<compile_context>
chip_gen: v6e
topology: v6e:2x2x1
jax: 0.10.0
libtpu: 0.0.40
codegen_flags: <defaults>
</compile_context>

<pallas_src>
import jax
import jax.numpy as jnp
from jax import lax
from jax.experimental import pallas as pl
from jax.experimental.pallas import tpu as pltpu

EPS = 1e-5

_IN_HW = 11                 # 11 -> blocks -> 4 -> maxpool2 -> 2 (linear1 = 128*2*2)
_WP = 16                    # common flat row pitch (multiple of 8)
_HP = 13                    # padded height of the largest stage (11 + 2)
_BASE = _HP * _WP           # rows per image in the common flat layout (208)
_SHIFT = _WP + 1            # flat offset of padded pixel (1, 1)

# (input spatial, Cin, Cout, pointwise k) per Block; cfg = [32, 64, 64, (128, 2)]
_BLOCK_CFG = [(11, 32, 32, 3), (9, 32, 64, 3), (7, 64, 64, 3), (5, 64, 128, 2)]
_HID = 256
_HEAD_N = 15                # 1 (cond) + 4 (offset) + 10 (landmarks)


def _ru8(n):
    return (n + 7) & ~7


def _build_geom(b_tile):
    stages = []
    for (h, cin, cout, k) in _BLOCK_CFG:
        ho = h - k + 1
        stages.append(dict(
            h=h, cin=cin, cout=cout, k=k, ho=ho,
            n_dw=(b_tile - 1) * _BASE + (h - 1) * _WP + h,
            n_pw=(b_tile - 1) * _BASE + (ho - 1) * _WP + ho))
    return dict(b_tile=b_tile, stages=stages,
                n_c1=(b_tile - 1) * _BASE + (_IN_HW - 1) * _WP + _IN_HW,
                n_f=stages[-1]['n_pw'])


# ----------------------------- fused Pallas kernel ---------------------------

def _make_kernel(geom, layout):
    bt = geom['b_tile']
    stages = geom['stages']
    n_c1 = geom['n_c1']

    def kernel(x_ref, mask_ref, wa_ref, wb_ref, wc_ref, out_ref,
               p1, p2, p3, p4, d1, d2, d3, d4, f_ref):
        p_refs = (p1, p2, p3, p4)
        d_refs = (d1, d2, d3, d4)
        blob_refs = (wa_ref, wb_ref, wc_ref)

        def wslice(name, r0, nr, nc):
            blob, off, _, _ = layout[name]
            return blob_refs[blob][pl.ds(off + r0, nr), pl.ds(0, nc)]

        # Zero only the pad-ring rows the depthwise convs actually read and the
        # big masked stores do not cover (two 17-row stores per stage).
        for st, p in zip(stages, p_refs):
            cin, h = st['cin'], st['h']
            p[pl.ds(0, _SHIFT), :] = jnp.zeros((_SHIFT, cin), jnp.float32)
            t0 = (bt - 1) * _BASE + h * _WP + h + 1
            p[pl.ds(t0, _WP + 1), :] = jnp.zeros((_WP + 1, cin), jnp.float32)

        def masked_store(dst_ref, val, n, mask_col):
            # One contiguous store per stage: the mask zeroes non-pixel rows so
            # the destination's zero padding comes for free.
            m = mask_ref[pl.ds(0, n), pl.ds(mask_col, 1)]
            dst_ref[pl.ds(_SHIFT, n), :] = jnp.where(m > 0.5, val, 0.0)

        # ---- layer1: one K=32 matmul over the im2col'd input + bias + ReLU ---
        acc = jnp.dot(x_ref[pl.ds(0, n_c1), :], wslice('conv1_w', 0, 32, 32),
                      preferred_element_type=jnp.float32)
        v = jnp.maximum(acc + wslice('conv1_b', 0, 1, 32), 0.0)
        masked_store(p1, v, n_c1, 0)

        # ---- 4 Blocks: dw 3x3 pad1 + bias + ReLU, then pw kxk pad0 + bias+ReLU
        for s, st in enumerate(stages):
            cin, cout, k = st['cin'], st['cout'], st['k']
            n_dw, n_pw = st['n_dw'], st['n_pw']
            src, dst = p_refs[s], d_refs[s]

            acc = None
            t = 0
            for dy in range(3):
                for dx in range(3):
                    term = (src[pl.ds(dy * _WP + dx, n_dw), :] *
                            wslice(f'dw{s}_w', t, 1, cin))
                    acc = term if acc is None else acc + term
                    t += 1
            dst[pl.ds(0, n_dw), :] = jnp.maximum(
                acc + wslice(f'dw{s}_b', 0, 1, cin), 0.0)

            acc = None
            t = 0
            for dy in range(k):
                for dx in range(k):
                    lhs = dst[pl.ds(dy * _WP + dx, n_pw), :]
                    rhs = wslice(f'pw{s}_w', t * cin, cin, cout)
                    term = jnp.dot(lhs, rhs, preferred_element_type=jnp.float32)
                    acc = term if acc is None else acc + term
                    t += 1
            v = jnp.maximum(acc + wslice(f'pw{s}_b', 0, 1, cout), 0.0)
            if s + 1 < len(stages):
                masked_store(p_refs[s + 1], v, n_pw, s + 1)
            else:
                f_ref[pl.ds(0, n_pw), :] = v          # head features (4x4x128)

        # ---- head: 2x2 maxpool (HWC flatten) + batched linear1 + PReLU + heads
        rows = []
        for b in range(bt):
            segs = []
            for i in range(2):
                for j in range(2):
                    r0 = b * _BASE + (2 * i) * _WP + 2 * j
                    m = jnp.maximum(
                        jnp.maximum(f_ref[pl.ds(r0, 1), :],
                                    f_ref[pl.ds(r0 + 1, 1), :]),
                        jnp.maximum(f_ref[pl.ds(r0 + _WP, 1), :],
                                    f_ref[pl.ds(r0 + _WP + 1, 1), :]))
                    segs.append(m)
            rows.append(jnp.concatenate(segs, axis=1))          # (1, 512)
        pooled = jnp.concatenate(rows, axis=0) if bt > 1 else rows[0]

        w1 = wslice('w1', 0, 512, _HID)                         # bf16
        b1 = wslice('b1', 0, 1, _HID).astype(jnp.float32)
        alpha = wslice('alpha', 0, 1, 1).astype(jnp.float32)
        h = jnp.dot(pooled.astype(jnp.bfloat16), w1,
                    preferred_element_type=jnp.float32) + b1
        h = jnp.where(h > 0, h, h * alpha)                      # PReLU (shared)
        z = (jnp.dot(h, wslice('heads_w', 0, _HID, _HEAD_N),
                     preferred_element_type=jnp.float32) +
             wslice('heads_b', 0, 1, _HEAD_N))
        col = lax.broadcasted_iota(jnp.int32, z.shape, 1)
        z = jnp.where(col == 0, 1.0 / (1.0 + jnp.exp(-z)), z)   # sigmoid(cond)
        out_ref[0] = z

    return kernel


# ----------------------------- weight preparation -----------------------------

def _pack_blob(items, width, dtype):
    layout, parts, off = {}, [], 0
    for name, a in items:
        a = a.astype(dtype)
        r, c = a.shape
        layout[name] = (off, r, c)
        if c < width:
            a = jnp.pad(a, ((0, 0), (0, width - c)))
        parts.append(a)
        off += r
    pad = _ru8(off) - off
    if pad:
        parts.append(jnp.zeros((pad, width), dtype))
    return jnp.concatenate(parts, axis=0), layout


def _fold_bn(bn):
    scale = bn['gamma'] * lax.rsqrt(bn['var'] + EPS)
    bias = bn['beta'] - bn['mean'] * scale
    return scale, bias


def _pack_weights(p):
    """Fold BN into weights, permute to kernel layouts, pack into 3 blobs."""
    itemsA, itemsB, itemsC = [], [], []

    s, b = _fold_bn(p['bn1'])
    w0 = p['layer1_w'].transpose(2, 3, 1, 0).reshape(27, 32) * s[None, :]
    w0 = jnp.pad(w0, ((0, 5), (0, 0)))               # pad K 27 -> 32 (zero rows)
    itemsA += [('conv1_w', w0), ('conv1_b', b.reshape(1, 32))]

    for i, blk in enumerate(p['blocks']):
        cin = blk['dw_w'].shape[0]
        cout, _, k, _ = blk['pw_w'].shape
        s, b = _fold_bn(blk['bn_dw'])
        dw = (blk['dw_w'].reshape(cin, 3, 3).transpose(1, 2, 0).reshape(9, cin)
              * s[None, :])
        itemsA += [(f'dw{i}_w', dw), (f'dw{i}_b', b.reshape(1, cin))]
        s, b = _fold_bn(blk['bn_pw'])
        pw = (blk['pw_w'].transpose(2, 3, 1, 0).reshape(k * k * cin, cout)
              * s[None, :])
        tgt = itemsB if cout > 64 else itemsA
        tgt += [(f'pw{i}_w', pw), (f'pw{i}_b', b.reshape(1, cout))]

    wh = jnp.concatenate([p['linear2_w'], p['linear3_w'], p['linear4_w']],
                         axis=0).T                                  # (256, 15)
    bh = jnp.concatenate([p['linear2_b'], p['linear3_b'], p['linear4_b']],
                         axis=0).reshape(1, _HEAD_N)
    itemsB += [('heads_w', wh), ('heads_b', bh)]

    # linear1 rows re-ordered from PyTorch's CHW flatten to the kernel's HWC
    # pooled order: row (i*2 + j)*128 + c  <-  PyTorch feature c*4 + i*2 + j.
    w1 = (p['linear1_w'].reshape(_HID, 128, 2, 2)
          .transpose(2, 3, 1, 0).reshape(512, _HID))
    itemsC += [('w1', w1), ('b1', p['linear1_b'].reshape(1, _HID)),
               ('alpha', jnp.full((1, _HID), p['prelu_a'], jnp.float32))]

    blobA, layA = _pack_blob(itemsA, 64, jnp.float32)
    blobB, layB = _pack_blob(itemsB, 128, jnp.float32)
    blobC, layC = _pack_blob(itemsC, 256, jnp.bfloat16)   # head weights in bf16

    layout = {}
    for bi, lay in enumerate((layA, layB, layC)):
        for name, (off, r, c) in lay.items():
            layout[name] = (bi, off, r, c)
    return (blobA, blobB, blobC), layout


# ---------------------------------- wrapper ----------------------------------

def onet_forward(params, x_nchw, b_tile=None):
    """ONet forward.  x_nchw: (B, 3, 11, 11) PyTorch-layout input."""
    x = jnp.transpose(x_nchw, (0, 2, 3, 1)).astype(jnp.float32)   # NHWC
    batch = x.shape[0]
    if b_tile is None:
        b_tile = 8 if batch >= 8 else 1     # ~0.5 MB scratch / image -> fits v7x
    b_pad = pl.cdiv(batch, b_tile) * b_tile
    num_tiles = b_pad // b_tile
    geom = _build_geom(b_tile)
    stages = geom['stages']

    # --- conv1 im2col (3x3 taps -> 27 ch, padded to 32) in the flat layout ----
    xp = jnp.pad(x, ((0, b_pad - batch), (1, 1), (1, 1), (0, 0)))
    patches = jnp.concatenate(
        [xp[:, dy:dy + _IN_HW, dx:dx + _IN_HW, :]
         for dy in range(3) for dx in range(3)], axis=-1)     # (b_pad, 11, 11, 27)
    patches = jnp.pad(patches, ((0, 0), (0, _HP - _IN_HW),
                                (0, _WP - _IN_HW), (0, 32 - 27)))
    x_flat = patches.reshape(b_pad * _BASE, 32)

    # --- per-row validity masks for the 4 padded-layout stores ----------------
    cols = []
    for h in (_IN_HW, stages[0]['ho'], stages[1]['ho'], stages[2]['ho']):
        m = jnp.zeros((_HP, _WP), jnp.float32).at[:h, :h].set(1.0)
        cols.append(jnp.tile(m.reshape(1, _BASE), (b_tile, 1)).reshape(-1))
    masks = jnp.stack(cols + [jnp.zeros_like(cols[0])] * 4, axis=1)  # (bt*208, 8)

    blobs, layout = _pack_weights(params)
    blobA, blobB, blobC = blobs

    in_specs = [
        pl.BlockSpec((b_tile * _BASE, 32), lambda i: (i, 0)),
        pl.BlockSpec(masks.shape, lambda i: (0, 0)),
        pl.BlockSpec(blobA.shape, lambda i: (0, 0)),
        pl.BlockSpec(blobB.shape, lambda i: (0, 0)),
        pl.BlockSpec(blobC.shape, lambda i: (0, 0)),
    ]
    out_spec = pl.BlockSpec((1, b_tile, _HEAD_N), lambda i: (i, 0, 0))

    scratch = [pltpu.VMEM((b_tile * _BASE, st['cin']), jnp.float32)
               for st in stages]
    scratch += [pltpu.VMEM((_ru8(st['n_dw']), st['cin']), jnp.float32)
                for st in stages]
    scratch += [pltpu.VMEM((_ru8(geom['n_f']), 128), jnp.float32)]

    # --- VMEM budget from actual scratch + double-buffered IO -----------------
    scratch_elems = (sum(b_tile * _BASE * st['cin'] for st in stages) +
                     sum(_ru8(st['n_dw']) * st['cin'] for st in stages) +
                     _ru8(geom['n_f']) * 128)
    io_bytes = (b_tile * _BASE * 32 * 4 + masks.size * 4 +
                blobA.size * 4 + blobB.size * 4 + blobC.size * 2 +
                b_tile * _HEAD_N * 4)
    vmem_limit = int(scratch_elems * 4 + 2 * io_bytes + 8 * 1024 * 1024)

    flops = 2 * geom['n_c1'] * 32 * 32
    for st in stages:
        flops += 2 * st['n_dw'] * 9 * st['cin']
        flops += 2 * st['n_pw'] * (st['k'] ** 2) * st['cin'] * st['cout']
    flops += 2 * b_tile * (512 * _HID + _HID * _HEAD_N)
    flops *= num_tiles

    out = pl.pallas_call(
        _make_kernel(geom, layout),
        out_shape=jax.ShapeDtypeStruct((num_tiles, b_tile, _HEAD_N), jnp.float32),
        grid_spec=pltpu.PrefetchScalarGridSpec(
            num_scalar_prefetch=0,
            grid=(num_tiles,),
            in_specs=in_specs,
            out_specs=out_spec,
            scratch_shapes=scratch),
        compiler_params=pltpu.CompilerParams(
            dimension_semantics=("parallel",),
            vmem_limit_bytes=vmem_limit),
        cost_estimate=pl.CostEstimate(flops=int(flops),
                                      transcendentals=int(b_pad * _HEAD_N),
                                      bytes_accessed=int(io_bytes * num_tiles)),
    )(x_flat, masks, blobA, blobB, blobC)

    out = out.reshape(b_pad, _HEAD_N)[:batch]
    return out[:, 0:1], out[:, 1:5], out[:, 5:15]


# ------------------------------ parameter creation ----------------------------

def init_params(key):
    """Synthetic parameters in PyTorch layouts (folded/permuted in the wrapper)."""
    keys = iter(jax.random.split(key, 64))

    def nrm(shape, fan_in):
        return (jax.random.normal(next(keys), shape) /
                jnp.sqrt(float(fan_in))).astype(jnp.float32)

    def unif(shape):
        return jax.random.uniform(next(keys), shape, minval=-0.1,
                                  maxval=0.1).astype(jnp.float32)

    def bn(c):
        k1, k2, k3, k4 = (next(keys) for _ in range(4))
        return dict(
            gamma=jax.random.uniform(k1, (c,), minval=0.5, maxval=1.5
                                     ).astype(jnp.float32),
            beta=(0.1 * jax.random.normal(k2, (c,))).astype(jnp.float32),
            mean=(0.1 * jax.random.normal(k3, (c,))).astype(jnp.float32),
            var=jax.random.uniform(k4, (c,), minval=0.5, maxval=1.5
                                   ).astype(jnp.float32))

    p = {}
    p['layer1_w'] = nrm((32, 3, 3, 3), 27)
    p['bn1'] = bn(32)
    p['blocks'] = []
    for (_, cin, cout, k) in _BLOCK_CFG:
        p['blocks'].append(dict(
            dw_w=nrm((cin, 1, 3, 3), 9), bn_dw=bn(cin),
            pw_w=nrm((cout, cin, k, k), cin * k * k), bn_pw=bn(cout)))
    p['linear1_w'] = nrm((_HID, 512), 512)
    p['linear1_b'] = unif((_HID,))
    p['prelu_a'] = jnp.float32(0.25)                 # nn.PReLU() default
    p['linear2_w'] = nrm((1, _HID), _HID)
    p['linear2_b'] = unif((1,))
    p['linear3_w'] = nrm((4, _HID), _HID)
    p['linear3_b'] = unif((4,))
    p['linear4_w'] = nrm((10, _HID), _HID)
    p['linear4_b'] = unif((10,))
    return p


# ------------------------------------ main ------------------------------------

if __name__ == "__main__":
    # Spatial size 11 so the trace 11 -> (blocks) -> 4 -> maxpool2 -> 2 matches
    # linear1's 128*2*2 input features.
    key = jax.random.PRNGKey(0)
    kx, kp = jax.random.split(key)
    x = jax.random.normal(kx, (2, 3, _IN_HW, _IN_HW), jnp.float32)
    params = init_params(kp)

    fwd = jax.jit(lambda xx: onet_forward(params, xx))
    cond, offset, ldmk_off = fwd(x)
    jax.block_until_ready((cond, offset, ldmk_off))

    assert cond.shape == (2, 1)
    assert offset.shape == (2, 4)
    assert ldmk_off.shape == (2, 10)
    assert bool(jnp.all(jnp.isfinite(cond) & (cond >= 0.0) & (cond <= 1.0)))
    assert bool(jnp.all(jnp.isfinite(offset)))
    assert bool(jnp.all(jnp.isfinite(ldmk_off)))
    print("KERNEL_OK")
</pallas_src>

<mosaic_0001>
module attributes {stable_mosaic.version = 11 : i64} {
  func.func @kernel(%arg0: i32, %arg1: memref<208x32xf32, #tpu.memory_space<vmem>>, %arg2: memref<208x8xf32, #tpu.memory_space<vmem>>, %arg3: memref<1232x64xf32, #tpu.memory_space<vmem>>, %arg4: memref<520x128xf32, #tpu.memory_space<vmem>>, %arg5: memref<520x256xbf16, #tpu.memory_space<vmem>>, %arg6: memref<1x1x15xf32, #tpu.memory_space<vmem>>, %arg7: memref<208x32xf32, #tpu.memory_space<vmem>>, %arg8: memref<208x32xf32, #tpu.memory_space<vmem>>, %arg9: memref<208x64xf32, #tpu.memory_space<vmem>>, %arg10: memref<208x64xf32, #tpu.memory_space<vmem>>, %arg11: memref<176x32xf32, #tpu.memory_space<vmem>>, %arg12: memref<144x32xf32, #tpu.memory_space<vmem>>, %arg13: memref<104x64xf32, #tpu.memory_space<vmem>>, %arg14: memref<72x64xf32, #tpu.memory_space<vmem>>, %arg15: memref<56x128xf32, #tpu.memory_space<vmem>>) attributes {dimension_semantics = [#tpu.dimension_semantics<parallel>], iteration_bounds = array<i64: 2>, scalar_prefetch = 0 : i64, scratch_operands = 9 : i64, tpu.core_type = #tpu.core_type<tc>, window_params = [{transform_indices = @transform_0, window_bounds = array<i64: 208, 32>}, {pipeline_mode = #tpu.pipeline_mode<synchronous>, transform_indices = @transform_1, window_bounds = array<i64: 208, 8>}, {pipeline_mode = #tpu.pipeline_mode<synchronous>, transform_indices = @transform_2, window_bounds = array<i64: 1232, 64>}, {pipeline_mode = #tpu.pipeline_mode<synchronous>, transform_indices = @transform_3, window_bounds = array<i64: 520, 128>}, {pipeline_mode = #tpu.pipeline_mode<synchronous>, transform_indices = @transform_4, window_bounds = array<i64: 520, 256>}, {transform_indices = @transform_5, window_bounds = array<i64: 1, 1, 15>}]} {
    %cst = arith.constant 0.000000e+00 : f32
    %0 = vector.broadcast %cst : f32 to vector<17x32xf32>
    %c0 = arith.constant 0 : index
    %c0_0 = arith.constant 0 : index
    %1 = vector.load %arg7[%c0, %c0_0] : memref<208x32xf32, #tpu.memory_space<vmem>>, vector<17x32xf32>
    tpu.vector_store %arg7[%c0, %c0_0], %0 {strides = array<i32>} : memref<208x32xf32, #tpu.memory_space<vmem>>, vector<17x32xf32>,
    %cst_1 = arith.constant 0.000000e+00 : f32
    %2 = vector.broadcast %cst_1 : f32 to vector<17x32xf32>
    %c188 = arith.constant 188 : index
    %c0_2 = arith.constant 0 : index
    %3 = vector.load %arg7[%c188, %c0_2] : memref<208x32xf32, #tpu.memory_space<vmem>>, vector<17x32xf32>
    tpu.vector_store %arg7[%c188, %c0_2], %2 {strides = array<i32>} : memref<208x32xf32, #tpu.memory_space<vmem>>, vector<17x32xf32>,
    %cst_3 = arith.constant 0.000000e+00 : f32
    %4 = vector.broadcast %cst_3 : f32 to vector<17x32xf32>
    %c0_4 = arith.constant 0 : index
    %c0_5 = arith.constant 0 : index
    %5 = vector.load %arg8[%c0_4, %c0_5] : memref<208x32xf32, #tpu.memory_space<vmem>>, vector<17x32xf32>
    tpu.vector_store %arg8[%c0_4, %c0_5], %4 {strides = array<i32>} : memref<208x32xf32, #tpu.memory_space<vmem>>, vector<17x32xf32>,
    %cst_6 = arith.constant 0.000000e+00 : f32
    %6 = vector.broadcast %cst_6 : f32 to vector<17x32xf32>
    %c154 = arith.constant 154 : index
    %c0_7 = arith.constant 0 : index
    %7 = vector.load %arg8[%c154, %c0_7] : memref<208x32xf32, #tpu.memory_space<vmem>>, vector<17x32xf32>
    tpu.vector_store %arg8[%c154, %c0_7], %6 {strides = array<i32>} : memref<208x32xf32, #tpu.memory_space<vmem>>, vector<17x32xf32>,
    %cst_8 = arith.constant 0.000000e+00 : f32
    %8 = vector.broadcast %cst_8 : f32 to vector<17x64xf32>
    %c0_9 = arith.constant 0 : index
    %c0_10 = arith.constant 0 : index
    %9 = vector.load %arg9[%c0_9, %c0_10] : memref<208x64xf32, #tpu.memory_space<vmem>>, vector<17x64xf32>
    tpu.vector_store %arg9[%c0_9, %c0_10], %8 {strides = array<i32>} : memref<208x64xf32, #tpu.memory_space<vmem>>, vector<17x64xf32>,
    %cst_11 = arith.constant 0.000000e+00 : f32
    %10 = vector.broadcast %cst_11 : f32 to vector<17x64xf32>
    %c120 = arith.constant 120 : index
    %c0_12 = arith.constant 0 : index
    %11 = vector.load %arg9[%c120, %c0_12] : memref<208x64xf32, #tpu.memory_space<vmem>>, vector<17x64xf32>
    tpu.vector_store %arg9[%c120, %c0_12], %10 {strides = array<i32>} : memref<208x64xf32, #tpu.memory_space<vmem>>, vector<17x64xf32>,
    %cst_13 = arith.constant 0.000000e+00 : f32
    %12 = vector.broadcast %cst_13 : f32 to vector<17x64xf32>
    %c0_14 = arith.constant 0 : index
    %c0_15 = arith.constant 0 : index
    %13 = vector.load %arg10[%c0_14, %c0_15] : memref<208x64xf32, #tpu.memory_space<vmem>>, vector<17x64xf32>
    tpu.vector_store %arg10[%c0_14, %c0_15], %12 {strides = array<i32>} : memref<208x64xf32, #tpu.memory_space<vmem>>, vector<17x64xf32>,
    %cst_16 = arith.constant 0.000000e+00 : f32
    %14 = vector.broadcast %cst_16 : f32 to vector<17x64xf32>
    %c86 = arith.constant 86 : index
    %c0_17 = arith.constant 0 : index
    %15 = vector.load %arg10[%c86, %c0_17] : memref<208x64xf32, #tpu.memory_space<vmem>>, vector<17x64xf32>
    tpu.vector_store %arg10[%c86, %c0_17], %14 {strides = array<i32>} : memref<208x64xf32, #tpu.memory_space<vmem>>, vector<17x64xf32>,
    %c0_18 = arith.constant 0 : index
    %c0_19 = arith.constant 0 : index
    %16 = vector.load %arg1[%c0_18, %c0_19] : memref<208x32xf32, #tpu.memory_space<vmem>>, vector<171x32xf32>
    %c0_20 = arith.constant 0 : index
    %c0_21 = arith.constant 0 : index
    %17 = vector.load %arg3[%c0_20, %c0_21] : memref<1232x64xf32, #tpu.memory_space<vmem>>, vector<32x32xf32>
    %cst_22 = arith.constant dense<0.000000e+00> : vector<171x32xf32>
    %18 = tpu.matmul %16, %17, %cst_22 {dimension_numbers = #tpu.dot_dimension_numbers<[1], [0], [0], [1], [0, 0, 1, 1], [], []>} : vector<171x32xf32>, vector<32x32xf32>, vector<171x32xf32> -> vector<171x32xf32>
    %c32 = arith.constant 32 : index
    %c0_23 = arith.constant 0 : index
    %19 = vector.load %arg3[%c32, %c0_23] : memref<1232x64xf32, #tpu.memory_space<vmem>>, vector<1x32xf32>
    %20 = vector.broadcast %19 : vector<1x32xf32> to vector<171x32xf32>
    %21 = arith.addf %18, %20 : vector<171x32xf32>
    %cst_24 = arith.constant 0.000000e+00 : f32
    %22 = vector.broadcast %cst_24 : f32 to vector<171x32xf32>
    %23 = arith.maximumf %21, %22 : vector<171x32xf32>
    %c0_25 = arith.constant 0 : index
    %c0_26 = arith.constant 0 : index
    %24 = vector.load %arg2[%c0_25, %c0_26] : memref<208x8xf32, #tpu.memory_space<vmem>>, vector<171x1xf32>
    %cst_27 = arith.constant 5.000000e-01 : f32
    %25 = vector.broadcast %cst_27 : f32 to vector<171x1xf32>
    %26 = arith.cmpf ogt, %24, %25 : vector<171x1xf32>
    %cst_28 = arith.constant 0.000000e+00 : f32
    %27 = vector.shape_cast %26 : vector<171x1xi1> to vector<171x1xi1>
    %28 = vector.broadcast %27 : vector<171x1xi1> to vector<171x32xi1>
    %29 = vector.broadcast %cst_28 : f32 to vector<171x32xf32>
    %30 = arith.select %28, %23, %29 : vector<171x32xi1>, vector<171x32xf32>
    %c17 = arith.constant 17 : index
    %c0_29 = arith.constant 0 : index
    %31 = vector.load %arg7[%c17, %c0_29] : memref<208x32xf32, #tpu.memory_space<vmem>>, vector<171x32xf32>
    tpu.vector_store %arg7[%c17, %c0_29], %30 {strides = array<i32>} : memref<208x32xf32, #tpu.memory_space<vmem>>, vector<171x32xf32>,
    %c0_30 = arith.constant 0 : index
    %c0_31 = arith.constant 0 : index
    %32 = vector.load %arg7[%c0_30, %c0_31] : memref<208x32xf32, #tpu.memory_space<vmem>>, vector<171x32xf32>
    %c33 = arith.constant 33 : index
    %c0_32 = arith.constant 0 : index
    %33 = vector.load %arg3[%c33, %c0_32] : memref<1232x64xf32, #tpu.memory_space<vmem>>, vector<1x32xf32>
    %34 = vector.broadcast %33 : vector<1x32xf32> to vector<171x32xf32>
    %35 = arith.mulf %32, %34 : vector<171x32xf32>
    %c1 = arith.constant 1 : index
    %c0_33 = arith.constant 0 : index
    %36 = vector.load %arg7[%c1, %c0_33] : memref<208x32xf32, #tpu.memory_space<vmem>>, vector<171x32xf32>
    %c34 = arith.constant 34 : index
    %c0_34 = arith.constant 0 : index
    %37 = vector.load %arg3[%c34, %c0_34] : memref<1232x64xf32, #tpu.memory_space<vmem>>, vector<1x32xf32>
    %38 = vector.broadcast %37 : vector<1x32xf32> to vector<171x32xf32>
    %39 = arith.mulf %36, %38 : vector<171x32xf32>
    %40 = arith.addf %35, %39 : vector<171x32xf32>
    %c2 = arith.constant 2 : index
    %c0_35 = arith.constant 0 : index
    %41 = vector.load %arg7[%c2, %c0_35] : memref<208x32xf32, #tpu.memory_space<vmem>>, vector<171x32xf32>
    %c35 = arith.constant 35 : index
    %c0_36 = arith.constant 0 : index
    %42 = vector.load %arg3[%c35, %c0_36] : memref<1232x64xf32, #tpu.memory_space<vmem>>, vector<1x32xf32>
    %43 = vector.broadcast %42 : vector<1x32xf32> to vector<171x32xf32>
    %44 = arith.mulf %41, %43 : vector<171x32xf32>
    %45 = arith.addf %40, %44 : vector<171x32xf32>
    %c16 = arith.constant 16 : index
    %c0_37 = arith.constant 0 : index
    %46 = vector.load %arg7[%c16, %c0_37] : memref<208x32xf32, #tpu.memory_space<vmem>>, vector<171x32xf32>
    %c36 = arith.constant 36 : index
    %c0_38 = arith.constant 0 : index
    %47 = vector.load %arg3[%c36, %c0_38] : memref<1232x64xf32, #tpu.memory_space<vmem>>, vector<1x32xf32>
    %48 = vector.broadcast %47 : vector<1x32xf32> to vector<171x32xf32>
    %49 = arith.mulf %46, %48 : vector<171x32xf32>
    %50 = arith.addf %45, %49 : vector<171x32xf32>
    %c17_39 = arith.constant 17 : index
    %c0_40 = arith.constant 0 : index
    %51 = vector.load %arg7[%c17_39, %c0_40] : memref<208x32xf32, #tpu.memory_space<vmem>>, vector<171x32xf32>
    %c37 = arith.constant 37 : index
    %c0_41 = arith.constant 0 : index
    %52 = vector.load %arg3[%c37, %c0_41] : memref<1232x64xf32, #tpu.memory_space<vmem>>, vector<1x32xf32>
    %53 = vector.broadcast %52 : vector<1x32xf32> to vector<171x32xf32>
    %54 = arith.mulf %51, %53 : vector<171x32xf32>
    %55 = arith.addf %50, %54 : vector<171x32xf32>
    %c18 = arith.constant 18 : index
    %c0_42 = arith.constant 0 : index
    %56 = vector.load %arg7[%c18, %c0_42] : memref<208x32xf32, #tpu.memory_space<vmem>>, vector<171x32xf32>
    %c38 = arith.constant 38 : index
    %c0_43 = arith.constant 0 : index
    %57 = vector.load %arg3[%c38, %c0_43] : memref<1232x64xf32, #tpu.memory_space<vmem>>, vector<1x32xf32>
    %58 = vector.broadcast %57 : vector<1x32xf32> to vector<171x32xf32>
    %59 = arith.mulf %56, %58 : vector<171x32xf32>
    %60 = arith.addf %55, %59 : vector<171x32xf32>
    %c32_44 = arith.constant 32 : index
    %c0_45 = arith.constant 0 : index
    %61 = vector.load %arg7[%c32_44, %c0_45] : memref<208x32xf32, #tpu.memory_space<vmem>>, vector<171x32xf32>
    %c39 = arith.constant 39 : index
    %c0_46 = arith.constant 0 : index
    %62 = vector.load %arg3[%c39, %c0_46] : memref<1232x64xf32, #tpu.memory_space<vmem>>, vector<1x32xf32>
    %63 = vector.broadcast %62 : vector<1x32xf32> to vector<171x32xf32>
    %64 = arith.mulf %61, %63 : vector<171x32xf32>
    %65 = arith.addf %60, %64 : vector<171x32xf32>
    %c33_47 = arith.constant 33 : index
    %c0_48 = arith.constant 0 : index
    %66 = vector.load %arg7[%c33_47, %c0_48] : memref<208x32xf32, #tpu.memory_space<vmem>>, vector<171x32xf32>
    %c40 = arith.constant 40 : index
    %c0_49 = arith.constant 0 : index
    %67 = vector.load %arg3[%c40, %c0_49] : memref<1232x64xf32, #tpu.memory_space<vmem>>, vector<1x32xf32>
    %68 = vector.broadcast %67 : vector<1x32xf32> to vector<171x32xf32>
    %69 = arith.mulf %66, %68 : vector<171x32xf32>
    %70 = arith.addf %65, %69 : vector<171x32xf32>
    %c34_50 = arith.constant 34 : index
    %c0_51 = arith.constant 0 : index
    %71 = vector.load %arg7[%c34_50, %c0_51] : memref<208x32xf32, #tpu.memory_space<vmem>>, vector<171x32xf32>
    %c41 = arith.constant 41 : index
    %c0_52 = arith.constant 0 : index
    %72 = vector.load %arg3[%c41, %c0_52] : memref<1232x64xf32, #tpu.memory_space<vmem>>, vector<1x32xf32>
    %73 = vector.broadcast %72 : vector<1x32xf32> to vector<171x32xf32>
    %74 = arith.mulf %71, %73 : vector<171x32xf32>
    %75 = arith.addf %70, %74 : vector<171x32xf32>
    %c42 = arith.constant 42 : index
    %c0_53 = arith.constant 0 : index
    %76 = vector.load %arg3[%c42, %c0_53] : memref<1232x64xf32, #tpu.memory_space<vmem>>, vector<1x32xf32>
    %77 = vector.broadcast %76 : vector<1x32xf32> to vector<171x32xf32>
    %78 = arith.addf %75, %77 : vector<171x32xf32>
    %cst_54 = arith.constant 0.000000e+00 : f32
    %79 = vector.broadcast %cst_54 : f32 to vector<171x32xf32>
    %80 = arith.maximumf %78, %79 : vector<171x32xf32>
    %c0_55 = arith.constant 0 : index
    %c0_56 = arith.constant 0 : index
    %81 = vector.load %arg11[%c0_55, %c0_56] : memref<176x32xf32, #tpu.memory_space<vmem>>, vector<171x32xf32>
    tpu.vector_store %arg11[%c0_55, %c0_56], %80 {strides = array<i32>} : memref<176x32xf32, #tpu.memory_space<vmem>>, vector<171x32xf32>,
    %c0_57 = arith.constant 0 : index
    %c0_58 = arith.constant 0 : index
    %82 = vector.load %arg11[%c0_57, %c0_58] : memref<176x32xf32, #tpu.memory_space<vmem>>, vector<137x32xf32>
    %c43 = arith.constant 43 : index
    %c0_59 = arith.constant 0 : index
    %83 = vector.load %arg3[%c43, %c0_59] : memref<1232x64xf32, #tpu.memory_space<vmem>>, vector<32x32xf32>
    %cst_60 = arith.constant dense<0.000000e+00> : vector<137x32xf32>
    %84 = tpu.matmul %82, %83, %cst_60 {dimension_numbers = #tpu.dot_dimension_numbers<[1], [0], [0], [1], [0, 0, 1, 1], [], []>} : vector<137x32xf32>, vector<32x32xf32>, vector<137x32xf32> -> vector<137x32xf32>
    %c1_61 = arith.constant 1 : index
    %c0_62 = arith.constant 0 : index
    %85 = vector.load %arg11[%c1_61, %c0_62] : memref<176x32xf32, #tpu.memory_space<vmem>>, vector<137x32xf32>
    %c75 = arith.constant 75 : index
    %c0_63 = arith.constant 0 : index
    %86 = vector.load %arg3[%c75, %c0_63] : memref<1232x64xf32, #tpu.memory_space<vmem>>, vector<32x32xf32>
    %cst_64 = arith.constant dense<0.000000e+00> : vector<137x32xf32>
    %87 = tpu.matmul %85, %86, %cst_64 {dimension_numbers = #tpu.dot_dimension_numbers<[1], [0], [0], [1], [0, 0, 1, 1], [], []>} : vector<137x32xf32>, vector<32x32xf32>, vector<137x32xf32> -> vector<137x32xf32>
    %88 = arith.addf %84, %87 : vector<137x32xf32>
    %c2_65 = arith.constant 2 : index
    %c0_66 = arith.constant 0 : index
    %89 = vector.load %arg11[%c2_65, %c0_66] : memref<176x32xf32, #tpu.memory_space<vmem>>, vector<137x32xf32>
    %c107 = arith.constant 107 : index
    %c0_67 = arith.constant 0 : index
    %90 = vector.load %arg3[%c107, %c0_67] : memref<1232x64xf32, #tpu.memory_space<vmem>>, vector<32x32xf32>
    %cst_68 = arith.constant dense<0.000000e+00> : vector<137x32xf32>
    %91 = tpu.matmul %89, %90, %cst_68 {dimension_numbers = #tpu.dot_dimension_numbers<[1], [0], [0], [1], [0, 0, 1, 1], [], []>} : vector<137x32xf32>, vector<32x32xf32>, vector<137x32xf32> -> vector<137x32xf32>
    %92 = arith.addf %88, %91 : vector<137x32xf32>
    %c16_69 = arith.constant 16 : index
    %c0_70 = arith.constant 0 : index
    %93 = vector.load %arg11[%c16_69, %c0_70] : memref<176x32xf32, #tpu.memory_space<vmem>>, vector<137x32xf32>
    %c139 = arith.constant 139 : index
    %c0_71 = arith.constant 0 : index
    %94 = vector.load %arg3[%c139, %c0_71] : memref<1232x64xf32, #tpu.memory_space<vmem>>, vector<32x32xf32>
    %cst_72 = arith.constant dense<0.000000e+00> : vector<137x32xf32>
    %95 = tpu.matmul %93, %94, %cst_72 {dimension_numbers = #tpu.dot_dimension_numbers<[1], [0], [0], [1], [0, 0, 1, 1], [], []>} : vector<137x32xf32>, vector<32x32xf32>, vector<137x32xf32> -> vector<137x32xf32>
    %96 = arith.addf %92, %95 : vector<137x32xf32>
    %c17_73 = arith.constant 17 : index
    %c0_74 = arith.constant 0 : index
    %97 = vector.load %arg11[%c17_73, %c0_74] : memref<176x32xf32, #tpu.memory_space<vmem>>, vector<137x32xf32>
    %c171 = arith.constant 171 : index
    %c0_75 = arith.constant 0 : index
    %98 = vector.load %arg3[%c171, %c0_75] : memref<1232x64xf32, #tpu.memory_space<vmem>>, vector<32x32xf32>
    %cst_76 = arith.constant dense<0.000000e+00> : vector<137x32xf32>
    %99 = tpu.matmul %97, %98, %cst_76 {dimension_numbers = #tpu.dot_dimension_numbers<[1], [0], [0], [1], [0, 0, 1, 1], [], []>} : vector<137x32xf32>, vector<32x32xf32>, vector<137x32xf32> -> vector<137x32xf32>
    %100 = arith.addf %96, %99 : vector<137x32xf32>
    %c18_77 = arith.constant 18 : index
    %c0_78 = arith.constant 0 : index
    %101 = vector.load %arg11[%c18_77, %c0_78] : memref<176x32xf32, #tpu.memory_space<vmem>>, vector<137x32xf32>
    %c203 = arith.constant 203 : index
    %c0_79 = arith.constant 0 : index
    %102 = vector.load %arg3[%c203, %c0_79] : memref<1232x64xf32, #tpu.memory_space<vmem>>, vector<32x32xf32>
    %cst_80 = arith.constant dense<0.000000e+00> : vector<137x32xf32>
    %103 = tpu.matmul %101, %102, %cst_80 {dimension_numbers = #tpu.dot_dimension_numbers<[1], [0], [0], [1], [0, 0, 1, 1], [], []>} : vector<137x32xf32>, vector<32x32xf32>, vector<137x32xf32> -> vector<137x32xf32>
    %104 = arith.addf %100, %103 : vector<137x32xf32>
    %c32_81 = arith.constant 32 : index
    %c0_82 = arith.constant 0 : index
    %105 = vector.load %arg11[%c32_81, %c0_82] : memref<176x32xf32, #tpu.memory_space<vmem>>, vector<137x32xf32>
    %c235 = arith.constant 235 : index
    %c0_83 = arith.constant 0 : index
    %106 = vector.load %arg3[%c235, %c0_83] : memref<1232x64xf32, #tpu.memory_space<vmem>>, vector<32x32xf32>
    %cst_84 = arith.constant dense<0.000000e+00> : vector<137x32xf32>
    %107 = tpu.matmul %105, %106, %cst_84 {dimension_numbers = #tpu.dot_dimension_numbers<[1], [0], [0], [1], [0, 0, 1, 1], [], []>} : vector<137x32xf32>, vector<32x32xf32>, vector<137x32xf32> -> vector<137x32xf32>
    %108 = arith.addf %104, %107 : vector<137x32xf32>
    %c33_85 = arith.constant 33 : index
    %c0_86 = arith.constant 0 : index
    %109 = vector.load %arg11[%c33_85, %c0_86] : memref<176x32xf32, #tpu.memory_space<vmem>>, vector<137x32xf32>
    %c267 = arith.constant 267 : index
    %c0_87 = arith.constant 0 : index
    %110 = vector.load %arg3[%c267, %c0_87] : memref<1232x64xf32, #tpu.memory_space<vmem>>, vector<32x32xf32>
    %cst_88 = arith.constant dense<0.000000e+00> : vector<137x32xf32>
    %111 = tpu.matmul %109, %110, %cst_88 {dimension_numbers = #tpu.dot_dimension_numbers<[1], [0], [0], [1], [0, 0, 1, 1], [], []>} : vector<137x32xf32>, vector<32x32xf32>, vector<137x32xf32> -> vector<137x32xf32>
    %112 = arith.addf %108, %111 : vector<137x32xf32>
    %c34_89 = arith.constant 34 : index
    %c0_90 = arith.constant 0 : index
    %113 = vector.load %arg11[%c34_89, %c0_90] : memref<176x32xf32, #tpu.memory_space<vmem>>, vector<137x32xf32>
    %c299 = arith.constant 299 : index
    %c0_91 = arith.constant 0 : index
    %114 = vector.load %arg3[%c299, %c0_91] : memref<1232x64xf32, #tpu.memory_space<vmem>>, vector<32x32xf32>
    %cst_92 = arith.constant dense<0.000000e+00> : vector<137x32xf32>
    %115 = tpu.matmul %113, %114, %cst_92 {dimension_numbers = #tpu.dot_dimension_numbers<[1], [0], [0], [1], [0, 0, 1, 1], [], []>} : vector<137x32xf32>, vector<32x32xf32>, vector<137x32xf32> -> vector<137x32xf32>
    %116 = arith.addf %112, %115 : vector<137x32xf32>
    %c331 = arith.constant 331 : index
    %c0_93 = arith.constant 0 : index
    %117 = vector.load %arg3[%c331, %c0_93] : memref<1232x64xf32, #tpu.memory_space<vmem>>, vector<1x32xf32>
    %118 = vector.broadcast %117 : vector<1x32xf32> to vector<137x32xf32>
    %119 = arith.addf %116, %118 : vector<137x32xf32>
    %cst_94 = arith.constant 0.000000e+00 : f32
    %120 = vector.broadcast %cst_94 : f32 to vector<137x32xf32>
    %121 = arith.maximumf %119, %120 : vector<137x32xf32>
    %c0_95 = arith.constant 0 : index
    %c1_96 = arith.constant 1 : index
    %122 = vector.load %arg2[%c0_95, %c1_96] : memref<208x8xf32, #tpu.memory_space<vmem>>, vector<137x1xf32>
    %cst_97 = arith.constant 5.000000e-01 : f32
    %123 = vector.broadcast %cst_97 : f32 to vector<137x1xf32>
    %124 = arith.cmpf ogt, %122, %123 : vector<137x1xf32>
    %cst_98 = arith.constant 0.000000e+00 : f32
    %125 = vector.shape_cast %124 : vector<137x1xi1> to vector<137x1xi1>
    %126 = vector.broadcast %125 : vector<137x1xi1> to vector<137x32xi1>
    %127 = vector.broadcast %cst_98 : f32 to vector<137x32xf32>
    %128 = arith.select %126, %121, %127 : vector<137x32xi1>, vector<137x32xf32>
    %c17_99 = arith.constant 17 : index
    %c0_100 = arith.constant 0 : index
    %129 = vector.load %arg8[%c17_99, %c0_100] : memref<208x32xf32, #tpu.memory_space<vmem>>, vector<137x32xf32>
    tpu.vector_store %arg8[%c17_99, %c0_100], %128 {strides = array<i32>} : memref<208x32xf32, #tpu.memory_space<vmem>>, vector<137x32xf32>,
    %c0_101 = arith.constant 0 : index
    %c0_102 = arith.constant 0 : index
    %130 = vector.load %arg8[%c0_101, %c0_102] : memref<208x32xf32, #tpu.memory_space<vmem>>, vector<137x32xf32>
    %c332 = arith.constant 332 : index
    %c0_103 = arith.constant 0 : index
    %131 = vector.load %arg3[%c332, %c0_103] : memref<1232x64xf32, #tpu.memory_space<vmem>>, vector<1x32xf32>
    %132 = vector.broadcast %131 : vector<1x32xf32> to vector<137x32xf32>
    %133 = arith.mulf %130, %132 : vector<137x32xf32>
    %c1_104 = arith.constant 1 : index
    %c0_105 = arith.constant 0 : index
    %134 = vector.load %arg8[%c1_104, %c0_105] : memref<208x32xf32, #tpu.memory_space<vmem>>, vector<137x32xf32>
    %c333 = arith.constant 333 : index
    %c0_106 = arith.constant 0 : index
    %135 = vector.load %arg3[%c333, %c0_106] : memref<1232x64xf32, #tpu.memory_space<vmem>>, vector<1x32xf32>
    %136 = vector.broadcast %135 : vector<1x32xf32> to vector<137x32xf32>
    %137 = arith.mulf %134, %136 : vector<137x32xf32>
    %138 = arith.addf %133, %137 : vector<137x32xf32>
    %c2_107 = arith.constant 2 : index
    %c0_108 = arith.constant 0 : index
    %139 = vector.load %arg8[%c2_107, %c0_108] : memref<208x32xf32, #tpu.memory_space<vmem>>, vector<137x32xf32>
    %c334 = arith.constant 334 : index
    %c0_109 = arith.constant 0 : index
    %140 = vector.load %arg3[%c334, %c0_109] : memref<1232x64xf32, #tpu.memory_space<vmem>>, vector<1x32xf32>
    %141 = vector.broadcast %140 : vector<1x32xf32> to vector<137x32xf32>
    %142 = arith.mulf %139, %141 : vector<137x32xf32>
    %143 = arith.addf %138, %142 : vector<137x32xf32>
    %c16_110 = arith.constant 16 : index
    %c0_111 = arith.constant 0 : index
    %144 = vector.load %arg8[%c16_110, %c0_111] : memref<208x32xf32, #tpu.memory_space<vmem>>, vector<137x32xf32>
    %c335 = arith.constant 335 : index
    %c0_112 = arith.constant 0 : index
    %145 = vector.load %arg3[%c335, %c0_112] : memref<1232x64xf32, #tpu.memory_space<vmem>>, vector<1x32xf32>
    %146 = vector.broadcast %145 : vector<1x32xf32> to vector<137x32xf32>
    %147 = arith.mulf %144, %146 : vector<137x32xf32>
    %148 = arith.addf %143, %147 : vector<137x32xf32>
    %c17_113 = arith.constant 17 : index
    %c0_114 = arith.constant 0 : index
    %149 = vector.load %arg8[%c17_113, %c0_114] : memref<208x32xf32, #tpu.memory_space<vmem>>, vector<137x32xf32>
    %c336 = arith.constant 336 : index
    %c0_115 = arith.constant 0 : index
    %150 = vector.load %arg3[%c336, %c0_115] : memref<1232x64xf32, #tpu.memory_space<vmem>>, vector<1x32xf32>
    %151 = vector.broadcast %150 : vector<1x32xf32> to vector<137x32xf32>
    %152 = arith.mulf %149, %151 : vector<137x32xf32>
    %153 = arith.addf %148, %152 : vector<137x32xf32>
    %c18_116 = arith.constant 18 : index
    %c0_117 = arith.constant 0 : index
    %154 = vector.load %arg8[%c18_116, %c0_117] : memref<208x32xf32, #tpu.memory_space<vmem>>, vector<137x32xf32>
    %c337 = arith.constant 337 : index
    %c0_118 = arith.constant 0 : index
    %155 = vector.load %arg3[%c337, %c0_118] : memref<1232x64xf32, #tpu.memory_space<vmem>>, vector<1x32xf32>
    %156 = vector.broadcast %155 : vector<1x32xf32> to vector<137x32xf32>
    %157 = arith.mulf %154, %156 : vector<137x32xf32>
    %158 = arith.addf %153, %157 : vector<137x32xf32>
    %c32_119 = arith.constant 32 : index
    %c0_120 = arith.constant 0 : index
    %159 = vector.load %arg8[%c32_119, %c0_120] : memref<208x32xf32, #tpu.memory_space<vmem>>, vector<137x32xf32>
    %c338 = arith.constant 338 : index
    %c0_121 = arith.constant 0 : index
    %160 = vector.load %arg3[%c338, %c0_121] : memref<1232x64xf32, #tpu.memory_space<vmem>>, vector<1x32xf32>
    %161 = vector.broadcast %160 : vector<1x32xf32> to vector<137x32xf32>
    %162 = arith.mulf %159, %161 : vector<137x32xf32>
    %163 = arith.addf %158, %162 : vector<137x32xf32>
    %c33_122 = arith.constant 33 : index
    %c0_123 = arith.constant 0 : index
    %164 = vector.load %arg8[%c33_122, %c0_123] : memref<208x32xf32, #tpu.memory_space<vmem>>, vector<137x32xf32>
    %c339 = arith.constant 339 : index
    %c0_124 = arith.constant 0 : index
    %165 = vector.load %arg3[%c339, %c0_124] : memref<1232x64xf32, #tpu.memory_space<vmem>>, vector<1x32xf32>
    %166 = vector.broadcast %165 : vector<1x32xf32> to vector<137x32xf32>
    %167 = arith.mulf %164, %166 : vector<137x32xf32>
    %168 = arith.addf %163, %167 : vector<137x32xf32>
    %c34_125 = arith.constant 34 : index
    %c0_126 = arith.constant 0 : index
    %169 = vector.load %arg8[%c34_125, %c0_126] : memref<208x32xf32, #tpu.memory_space<vmem>>, vector<137x32xf32>
    %c340 = arith.constant 340 : index
    %c0_127 = arith.constant 0 : index
    %170 = vector.load %arg3[%c340, %c0_127] : memref<1232x64xf32, #tpu.memory_space<vmem>>, vector<1x32xf32>
    %171 = vector.broadcast %170 : vector<1x32xf32> to vector<137x32xf32>
    %172 = arith.mulf %169, %171 : vector<137x32xf32>
    %173 = arith.addf %168, %172 : vector<137x32xf32>
    %c341 = arith.constant 341 : index
    %c0_128 = arith.constant 0 : index
    %174 = vector.load %arg3[%c341, %c0_128] : memref<1232x64xf32, #tpu.memory_space<vmem>>, vector<1x32xf32>
    %175 = vector.broadcast %174 : vector<1x32xf32> to vector<137x32xf32>
    %176 = arith.addf %173, %175 : vector<137x32xf32>
    %cst_129 = arith.constant 0.000000e+00 : f32
    %177 = vector.broadcast %cst_129 : f32 to vector<137x32xf32>
    %178 = arith.maximumf %176, %177 : vector<137x32xf32>
    %c0_130 = arith.constant 0 : index
    %c0_131 = arith.constant 0 : index
    %179 = vector.load %arg12[%c0_130, %c0_131] : memref<144x32xf32, #tpu.memory_space<vmem>>, vector<137x32xf32>
    tpu.vector_store %arg12[%c0_130, %c0_131], %178 {strides = array<i32>} : memref<144x32xf32, #tpu.memory_space<vmem>>, vector<137x32xf32>,
    %c0_132 = arith.constant 0 : index
    %c0_133 = arith.constant 0 : index
    %180 = vector.load %arg12[%c0_132, %c0_133] : memref<144x32xf32, #tpu.memory_space<vmem>>, vector<103x32xf32>
    %c342 = arith.constant 342 : index
    %c0_134 = arith.constant 0 : index
    %181 = vector.load %arg3[%c342, %c0_134] : memref<1232x64xf32, #tpu.memory_space<vmem>>, vector<32x64xf32>
    %cst_135 = arith.constant dense<0.000000e+00> : vector<103x64xf32>
    %182 = tpu.matmul %180, %181, %cst_135 {dimension_numbers = #tpu.dot_dimension_numbers<[1], [0], [0], [1], [0, 0, 1, 1], [], []>} : vector<103x32xf32>, vector<32x64xf32>, vector<103x64xf32> -> vector<103x64xf32>
    %c1_136 = arith.constant 1 : index
    %c0_137 = arith.constant 0 : index
    %183 = vector.load %arg12[%c1_136, %c0_137] : memref<144x32xf32, #tpu.memory_space<vmem>>, vector<103x32xf32>
    %c374 = arith.constant 374 : index
    %c0_138 = arith.constant 0 : index
    %184 = vector.load %arg3[%c374, %c0_138] : memref<1232x64xf32, #tpu.memory_space<vmem>>, vector<32x64xf32>
    %cst_139 = arith.constant dense<0.000000e+00> : vector<103x64xf32>
    %185 = tpu.matmul %183, %184, %cst_139 {dimension_numbers = #tpu.dot_dimension_numbers<[1], [0], [0], [1], [0, 0, 1, 1], [], []>} : vector<103x32xf32>, vector<32x64xf32>, vector<103x64xf32> -> vector<103x64xf32>
    %186 = arith.addf %182, %185 : vector<103x64xf32>
    %c2_140 = arith.constant 2 : index
    %c0_141 = arith.constant 0 : index
    %187 = vector.load %arg12[%c2_140, %c0_141] : memref<144x32xf32, #tpu.memory_space<vmem>>, vector<103x32xf32>
    %c406 = arith.constant 406 : index
    %c0_142 = arith.constant 0 : index
    %188 = vector.load %arg3[%c406, %c0_142] : memref<1232x64xf32, #tpu.memory_space<vmem>>, vector<32x64xf32>
    %cst_143 = arith.constant dense<0.000000e+00> : vector<103x64xf32>
    %189 = tpu.matmul %187, %188, %cst_143 {dimension_numbers = #tpu.dot_dimension_numbers<[1], [0], [0], [1], [0, 0, 1, 1], [], []>} : vector<103x32xf32>, vector<32x64xf32>, vector<103x64xf32> -> vector<103x64xf32>
    %190 = arith.addf %186, %189 : vector<103x64xf32>
    %c16_144 = arith.constant 16 : index
    %c0_145 = arith.constant 0 : index
    %191 = vector.load %arg12[%c16_144, %c0_145] : memref<144x32xf32, #tpu.memory_space<vmem>>, vector<103x32xf32>
    %c438 = arith.constant 438 : index
    %c0_146 = arith.constant 0 : index
    %192 = vector.load %arg3[%c438, %c0_146] : memref<1232x64xf32, #tpu.memory_space<vmem>>, vector<32x64xf32>
    %cst_147 = arith.constant dense<0.000000e+00> : vector<103x64xf32>
    %193 = tpu.matmul %191, %192, %cst_147 {dimension_numbers = #tpu.dot_dimension_numbers<[1], [0], [0], [1], [0, 0, 1, 1], [], []>} : vector<103x32xf32>, vector<32x64xf32>, vector<103x64xf32> -> vector<103x64xf32>
    %194 = arith.addf %190, %193 : vector<103x64xf32>
    %c17_148 = arith.constant 17 : index
    %c0_149 = arith.constant 0 : index
    %195 = vector.load %arg12[%c17_148, %c0_149] : memref<144x32xf32, #tpu.memory_space<vmem>>, vector<103x32xf32>
    %c470 = arith.constant 470 : index
    %c0_150 = arith.constant 0 : index
    %196 = vector.load %arg3[%c470, %c0_150] : memref<1232x64xf32, #tpu.memory_space<vmem>>, vector<32x64xf32>
    %cst_151 = arith.constant dense<0.000000e+00> : vector<103x64xf32>
    %197 = tpu.matmul %195, %196, %cst_151 {dimension_numbers = #tpu.dot_dimension_numbers<[1], [0], [0], [1], [0, 0, 1, 1], [], []>} : vector<103x32xf32>, vector<32x64xf32>, vector<103x64xf32> -> vector<103x64xf32>
    %198 = arith.addf %194, %197 : vector<103x64xf32>
    %c18_152 = arith.constant 18 : index
    %c0_153 = arith.constant 0 : index
    %199 = vector.load %arg12[%c18_152, %c0_153] : memref<144x32xf32, #tpu.memory_space<vmem>>, vector<103x32xf32>
    %c502 = arith.constant 502 : index
    %c0_154 = arith.constant 0 : index
    %200 = vector.load %arg3[%c502, %c0_154] : memref<1232x64xf32, #tpu.memory_space<vmem>>, vector<32x64xf32>
    %cst_155 = arith.constant dense<0.000000e+00> : vector<103x64xf32>
    %201 = tpu.matmul %199, %200, %cst_155 {dimension_numbers = #tpu.dot_dimension_numbers<[1], [0], [0], [1], [0, 0, 1, 1], [], []>} : vector<103x32xf32>, vector<32x64xf32>, vector<103x64xf32> -> vector<103x64xf32>
    %202 = arith.addf %198, %201 : vector<103x64xf32>
    %c32_156 = arith.constant 32 : index
    %c0_157 = arith.constant 0 : index
    %203 = vector.load %arg12[%c32_156, %c0_157] : memref<144x32xf32, #tpu.memory_space<vmem>>, vector<103x32xf32>
    %c534 = arith.constant 534 : index
    %c0_158 = arith.constant 0 : index
    %204 = vector.load %arg3[%c534, %c0_158] : memref<1232x64xf32, #tpu.memory_space<vmem>>, vector<32x64xf32>
    %cst_159 = arith.constant dense<0.000000e+00> : vector<103x64xf32>
    %205 = tpu.matmul %203, %204, %cst_159 {dimension_numbers = #tpu.dot_dimension_numbers<[1], [0], [0], [1], [0, 0, 1, 1], [], []>} : vector<103x32xf32>, vector<32x64xf32>, vector<103x64xf32> -> vector<103x64xf32>
    %206 = arith.addf %202, %205 : vector<103x64xf32>
    %c33_160 = arith.constant 33 : index
    %c0_161 = arith.constant 0 : index
    %207 = vector.load %arg12[%c33_160, %c0_161] : memref<144x32xf32, #tpu.memory_space<vmem>>, vector<103x32xf32>
    %c566 = arith.constant 566 : index
    %c0_162 = arith.constant 0 : index
    %208 = vector.load %arg3[%c566, %c0_162] : memref<1232x64xf32, #tpu.memory_space<vmem>>, vector<32x64xf32>
    %cst_163 = arith.constant dense<0.000000e+00> : vector<103x64xf32>
    %209 = tpu.matmul %207, %208, %cst_163 {dimension_numbers = #tpu.dot_dimension_numbers<[1], [0], [0], [1], [0, 0, 1, 1], [], []>} : vector<103x32xf32>, vector<32x64xf32>, vector<103x64xf32> -> vector<103x64xf32>
    %210 = arith.addf %206, %209 : vector<103x64xf32>
    %c34_164 = arith.constant 34 : index
    %c0_165 = arith.constant 0 : index
    %211 = vector.load %arg12[%c34_164, %c0_165] : memref<144x32xf32, #tpu.memory_space<vmem>>, vector<103x32xf32>
    %c598 = arith.constant 598 : index
    %c0_166 = arith.constant 0 : index
    %212 = vector.load %arg3[%c598, %c0_166] : memref<1232x64xf32, #tpu.memory_space<vmem>>, vector<32x64xf32>
    %cst_167 = arith.constant dense<0.000000e+00> : vector<103x64xf32>
    %213 = tpu.matmul %211, %212, %cst_167 {dimension_numbers = #tpu.dot_dimension_numbers<[1], [0], [0], [1], [0, 0, 1, 1], [], []>} : vector<103x32xf32>, vector<32x64xf32>, vector<103x64xf32> -> vector<103x64xf32>
    %214 = arith.addf %210, %213 : vector<103x64xf32>
    %c630 = arith.constant 630 : index
    %c0_168 = arith.constant 0 : index
    %215 = vector.load %arg3[%c630, %c0_168] : memref<1232x64xf32, #tpu.memory_space<vmem>>, vector<1x64xf32>
    %216 = vector.broadcast %215 : vector<1x64xf32> to vector<103x64xf32>
    %217 = arith.addf %214, %216 : vector<103x64xf32>
    %cst_169 = arith.constant 0.000000e+00 : f32
    %218 = vector.broadcast %cst_169 : f32 to vector<103x64xf32>
    %219 = arith.maximumf %217, %218 : vector<103x64xf32>
    %c0_170 = arith.constant 0 : index
    %c2_171 = arith.constant 2 : index
    %220 = vector.load %arg2[%c0_170, %c2_171] : memref<208x8xf32, #tpu.memory_space<vmem>>, vector<103x1xf32>
    %cst_172 = arith.constant 5.000000e-01 : f32
    %221 = vector.broadcast %cst_172 : f32 to vector<103x1xf32>
    %222 = arith.cmpf ogt, %220, %221 : vector<103x1xf32>
    %cst_173 = arith.constant 0.000000e+00 : f32
    %223 = vector.shape_cast %222 : vector<103x1xi1> to vector<103x1xi1>
    %224 = vector.broadcast %223 : vector<103x1xi1> to vector<103x64xi1>
    %225 = vector.broadcast %cst_173 : f32 to vector<103x64xf32>
    %226 = arith.select %224, %219, %225 : vector<103x64xi1>, vector<103x64xf32>
    %c17_174 = arith.constant 17 : index
    %c0_175 = arith.constant 0 : index
    %227 = vector.load %arg9[%c17_174, %c0_175] : memref<208x64xf32, #tpu.memory_space<vmem>>, vector<103x64xf32>
    tpu.vector_store %arg9[%c17_174, %c0_175], %226 {strides = array<i32>} : memref<208x64xf32, #tpu.memory_space<vmem>>, vector<103x64xf32>,
    %c0_176 = arith.constant 0 : index
    %c0_177 = arith.constant 0 : index
    %228 = vector.load %arg9[%c0_176, %c0_177] : memref<208x64xf32, #tpu.memory_space<vmem>>, vector<103x64xf32>
    %c631 = arith.constant 631 : index
    %c0_178 = arith.constant 0 : index
    %229 = vector.load %arg3[%c631, %c0_178] : memref<1232x64xf32, #tpu.memory_space<vmem>>, vector<1x64xf32>
    %230 = vector.broadcast %229 : vector<1x64xf32> to vector<103x64xf32>
    %231 = arith.mulf %228, %230 : vector<103x64xf32>
    %c1_179 = arith.constant 1 : index
    %c0_180 = arith.constant 0 : index
    %232 = vector.load %arg9[%c1_179, %c0_180] : memref<208x64xf32, #tpu.memory_space<vmem>>, vector<103x64xf32>
    %c632 = arith.constant 632 : index
    %c0_181 = arith.constant 0 : index
    %233 = vector.load %arg3[%c632, %c0_181] : memref<1232x64xf32, #tpu.memory_space<vmem>>, vector<1x64xf32>
    %234 = vector.broadcast %233 : vector<1x64xf32> to vector<103x64xf32>
    %235 = arith.mulf %232, %234 : vector<103x64xf32>
    %236 = arith.addf %231, %235 : vector<103x64xf32>
    %c2_182 = arith.constant 2 : index
    %c0_183 = arith.constant 0 : index
    %237 = vector.load %arg9[%c2_182, %c0_183] : memref<208x64xf32, #tpu.memory_space<vmem>>, vector<103x64xf32>
    %c633 = arith.constant 633 : index
    %c0_184 = arith.constant 0 : index
    %238 = vector.load %arg3[%c633, %c0_184] : memref<1232x64xf32, #tpu.memory_space<vmem>>, vector<1x64xf32>
    %239 = vector.broadcast %238 : vector<1x64xf32> to vector<103x64xf32>
    %240 = arith.mulf %237, %239 : vector<103x64xf32>
    %241 = arith.addf %236, %240 : vector<103x64xf32>
    %c16_185 = arith.constant 16 : index
    %c0_186 = arith.constant 0 : index
    %242 = vector.load %arg9[%c16_185, %c0_186] : memref<208x64xf32, #tpu.memory_space<vmem>>, vector<103x64xf32>
    %c634 = arith.constant 634 : index
    %c0_187 = arith.constant 0 : index
    %243 = vector.load %arg3[%c634, %c0_187] : memref<1232x64xf32, #tpu.memory_space<vmem>>, vector<1x64xf32>
    %244 = vector.broadcast %243 : vector<1x64xf32> to vector<103x64xf32>
    %245 = arith.mulf %242, %244 : vector<103x64xf32>
    %246 = arith.addf %241, %245 : vector<103x64xf32>
    %c17_188 = arith.constant 17 : index
    %c0_189 = arith.constant 0 : index
    %247 = vector.load %arg9[%c17_188, %c0_189] : memref<208x64xf32, #tpu.memory_space<vmem>>, vector<103x64xf32>
    %c635 = arith.constant 635 : index
    %c0_190 = arith.constant 0 : index
    %248 = vector.load %arg3[%c635, %c0_190] : memref<1232x64xf32, #tpu.memory_space<vmem>>, vector<1x64xf32>
    %249 = vector.broadcast %248 : vector<1x64xf32> to vector<103x64xf32>
    %250 = arith.mulf %247, %249 : vector<103x64xf32>
    %251 = arith.addf %246, %250 : vector<103x64xf32>
    %c18_191 = arith.constant 18 : index
    %c0_192 = arith.constant 0 : index
    %252 = vector.load %arg9[%c18_191, %c0_192] : memref<208x64xf32, #tpu.memory_space<vmem>>, vector<103x64xf32>
    %c636 = arith.constant 636 : index
    %c0_193 = arith.constant 0 : index
    %253 = vector.load %arg3[%c636, %c0_193] : memref<1232x64xf32, #tpu.memory_space<vmem>>, vector<1x64xf32>
    %254 = vector.broadcast %253 : vector<1x64xf32> to vector<103x64xf32>
    %255 = arith.mulf %252, %254 : vector<103x64xf32>
    %256 = arith.addf %251, %255 : vector<103x64xf32>
    %c32_194 = arith.constant 32 : index
    %c0_195 = arith.constant 0 : index
    %257 = vector.load %arg9[%c32_194, %c0_195] : memref<208x64xf32, #tpu.memory_space<vmem>>, vector<103x64xf32>
    %c637 = arith.constant 637 : index
    %c0_196 = arith.constant 0 : index
    %258 = vector.load %arg3[%c637, %c0_196] : memref<1232x64xf32, #tpu.memory_space<vmem>>, vector<1x64xf32>
    %259 = vector.broadcast %258 : vector<1x64xf32> to vector<103x64xf32>
    %260 = arith.mulf %257, %259 : vector<103x64xf32>
    %261 = arith.addf %256, %260 : vector<103x64xf32>
    %c33_197 = arith.constant 33 : index
    %c0_198 = arith.constant 0 : index
    %262 = vector.load %arg9[%c33_197, %c0_198] : memref<208x64xf32, #tpu.memory_space<vmem>>, vector<103x64xf32>
    %c638 = arith.constant 638 : index
    %c0_199 = arith.constant 0 : index
    %263 = vector.load %arg3[%c638, %c0_199] : memref<1232x64xf32, #tpu.memory_space<vmem>>, vector<1x64xf32>
    %264 = vector.broadcast %263 : vector<1x64xf32> to vector<103x64xf32>
    %265 = arith.mulf %262, %264 : vector<103x64xf32>
    %266 = arith.addf %261, %265 : vector<103x64xf32>
    %c34_200 = arith.constant 34 : index
    %c0_201 = arith.constant 0 : index
    %267 = vector.load %arg9[%c34_200, %c0_201] : memref<208x64xf32, #tpu.memory_space<vmem>>, vector<103x64xf32>
    %c639 = arith.constant 639 : index
    %c0_202 = arith.constant 0 : index
    %268 = vector.load %arg3[%c639, %c0_202] : memref<1232x64xf32, #tpu.memory_space<vmem>>, vector<1x64xf32>
    %269 = vector.broadcast %268 : vector<1x64xf32> to vector<103x64xf32>
    %270 = arith.mulf %267, %269 : vector<103x64xf32>
    %271 = arith.addf %266, %270 : vector<103x64xf32>
    %c640 = arith.constant 640 : index
    %c0_203 = arith.constant 0 : index
    %272 = vector.load %arg3[%c640, %c0_203] : memref<1232x64xf32, #tpu.memory_space<vmem>>, vector<1x64xf32>
    %273 = vector.broadcast %272 : vector<1x64xf32> to vector<103x64xf32>
    %274 = arith.addf %271, %273 : vector<103x64xf32>
    %cst_204 = arith.constant 0.000000e+00 : f32
    %275 = vector.broadcast %cst_204 : f32 to vector<103x64xf32>
    %276 = arith.maximumf %274, %275 : vector<103x64xf32>
    %c0_205 = arith.constant 0 : index
    %c0_206 = arith.constant 0 : index
    %277 = vector.load %arg13[%c0_205, %c0_206] : memref<104x64xf32, #tpu.memory_space<vmem>>, vector<103x64xf32>
    tpu.vector_store %arg13[%c0_205, %c0_206], %276 {strides = array<i32>} : memref<104x64xf32, #tpu.memory_space<vmem>>, vector<103x64xf32>,
    %c0_207 = arith.constant 0 : index
    %c0_208 = arith.constant 0 : index
    %278 = vector.load %arg13[%c0_207, %c0_208] : memref<104x64xf32, #tpu.memory_space<vmem>>, vector<69x64xf32>
    %c641 = arith.constant 641 : index
    %c0_209 = arith.constant 0 : index
    %279 = vector.load %arg3[%c641, %c0_209] : memref<1232x64xf32, #tpu.memory_space<vmem>>, vector<64x64xf32>
    %cst_210 = arith.constant dense<0.000000e+00> : vector<69x64xf32>
    %280 = tpu.matmul %278, %279, %cst_210 {dimension_numbers = #tpu.dot_dimension_numbers<[1], [0], [0], [1], [0, 0, 1, 1], [], []>} : vector<69x64xf32>, vector<64x64xf32>, vector<69x64xf32> -> vector<69x64xf32>
    %c1_211 = arith.constant 1 : index
    %c0_212 = arith.constant 0 : index
    %281 = vector.load %arg13[%c1_211, %c0_212] : memref<104x64xf32, #tpu.memory_space<vmem>>, vector<69x64xf32>
    %c705 = arith.constant 705 : index
    %c0_213 = arith.constant 0 : index
    %282 = vector.load %arg3[%c705, %c0_213] : memref<1232x64xf32, #tpu.memory_space<vmem>>, vector<64x64xf32>
    %cst_214 = arith.constant dense<0.000000e+00> : vector<69x64xf32>
    %283 = tpu.matmul %281, %282, %cst_214 {dimension_numbers = #tpu.dot_dimension_numbers<[1], [0], [0], [1], [0, 0, 1, 1], [], []>} : vector<69x64xf32>, vector<64x64xf32>, vector<69x64xf32> -> vector<69x64xf32>
    %284 = arith.addf %280, %283 : vector<69x64xf32>
    %c2_215 = arith.constant 2 : index
    %c0_216 = arith.constant 0 : index
    %285 = vector.load %arg13[%c2_215, %c0_216] : memref<104x64xf32, #tpu.memory_space<vmem>>, vector<69x64xf32>
    %c769 = arith.constant 769 : index
    %c0_217 = arith.constant 0 : index
    %286 = vector.load %arg3[%c769, %c0_217] : memref<1232x64xf32, #tpu.memory_space<vmem>>, vector<64x64xf32>
    %cst_218 = arith.constant dense<0.000000e+00> : vector<69x64xf32>
    %287 = tpu.matmul %285, %286, %cst_218 {dimension_numbers = #tpu.dot_dimension_numbers<[1], [0], [0], [1], [0, 0, 1, 1], [], []>} : vector<69x64xf32>, vector<64x64xf32>, vector<69x64xf32> -> vector<69x64xf32>
    %288 = arith.addf %284, %287 : vector<69x64xf32>
    %c16_219 = arith.constant 16 : index
    %c0_220 = arith.constant 0 : index
    %289 = vector.load %arg13[%c16_219, %c0_220] : memref<104x64xf32, #tpu.memory_space<vmem>>, vector<69x64xf32>
    %c833 = arith.constant 833 : index
    %c0_221 = arith.constant 0 : index
    %290 = vector.load %arg3[%c833, %c0_221] : memref<1232x64xf32, #tpu.memory_space<vmem>>, vector<64x64xf32>
    %cst_222 = arith.constant dense<0.000000e+00> : vector<69x64xf32>
    %291 = tpu.matmul %289, %290, %cst_222 {dimension_numbers = #tpu.dot_dimension_numbers<[1], [0], [0], [1], [0, 0, 1, 1], [], []>} : vector<69x64xf32>, vector<64x64xf32>, vector<69x64xf32> -> vector<69x64xf32>
    %292 = arith.addf %288, %291 : vector<69x64xf32>
    %c17_223 = arith.constant 17 : index
    %c0_224 = arith.constant 0 : index
    %293 = vector.load %arg13[%c17_223, %c0_224] : memref<104x64xf32, #tpu.memory_space<vmem>>, vector<69x64xf32>
    %c897 = arith.constant 897 : index
    %c0_225 = arith.constant 0 : index
    %294 = vector.load %arg3[%c897, %c0_225] : memref<1232x64xf32, #tpu.memory_space<vmem>>, vector<64x64xf32>
    %cst_226 = arith.constant dense<0.000000e+00> : vector<69x64xf32>
    %295 = tpu.matmul %293, %294, %cst_226 {dimension_numbers = #tpu.dot_dimension_numbers<[1], [0], [0], [1], [0, 0, 1, 1], [], []>} : vector<69x64xf32>, vector<64x64xf32>, vector<69x64xf32> -> vector<69x64xf32>
    %296 = arith.addf %292, %295 : vector<69x64xf32>
    %c18_227 = arith.constant 18 : index
    %c0_228 = arith.constant 0 : index
    %297 = vector.load %arg13[%c18_227, %c0_228] : memref<104x64xf32, #tpu.memory_space<vmem>>, vector<69x64xf32>
    %c961 = arith.constant 961 : index
    %c0_229 = arith.constant 0 : index
    %298 = vector.load %arg3[%c961, %c0_229] : memref<1232x64xf32, #tpu.memory_space<vmem>>, vector<64x64xf32>
    %cst_230 = arith.constant dense<0.000000e+00> : vector<69x64xf32>
    %299 = tpu.matmul %297, %298, %cst_230 {dimension_numbers = #tpu.dot_dimension_numbers<[1], [0], [0], [1], [0, 0, 1, 1], [], []>} : vector<69x64xf32>, vector<64x64xf32>, vector<69x64xf32> -> vector<69x64xf32>
    %300 = arith.addf %296, %299 : vector<69x64xf32>
    %c32_231 = arith.constant 32 : index
    %c0_232 = arith.constant 0 : index
    %301 = vector.load %arg13[%c32_231, %c0_232] : memref<104x64xf32, #tpu.memory_space<vmem>>, vector<69x64xf32>
    %c1025 = arith.constant 1025 : index
    %c0_233 = arith.constant 0 : index
    %302 = vector.load %arg3[%c1025, %c0_233] : memref<1232x64xf32, #tpu.memory_space<vmem>>, vector<64x64xf32>
    %cst_234 = arith.constant dense<0.000000e+00> : vector<69x64xf32>
    %303 = tpu.matmul %301, %302, %cst_234 {dimension_numbers = #tpu.dot_dimension_numbers<[1], [0], [0], [1], [0, 0, 1, 1], [], []>} : vector<69x64xf32>, vector<64x64xf32>, vector<69x64xf32> -> vector<69x64xf32>
    %304 = arith.addf %300, %303 : vector<69x64xf32>
    %c33_235 = arith.constant 33 : index
    %c0_236 = arith.constant 0 : index
    %305 = vector.load %arg13[%c33_235, %c0_236] : memref<104x64xf32, #tpu.memory_space<vmem>>, vector<69x64xf32>
    %c1089 = arith.constant 1089 : index
    %c0_237 = arith.constant 0 : index
    %306 = vector.load %arg3[%c1089, %c0_237] : memref<1232x64xf32, #tpu.memory_space<vmem>>, vector<64x64xf32>
    %cst_238 = arith.constant dense<0.000000e+00> : vector<69x64xf32>
    %307 = tpu.matmul %305, %306, %cst_238 {dimension_numbers = #tpu.dot_dimension_numbers<[1], [0], [0], [1], [0, 0, 1, 1], [], []>} : vector<69x64xf32>, vector<64x64xf32>, vector<69x64xf32> -> vector<69x64xf32>
    %308 = arith.addf %304, %307 : vector<69x64xf32>
    %c34_239 = arith.constant 34 : index
    %c0_240 = arith.constant 0 : index
    %309 = vector.load %arg13[%c34_239, %c0_240] : memref<104x64xf32, #tpu.memory_space<vmem>>, vector<69x64xf32>
    %c1153 = arith.constant 1153 : index
    %c0_241 = arith.constant 0 : index
    %310 = vector.load %arg3[%c1153, %c0_241] : memref<1232x64xf32, #tpu.memory_space<vmem>>, vector<64x64xf32>
    %cst_242 = arith.constant dense<0.000000e+00> : vector<69x64xf32>
    %311 = tpu.matmul %309, %310, %cst_242 {dimension_numbers = #tpu.dot_dimension_numbers<[1], [0], [0], [1], [0, 0, 1, 1], [], []>} : vector<69x64xf32>, vector<64x64xf32>, vector<69x64xf32> -> vector<69x64xf32>
    %312 = arith.addf %308, %311 : vector<69x64xf32>
    %c1217 = arith.constant 1217 : index
    %c0_243 = arith.constant 0 : index
    %313 = vector.load %arg3[%c1217, %c0_243] : memref<1232x64xf32, #tpu.memory_space<vmem>>, vector<1x64xf32>
    %314 = vector.broadcast %313 : vector<1x64xf32> to vector<69x64xf32>
    %315 = arith.addf %312, %314 : vector<69x64xf32>
    %cst_244 = arith.constant 0.000000e+00 : f32
    %316 = vector.broadcast %cst_244 : f32 to vector<69x64xf32>
    %317 = arith.maximumf %315, %316 : vector<69x64xf32>
    %c0_245 = arith.constant 0 : index
    %c3 = arith.constant 3 : index
    %318 = vector.load %arg2[%c0_245, %c3] : memref<208x8xf32, #tpu.memory_space<vmem>>, vector<69x1xf32>
    %cst_246 = arith.constant 5.000000e-01 : f32
    %319 = vector.broadcast %cst_246 : f32 to vector<69x1xf32>
    %320 = arith.cmpf ogt, %318, %319 : vector<69x1xf32>
    %cst_247 = arith.constant 0.000000e+00 : f32
    %321 = vector.shape_cast %320 : vector<69x1xi1> to vector<69x1xi1>
    %322 = vector.broadcast %321 : vector<69x1xi1> to vector<69x64xi1>
    %323 = vector.broadcast %cst_247 : f32 to vector<69x64xf32>
    %324 = arith.select %322, %317, %323 : vector<69x64xi1>, vector<69x64xf32>
    %c17_248 = arith.constant 17 : index
    %c0_249 = arith.constant 0 : index
    %325 = vector.load %arg10[%c17_248, %c0_249] : memref<208x64xf32, #tpu.memory_space<vmem>>, vector<69x64xf32>
    tpu.vector_store %arg10[%c17_248, %c0_249], %324 {strides = array<i32>} : memref<208x64xf32, #tpu.memory_space<vmem>>, vector<69x64xf32>,
    %c0_250 = arith.constant 0 : index
    %c0_251 = arith.constant 0 : index
    %326 = vector.load %arg10[%c0_250, %c0_251] : memref<208x64xf32, #tpu.memory_space<vmem>>, vector<69x64xf32>
    %c1218 = arith.constant 1218 : index
    %c0_252 = arith.constant 0 : index
    %327 = vector.load %arg3[%c1218, %c0_252] : memref<1232x64xf32, #tpu.memory_space<vmem>>, vector<1x64xf32>
    %328 = vector.broadcast %327 : vector<1x64xf32> to vector<69x64xf32>
    %329 = arith.mulf %326, %328 : vector<69x64xf32>
    %c1_253 = arith.constant 1 : index
    %c0_254 = arith.constant 0 : index
    %330 = vector.load %arg10[%c1_253, %c0_254] : memref<208x64xf32, #tpu.memory_space<vmem>>, vector<69x64xf32>
    %c1219 = arith.constant 1219 : index
    %c0_255 = arith.constant 0 : index
    %331 = vector.load %arg3[%c1219, %c0_255] : memref<1232x64xf32, #tpu.memory_space<vmem>>, vector<1x64xf32>
    %332 = vector.broadcast %331 : vector<1x64xf32> to vector<69x64xf32>
    %333 = arith.mulf %330, %332 : vector<69x64xf32>
    %334 = arith.addf %329, %333 : vector<69x64xf32>
    %c2_256 = arith.constant 2 : index
    %c0_257 = arith.constant 0 : index
    %335 = vector.load %arg10[%c2_256, %c0_257] : memref<208x64xf32, #tpu.memory_space<vmem>>, vector<69x64xf32>
    %c1220 = arith.constant 1220 : index
    %c0_258 = arith.constant 0 : index
    %336 = vector.load %arg3[%c1220, %c0_258] : memref<1232x64xf32, #tpu.memory_space<vmem>>, vector<1x64xf32>
    %337 = vector.broadcast %336 : vector<1x64xf32> to vector<69x64xf32>
    %338 = arith.mulf %335, %337 : vector<69x64xf32>
    %339 = arith.addf %334, %338 : vector<69x64xf32>
    %c16_259 = arith.constant 16 : index
    %c0_260 = arith.constant 0 : index
    %340 = vector.load %arg10[%c16_259, %c0_260] : memref<208x64xf32, #tpu.memory_space<vmem>>, vector<69x64xf32>
    %c1221 = arith.constant 1221 : index
    %c0_261 = arith.constant 0 : index
    %341 = vector.load %arg3[%c1221, %c0_261] : memref<1232x64xf32, #tpu.memory_space<vmem>>, vector<1x64xf32>
    %342 = vector.broadcast %341 : vector<1x64xf32> to vector<69x64xf32>
    %343 = arith.mulf %340, %342 : vector<69x64xf32>
    %344 = arith.addf %339, %343 : vector<69x64xf32>
    %c17_262 = arith.constant 17 : index
    %c0_263 = arith.constant 0 : index
    %345 = vector.load %arg10[%c17_262, %c0_263] : memref<208x64xf32, #tpu.memory_space<vmem>>, vector<69x64xf32>
    %c1222 = arith.constant 1222 : index
    %c0_264 = arith.constant 0 : index
    %346 = vector.load %arg3[%c1222, %c0_264] : memref<1232x64xf32, #tpu.memory_space<vmem>>, vector<1x64xf32>
    %347 = vector.broadcast %346 : vector<1x64xf32> to vector<69x64xf32>
    %348 = arith.mulf %345, %347 : vector<69x64xf32>
    %349 = arith.addf %344, %348 : vector<69x64xf32>
    %c18_265 = arith.constant 18 : index
    %c0_266 = arith.constant 0 : index
    %350 = vector.load %arg10[%c18_265, %c0_266] : memref<208x64xf32, #tpu.memory_space<vmem>>, vector<69x64xf32>
    %c1223 = arith.constant 1223 : index
    %c0_267 = arith.constant 0 : index
    %351 = vector.load %arg3[%c1223, %c0_267] : memref<1232x64xf32, #tpu.memory_space<vmem>>, vector<1x64xf32>
    %352 = vector.broadcast %351 : vector<1x64xf32> to vector<69x64xf32>
    %353 = arith.mulf %350, %352 : vector<69x64xf32>
    %354 = arith.addf %349, %353 : vector<69x64xf32>
    %c32_268 = arith.constant 32 : index
    %c0_269 = arith.constant 0 : index
    %355 = vector.load %arg10[%c32_268, %c0_269] : memref<208x64xf32, #tpu.memory_space<vmem>>, vector<69x64xf32>
    %c1224 = arith.constant 1224 : index
    %c0_270 = arith.constant 0 : index
    %356 = vector.load %arg3[%c1224, %c0_270] : memref<1232x64xf32, #tpu.memory_space<vmem>>, vector<1x64xf32>
    %357 = vector.broadcast %356 : vector<1x64xf32> to vector<69x64xf32>
    %358 = arith.mulf %355, %357 : vector<69x64xf32>
    %359 = arith.addf %354, %358 : vector<69x64xf32>
    %c33_271 = arith.constant 33 : index
    %c0_272 = arith.constant 0 : index
    %360 = vector.load %arg10[%c33_271, %c0_272] : memref<208x64xf32, #tpu.memory_space<vmem>>, vector<69x64xf32>
    %c1225 = arith.constant 1225 : index
    %c0_273 = arith.constant 0 : index
    %361 = vector.load %arg3[%c1225, %c0_273] : memref<1232x64xf32, #tpu.memory_space<vmem>>, vector<1x64xf32>
    %362 = vector.broadcast %361 : vector<1x64xf32> to vector<69x64xf32>
    %363 = arith.mulf %360, %362 : vector<69x64xf32>
    %364 = arith.addf %359, %363 : vector<69x64xf32>
    %c34_274 = arith.constant 34 : index
    %c0_275 = arith.constant 0 : index
    %365 = vector.load %arg10[%c34_274, %c0_275] : memref<208x64xf32, #tpu.memory_space<vmem>>, vector<69x64xf32>
    %c1226 = arith.constant 1226 : index
    %c0_276 = arith.constant 0 : index
    %366 = vector.load %arg3[%c1226, %c0_276] : memref<1232x64xf32, #tpu.memory_space<vmem>>, vector<1x64xf32>
    %367 = vector.broadcast %366 : vector<1x64xf32> to vector<69x64xf32>
    %368 = arith.mulf %365, %367 : vector<69x64xf32>
    %369 = arith.addf %364, %368 : vector<69x64xf32>
    %c1227 = arith.constant 1227 : index
    %c0_277 = arith.constant 0 : index
    %370 = vector.load %arg3[%c1227, %c0_277] : memref<1232x64xf32, #tpu.memory_space<vmem>>, vector<1x64xf32>
    %371 = vector.broadcast %370 : vector<1x64xf32> to vector<69x64xf32>
    %372 = arith.addf %369, %371 : vector<69x64xf32>
    %cst_278 = arith.constant 0.000000e+00 : f32
    %373 = vector.broadcast %cst_278 : f32 to vector<69x64xf32>
    %374 = arith.maximumf %372, %373 : vector<69x64xf32>
    %c0_279 = arith.constant 0 : index
    %c0_280 = arith.constant 0 : index
    %375 = vector.load %arg14[%c0_279, %c0_280] : memref<72x64xf32, #tpu.memory_space<vmem>>, vector<69x64xf32>
    tpu.vector_store %arg14[%c0_279, %c0_280], %374 {strides = array<i32>} : memref<72x64xf32, #tpu.memory_space<vmem>>, vector<69x64xf32>,
    %c0_281 = arith.constant 0 : index
    %c0_282 = arith.constant 0 : index
    %376 = vector.load %arg14[%c0_281, %c0_282] : memref<72x64xf32, #tpu.memory_space<vmem>>, vector<52x64xf32>
    %c0_283 = arith.constant 0 : index
    %c0_284 = arith.constant 0 : index
    %377 = vector.load %arg4[%c0_283, %c0_284] : memref<520x128xf32, #tpu.memory_space<vmem>>, vector<64x128xf32>
    %cst_285 = arith.constant dense<0.000000e+00> : vector<52x128xf32>
    %378 = tpu.matmul %376, %377, %cst_285 {dimension_numbers = #tpu.dot_dimension_numbers<[1], [0], [0], [1], [0, 0, 1, 1], [], []>} : vector<52x64xf32>, vector<64x128xf32>, vector<52x128xf32> -> vector<52x128xf32>
    %c1_286 = arith.constant 1 : index
    %c0_287 = arith.constant 0 : index
    %379 = vector.load %arg14[%c1_286, %c0_287] : memref<72x64xf32, #tpu.memory_space<vmem>>, vector<52x64xf32>
    %c64 = arith.constant 64 : index
    %c0_288 = arith.constant 0 : index
    %380 = vector.load %arg4[%c64, %c0_288] : memref<520x128xf32, #tpu.memory_space<vmem>>, vector<64x128xf32>
    %cst_289 = arith.constant dense<0.000000e+00> : vector<52x128xf32>
    %381 = tpu.matmul %379, %380, %cst_289 {dimension_numbers = #tpu.dot_dimension_numbers<[1], [0], [0], [1], [0, 0, 1, 1], [], []>} : vector<52x64xf32>, vector<64x128xf32>, vector<52x128xf32> -> vector<52x128xf32>
    %382 = arith.addf %378, %381 : vector<52x128xf32>
    %c16_290 = arith.constant 16 : index
    %c0_291 = arith.constant 0 : index
    %383 = vector.load %arg14[%c16_290, %c0_291] : memref<72x64xf32, #tpu.memory_space<vmem>>, vector<52x64xf32>
    %c128 = arith.constant 128 : index
    %c0_292 = arith.constant 0 : index
    %384 = vector.load %arg4[%c128, %c0_292] : memref<520x128xf32, #tpu.memory_space<vmem>>, vector<64x128xf32>
    %cst_293 = arith.constant dense<0.000000e+00> : vector<52x128xf32>
    %385 = tpu.matmul %383, %384, %cst_293 {dimension_numbers = #tpu.dot_dimension_numbers<[1], [0], [0], [1], [0, 0, 1, 1], [], []>} : vector<52x64xf32>, vector<64x128xf32>, vector<52x128xf32> -> vector<52x128xf32>
    %386 = arith.addf %382, %385 : vector<52x128xf32>
    %c17_294 = arith.constant 17 : index
    %c0_295 = arith.constant 0 : index
    %387 = vector.load %arg14[%c17_294, %c0_295] : memref<72x64xf32, #tpu.memory_space<vmem>>, vector<52x64xf32>
    %c192 = arith.constant 192 : index
    %c0_296 = arith.constant 0 : index
    %388 = vector.load %arg4[%c192, %c0_296] : memref<520x128xf32, #tpu.memory_space<vmem>>, vector<64x128xf32>
    %cst_297 = arith.constant dense<0.000000e+00> : vector<52x128xf32>
    %389 = tpu.matmul %387, %388, %cst_297 {dimension_numbers = #tpu.dot_dimension_numbers<[1], [0], [0], [1], [0, 0, 1, 1], [], []>} : vector<52x64xf32>, vector<64x128xf32>, vector<52x128xf32> -> vector<52x128xf32>
    %390 = arith.addf %386, %389 : vector<52x128xf32>
    %c256 = arith.constant 256 : index
    %c0_298 = arith.constant 0 : index
    %391 = vector.load %arg4[%c256, %c0_298] : memref<520x128xf32, #tpu.memory_space<vmem>>, vector<1x128xf32>
    %392 = vector.broadcast %391 : vector<1x128xf32> to vector<52x128xf32>
    %393 = arith.addf %390, %392 : vector<52x128xf32>
    %cst_299 = arith.constant 0.000000e+00 : f32
    %394 = vector.broadcast %cst_299 : f32 to vector<52x128xf32>
    %395 = arith.maximumf %393, %394 : vector<52x128xf32>
    %c0_300 = arith.constant 0 : index
    %c0_301 = arith.constant 0 : index
    %396 = vector.load %arg15[%c0_300, %c0_301] : memref<56x128xf32, #tpu.memory_space<vmem>>, vector<52x128xf32>
    tpu.vector_store %arg15[%c0_300, %c0_301], %395 {strides = array<i32>} : memref<56x128xf32, #tpu.memory_space<vmem>>, vector<52x128xf32>,
    %c0_302 = arith.constant 0 : index
    %c0_303 = arith.constant 0 : index
    %397 = vector.load %arg15[%c0_302, %c0_303] : memref<56x128xf32, #tpu.memory_space<vmem>>, vector<1x128xf32>
    %c1_304 = arith.constant 1 : index
    %c0_305 = arith.constant 0 : index
    %398 = vector.load %arg15[%c1_304, %c0_305] : memref<56x128xf32, #tpu.memory_space<vmem>>, vector<1x128xf32>
    %399 = arith.maximumf %397, %398 : vector<1x128xf32>
    %c16_306 = arith.constant 16 : index
    %c0_307 = arith.constant 0 : index
    %400 = vector.load %arg15[%c16_306, %c0_307] : memref<56x128xf32, #tpu.memory_space<vmem>>, vector<1x128xf32>
    %c17_308 = arith.constant 17 : index
    %c0_309 = arith.constant 0 : index
    %401 = vector.load %arg15[%c17_308, %c0_309] : memref<56x128xf32, #tpu.memory_space<vmem>>, vector<1x128xf32>
    %402 = arith.maximumf %400, %401 : vector<1x128xf32>
    %403 = arith.maximumf %399, %402 : vector<1x128xf32>
    %c2_310 = arith.constant 2 : index
    %c0_311 = arith.constant 0 : index
    %404 = vector.load %arg15[%c2_310, %c0_311] : memref<56x128xf32, #tpu.memory_space<vmem>>, vector<1x128xf32>
    %c3_312 = arith.constant 3 : index
    %c0_313 = arith.constant 0 : index
    %405 = vector.load %arg15[%c3_312, %c0_313] : memref<56x128xf32, #tpu.memory_space<vmem>>, vector<1x128xf32>
    %406 = arith.maximumf %404, %405 : vector<1x128xf32>
    %c18_314 = arith.constant 18 : index
    %c0_315 = arith.constant 0 : index
    %407 = vector.load %arg15[%c18_314, %c0_315] : memref<56x128xf32, #tpu.memory_space<vmem>>, vector<1x128xf32>
    %c19 = arith.constant 19 : index
    %c0_316 = arith.constant 0 : index
    %408 = vector.load %arg15[%c19, %c0_316] : memref<56x128xf32, #tpu.memory_space<vmem>>, vector<1x128xf32>
    %409 = arith.maximumf %407, %408 : vector<1x128xf32>
    %410 = arith.maximumf %406, %409 : vector<1x128xf32>
    %c32_317 = arith.constant 32 : index
    %c0_318 = arith.constant 0 : index
    %411 = vector.load %arg15[%c32_317, %c0_318] : memref<56x128xf32, #tpu.memory_space<vmem>>, vector<1x128xf32>
    %c33_319 = arith.constant 33 : index
    %c0_320 = arith.constant 0 : index
    %412 = vector.load %arg15[%c33_319, %c0_320] : memref<56x128xf32, #tpu.memory_space<vmem>>, vector<1x128xf32>
    %413 = arith.maximumf %411, %412 : vector<1x128xf32>
    %c48 = arith.constant 48 : index
    %c0_321 = arith.constant 0 : index
    %414 = vector.load %arg15[%c48, %c0_321] : memref<56x128xf32, #tpu.memory_space<vmem>>, vector<1x128xf32>
    %c49 = arith.constant 49 : index
    %c0_322 = arith.constant 0 : index
    %415 = vector.load %arg15[%c49, %c0_322] : memref<56x128xf32, #tpu.memory_space<vmem>>, vector<1x128xf32>
    %416 = arith.maximumf %414, %415 : vector<1x128xf32>
    %417 = arith.maximumf %413, %416 : vector<1x128xf32>
    %c34_323 = arith.constant 34 : index
    %c0_324 = arith.constant 0 : index
    %418 = vector.load %arg15[%c34_323, %c0_324] : memref<56x128xf32, #tpu.memory_space<vmem>>, vector<1x128xf32>
    %c35_325 = arith.constant 35 : index
    %c0_326 = arith.constant 0 : index
    %419 = vector.load %arg15[%c35_325, %c0_326] : memref<56x128xf32, #tpu.memory_space<vmem>>, vector<1x128xf32>
    %420 = arith.maximumf %418, %419 : vector<1x128xf32>
    %c50 = arith.constant 50 : index
    %c0_327 = arith.constant 0 : index
    %421 = vector.load %arg15[%c50, %c0_327] : memref<56x128xf32, #tpu.memory_space<vmem>>, vector<1x128xf32>
    %c51 = arith.constant 51 : index
    %c0_328 = arith.constant 0 : index
    %422 = vector.load %arg15[%c51, %c0_328] : memref<56x128xf32, #tpu.memory_space<vmem>>, vector<1x128xf32>
    %423 = arith.maximumf %421, %422 : vector<1x128xf32>
    %424 = arith.maximumf %420, %423 : vector<1x128xf32>
    %425 = tpu.concatenate %403, %410, %417, %424 in 1 : vector<1x128xf32>, vector<1x128xf32>, vector<1x128xf32>, vector<1x128xf32> -> vector<1x512xf32>
    %c0_329 = arith.constant 0 : index
    %c0_330 = arith.constant 0 : index
    %426 = vector.load %arg5[%c0_329, %c0_330] : memref<520x256xbf16, #tpu.memory_space<vmem>>, vector<512x256xbf16>
    %c512 = arith.constant 512 : index
    %c0_331 = arith.constant 0 : index
    %427 = vector.load %arg5[%c512, %c0_331] : memref<520x256xbf16, #tpu.memory_space<vmem>>, vector<1x256xbf16>
    %428 = arith.extf %427 : vector<1x256xbf16> to vector<1x256xf32>
    %c513 = arith.constant 513 : index
    %c0_332 = arith.constant 0 : index
    %429 = vector.load %arg5[%c513, %c0_332] : memref<520x256xbf16, #tpu.memory_space<vmem>>, vector<1x1xbf16>
    %430 = arith.extf %429 : vector<1x1xbf16> to vector<1x1xf32>
    %431 = arith.truncf %425 : vector<1x512xf32> to vector<1x512xbf16>
    %cst_333 = arith.constant dense<0.000000e+00> : vector<1x256xf32>
    %432 = tpu.matmul %431, %426, %cst_333 {dimension_numbers = #tpu.dot_dimension_numbers<[1], [0], [0], [1], [0, 0, 1, 1], [], []>} : vector<1x512xbf16>, vector<512x256xbf16>, vector<1x256xf32> -> vector<1x256xf32>
    %433 = arith.addf %432, %428 : vector<1x256xf32>
    %cst_334 = arith.constant 0.000000e+00 : f32
    %434 = vector.broadcast %cst_334 : f32 to vector<1x256xf32>
    %435 = arith.cmpf ogt, %433, %434 : vector<1x256xf32>
    %436 = vector.broadcast %430 : vector<1x1xf32> to vector<1x256xf32>
    %437 = arith.mulf %433, %436 : vector<1x256xf32>
    %438 = arith.select %435, %433, %437 : vector<1x256xi1>, vector<1x256xf32>
    %c257 = arith.constant 257 : index
    %c0_335 = arith.constant 0 : index
    %439 = vector.load %arg4[%c257, %c0_335] : memref<520x128xf32, #tpu.memory_space<vmem>>, vector<256x15xf32>
    %cst_336 = arith.constant dense<0.000000e+00> : vector<1x15xf32>
    %440 = tpu.matmul %438, %439, %cst_336 {dimension_numbers = #tpu.dot_dimension_numbers<[1], [0], [0], [1], [0, 0, 1, 1], [], []>} : vector<1x256xf32>, vector<256x15xf32>, vector<1x15xf32> -> vector<1x15xf32>
    %c513_337 = arith.constant 513 : index
    %c0_338 = arith.constant 0 : index
    %441 = vector.load %arg4[%c513_337, %c0_338] : memref<520x128xf32, #tpu.memory_space<vmem>>, vector<1x15xf32>
    %442 = arith.addf %440, %441 : vector<1x15xf32>
    %443 = tpu.iota {dimensions = array<i32: 1>} : vector<1x15xi32>
    %c0_i32 = arith.constant 0 : i32
    %444 = vector.broadcast %c0_i32 : i32 to vector<1x15xi32>
    %445 = arith.cmpi eq, %443, %444 : vector<1x15xi32>
    %cst_339 = arith.constant 0.000000e+00 : f32
    %446 = vector.broadcast %cst_339 : f32 to vector<1x15xf32>
    %447 = arith.subf %446, %442 : vector<1x15xf32>
    %448 = math.exp %447 : vector<1x15xf32>
    %cst_340 = arith.constant 1.000000e+00 : f32
    %449 = vector.broadcast %cst_340 : f32 to vector<1x15xf32>
    %450 = arith.addf %449, %448 : vector<1x15xf32>
    %cst_341 = arith.constant 1.000000e+00 : f32
    %451 = vector.broadcast %cst_341 : f32 to vector<1x15xf32>
    %452 = arith.divf %451, %450 : vector<1x15xf32>
    %453 = arith.select %445, %452, %442 : vector<1x15xi1>, vector<1x15xf32>
    %c0_342 = arith.constant 0 : index
    %c0_343 = arith.constant 0 : index
    %c0_344 = arith.constant 0 : index
    %454 = vector.load %arg6[%c0_342, %c0_343, %c0_344] : memref<1x1x15xf32, #tpu.memory_space<vmem>>, vector<1x1x15xf32>
    %455 = vector.shape_cast %454 : vector<1x1x15xf32> to vector<1x15xf32>
    %456 = vector.shape_cast %453 : vector<1x15xf32> to vector<1x1x15xf32>
    tpu.vector_store %arg6[%c0_342, %c0_343, %c0_344], %456 {strides = array<i32>} : memref<1x1x15xf32, #tpu.memory_space<vmem>>, vector<1x1x15xf32>,
    return
  }
  func.func @transform_0(%arg0: i32) -> (i32, i32) {
    %c0_i32 = arith.constant 0 : i32
    %c0_i32_0 = arith.constant 0 : i32
    return %arg0, %c0_i32 : i32, i32
  }
  func.func @transform_1(%arg0: i32) -> (i32, i32) {
    %c0_i32 = arith.constant 0 : i32
    %c0_i32_0 = arith.constant 0 : i32
    %c0_i32_1 = arith.constant 0 : i32
    return %c0_i32, %c0_i32_0 : i32, i32
  }
  func.func @transform_2(%arg0: i32) -> (i32, i32) {
    %c0_i32 = arith.constant 0 : i32
    %c0_i32_0 = arith.constant 0 : i32
    %c0_i32_1 = arith.constant 0 : i32
    return %c0_i32, %c0_i32_0 : i32, i32
  }
  func.func @transform_3(%arg0: i32) -> (i32, i32) {
    %c0_i32 = arith.constant 0 : i32
    %c0_i32_0 = arith.constant 0 : i32
    %c0_i32_1 = arith.constant 0 : i32
    return %c0_i32, %c0_i32_0 : i32, i32
  }
  func.func @transform_4(%arg0: i32) -> (i32, i32) {
    %c0_i32 = arith.constant 0 : i32
    %c0_i32_0 = arith.constant 0 : i32
    %c0_i32_1 = arith.constant 0 : i32
    return %c0_i32, %c0_i32_0 : i32, i32
  }
  func.func @transform_5(%arg0: i32) -> (i32, i32, i32) {
    %c0_i32 = arith.constant 0 : i32
    %c0_i32_0 = arith.constant 0 : i32
    %c0_i32_1 = arith.constant 0 : i32
    return %arg0, %c0_i32, %c0_i32_0 : i32, i32, i32
  }
}

</mosaic_0001>

<llo_original>
// kernel: _lambda_.1
$region0: #{_lambda_.1}
  #allocation0 [shape = 'u32[]', space=smem, size = 0x4, offset = 0x4, fixed_abs, tag = 'smem constant byte address 0x4 - core index']
  #allocation1 [shape = 'u32[144,128]{1,0:T(1,128)}', space=vmem, size = 0x12000, scoped, tag = 'internal scratch']
  #allocation2 [shape = 'f32[208,32]{1,0:T(8,128)}', space=vmem, size = 0x1a000, scoped, tag = 'scratch operand']
  #allocation3 [shape = 'f32[208,32]{1,0:T(8,128)}', space=vmem, size = 0x1a000, scoped, tag = 'scratch operand']
  #allocation4 [shape = 'f32[208,64]{1,0:T(8,128)}', space=vmem, size = 0x1a000, scoped, tag = 'scratch operand']
  #allocation5 [shape = 'f32[208,64]{1,0:T(8,128)}', space=vmem, size = 0x1a000, scoped, tag = 'scratch operand']
  #allocation6 [shape = 'f32[176,32]{1,0:T(8,128)}', space=vmem, size = 0x16000, scoped, tag = 'scratch operand']
  #allocation7 [shape = 'f32[144,32]{1,0:T(8,128)}', space=vmem, size = 0x12000, scoped, tag = 'scratch operand']
  #allocation8 [shape = 'f32[104,64]{1,0:T(8,128)}', space=vmem, size = 0xd000, scoped, tag = 'scratch operand']
  #allocation9 [shape = 'f32[72,64]{1,0:T(8,128)}', space=vmem, size = 0x9000, scoped, tag = 'scratch operand']
  #allocation10 [shape = 'f32[56,128]{1,0:T(8,128)}', space=vmem, size = 0x7000, scoped, tag = 'scratch operand']
  %s0 = inlined_call_operand.vmem [shape: f32[416,32], index: 0, kind: input, shape index: {}]
  %s1 = inlined_call_operand.vmem [shape: f32[208,8], index: 1, kind: input, shape index: {}]
  %s2 = inlined_call_operand.vmem [shape: f32[1232,64], index: 2, kind: input, shape index: {}]
  %s3 = inlined_call_operand.vmem [shape: f32[520,128], index: 3, kind: input, shape index: {}]
  %s4 = inlined_call_operand.vmem [shape: bf16[520,256], index: 4, kind: input, shape index: {}]
  %s5 = inlined_call_operand.vmem [shape: f32[2,1,15], index: 5, kind: output, shape index: {}]
  %s6 = sld [smem:[#allocation0]]
  $region53: #{_lambda_.1} parent=0
    _
  %s8 = ssub.s32 1, %s6
  %s9 = scalar_select 0, %s8, %s6
  loop: start=0, step=1, limit=4
  $region2: #{_lambda_.1} parent=0 // loop_pre_header
    _
  $region3: #{_lambda_.1} parent=0 // loop_header
    %s11 = sphi 0, %s15
    %p12 = scmp.ge.s32.totalorder %s11, 4
    %s21 = sphi 0, %s23
    %s24 = sphi 0, %s21
    %s25 = sphi 0, %s24
    %s41 = sphi 0, %s25
    %s45 = sphi 0, %s45
    %s47 = sphi 0, %s45
    %s48 = sphi 0, %s47
    %s62 = sphi 0, %s48
    %s66 = sphi 0, %s66
    %s68 = sphi 0, %s66
    %s69 = sphi 0, %s68
    %s83 = sphi 0, %s69
    %s87 = sphi 0, %s87
    %s89 = sphi 0, %s87
    %s90 = sphi 0, %s89
    %s104 = sphi 0, %s90
    %s108 = sphi 0, %s108
    %s110 = sphi 0, %s108
    %s111 = sphi 0, %s110
    %s125 = sphi 0, %s111
    %s131 = sphi 0, %s133
    %s134 = sphi 0, %s131
    %s135 = sphi 0, %s134
    %s151 = sphi 0, %s135
  $region4: #{_lambda_.1} parent=0 // loop_header_branch
    %14 = sbr.rel (%p12) target = $region8
  $region5: #{_lambda_.1} parent=0 // loop_body
    %s16 = ssub.s32 %s11, 1
    %s17 = ssub.s32 %s11, 2
    %s18 = sadd.s32 %s11, 1
    %s19 = ssub.s32 %s11, %s18
    %p20 = scmp.eq.s32.totalorder %s19, 0
    %s22 = sadd.s32 %s21, 1
    %s23 = scalar_select %p20, %s21, %s22
    %p26 = pneg %p20
    %p27 = scmp.eq.s32.totalorder %s11, 1
    %p28 = por %p26, %p27
    %p29 = scmp.ne.s32.totalorder %s21, %s24
    %p30 = scmp.eq.s32.totalorder %s11, 0
    %p31 = por %p29, %p30
    %p32 = scmp.ne.s32.totalorder %s21, %s24
    %p33 = scmp.eq.s32.totalorder %s16, 1
    %p34 = por %p32, %p33
    %p35 = scmp.ne.s32.totalorder %s24, %s25
    %p36 = scmp.eq.s32.totalorder %s16, 0
    %p37 = por %p35, %p36
    %p38 = scmp.ne.s32.totalorder %s24, %s25
    %p39 = scmp.eq.s32.totalorder %s17, 1
    %p40 = por %p38, %p39
    %p42 = scmp.ne.s32.totalorder %s25, %s41
    %p43 = scmp.eq.s32.totalorder %s17, 0
    %p44 = por %p42, %p43
    %s46 = sadd.s32 %s45, 1
    %p49 = scmp.eq.s32.totalorder %s11, 1
    %p50 = scmp.ne.s32.totalorder %s45, %s47
    %p51 = scmp.eq.s32.totalorder %s11, 0
    %p52 = por %p50, %p51
    %p53 = scmp.ne.s32.totalorder %s45, %s47
    %p54 = scmp.eq.s32.totalorder %s16, 1
    %p55 = por %p53, %p54
    %p56 = scmp.ne.s32.totalorder %s47, %s48
    %p57 = scmp.eq.s32.totalorder %s16, 0
    %p58 = por %p56, %p57
    %p59 = scmp.ne.s32.totalorder %s47, %s48
    %p60 = scmp.eq.s32.totalorder %s17, 1
    %p61 = por %p59, %p60
    %p63 = scmp.ne.s32.totalorder %s48, %s62
    %p64 = scmp.eq.s32.totalorder %s17, 0
    %p65 = por %p63, %p64
    %s67 = sadd.s32 %s66, 1
    %p70 = scmp.eq.s32.totalorder %s11, 1
    %p71 = scmp.ne.s32.totalorder %s66, %s68
    %p72 = scmp.eq.s32.totalorder %s11, 0
    %p73 = por %p71, %p72
    %p74 = scmp.ne.s32.totalorder %s66, %s68
    %p75 = scmp.eq.s32.totalorder %s16, 1
    %p76 = por %p74, %p75
    %p77 = scmp.ne.s32.totalorder %s68, %s69
    %p78 = scmp.eq.s32.totalorder %s16, 0
    %p79 = por %p77, %p78
    %p80 = scmp.ne.s32.totalorder %s68, %s69
    %p81 = scmp.eq.s32.totalorder %s17, 1
    %p82 = por %p80, %p81
    %p84 = scmp.ne.s32.totalorder %s69, %s83
    %p85 = scmp.eq.s32.totalorder %s17, 0
    %p86 = por %p84, %p85
    %s88 = sadd.s32 %s87, 1
    %p91 = scmp.eq.s32.totalorder %s11, 1
    %p92 = scmp.ne.s32.totalorder %s87, %s89
    %p93 = scmp.eq.s32.totalorder %s11, 0
    %p94 = por %p92, %p93
    %p95 = scmp.ne.s32.totalorder %s87, %s89
    %p96 = scmp.eq.s32.totalorder %s16, 1
    %p97 = por %p95, %p96
    %p98 = scmp.ne.s32.totalorder %s89, %s90
    %p99 = scmp.eq.s32.totalorder %s16, 0
    %p100 = por %p98, %p99
    %p101 = scmp.ne.s32.totalorder %s89, %s90
    %p102 = scmp.eq.s32.totalorder %s17, 1
    %p103 = por %p101, %p102
    %p105 = scmp.ne.s32.totalorder %s90, %s104
    %p106 = scmp.eq.s32.totalorder %s17, 0
    %p107 = por %p105, %p106
    %s109 = sadd.s32 %s108, 1
    %p112 = scmp.eq.s32.totalorder %s11, 1
    %p113 = scmp.ne.s32.totalorder %s108, %s110
    %p114 = scmp.eq.s32.totalorder %s11, 0
    %p115 = por %p113, %p114
    %p116 = scmp.ne.s32.totalorder %s108, %s110
    %p117 = scmp.eq.s32.totalorder %s16, 1
    %p118 = por %p116, %p117
    %p119 = scmp.ne.s32.totalorder %s110, %s111
    %p120 = scmp.eq.s32.totalorder %s16, 0
    %p121 = por %p119, %p120
    %p122 = scmp.ne.s32.totalorder %s110, %s111
    %p123 = scmp.eq.s32.totalorder %s17, 1
    %p124 = por %p122, %p123
    %p126 = scmp.ne.s32.totalorder %s111, %s125
    %p127 = scmp.eq.s32.totalorder %s17, 0
    %p128 = por %p126, %p127
    %s129 = ssub.s32 %s11, %s18
    %p130 = scmp.eq.s32.totalorder %s129, 0
    %s132 = sadd.s32 %s131, 1
    %s133 = scalar_select %p130, %s131, %s132
    %p136 = pneg %p130
    %p137 = scmp.eq.s32.totalorder %s11, 1
    %p138 = por %p136, %p137
    %p139 = scmp.ne.s32.totalorder %s131, %s134
    %p140 = scmp.eq.s32.totalorder %s11, 0
    %p141 = por %p139, %p140
    %p142 = scmp.ne.s32.totalorder %s131, %s134
    %p143 = scmp.eq.s32.totalorder %s16, 1
    %p144 = por %p142, %p143
    %p145 = scmp.ne.s32.totalorder %s134, %s135
    %p146 = scmp.eq.s32.totalorder %s16, 0
    %p147 = por %p145, %p146
    %p148 = scmp.ne.s32.totalorder %s134, %s135
    %p149 = scmp.eq.s32.totalorder %s17, 1
    %p150 = por %p148, %p149
    %p152 = scmp.ne.s32.totalorder %s135, %s151
    %p153 = scmp.eq.s32.totalorder %s17, 0
    %p154 = por %p152, %p153
    %p155 = scmp.le.s32.totalorder 1, %s11
    %p156 = scmp.lt.s32.totalorder %s11, 3
    %p157 = pnand %p155, %p156
    %p158 = pneg %p157
    // Predicated region
    $region9: #{_lambda_.1} parent=5 // pred_check
      _
    $region10: #{_lambda_.1} parent=5 // pred_check_branch
      %160 = sbr.rel (%p157) target = $region12
    $region11: #{_lambda_.1} parent=5 // pred_region
      %s161 = ssub.s32 %s11, 1
      // Predicated region
      $region13: #{_lambda_.1} parent=11 // pred_check
        %p162 = pneg %p58
      $region14: #{_lambda_.1} parent=11 // pred_check_branch
        %164 = sbr.rel (%p162) target = $region16
      $region15: #{_lambda_.1} parent=11 // pred_region
        _
      $region16: #{_lambda_.1} parent=11 // pred_fallthru
        _
      // Predicated region
      $region17: #{_lambda_.1} parent=11 // pred_check
        %p165 = pneg %p79
      $region18: #{_lambda_.1} parent=11 // pred_check_branch
        %167 = sbr.rel (%p165) target = $region20
      $region19: #{_lambda_.1} parent=11 // pred_region
        _
      $region20: #{_lambda_.1} parent=11 // pred_fallthru
        _
      // Predicated region
      $region21: #{_lambda_.1} parent=11 // pred_check
        %p168 = pneg %p100
      $region22: #{_lambda_.1} parent=11 // pred_check_branch
        %170 = sbr.rel (%p168) target = $region24
      $region23: #{_lambda_.1} parent=11 // pred_region
        _
      $region24: #{_lambda_.1} parent=11 // pred_fallthru
        _
      // Predicated region
      $region25: #{_lambda_.1} parent=11 // pred_check
        %p171 = pneg %p121
      $region26: #{_lambda_.1} parent=11 // pred_check_branch
        %173 = sbr.rel (%p171) target = $region28
      $region27: #{_lambda_.1} parent=11 // pred_region
        _
      $region28: #{_lambda_.1} parent=11 // pred_fallthru
        _
    $region12: #{_lambda_.1} parent=5 // pred_fallthru
      _
    %p174 = scmp.lt.s32.totalorder %s11, 2
    // Predicated region
    $region29: #{_lambda_.1} parent=5 // pred_check
      %p175 = pneg %p174
    $region30: #{_lambda_.1} parent=5 // pred_check_branch
      %177 = sbr.rel (%p175) target = $region32
    $region31: #{_lambda_.1} parent=5 // pred_region
      // Predicated region
      $region33: #{_lambda_.1} parent=31 // pred_check
        %p178 = pneg %p31
      $region34: #{_lambda_.1} parent=31 // pred_check_branch
        %180 = sbr.rel (%p178) target = $region36
      $region35: #{_lambda_.1} parent=31 // pred_region
        %s181 = smul.u32 26, %s11
        %p182 = scmp.lt.s32.totalorder %s181, 51
        %s183 = scalar_select %p182, %s181, 51
        %s184 = smul.addr %s183, 8
        %s185 = scalar_lea.vmem %s0, %s184
        %s186 = smul.u32 26, %s11
      $region36: #{_lambda_.1} parent=31 // pred_fallthru
        _
    $region32: #{_lambda_.1} parent=5 // pred_fallthru
      _
    %p187 = scmp.le.s32.totalorder 1, %s11
    %p188 = scmp.lt.s32.totalorder %s11, 3
    %p189 = pnand %p187, %p188
    %p190 = pneg %p189
    // Predicated region
    $region37: #{_lambda_.1} parent=5 // pred_check
      _
    $region38: #{_lambda_.1} parent=5 // pred_check_branch
      %192 = sbr.rel (%p189) target = $region40
    $region39: #{_lambda_.1} parent=5 // pred_region
      %s193 = ssub.s32 %s11, 1
      %s194 = smul.u32 26, %s16
      %p195 = scmp.lt.s32.totalorder %s194, 51
      %s196 = scalar_select %p195, %s194, 51
      %s197 = smul.addr %s196, 8
      %s198 = scalar_lea.vmem %s0, %s197
      %p199 = pneg %p37
      %p200 = pneg %p34
      %p201 = pneg %p58
      %p202 = pneg %p55
      %p203 = pneg %p79
      %p204 = pneg %p76
      %p205 = pneg %p100
      %p206 = pneg %p97
      %p207 = pneg %p121
      %p208 = pneg %p118
      %p209 = pneg %p147
      %p210 = pneg %p144
      %p211 = scmp.lt.s32.totalorder %s16, 1
      %s212 = scalar_select %p211, %s16, 1
      %s213 = scalar_lea.vmem %s5, %s212
      %s214 = smul.u32 26, %s16
      %p215 = scmp.lt.s32.totalorder %s214, 51
      %s216 = scalar_select %p215, %s214, 51
      %s217 = smul.addr %s216, 8
      %s218 = scalar_lea.vmem %s0, %s217
      %s219 = smul.u32 26, %s16
      %p220 = scmp.lt.s32.totalorder %s16, 1
      %s221 = scalar_select %p220, %s16, 1
      %s222 = scalar_lea.vmem %s5, %s221
      %vm223 = vcmask 261120
      %224 = vst.msk [vmem:[#allocation2] sm:$0xff] %vm223, 0.0
      %225 = vst.msk [vmem:[#allocation2 + $0x8] sm:$0xff] %vm223, 0.0
      %vm226 = vcmask 253952
      %227 = vst.msk [vmem:[#allocation2 + $0x10] sm:$0x1] %vm226, 0.0
      %228 = vst.msk [vmem:[#allocation2 + $0xbc] sm:$0xff] %vm223, 0.0
      %229 = vst.msk [vmem:[#allocation2 + $0xc4] sm:$0xff] %vm223, 0.0
      %230 = vst.msk [vmem:[#allocation2 + $0xcc] sm:$0x1] %vm226, 0.0
      %231 = vst.msk [vmem:[#allocation3] sm:$0xff] %vm223, 0.0
      %232 = vst.msk [vmem:[#allocation3 + $0x8] sm:$0xff] %vm223, 0.0
      %233 = vst.msk [vmem:[#allocation3 + $0x10] sm:$0x1] %vm226, 0.0
      %234 = vst.msk [vmem:[#allocation3 + $0x9a] sm:$0xff] %vm223, 0.0
      %235 = vst.msk [vmem:[#allocation3 + $0xa2] sm:$0xff] %vm223, 0.0
      %236 = vst.msk [vmem:[#allocation3 + $0xaa] sm:$0x1] %vm226, 0.0
      %vm237 = vcmask 523264
      %238 = vst.msk [vmem:[#allocation4] sm:$0xff] %vm237, 0.0
      %239 = vst.msk [vmem:[#allocation4 + $0x8] sm:$0xff] %vm237, 0.0
      %vm240 = vcmask 516096
      %241 = vst.msk [vmem:[#allocation4 + $0x10] sm:$0x1] %vm240, 0.0
      %242 = vst.msk [vmem:[#allocation4 + $0x78] sm:$0xff] %vm237, 0.0
      %243 = vst.msk [vmem:[#allocation4 + $0x80] sm:$0xff] %vm237, 0.0
      %244 = vst.msk [vmem:[#allocation4 + $0x88] sm:$0x1] %vm240, 0.0
      %245 = vst.msk [vmem:[#allocation5] sm:$0xff] %vm237, 0.0
      %246 = vst.msk [vmem:[#allocation5 + $0x8] sm:$0xff] %vm237, 0.0
      %247 = vst.msk [vmem:[#allocation5 + $0x10] sm:$0x1] %vm240, 0.0
      %248 = vst.msk [vmem:[#allocation5 + $0x56] sm:$0xff] %vm237, 0.0
      %249 = vst.msk [vmem:[#allocation5 + $0x5e] sm:$0xff] %vm237, 0.0
      %250 = vst.msk [vmem:[#allocation5 + $0x66] sm:$0x1] %vm240, 0.0
      %v251 = vld [vmem:[%s218] sm:$0xff]
      %v252 = vld [vmem:[%s218 + $0x8] sm:$0xff]
      %v253 = vld [vmem:[%s218 + $0x10] sm:$0xff]
      %v254 = vld [vmem:[%s218 + $0x18] sm:$0xff]
      %v255 = vld [vmem:[%s218 + $0x20] sm:$0xff]
      %v256 = vld [vmem:[%s218 + $0x28] sm:$0xff]
      %v257 = vld [vmem:[%s218 + $0x30] sm:$0xff]
      %v258 = vld [vmem:[%s218 + $0x38] sm:$0xff]
      %v259 = vld [vmem:[%s218 + $0x40] sm:$0xff]
      %v260 = vld [vmem:[%s218 + $0x48] sm:$0xff]
      %v261 = vld [vmem:[%s218 + $0x50] sm:$0xff]
      %v262 = vld [vmem:[%s218 + $0x58] sm:$0xff]
      %v263 = vld [vmem:[%s218 + $0x60] sm:$0xff]
      %v264 = vld [vmem:[%s218 + $0x68] sm:$0xff]
      %v265 = vld [vmem:[%s218 + $0x70] sm:$0xff]
      %v266 = vld [vmem:[%s218 + $0x78] sm:$0xff]
      %v267 = vld [vmem:[%s218 + $0x80] sm:$0xff]
      %v268 = vld [vmem:[%s218 + $0x88] sm:$0xff]
      %v269 = vld [vmem:[%s218 + $0x90] sm:$0xff]
      %v270 = vld [vmem:[%s218 + $0x98] sm:$0xff]
      %v271 = vld [vmem:[%s218 + $0xa0] sm:$0xff]
      %v272 = vld [vmem:[%s218 + $0xa8] sm:$0x7]
      %v273 = vld [vmem:[%s2] sm:$0xff]
      %v274 = vld [vmem:[%s2 + $0x8] sm:$0xff]
      %v275 = vld [vmem:[%s2 + $0x10] sm:$0xff]
      %v276 = vld [vmem:[%s2 + $0x18] sm:$0xff]
      %v277 = vld [vmem:[%s2 + $0x20] sm:$0x1]
      %v278 = vlaneseq
      %v279 = vshrl.u32 %v278, 7
      %v280 = vsub.s32 0, %v279
      %v281 = vrot.slane %v277, %v280
      %v283 = vsel %vm223, %v251, 0
      %v286 = vsel %vm223, %v252, 0
      %v289 = vsel %vm223, %v253, 0
      %v292 = vsel %vm223, %v254, 0
      %v295 = vsel %vm223, %v255, 0
      %v298 = vsel %vm223, %v256, 0
      %v301 = vsel %vm223, %v257, 0
      %v304 = vsel %vm223, %v258, 0
      %v307 = vsel %vm223, %v259, 0
      %v310 = vsel %vm223, %v260, 0
      %v313 = vsel %vm223, %v261, 0
      %v316 = vsel %vm223, %v262, 0
      %v319 = vsel %vm223, %v263, 0
      %v322 = vsel %vm223, %v264, 0
      %v325 = vsel %vm223, %v265, 0
      %v328 = vsel %vm223, %v266, 0
      %v331 = vsel %vm223, %v267, 0
      %v334 = vsel %vm223, %v268, 0
      %v337 = vsel %vm223, %v269, 0
      %v340 = vsel %vm223, %v270, 0
      %v343 = vsel %vm223, %v271, 0
      %v346 = vsel %vm223, %v272, 0
      %348 = vmatprep.subr.mxu0 0.0
      %349 = vmatpush1.msra.mxu0 0.0
      %350 = vmatprep.subr.mxu0 0.0
      %351 = vmatpush1.msra.mxu0 0.0
      %352 = vmatprep.subr.mxu0 0.0
      %353 = vmatpush1.msra.mxu0 0.0
      %354 = vmatprep.subr.mxu0 0.0
      %355 = vmatpush1.msra.mxu0 0.0
      %356 = vmatprep.subr.mxu0 0.0
      %357 = vmatpush1.msra.mxu0 0.0
      %358 = vmatprep.subr.mxu0 0.0
      %359 = vmatpush1.msra.mxu0 0.0
      %360 = vmatprep.subr.mxu0 0.0
      %361 = vmatpush1.msra.mxu0 0.0
      %362 = vmatprep.subr.mxu0 0.0
      %363 = vmatpush1.msra.mxu0 0.0
      %364 = vmatprep.subr.mxu0 0.0
      %365 = vmatpush1.msra.mxu0 0.0
      %366 = vmatprep.subr.mxu0 0.0
      %367 = vmatpush1.msra.mxu0 0.0
      %368 = vmatprep.subr.mxu0 0.0
      %369 = vmatpush1.msra.mxu0 0.0
      %370 = vmatprep.subr.mxu0 0.0
      %371 = vmatpush1.msra.mxu0 0.0
      %372 = vmatprep.subr.mxu0 0.0
      %373 = vmatpush1.msra.mxu0 %v276
      %374 = vmatprep.subr.mxu0 0.0
      %375 = vmatpush1.msra.mxu0 %v275
      %376 = vmatprep.subr.mxu0 0.0
      %377 = vmatpush1.msra.mxu0 %v274
      %378 = vmatprep.subr.mxu0 0.0
      %379 = vmatpush1.msra.mxu0 %v273
      %380 = vmatprep.subr.mxu0 0.0
      %381 = vmatpush2.msra.mxu0 0.0
      %382 = vmatprep.subr.mxu0 0.0
      %383 = vmatpush2.msra.mxu0 0.0
      %384 = vmatprep.subr.mxu0 0.0
      %385 = vmatpush2.msra.mxu0 0.0
      %386 = vmatprep.subr.mxu0 0.0
      %387 = vmatpush2.msra.mxu0 0.0
      %388 = vmatprep.subr.mxu0 0.0
      %389 = vmatpush2.msra.mxu0 0.0
      %390 = vmatprep.subr.mxu0 0.0
      %391 = vmatpush2.msra.mxu0 0.0
      %392 = vmatprep.subr.mxu0 0.0
      %393 = vmatpush2.msra.mxu0 0.0
      %394 = vmatprep.subr.mxu0 0.0
      %395 = vmatpush2.msra.mxu0 0.0
      %396 = vmatprep.subr.mxu0 0.0
      %397 = vmatpush2.msra.mxu0 0.0
      %398 = vmatprep.subr.mxu0 0.0
      %399 = vmatpush2.msra.mxu0 0.0
      %400 = vmatprep.subr.mxu0 0.0
      %401 = vmatpush2.msra.mxu0 0.0
      %402 = vmatprep.subr.mxu0 0.0
      %403 = vmatpush2.msra.mxu0 0.0
      %404 = vmatprep.subr.mxu0 0.0
      %405 = vmatpush2.msra.mxu0 0.0
      %406 = vmatprep.subr.mxu0 0.0
      %407 = vmatpush2.msra.mxu0 0.0
      %408 = vmatprep.subr.mxu0 0.0
      %409 = vmatpush2.msra.mxu0 0.0
      %410 = vmatprep.subr.mxu0 0.0
      %411 = vmatpush2.msra.mxu0 0.0
      %412 = vmatprep.mubr.f32.mxu0 0.0
      %413 = vmatmul.mubr.f32.gmra.mxu0 %v283
      %v414 = vpop.f32.mrf.mxu0
      %v415 = vadd.f32 %v281, %v414
      %v416 = vpop.f32.mrf.mxu0
      %417 = vmatprep.mubr.f32.mxu0 0.0
      %418 = vmatmul.mubr.f32.gmra.mxu0 %v286
      %v419 = vpop.f32.mrf.mxu0
      %v420 = vadd.f32 %v281, %v419
      %v421 = vpop.f32.mrf.mxu0
      %422 = vmatprep.mubr.f32.mxu0 0.0
      %423 = vmatmul.mubr.f32.gmra.mxu0 %v289
      %v424 = vpop.f32.mrf.mxu0
      %v425 = vadd.f32 %v281, %v424
      %v426 = vpop.f32.mrf.mxu0
      %427 = vmatprep.mubr.f32.mxu0 0.0
      %428 = vmatmul.mubr.f32.gmra.mxu0 %v292
      %v429 = vpop.f32.mrf.mxu0
      %v430 = vadd.f32 %v281, %v429
      %v431 = vpop.f32.mrf.mxu0
      %432 = vmatprep.mubr.f32.mxu0 0.0
      %433 = vmatmul.mubr.f32.gmra.mxu0 %v295
      %v434 = vpop.f32.mrf.mxu0
      %v435 = vadd.f32 %v281, %v434
      %v436 = vpop.f32.mrf.mxu0
      %437 = vmatprep.mubr.f32.mxu0 0.0
      %438 = vmatmul.mubr.f32.gmra.mxu0 %v298
      %v439 = vpop.f32.mrf.mxu0
      %v440 = vadd.f32 %v281, %v439
      %v441 = vpop.f32.mrf.mxu0
      %442 = vmatprep.mubr.f32.mxu0 0.0
      %443 = vmatmul.mubr.f32.gmra.mxu0 %v301
      %v444 = vpop.f32.mrf.mxu0
      %v445 = vadd.f32 %v281, %v444
      %v446 = vpop.f32.mrf.mxu0
      %447 = vmatprep.mubr.f32.mxu0 0.0
      %448 = vmatmul.mubr.f32.gmra.mxu0 %v304
      %v449 = vpop.f32.mrf.mxu0
      %v450 = vadd.f32 %v281, %v449
      %v451 = vpop.f32.mrf.mxu0
      %452 = vmatprep.mubr.f32.mxu0 0.0
      %453 = vmatmul.mubr.f32.gmra.mxu0 %v307
      %v454 = vpop.f32.mrf.mxu0
      %v455 = vadd.f32 %v281, %v454
      %v456 = vpop.f32.mrf.mxu0
      %457 = vmatprep.mubr.f32.mxu0 0.0
      %458 = vmatmul.mubr.f32.gmra.mxu0 %v310
      %v459 = vpop.f32.mrf.mxu0
      %v460 = vadd.f32 %v281, %v459
      %v461 = vpop.f32.mrf.mxu0
      %462 = vmatprep.mubr.f32.mxu0 0.0
      %463 = vmatmul.mubr.f32.gmra.mxu0 %v313
      %v464 = vpop.f32.mrf.mxu0
      %v465 = vadd.f32 %v281, %v464
      %v466 = vpop.f32.mrf.mxu0
      %467 = vmatprep.mubr.f32.mxu0 0.0
      %468 = vmatmul.mubr.f32.gmra.mxu0 %v316
      %v469 = vpop.f32.mrf.mxu0
      %v470 = vadd.f32 %v281, %v469
      %v471 = vpop.f32.mrf.mxu0
      %472 = vmatprep.mubr.f32.mxu0 0.0
      %473 = vmatmul.mubr.f32.gmra.mxu0 %v319
      %v474 = vpop.f32.mrf.mxu0
      %v475 = vadd.f32 %v281, %v474
      %v476 = vpop.f32.mrf.mxu0
      %477 = vmatprep.mubr.f32.mxu0 0.0
      %478 = vmatmul.mubr.f32.gmra.mxu0 %v322
      %v479 = vpop.f32.mrf.mxu0
      %v480 = vadd.f32 %v281, %v479
      %v481 = vpop.f32.mrf.mxu0
      %482 = vmatprep.mubr.f32.mxu0 0.0
      %483 = vmatmul.mubr.f32.gmra.mxu0 %v325
      %v484 = vpop.f32.mrf.mxu0
      %v485 = vadd.f32 %v281, %v484
      %v486 = vpop.f32.mrf.mxu0
      %487 = vmatprep.mubr.f32.mxu0 0.0
      %488 = vmatmul.mubr.f32.gmra.mxu0 %v328
      %v489 = vpop.f32.mrf.mxu0
      %v490 = vadd.f32 %v281, %v489
      %v491 = vpop.f32.mrf.mxu0
      %492 = vmatprep.mubr.f32.mxu0 0.0
      %493 = vmatmul.mubr.f32.gmra.mxu0 %v331
      %v494 = vpop.f32.mrf.mxu0
      %v495 = vadd.f32 %v281, %v494
      %v496 = vpop.f32.mrf.mxu0
      %497 = vmatprep.mubr.f32.mxu0 0.0
      %498 = vmatmul.mubr.f32.gmra.mxu0 %v334
      %v499 = vpop.f32.mrf.mxu0
      %v500 = vadd.f32 %v281, %v499
      %v501 = vpop.f32.mrf.mxu0
      %502 = vmatprep.mubr.f32.mxu0 0.0
      %503 = vmatmul.mubr.f32.gmra.mxu0 %v337
      %v504 = vpop.f32.mrf.mxu0
      %v505 = vadd.f32 %v281, %v504
      %v506 = vpop.f32.mrf.mxu0
      %507 = vmatprep.mubr.f32.mxu0 0.0
      %508 = vmatmul.mubr.f32.gmra.mxu0 %v340
      %v509 = vpop.f32.mrf.mxu0
      %v510 = vadd.f32 %v281, %v509
      %v511 = vpop.f32.mrf.mxu0
      %512 = vmatprep.mubr.f32.mxu0 0.0
      %513 = vmatmul.mubr.f32.gmra.mxu0 %v343
      %v514 = vpop.f32.mrf.mxu0
      %v515 = vadd.f32 %v281, %v514
      %v516 = vpop.f32.mrf.mxu0
      %517 = vmatprep.mubr.f32.mxu0 0.0
      %518 = vmatmul.mubr.f32.gmra.mxu0 %v346
      %v519 = vpop.f32.mrf.mxu0
      %v520 = vadd.f32 %v281, %v519
      %v521 = vpop.f32.mrf.mxu0
      %522 = vdwg.mxu0
      %v523 = vmax.f32 %v415, 0.0
      %v524 = vmax.f32 %v420, 0.0
      %v525 = vmax.f32 %v425, 0.0
      %v526 = vmax.f32 %v430, 0.0
      %v527 = vmax.f32 %v435, 0.0
      %v528 = vmax.f32 %v440, 0.0
      %v529 = vmax.f32 %v445, 0.0
      %v530 = vmax.f32 %v450, 0.0
      %v531 = vmax.f32 %v455, 0.0
      %v532 = vmax.f32 %v460, 0.0
      %v533 = vmax.f32 %v465, 0.0
      %v534 = vmax.f32 %v470, 0.0
      %v535 = vmax.f32 %v475, 0.0
      %v536 = vmax.f32 %v480, 0.0
      %v537 = vmax.f32 %v485, 0.0
      %v538 = vmax.f32 %v490, 0.0
      %v539 = vmax.f32 %v495, 0.0
      %v540 = vmax.f32 %v500, 0.0
      %v541 = vmax.f32 %v505, 0.0
      %v542 = vmax.f32 %v510, 0.0
      %v543 = vmax.f32 %v515, 0.0
      %v544 = vmax.f32 %v520, 0.0
      %v545 = vld [vmem:[%s1] sm:$0xff]
      %v546 = vld [vmem:[%s1 + $0x8] sm:$0xff]
      %v547 = vld [vmem:[%s1 + $0x10] sm:$0xff]
      %v548 = vld [vmem:[%s1 + $0x18] sm:$0xff]
      %v549 = vld [vmem:[%s1 + $0x20] sm:$0xff]
      %v550 = vld [vmem:[%s1 + $0x28] sm:$0xff]
      %v551 = vld [vmem:[%s1 + $0x30] sm:$0xff]
      %v552 = vld [vmem:[%s1 + $0x38] sm:$0xff]
      %v553 = vld [vmem:[%s1 + $0x40] sm:$0xff]
      %v554 = vld [vmem:[%s1 + $0x48] sm:$0xff]
      %v555 = vld [vmem:[%s1 + $0x50] sm:$0xff]
      %v556 = vld [vmem:[%s1 + $0x58] sm:$0xff]
      %v557 = vld [vmem:[%s1 + $0x60] sm:$0xff]
      %v558 = vld [vmem:[%s1 + $0x68] sm:$0xff]
      %v559 = vld [vmem:[%s1 + $0x70] sm:$0xff]
      %v560 = vld [vmem:[%s1 + $0x78] sm:$0xff]
      %v561 = vld [vmem:[%s1 + $0x80] sm:$0xff]
      %v562 = vld [vmem:[%s1 + $0x88] sm:$0xff]
      %v563 = vld [vmem:[%s1 + $0x90] sm:$0xff]
      %v564 = vld [vmem:[%s1 + $0x98] sm:$0xff]
      %v565 = vld [vmem:[%s1 + $0xa0] sm:$0xff]
      %v566 = vld [vmem:[%s1 + $0xa8] sm:$0x7]
      %vm567 = vcmp.gt.f32.partialorder %v545, 0.5
      %vm568 = vcmp.gt.f32.partialorder %v546, 0.5
      %vm569 = vcmp.gt.f32.partialorder %v547, 0.5
      %vm570 = vcmp.gt.f32.partialorder %v548, 0.5
      %vm571 = vcmp.gt.f32.partialorder %v549, 0.5
      %vm572 = vcmp.gt.f32.partialorder %v550, 0.5
      %vm573 = vcmp.gt.f32.partialorder %v551, 0.5
      %vm574 = vcmp.gt.f32.partialorder %v552, 0.5
      %vm575 = vcmp.gt.f32.partialorder %v553, 0.5
      %vm576 = vcmp.gt.f32.partialorder %v554, 0.5
      %vm577 = vcmp.gt.f32.partialorder %v555, 0.5
      %vm578 = vcmp.gt.f32.partialorder %v556, 0.5
      %vm579 = vcmp.gt.f32.partialorder %v557, 0.5
      %vm580 = vcmp.gt.f32.partialorder %v558, 0.5
      %vm581 = vcmp.gt.f32.partialorder %v559, 0.5
      %vm582 = vcmp.gt.f32.partialorder %v560, 0.5
      %vm583 = vcmp.gt.f32.partialorder %v561, 0.5
      %vm584 = vcmp.gt.f32.partialorder %v562, 0.5
      %vm585 = vcmp.gt.f32.partialorder %v563, 0.5
      %vm586 = vcmp.gt.f32.partialorder %v564, 0.5
      %vm587 = vcmp.gt.f32.partialorder %v565, 0.5
      %vm588 = vcmp.gt.f32.partialorder %v566, 0.5
      %v589 = vsel %vm567, 1, 0
      %v590 = vsel %vm568, 1, 0
      %v591 = vsel %vm569, 1, 0
      %v592 = vsel %vm570, 1, 0
      %v593 = vsel %vm571, 1, 0
      %v594 = vsel %vm572, 1, 0
      %v595 = vsel %vm573, 1, 0
      %v596 = vsel %vm574, 1, 0
      %v597 = vsel %vm575, 1, 0
      %v598 = vsel %vm576, 1, 0
      %v599 = vsel %vm577, 1, 0
      %v600 = vsel %vm578, 1, 0
      %v601 = vsel %vm579, 1, 0
      %v602 = vsel %vm580, 1, 0
      %v603 = vsel %vm581, 1, 0
      %v604 = vsel %vm582, 1, 0
      %v605 = vsel %vm583, 1, 0
      %v606 = vsel %vm584, 1, 0
      %v607 = vsel %vm585, 1, 0
      %v608 = vsel %vm586, 1, 0
      %v609 = vsel %vm587, 1, 0
      %v610 = vsel %vm588, 1, 0
      %611 = vset.pattern.permute.xlu0 0
      %612 = vperm.xlu0 %611, %v589
      %v613 = vpop.permute.xlu0 %612
      %614 = vset.pattern.permute.xlu0 0
      %615 = vperm.xlu0 %614, %v590
      %v616 = vpop.permute.xlu0 %615
      %617 = vset.pattern.permute.xlu0 0
      %618 = vperm.xlu0 %617, %v591
      %v619 = vpop.permute.xlu0 %618
      %620 = vset.pattern.permute.xlu0 0
      %621 = vperm.xlu0 %620, %v592
      %v622 = vpop.permute.xlu0 %621
      %623 = vset.pattern.permute.xlu0 0
      %624 = vperm.xlu0 %623, %v593
      %v625 = vpop.permute.xlu0 %624
      %626 = vset.pattern.permute.xlu0 0
      %627 = vperm.xlu0 %626, %v594
      %v628 = vpop.permute.xlu0 %627
      %629 = vset.pattern.permute.xlu0 0
      %630 = vperm.xlu0 %629, %v595
      %v631 = vpop.permute.xlu0 %630
      %632 = vset.pattern.permute.xlu0 0
      %633 = vperm.xlu0 %632, %v596
      %v634 = vpop.permute.xlu0 %633
      %635 = vset.pattern.permute.xlu0 0
      %636 = vperm.xlu0 %635, %v597
      %v637 = vpop.permute.xlu0 %636
      %638 = vset.pattern.permute.xlu0 0
      %639 = vperm.xlu0 %638, %v598
      %v640 = vpop.permute.xlu0 %639
      %641 = vset.pattern.permute.xlu0 0
      %642 = vperm.xlu0 %641, %v599
      %v643 = vpop.permute.xlu0 %642
      %644 = vset.pattern.permute.xlu0 0
      %645 = vperm.xlu0 %644, %v600
      %v646 = vpop.permute.xlu0 %645
      %647 = vset.pattern.permute.xlu0 0
      %648 = vperm.xlu0 %647, %v601
      %v649 = vpop.permute.xlu0 %648
      %650 = vset.pattern.permute.xlu0 0
      %651 = vperm.xlu0 %650, %v602
      %v652 = vpop.permute.xlu0 %651
      %653 = vset.pattern.permute.xlu0 0
      %654 = vperm.xlu0 %653, %v603
      %v655 = vpop.permute.xlu0 %654
      %656 = vset.pattern.permute.xlu0 0
      %657 = vperm.xlu0 %656, %v604
      %v658 = vpop.permute.xlu0 %657
      %659 = vset.pattern.permute.xlu0 0
      %660 = vperm.xlu0 %659, %v605
      %v661 = vpop.permute.xlu0 %660
      %662 = vset.pattern.permute.xlu0 0
      %663 = vperm.xlu0 %662, %v606
      %v664 = vpop.permute.xlu0 %663
      %665 = vset.pattern.permute.xlu0 0
      %666 = vperm.xlu0 %665, %v607
      %v667 = vpop.permute.xlu0 %666
      %668 = vset.pattern.permute.xlu0 0
      %669 = vperm.xlu0 %668, %v608
      %v670 = vpop.permute.xlu0 %669
      %671 = vset.pattern.permute.xlu0 0
      %672 = vperm.xlu0 %671, %v609
      %v673 = vpop.permute.xlu0 %672
      %674 = vset.pattern.permute.xlu0 0
      %675 = vperm.xlu0 %674, %v610
      %v676 = vpop.permute.xlu0 %675
      %vm677 = vcmp.eq.s32.totalorder %v613, 1
      %vm678 = vcmp.eq.s32.totalorder %v616, 1
      %vm679 = vcmp.eq.s32.totalorder %v619, 1
      %vm680 = vcmp.eq.s32.totalorder %v622, 1
      %vm681 = vcmp.eq.s32.totalorder %v625, 1
      %vm682 = vcmp.eq.s32.totalorder %v628, 1
      %vm683 = vcmp.eq.s32.totalorder %v631, 1
      %vm684 = vcmp.eq.s32.totalorder %v634, 1
      %vm685 = vcmp.eq.s32.totalorder %v637, 1
      %vm686 = vcmp.eq.s32.totalorder %v640, 1
      %vm687 = vcmp.eq.s32.totalorder %v643, 1
      %vm688 = vcmp.eq.s32.totalorder %v646, 1
      %vm689 = vcmp.eq.s32.totalorder %v649, 1
      %vm690 = vcmp.eq.s32.totalorder %v652, 1
      %vm691 = vcmp.eq.s32.totalorder %v655, 1
      %vm692 = vcmp.eq.s32.totalorder %v658, 1
      %vm693 = vcmp.eq.s32.totalorder %v661, 1
      %vm694 = vcmp.eq.s32.totalorder %v664, 1
      %vm695 = vcmp.eq.s32.totalorder %v667, 1
      %vm696 = vcmp.eq.s32.totalorder %v670, 1
      %vm697 = vcmp.eq.s32.totalorder %v673, 1
      %vm698 = vcmp.eq.s32.totalorder %v676, 1
      %v699 = vsel %vm677, %v523, 0.0
      %v700 = vsel %vm678, %v524, 0.0
      %v701 = vsel %vm679, %v525, 0.0
      %v702 = vsel %vm680, %v526, 0.0
      %v703 = vsel %vm681, %v527, 0.0
      %v704 = vsel %vm682, %v528, 0.0
      %v705 = vsel %vm683, %v529, 0.0
      %v706 = vsel %vm684, %v530, 0.0
      %v707 = vsel %vm685, %v531, 0.0
      %v708 = vsel %vm686, %v532, 0.0
      %v709 = vsel %vm687, %v533, 0.0
      %v710 = vsel %vm688, %v534, 0.0
      %v711 = vsel %vm689, %v535, 0.0
      %v712 = vsel %vm690, %v536, 0.0
      %v713 = vsel %vm691, %v537, 0.0
      %v714 = vsel %vm692, %v538, 0.0
      %v715 = vsel %vm693, %v539, 0.0
      %v716 = vsel %vm694, %v540, 0.0
      %v717 = vsel %vm695, %v541, 0.0
      %v718 = vsel %vm696, %v542, 0.0
      %v719 = vsel %vm697, %v543, 0.0
      %v720 = vsel %vm698, %v544, 0.0
      %721 = vst.msk [vmem:[#allocation2 + $0x11] sm:$0xff] %vm223, %v699
      %722 = vst.msk [vmem:[#allocation2 + $0x19] sm:$0xff] %vm223, %v700
      %723 = vst.msk [vmem:[#allocation2 + $0x21] sm:$0xff] %vm223, %v701
      %724 = vst.msk [vmem:[#allocation2 + $0x29] sm:$0xff] %vm223, %v702
      %725 = vst.msk [vmem:[#allocation2 + $0x31] sm:$0xff] %vm223, %v703
      %726 = vst.msk [vmem:[#allocation2 + $0x39] sm:$0xff] %vm223, %v704
      %727 = vst.msk [vmem:[#allocation2 + $0x41] sm:$0xff] %vm223, %v705
      %728 = vst.msk [vmem:[#allocation2 + $0x49] sm:$0xff] %vm223, %v706
      %729 = vst.msk [vmem:[#allocation2 + $0x51] sm:$0xff] %vm223, %v707
      %730 = vst.msk [vmem:[#allocation2 + $0x59] sm:$0xff] %vm223, %v708
      %731 = vst.msk [vmem:[#allocation2 + $0x61] sm:$0xff] %vm223, %v709
      %732 = vst.msk [vmem:[#allocation2 + $0x69] sm:$0xff] %vm223, %v710
      %733 = vst.msk [vmem:[#allocation2 + $0x71] sm:$0xff] %vm223, %v711
      %734 = vst.msk [vmem:[#allocation2 + $0x79] sm:$0xff] %vm223, %v712
      %735 = vst.msk [vmem:[#allocation2 + $0x81] sm:$0xff] %vm223, %v713
      %736 = vst.msk [vmem:[#allocation2 + $0x89] sm:$0xff] %vm223, %v714
      %737 = vst.msk [vmem:[#allocation2 + $0x91] sm:$0xff] %vm223, %v715
      %738 = vst.msk [vmem:[#allocation2 + $0x99] sm:$0xff] %vm223, %v716
      %739 = vst.msk [vmem:[#allocation2 + $0xa1] sm:$0xff] %vm223, %v717
      %740 = vst.msk [vmem:[#allocation2 + $0xa9] sm:$0xff] %vm223, %v718
      %741 = vst.msk [vmem:[#allocation2 + $0xb1] sm:$0xff] %vm223, %v719
      %vm742 = vcmask 256000
      %743 = vst.msk [vmem:[#allocation2 + $0xb9] sm:$0x7] %vm742, %v720
      %v744 = vld [vmem:[#allocation2] sm:$0xff]
      %v745 = vld [vmem:[#allocation2 + $0x8] sm:$0xff]
      %v746 = vld [vmem:[#allocation2 + $0x10] sm:$0xff]
      %v747 = vld [vmem:[#allocation2 + $0x18] sm:$0xff]
      %v748 = vld [vmem:[#allocation2 + $0x20] sm:$0xff]
      %v749 = vld [vmem:[#allocation2 + $0x28] sm:$0xff]
      %v750 = vld [vmem:[#allocation2 + $0x30] sm:$0xff]
      %v751 = vld [vmem:[#allocation2 + $0x38] sm:$0xff]
      %v752 = vld [vmem:[#allocation2 + $0x40] sm:$0xff]
      %v753 = vld [vmem:[#allocation2 + $0x48] sm:$0xff]
      %v754 = vld [vmem:[#allocation2 + $0x50] sm:$0xff]
      %v755 = vld [vmem:[#allocation2 + $0x58] sm:$0xff]
      %v756 = vld [vmem:[#allocation2 + $0x60] sm:$0xff]
      %v757 = vld [vmem:[#allocation2 + $0x68] sm:$0xff]
      %v758 = vld [vmem:[#allocation2 + $0x70] sm:$0xff]
      %v759 = vld [vmem:[#allocation2 + $0x78] sm:$0xff]
      %v760 = vld [vmem:[#allocation2 + $0x80] sm:$0xff]
      %v761 = vld [vmem:[#allocation2 + $0x88] sm:$0xff]
      %v762 = vld [vmem:[#allocation2 + $0x90] sm:$0xff]
      %v763 = vld [vmem:[#allocation2 + $0x98] sm:$0xff]
      %v764 = vld [vmem:[#allocation2 + $0xa0] sm:$0xff]
      %v765 = vld [vmem:[#allocation2 + $0xa8] sm:$0x7]
      %v766 = vld [vmem:[%s2 + $0x21] sm:$0x1]
      %v767 = vlaneseq
      %v768 = vshrl.u32 %v767, 7
      %v769 = vsub.s32 0, %v768
      %v770 = vrot.slane %v766, %v769
      %v771 = vmul.f32 %v744, %v770
      %v772 = vmul.f32 %v745, %v770
      %v773 = vmul.f32 %v746, %v770
      %v774 = vmul.f32 %v747, %v770
      %v775 = vmul.f32 %v748, %v770
      %v776 = vmul.f32 %v749, %v770
      %v777 = vmul.f32 %v750, %v770
      %v778 = vmul.f32 %v751, %v770
      %v779 = vmul.f32 %v752, %v770
      %v780 = vmul.f32 %v753, %v770
      %v781 = vmul.f32 %v754, %v770
      %v782 = vmul.f32 %v755, %v770
      %v783 = vmul.f32 %v756, %v770
      %v784 = vmul.f32 %v757, %v770
      %v785 = vmul.f32 %v758, %v770
      %v786 = vmul.f32 %v759, %v770
      %v787 = vmul.f32 %v760, %v770
      %v788 = vmul.f32 %v761, %v770
      %v789 = vmul.f32 %v762, %v770
      %v790 = vmul.f32 %v763, %v770
      %v791 = vmul.f32 %v764, %v770
      %v792 = vmul.f32 %v765, %v770
      %v793 = vld [vmem:[#allocation2 + $0x1] sm:$0xff]
      %v794 = vld [vmem:[#allocation2 + $0x9] sm:$0xff]
      %v795 = vld [vmem:[#allocation2 + $0x11] sm:$0xff]
      %v796 = vld [vmem:[#allocation2 + $0x19] sm:$0xff]
      %v797 = vld [vmem:[#allocation2 + $0x21] sm:$0xff]
      %v798 = vld [vmem:[#allocation2 + $0x29] sm:$0xff]
      %v799 = vld [vmem:[#allocation2 + $0x31] sm:$0xff]
      %v800 = vld [vmem:[#allocation2 + $0x39] sm:$0xff]
      %v801 = vld [vmem:[#allocation2 + $0x41] sm:$0xff]
      %v802 = vld [vmem:[#allocation2 + $0x49] sm:$0xff]
      %v803 = vld [vmem:[#allocation2 + $0x51] sm:$0xff]
      %v804 = vld [vmem:[#allocation2 + $0x59] sm:$0xff]
      %v805 = vld [vmem:[#allocation2 + $0x61] sm:$0xff]
      %v806 = vld [vmem:[#allocation2 + $0x69] sm:$0xff]
      %v807 = vld [vmem:[#allocation2 + $0x71] sm:$0xff]
      %v808 = vld [vmem:[#allocation2 + $0x79] sm:$0xff]
      %v809 = vld [vmem:[#allocation2 + $0x81] sm:$0xff]
      %v810 = vld [vmem:[#allocation2 + $0x89] sm:$0xff]
      %v811 = vld [vmem:[#allocation2 + $0x91] sm:$0xff]
      %v812 = vld [vmem:[#allocation2 + $0x99] sm:$0xff]
      %v813 = vld [vmem:[#allocation2 + $0xa1] sm:$0xff]
      %v814 = vld [vmem:[#allocation2 + $0xa9] sm:$0x7]
      %v815 = vld [vmem:[%s2 + $0x22] sm:$0x1]
      %v816 = vlaneseq
      %v817 = vshrl.u32 %v816, 7
      %v818 = vsub.s32 0, %v817
      %v819 = vrot.slane %v815, %v818
      %v820 = vmul.f32 %v793, %v819
      %v821 = vmul.f32 %v794, %v819
      %v822 = vmul.f32 %v795, %v819
      %v823 = vmul.f32 %v796, %v819
      %v824 = vmul.f32 %v797, %v819
      %v825 = vmul.f32 %v798, %v819
      %v826 = vmul.f32 %v799, %v819
      %v827 = vmul.f32 %v800, %v819
      %v828 = vmul.f32 %v801, %v819
      %v829 = vmul.f32 %v802, %v819
      %v830 = vmul.f32 %v803, %v819
      %v831 = vmul.f32 %v804, %v819
      %v832 = vmul.f32 %v805, %v819
      %v833 = vmul.f32 %v806, %v819
      %v834 = vmul.f32 %v807, %v819
      %v835 = vmul.f32 %v808, %v819
      %v836 = vmul.f32 %v809, %v819
      %v837 = vmul.f32 %v810, %v819
      %v838 = vmul.f32 %v811, %v819
      %v839 = vmul.f32 %v812, %v819
      %v840 = vmul.f32 %v813, %v819
      %v841 = vmul.f32 %v814, %v819
      %v842 = vadd.f32 %v771, %v820
      %v843 = vadd.f32 %v772, %v821
      %v844 = vadd.f32 %v773, %v822
      %v845 = vadd.f32 %v774, %v823
      %v846 = vadd.f32 %v775, %v824
      %v847 = vadd.f32 %v776, %v825
      %v848 = vadd.f32 %v777, %v826
      %v849 = vadd.f32 %v778, %v827
      %v850 = vadd.f32 %v779, %v828
      %v851 = vadd.f32 %v780, %v829
      %v852 = vadd.f32 %v781, %v830
      %v853 = vadd.f32 %v782, %v831
      %v854 = vadd.f32 %v783, %v832
      %v855 = vadd.f32 %v784, %v833
      %v856 = vadd.f32 %v785, %v834
      %v857 = vadd.f32 %v786, %v835
      %v858 = vadd.f32 %v787, %v836
      %v859 = vadd.f32 %v788, %v837
      %v860 = vadd.f32 %v789, %v838
      %v861 = vadd.f32 %v790, %v839
      %v862 = vadd.f32 %v791, %v840
      %v863 = vadd.f32 %v792, %v841
      %v864 = vld [vmem:[#allocation2 + $0x2] sm:$0xff]
      %v865 = vld [vmem:[#allocation2 + $0xa] sm:$0xff]
      %v866 = vld [vmem:[#allocation2 + $0x12] sm:$0xff]
      %v867 = vld [vmem:[#allocation2 + $0x1a] sm:$0xff]
      %v868 = vld [vmem:[#allocation2 + $0x22] sm:$0xff]
      %v869 = vld [vmem:[#allocation2 + $0x2a] sm:$0xff]
      %v870 = vld [vmem:[#allocation2 + $0x32] sm:$0xff]
      %v871 = vld [vmem:[#allocation2 + $0x3a] sm:$0xff]
      %v872 = vld [vmem:[#allocation2 + $0x42] sm:$0xff]
      %v873 = vld [vmem:[#allocation2 + $0x4a] sm:$0xff]
      %v874 = vld [vmem:[#allocation2 + $0x52] sm:$0xff]
      %v875 = vld [vmem:[#allocation2 + $0x5a] sm:$0xff]
      %v876 = vld [vmem:[#allocation2 + $0x62] sm:$0xff]
      %v877 = vld [vmem:[#allocation2 + $0x6a] sm:$0xff]
      %v878 = vld [vmem:[#allocation2 + $0x72] sm:$0xff]
      %v879 = vld [vmem:[#allocation2 + $0x7a] sm:$0xff]
      %v880 = vld [vmem:[#allocation2 + $0x82] sm:$0xff]
      %v881 = vld [vmem:[#allocation2 + $0x8a] sm:$0xff]
      %v882 = vld [vmem:[#allocation2 + $0x92] sm:$0xff]
      %v883 = vld [vmem:[#allocation2 + $0x9a] sm:$0xff]
      %v884 = vld [vmem:[#allocation2 + $0xa2] sm:$0xff]
      %v885 = vld [vmem:[#allocation2 + $0xaa] sm:$0x7]
      %v886 = vld [vmem:[%s2 + $0x23] sm:$0x1]
      %v887 = vlaneseq
      %v888 = vshrl.u32 %v887, 7
      %v889 = vsub.s32 0, %v888
      %v890 = vrot.slane %v886, %v889
      %v891 = vmul.f32 %v864, %v890
      %v892 = vmul.f32 %v865, %v890
      %v893 = vmul.f32 %v866, %v890
      %v894 = vmul.f32 %v867, %v890
      %v895 = vmul.f32 %v868, %v890
      %v896 = vmul.f32 %v869, %v890
      %v897 = vmul.f32 %v870, %v890
      %v898 = vmul.f32 %v871, %v890
      %v899 = vmul.f32 %v872, %v890
      %v900 = vmul.f32 %v873, %v890
      %v901 = vmul.f32 %v874, %v890
      %v902 = vmul.f32 %v875, %v890
      %v903 = vmul.f32 %v876, %v890
      %v904 = vmul.f32 %v877, %v890
      %v905 = vmul.f32 %v878, %v890
      %v906 = vmul.f32 %v879, %v890
      %v907 = vmul.f32 %v880, %v890
      %v908 = vmul.f32 %v881, %v890
      %v909 = vmul.f32 %v882, %v890
      %v910 = vmul.f32 %v883, %v890
      %v911 = vmul.f32 %v884, %v890
      %v912 = vmul.f32 %v885, %v890
      %v913 = vadd.f32 %v842, %v891
      %v914 = vadd.f32 %v843, %v892
      %v915 = vadd.f32 %v844, %v893
      %v916 = vadd.f32 %v845, %v894
      %v917 = vadd.f32 %v846, %v895
      %v918 = vadd.f32 %v847, %v896
      %v919 = vadd.f32 %v848, %v897
      %v920 = vadd.f32 %v849, %v898
      %v921 = vadd.f32 %v850, %v899
      %v922 = vadd.f32 %v851, %v900
      %v923 = vadd.f32 %v852, %v901
      %v924 = vadd.f32 %v853, %v902
      %v925 = vadd.f32 %v854, %v903
      %v926 = vadd.f32 %v855, %v904
      %v927 = vadd.f32 %v856, %v905
      %v928 = vadd.f32 %v857, %v906
      %v929 = vadd.f32 %v858, %v907
      %v930 = vadd.f32 %v859, %v908
      %v931 = vadd.f32 %v860, %v909
      %v932 = vadd.f32 %v861, %v910
      %v933 = vadd.f32 %v862, %v911
      %v934 = vadd.f32 %v863, %v912
      %v935 = vld [vmem:[#allocation2 + $0xa8] sm:$0xff]
      %v936 = vld [vmem:[#allocation2 + $0xb0] sm:$0xff]
      %v937 = vld [vmem:[#allocation2 + $0xb8] sm:$0x7]
      %v938 = vld [vmem:[%s2 + $0x24] sm:$0x1]
      %v939 = vlaneseq
      %v940 = vshrl.u32 %v939, 7
      %v941 = vsub.s32 0, %v940
      %v942 = vrot.slane %v938, %v941
      %v943 = vmul.f32 %v746, %v942
      %v944 = vmul.f32 %v747, %v942
      %v945 = vmul.f32 %v748, %v942
      %v946 = vmul.f32 %v749, %v942
      %v947 = vmul.f32 %v750, %v942
      %v948 = vmul.f32 %v751, %v942
      %v949 = vmul.f32 %v752, %v942
      %v950 = vmul.f32 %v753, %v942
      %v951 = vmul.f32 %v754, %v942
      %v952 = vmul.f32 %v755, %v942
      %v953 = vmul.f32 %v756, %v942
      %v954 = vmul.f32 %v757, %v942
      %v955 = vmul.f32 %v758, %v942
      %v956 = vmul.f32 %v759, %v942
      %v957 = vmul.f32 %v760, %v942
      %v958 = vmul.f32 %v761, %v942
      %v959 = vmul.f32 %v762, %v942
      %v960 = vmul.f32 %v763, %v942
      %v961 = vmul.f32 %v764, %v942
      %v962 = vmul.f32 %v935, %v942
      %v963 = vmul.f32 %v936, %v942
      %v964 = vmul.f32 %v937, %v942
      %v965 = vadd.f32 %v913, %v943
      %v966 = vadd.f32 %v914, %v944
      %v967 = vadd.f32 %v915, %v945
      %v968 = vadd.f32 %v916, %v946
      %v969 = vadd.f32 %v917, %v947
      %v970 = vadd.f32 %v918, %v948
      %v971 = vadd.f32 %v919, %v949
      %v972 = vadd.f32 %v920, %v950
      %v973 = vadd.f32 %v921, %v951
      %v974 = vadd.f32 %v922, %v952
      %v975 = vadd.f32 %v923, %v953
      %v976 = vadd.f32 %v924, %v954
      %v977 = vadd.f32 %v925, %v955
      %v978 = vadd.f32 %v926, %v956
      %v979 = vadd.f32 %v927, %v957
      %v980 = vadd.f32 %v928, %v958
      %v981 = vadd.f32 %v929, %v959
      %v982 = vadd.f32 %v930, %v960
      %v983 = vadd.f32 %v931, %v961
      %v984 = vadd.f32 %v932, %v962
      %v985 = vadd.f32 %v933, %v963
      %v986 = vadd.f32 %v934, %v964
      %v987 = vld [vmem:[#allocation2 + $0xa9] sm:$0xff]
      %v988 = vld [vmem:[#allocation2 + $0xb1] sm:$0xff]
      %v989 = vld [vmem:[#allocation2 + $0xb9] sm:$0x7]
      %v990 = vld [vmem:[%s2 + $0x25] sm:$0x1]
      %v991 = vlaneseq
      %v992 = vshrl.u32 %v991, 7
      %v993 = vsub.s32 0, %v992
      %v994 = vrot.slane %v990, %v993
      %v995 = vmul.f32 %v795, %v994
      %v996 = vmul.f32 %v796, %v994
      %v997 = vmul.f32 %v797, %v994
      %v998 = vmul.f32 %v798, %v994
      %v999 = vmul.f32 %v799, %v994
      %v1000 = vmul.f32 %v800, %v994
      %v1001 = vmul.f32 %v801, %v994
      %v1002 = vmul.f32 %v802, %v994
      %v1003 = vmul.f32 %v803, %v994
      %v1004 = vmul.f32 %v804, %v994
      %v1005 = vmul.f32 %v805, %v994
      %v1006 = vmul.f32 %v806, %v994
      %v1007 = vmul.f32 %v807, %v994
      %v1008 = vmul.f32 %v808, %v994
      %v1009 = vmul.f32 %v809, %v994
      %v1010 = vmul.f32 %v810, %v994
      %v1011 = vmul.f32 %v811, %v994
      %v1012 = vmul.f32 %v812, %v994
      %v1013 = vmul.f32 %v813, %v994
      %v1014 = vmul.f32 %v987, %v994
      %v1015 = vmul.f32 %v988, %v994
      %v1016 = vmul.f32 %v989, %v994
      %v1017 = vadd.f32 %v965, %v995
      %v1018 = vadd.f32 %v966, %v996
      %v1019 = vadd.f32 %v967, %v997
      %v1020 = vadd.f32 %v968, %v998
      %v1021 = vadd.f32 %v969, %v999
      %v1022 = vadd.f32 %v970, %v1000
      %v1023 = vadd.f32 %v971, %v1001
      %v1024 = vadd.f32 %v972, %v1002
      %v1025 = vadd.f32 %v973, %v1003
      %v1026 = vadd.f32 %v974, %v1004
      %v1027 = vadd.f32 %v975, %v1005
      %v1028 = vadd.f32 %v976, %v1006
      %v1029 = vadd.f32 %v977, %v1007
      %v1030 = vadd.f32 %v978, %v1008
      %v1031 = vadd.f32 %v979, %v1009
      %v1032 = vadd.f32 %v980, %v1010
      %v1033 = vadd.f32 %v981, %v1011
      %v1034 = vadd.f32 %v982, %v1012
      %v1035 = vadd.f32 %v983, %v1013
      %v1036 = vadd.f32 %v984, %v1014
      %v1037 = vadd.f32 %v985, %v1015
      %v1038 = vadd.f32 %v986, %v1016
      %v1039 = vld [vmem:[#allocation2 + $0xaa] sm:$0xff]
      %v1040 = vld [vmem:[#allocation2 + $0xb2] sm:$0xff]
      %v1041 = vld [vmem:[#allocation2 + $0xba] sm:$0x7]
      %v1042 = vld [vmem:[%s2 + $0x26] sm:$0x1]
      %v1043 = vlaneseq
      %v1044 = vshrl.u32 %v1043, 7
      %v1045 = vsub.s32 0, %v1044
      %v1046 = vrot.slane %v1042, %v1045
      %v1047 = vmul.f32 %v866, %v1046
      %v1048 = vmul.f32 %v867, %v1046
      %v1049 = vmul.f32 %v868, %v1046
      %v1050 = vmul.f32 %v869, %v1046
      %v1051 = vmul.f32 %v870, %v1046
      %v1052 = vmul.f32 %v871, %v1046
      %v1053 = vmul.f32 %v872, %v1046
      %v1054 = vmul.f32 %v873, %v1046
      %v1055 = vmul.f32 %v874, %v1046
      %v1056 = vmul.f32 %v875, %v1046
      %v1057 = vmul.f32 %v876, %v1046
      %v1058 = vmul.f32 %v877, %v1046
      %v1059 = vmul.f32 %v878, %v1046
      %v1060 = vmul.f32 %v879, %v1046
      %v1061 = vmul.f32 %v880, %v1046
      %v1062 = vmul.f32 %v881, %v1046
      %v1063 = vmul.f32 %v882, %v1046
      %v1064 = vmul.f32 %v883, %v1046
      %v1065 = vmul.f32 %v884, %v1046
      %v1066 = vmul.f32 %v1039, %v1046
      %v1067 = vmul.f32 %v1040, %v1046
      %v1068 = vmul.f32 %v1041, %v1046
      %v1069 = vadd.f32 %v1017, %v1047
      %v1070 = vadd.f32 %v1018, %v1048
      %v1071 = vadd.f32 %v1019, %v1049
      %v1072 = vadd.f32 %v1020, %v1050
      %v1073 = vadd.f32 %v1021, %v1051
      %v1074 = vadd.f32 %v1022, %v1052
      %v1075 = vadd.f32 %v1023, %v1053
      %v1076 = vadd.f32 %v1024, %v1054
      %v1077 = vadd.f32 %v1025, %v1055
      %v1078 = vadd.f32 %v1026, %v1056
      %v1079 = vadd.f32 %v1027, %v1057
      %v1080 = vadd.f32 %v1028, %v1058
      %v1081 = vadd.f32 %v1029, %v1059
      %v1082 = vadd.f32 %v1030, %v1060
      %v1083 = vadd.f32 %v1031, %v1061
      %v1084 = vadd.f32 %v1032, %v1062
      %v1085 = vadd.f32 %v1033, %v1063
      %v1086 = vadd.f32 %v1034, %v1064
      %v1087 = vadd.f32 %v1035, %v1065
      %v1088 = vadd.f32 %v1036, %v1066
      %v1089 = vadd.f32 %v1037, %v1067
      %v1090 = vadd.f32 %v1038, %v1068
      %v1091 = vld [vmem:[#allocation2 + $0xb8] sm:$0xff]
      %v1092 = vld [vmem:[#allocation2 + $0xc0] sm:$0xff]
      %v1093 = vld [vmem:[#allocation2 + $0xc8] sm:$0x7]
      %v1094 = vld [vmem:[%s2 + $0x27] sm:$0x1]
      %v1095 = vlaneseq
      %v1096 = vshrl.u32 %v1095, 7
      %v1097 = vsub.s32 0, %v1096
      %v1098 = vrot.slane %v1094, %v1097
      %v1099 = vmul.f32 %v748, %v1098
      %v1100 = vmul.f32 %v749, %v1098
      %v1101 = vmul.f32 %v750, %v1098
      %v1102 = vmul.f32 %v751, %v1098
      %v1103 = vmul.f32 %v752, %v1098
      %v1104 = vmul.f32 %v753, %v1098
      %v1105 = vmul.f32 %v754, %v1098
      %v1106 = vmul.f32 %v755, %v1098
      %v1107 = vmul.f32 %v756, %v1098
      %v1108 = vmul.f32 %v757, %v1098
      %v1109 = vmul.f32 %v758, %v1098
      %v1110 = vmul.f32 %v759, %v1098
      %v1111 = vmul.f32 %v760, %v1098
      %v1112 = vmul.f32 %v761, %v1098
      %v1113 = vmul.f32 %v762, %v1098
      %v1114 = vmul.f32 %v763, %v1098
      %v1115 = vmul.f32 %v764, %v1098
      %v1116 = vmul.f32 %v935, %v1098
      %v1117 = vmul.f32 %v936, %v1098
      %v1118 = vmul.f32 %v1091, %v1098
      %v1119 = vmul.f32 %v1092, %v1098
      %v1120 = vmul.f32 %v1093, %v1098
      %v1121 = vadd.f32 %v1069, %v1099
      %v1122 = vadd.f32 %v1070, %v1100
      %v1123 = vadd.f32 %v1071, %v1101
      %v1124 = vadd.f32 %v1072, %v1102
      %v1125 = vadd.f32 %v1073, %v1103
      %v1126 = vadd.f32 %v1074, %v1104
      %v1127 = vadd.f32 %v1075, %v1105
      %v1128 = vadd.f32 %v1076, %v1106
      %v1129 = vadd.f32 %v1077, %v1107
      %v1130 = vadd.f32 %v1078, %v1108
      %v1131 = vadd.f32 %v1079, %v1109
      %v1132 = vadd.f32 %v1080, %v1110
      %v1133 = vadd.f32 %v1081, %v1111
      %v1134 = vadd.f32 %v1082, %v1112
      %v1135 = vadd.f32 %v1083, %v1113
      %v1136 = vadd.f32 %v1084, %v1114
      %v1137 = vadd.f32 %v1085, %v1115
      %v1138 = vadd.f32 %v1086, %v1116
      %v1139 = vadd.f32 %v1087, %v1117
      %v1140 = vadd.f32 %v1088, %v1118
      %v1141 = vadd.f32 %v1089, %v1119
      %v1142 = vadd.f32 %v1090, %v1120
      %v1143 = vld [vmem:[#allocation2 + $0xb9] sm:$0xff]
      %v1144 = vld [vmem:[#allocation2 + $0xc1] sm:$0xff]
      %v1145 = vld [vmem:[#allocation2 + $0xc9] sm:$0x7]
      %v1146 = vld [vmem:[%s2 + $0x28] sm:$0x1]
      %v1147 = vlaneseq
      %v1148 = vshrl.u32 %v1147, 7
      %v1149 = vsub.s32 0, %v1148
      %v1150 = vrot.slane %v1146, %v1149
      %v1151 = vmul.f32 %v797, %v1150
      %v1152 = vmul.f32 %v798, %v1150
      %v1153 = vmul.f32 %v799, %v1150
      %v1154 = vmul.f32 %v800, %v1150
      %v1155 = vmul.f32 %v801, %v1150
      %v1156 = vmul.f32 %v802, %v1150
      %v1157 = vmul.f32 %v803, %v1150
      %v1158 = vmul.f32 %v804, %v1150
      %v1159 = vmul.f32 %v805, %v1150
      %v1160 = vmul.f32 %v806, %v1150
      %v1161 = vmul.f32 %v807, %v1150
      %v1162 = vmul.f32 %v808, %v1150
      %v1163 = vmul.f32 %v809, %v1150
      %v1164 = vmul.f32 %v810, %v1150
      %v1165 = vmul.f32 %v811, %v1150
      %v1166 = vmul.f32 %v812, %v1150
      %v1167 = vmul.f32 %v813, %v1150
      %v1168 = vmul.f32 %v987, %v1150
      %v1169 = vmul.f32 %v988, %v1150
      %v1170 = vmul.f32 %v1143, %v1150
      %v1171 = vmul.f32 %v1144, %v1150
      %v1172 = vmul.f32 %v1145, %v1150
      %v1173 = vadd.f32 %v1121, %v1151
      %v1174 = vadd.f32 %v1122, %v1152
      %v1175 = vadd.f32 %v1123, %v1153
      %v1176 = vadd.f32 %v1124, %v1154
      %v1177 = vadd.f32 %v1125, %v1155
      %v1178 = vadd.f32 %v1126, %v1156
      %v1179 = vadd.f32 %v1127, %v1157
      %v1180 = vadd.f32 %v1128, %v1158
      %v1181 = vadd.f32 %v1129, %v1159
      %v1182 = vadd.f32 %v1130, %v1160
      %v1183 = vadd.f32 %v1131, %v1161
      %v1184 = vadd.f32 %v1132, %v1162
      %v1185 = vadd.f32 %v1133, %v1163
      %v1186 = vadd.f32 %v1134, %v1164
      %v1187 = vadd.f32 %v1135, %v1165
      %v1188 = vadd.f32 %v1136, %v1166
      %v1189 = vadd.f32 %v1137, %v1167
      %v1190 = vadd.f32 %v1138, %v1168
      %v1191 = vadd.f32 %v1139, %v1169
      %v1192 = vadd.f32 %v1140, %v1170
      %v1193 = vadd.f32 %v1141, %v1171
      %v1194 = vadd.f32 %v1142, %v1172
      %v1195 = vld [vmem:[#allocation2 + $0xba] sm:$0xff]
      %v1196 = vld [vmem:[#allocation2 + $0xc2] sm:$0xff]
      %v1197 = vld [vmem:[#allocation2 + $0xca] sm:$0x7]
      %v1198 = vld [vmem:[%s2 + $0x29] sm:$0x1]
      %v1199 = vlaneseq
      %v1200 = vshrl.u32 %v1199, 7
      %v1201 = vsub.s32 0, %v1200
      %v1202 = vrot.slane %v1198, %v1201
      %v1203 = vmul.f32 %v868, %v1202
      %v1204 = vmul.f32 %v869, %v1202
      %v1205 = vmul.f32 %v870, %v1202
      %v1206 = vmul.f32 %v871, %v1202
      %v1207 = vmul.f32 %v872, %v1202
      %v1208 = vmul.f32 %v873, %v1202
      %v1209 = vmul.f32 %v874, %v1202
      %v1210 = vmul.f32 %v875, %v1202
      %v1211 = vmul.f32 %v876, %v1202
      %v1212 = vmul.f32 %v877, %v1202
      %v1213 = vmul.f32 %v878, %v1202
      %v1214 = vmul.f32 %v879, %v1202
      %v1215 = vmul.f32 %v880, %v1202
      %v1216 = vmul.f32 %v881, %v1202
      %v1217 = vmul.f32 %v882, %v1202
      %v1218 = vmul.f32 %v883, %v1202
      %v1219 = vmul.f32 %v884, %v1202
      %v1220 = vmul.f32 %v1039, %v1202
      %v1221 = vmul.f32 %v1040, %v1202
      %v1222 = vmul.f32 %v1195, %v1202
      %v1223 = vmul.f32 %v1196, %v1202
      %v1224 = vmul.f32 %v1197, %v1202
      %v1225 = vadd.f32 %v1173, %v1203
      %v1226 = vadd.f32 %v1174, %v1204
      %v1227 = vadd.f32 %v1175, %v1205
      %v1228 = vadd.f32 %v1176, %v1206
      %v1229 = vadd.f32 %v1177, %v1207
      %v1230 = vadd.f32 %v1178, %v1208
      %v1231 = vadd.f32 %v1179, %v1209
      %v1232 = vadd.f32 %v1180, %v1210
      %v1233 = vadd.f32 %v1181, %v1211
      %v1234 = vadd.f32 %v1182, %v1212
      %v1235 = vadd.f32 %v1183, %v1213
      %v1236 = vadd.f32 %v1184, %v1214
      %v1237 = vadd.f32 %v1185, %v1215
      %v1238 = vadd.f32 %v1186, %v1216
      %v1239 = vadd.f32 %v1187, %v1217
      %v1240 = vadd.f32 %v1188, %v1218
      %v1241 = vadd.f32 %v1189, %v1219
      %v1242 = vadd.f32 %v1190, %v1220
      %v1243 = vadd.f32 %v1191, %v1221
      %v1244 = vadd.f32 %v1192, %v1222
      %v1245 = vadd.f32 %v1193, %v1223
      %v1246 = vadd.f32 %v1194, %v1224
      %v1247 = vld [vmem:[%s2 + $0x2a] sm:$0x1]
      %v1248 = vlaneseq
      %v1249 = vshrl.u32 %v1248, 7
      %v1250 = vsub.s32 0, %v1249
      %v1251 = vrot.slane %v1247, %v1250
      %v1252 = vadd.f32 %v1225, %v1251
      %v1253 = vadd.f32 %v1226, %v1251
      %v1254 = vadd.f32 %v1227, %v1251
      %v1255 = vadd.f32 %v1228, %v1251
      %v1256 = vadd.f32 %v1229, %v1251
      %v1257 = vadd.f32 %v1230, %v1251
      %v1258 = vadd.f32 %v1231, %v1251
      %v1259 = vadd.f32 %v1232, %v1251
      %v1260 = vadd.f32 %v1233, %v1251
      %v1261 = vadd.f32 %v1234, %v1251
      %v1262 = vadd.f32 %v1235, %v1251
      %v1263 = vadd.f32 %v1236, %v1251
      %v1264 = vadd.f32 %v1237, %v1251
      %v1265 = vadd.f32 %v1238, %v1251
      %v1266 = vadd.f32 %v1239, %v1251
      %v1267 = vadd.f32 %v1240, %v1251
      %v1268 = vadd.f32 %v1241, %v1251
      %v1269 = vadd.f32 %v1242, %v1251
      %v1270 = vadd.f32 %v1243, %v1251
      %v1271 = vadd.f32 %v1244, %v1251
      %v1272 = vadd.f32 %v1245, %v1251
      %v1273 = vadd.f32 %v1246, %v1251
      %v1274 = vmax.f32 %v1252, 0.0
      %v1275 = vmax.f32 %v1253, 0.0
      %v1276 = vmax.f32 %v1254, 0.0
      %v1277 = vmax.f32 %v1255, 0.0
      %v1278 = vmax.f32 %v1256, 0.0
      %v1279 = vmax.f32 %v1257, 0.0
      %v1280 = vmax.f32 %v1258, 0.0
      %v1281 = vmax.f32 %v1259, 0.0
      %v1282 = vmax.f32 %v1260, 0.0
      %v1283 = vmax.f32 %v1261, 0.0
      %v1284 = vmax.f32 %v1262, 0.0
      %v1285 = vmax.f32 %v1263, 0.0
      %v1286 = vmax.f32 %v1264, 0.0
      %v1287 = vmax.f32 %v1265, 0.0
      %v1288 = vmax.f32 %v1266, 0.0
      %v1289 = vmax.f32 %v1267, 0.0
      %v1290 = vmax.f32 %v1268, 0.0
      %v1291 = vmax.f32 %v1269, 0.0
      %v1292 = vmax.f32 %v1270, 0.0
      %v1293 = vmax.f32 %v1271, 0.0
      %v1294 = vmax.f32 %v1272, 0.0
      %v1295 = vmax.f32 %v1273, 0.0
      %1296 = vst.msk [vmem:[#allocation6] sm:$0xff] %vm223, %v1274
      %1297 = vst.msk [vmem:[#allocation6 + $0x8] sm:$0xff] %vm223, %v1275
      %1298 = vst.msk [vmem:[#allocation6 + $0x10] sm:$0xff] %vm223, %v1276
      %1299 = vst.msk [vmem:[#allocation6 + $0x18] sm:$0xff] %vm223, %v1277
      %1300 = vst.msk [vmem:[#allocation6 + $0x20] sm:$0xff] %vm223, %v1278
      %1301 = vst.msk [vmem:[#allocation6 + $0x28] sm:$0xff] %vm223, %v1279
      %1302 = vst.msk [vmem:[#allocation6 + $0x30] sm:$0xff] %vm223, %v1280
      %1303 = vst.msk [vmem:[#allocation6 + $0x38] sm:$0xff] %vm223, %v1281
      %1304 = vst.msk [vmem:[#allocation6 + $0x40] sm:$0xff] %vm223, %v1282
      %1305 = vst.msk [vmem:[#allocation6 + $0x48] sm:$0xff] %vm223, %v1283
      %1306 = vst.msk [vmem:[#allocation6 + $0x50] sm:$0xff] %vm223, %v1284
      %1307 = vst.msk [vmem:[#allocation6 + $0x58] sm:$0xff] %vm223, %v1285
      %1308 = vst.msk [vmem:[#allocation6 + $0x60] sm:$0xff] %vm223, %v1286
      %1309 = vst.msk [vmem:[#allocation6 + $0x68] sm:$0xff] %vm223, %v1287
      %1310 = vst.msk [vmem:[#allocation6 + $0x70] sm:$0xff] %vm223, %v1288
      %1311 = vst.msk [vmem:[#allocation6 + $0x78] sm:$0xff] %vm223, %v1289
      %1312 = vst.msk [vmem:[#allocation6 + $0x80] sm:$0xff] %vm223, %v1290
      %1313 = vst.msk [vmem:[#allocation6 + $0x88] sm:$0xff] %vm223, %v1291
      %1314 = vst.msk [vmem:[#allocation6 + $0x90] sm:$0xff] %vm223, %v1292
      %1315 = vst.msk [vmem:[#allocation6 + $0x98] sm:$0xff] %vm223, %v1293
      %1316 = vst.msk [vmem:[#allocation6 + $0xa0] sm:$0xff] %vm223, %v1294
      %1317 = vst.msk [vmem:[#allocation6 + $0xa8] sm:$0x7] %vm742, %v1295
      %v1318 = vld [vmem:[#allocation6] sm:$0xff]
      %v1319 = vld [vmem:[#allocation6 + $0x8] sm:$0xff]
      %v1320 = vld [vmem:[#allocation6 + $0x10] sm:$0xff]
      %v1321 = vld [vmem:[#allocation6 + $0x18] sm:$0xff]
      %v1322 = vld [vmem:[#allocation6 + $0x20] sm:$0xff]
      %v1323 = vld [vmem:[#allocation6 + $0x28] sm:$0xff]
      %v1324 = vld [vmem:[#allocation6 + $0x30] sm:$0xff]
      %v1325 = vld [vmem:[#allocation6 + $0x38] sm:$0xff]
      %v1326 = vld [vmem:[#allocation6 + $0x40] sm:$0xff]
      %v1327 = vld [vmem:[#allocation6 + $0x48] sm:$0xff]
      %v1328 = vld [vmem:[#allocation6 + $0x50] sm:$0xff]
      %v1329 = vld [vmem:[#allocation6 + $0x58] sm:$0xff]
      %v1330 = vld [vmem:[#allocation6 + $0x60] sm:$0xff]
      %v1331 = vld [vmem:[#allocation6 + $0x68] sm:$0xff]
      %v1332 = vld [vmem:[#allocation6 + $0x70] sm:$0xff]
      %v1333 = vld [vmem:[#allocation6 + $0x78] sm:$0xff]
      %v1334 = vld [vmem:[#allocation6 + $0x80] sm:$0xff]
      %v1335 = vld [vmem:[#allocation6 + $0x88] sm:$0x1]
      %v1336 = vld [vmem:[%s2 + $0x2b] sm:$0xff]
      %v1337 = vld [vmem:[%s2 + $0x33] sm:$0xff]
      %v1338 = vld [vmem:[%s2 + $0x3b] sm:$0xff]
      %v1339 = vld [vmem:[%s2 + $0x43] sm:$0xff]
      %v1340 = vld [vmem:[#allocation6 + $0x1] sm:$0xff]
      %v1341 = vld [vmem:[#allocation6 + $0x9] sm:$0xff]
      %v1342 = vld [vmem:[#allocation6 + $0x11] sm:$0xff]
      %v1343 = vld [vmem:[#allocation6 + $0x19] sm:$0xff]
      %v1344 = vld [vmem:[#allocation6 + $0x21] sm:$0xff]
      %v1345 = vld [vmem:[#allocation6 + $0x29] sm:$0xff]
      %v1346 = vld [vmem:[#allocation6 + $0x31] sm:$0xff]
      %v1347 = vld [vmem:[#allocation6 + $0x39] sm:$0xff]
      %v1348 = vld [vmem:[#allocation6 + $0x41] sm:$0xff]
      %v1349 = vld [vmem:[#allocation6 + $0x49] sm:$0xff]
      %v1350 = vld [vmem:[#allocation6 + $0x51] sm:$0xff]
      %v1351 = vld [vmem:[#allocation6 + $0x59] sm:$0xff]
      %v1352 = vld [vmem:[#allocation6 + $0x61] sm:$0xff]
      %v1353 = vld [vmem:[#allocation6 + $0x69] sm:$0xff]
      %v1354 = vld [vmem:[#allocation6 + $0x71] sm:$0xff]
      %v1355 = vld [vmem:[#allocation6 + $0x79] sm:$0xff]
      %v1356 = vld [vmem:[#allocation6 + $0x81] sm:$0xff]
      %v1357 = vld [vmem:[#allocation6 + $0x89] sm:$0x1]
      %v1358 = vld [vmem:[%s2 + $0x4b] sm:$0xff]
      %v1359 = vld [vmem:[%s2 + $0x53] sm:$0xff]
      %v1360 = vld [vmem:[%s2 + $0x5b] sm:$0xff]
      %v1361 = vld [vmem:[%s2 + $0x63] sm:$0xff]
      %v1363 = vsel %vm223, %v1340, 0
      %v1366 = vsel %vm223, %v1341, 0
      %v1369 = vsel %vm223, %v1342, 0
      %v1372 = vsel %vm223, %v1343, 0
      %v1375 = vsel %vm223, %v1344, 0
      %v1378 = vsel %vm223, %v1345, 0
      %v1381 = vsel %vm223, %v1346, 0
      %v1384 = vsel %vm223, %v1347, 0
      %v1387 = vsel %vm223, %v1348, 0
      %v1390 = vsel %vm223, %v1349, 0
      %v1393 = vsel %vm223, %v1350, 0
      %v1396 = vsel %vm223, %v1351, 0
      %v1399 = vsel %vm223, %v1352, 0
      %v1402 = vsel %vm223, %v1353, 0
      %v1405 = vsel %vm223, %v1354, 0
      %v1408 = vsel %vm223, %v1355, 0
      %v1411 = vsel %vm223, %v1356, 0
      %v1414 = vsel %vm223, %v1357, 0
      %1416 = vmatprep.subr.mxu0 0.0
      %1417 = vmatpush1.msra.mxu0 0.0
      %1418 = vmatprep.subr.mxu0 0.0
      %1419 = vmatpush1.msra.mxu0 0.0
      %1420 = vmatprep.subr.mxu0 0.0
      %1421 = vmatpush1.msra.mxu0 0.0
      %1422 = vmatprep.subr.mxu0 0.0
      %1423 = vmatpush1.msra.mxu0 0.0
      %1424 = vmatprep.subr.mxu0 0.0
      %1425 = vmatpush1.msra.mxu0 0.0
      %1426 = vmatprep.subr.mxu0 0.0
      %1427 = vmatpush1.msra.mxu0 0.0
      %1428 = vmatprep.subr.mxu0 0.0
      %1429 = vmatpush1.msra.mxu0 0.0
      %1430 = vmatprep.subr.mxu0 0.0
      %1431 = vmatpush1.msra.mxu0 0.0
      %1432 = vmatprep.subr.mxu0 0.0
      %1433 = vmatpush1.msra.mxu0 0.0
      %1434 = vmatprep.subr.mxu0 0.0
      %1435 = vmatpush1.msra.mxu0 0.0
      %1436 = vmatprep.subr.mxu0 0.0
      %1437 = vmatpush1.msra.mxu0 0.0
      %1438 = vmatprep.subr.mxu0 0.0
      %1439 = vmatpush1.msra.mxu0 0.0
      %1440 = vmatprep.subr.mxu0 0.0
      %1441 = vmatpush1.msra.mxu0 %v1361
      %1442 = vmatprep.subr.mxu0 0.0
      %1443 = vmatpush1.msra.mxu0 %v1360
      %1444 = vmatprep.subr.mxu0 0.0
      %1445 = vmatpush1.msra.mxu0 %v1359
      %1446 = vmatprep.subr.mxu0 0.0
      %1447 = vmatpush1.msra.mxu0 %v1358
      %1448 = vmatprep.subr.mxu0 0.0
      %1449 = vmatpush2.msra.mxu0 0.0
      %1450 = vmatprep.subr.mxu0 0.0
      %1451 = vmatpush2.msra.mxu0 0.0
      %1452 = vmatprep.subr.mxu0 0.0
      %1453 = vmatpush2.msra.mxu0 0.0
      %1454 = vmatprep.subr.mxu0 0.0
      %1455 = vmatpush2.msra.mxu0 0.0
      %1456 = vmatprep.subr.mxu0 0.0
      %1457 = vmatpush2.msra.mxu0 0.0
      %1458 = vmatprep.subr.mxu0 0.0
      %1459 = vmatpush2.msra.mxu0 0.0
      %1460 = vmatprep.subr.mxu0 0.0
      %1461 = vmatpush2.msra.mxu0 0.0
      %1462 = vmatprep.subr.mxu0 0.0
      %1463 = vmatpush2.msra.mxu0 0.0
      %1464 = vmatprep.subr.mxu0 0.0
      %1465 = vmatpush2.msra.mxu0 0.0
      %1466 = vmatprep.subr.mxu0 0.0
      %1467 = vmatpush2.msra.mxu0 0.0
      %1468 = vmatprep.subr.mxu0 0.0
      %1469 = vmatpush2.msra.mxu0 0.0
      %1470 = vmatprep.subr.mxu0 0.0
      %1471 = vmatpush2.msra.mxu0 0.0
      %1472 = vmatprep.subr.mxu0 0.0
      %1473 = vmatpush2.msra.mxu0 0.0
      %1474 = vmatprep.subr.mxu0 0.0
      %1475 = vmatpush2.msra.mxu0 0.0
      %1476 = vmatprep.subr.mxu0 0.0
      %1477 = vmatpush2.msra.mxu0 0.0
      %1478 = vmatprep.subr.mxu0 0.0
      %1479 = vmatpush2.msra.mxu0 0.0
      %1480 = vmatprep.mubr.f32.mxu0 0.0
      %1481 = vmatmul.mubr.f32.gmra.mxu0 %v1363
      %v1482 = vpop.f32.mrf.mxu0
      %v1483 = vadd.f32 0.0, %v1482
      %v1484 = vpop.f32.mrf.mxu0
      %1485 = vmatprep.mubr.f32.mxu0 0.0
      %1486 = vmatmul.mubr.f32.gmra.mxu0 %v1366
      %v1487 = vpop.f32.mrf.mxu0
      %v1488 = vadd.f32 0.0, %v1487
      %v1489 = vpop.f32.mrf.mxu0
      %1490 = vmatprep.mubr.f32.mxu0 0.0
      %1491 = vmatmul.mubr.f32.gmra.mxu0 %v1369
      %v1492 = vpop.f32.mrf.mxu0
      %v1493 = vadd.f32 0.0, %v1492
      %v1494 = vpop.f32.mrf.mxu0
      %1495 = vmatprep.mubr.f32.mxu0 0.0
      %1496 = vmatmul.mubr.f32.gmra.mxu0 %v1372
      %v1497 = vpop.f32.mrf.mxu0
      %v1498 = vadd.f32 0.0, %v1497
      %v1499 = vpop.f32.mrf.mxu0
      %1500 = vmatprep.mubr.f32.mxu0 0.0
      %1501 = vmatmul.mubr.f32.gmra.mxu0 %v1375
      %v1502 = vpop.f32.mrf.mxu0
      %v1503 = vadd.f32 0.0, %v1502
      %v1504 = vpop.f32.mrf.mxu0
      %1505 = vmatprep.mubr.f32.mxu0 0.0
      %1506 = vmatmul.mubr.f32.gmra.mxu0 %v1378
      %v1507 = vpop.f32.mrf.mxu0
      %v1508 = vadd.f32 0.0, %v1507
      %v1509 = vpop.f32.mrf.mxu0
      %1510 = vmatprep.mubr.f32.mxu0 0.0
      %1511 = vmatmul.mubr.f32.gmra.mxu0 %v1381
      %v1512 = vpop.f32.mrf.mxu0
      %v1513 = vadd.f32 0.0, %v1512
      %v1514 = vpop.f32.mrf.mxu0
      %1515 = vmatprep.mubr.f32.mxu0 0.0
      %1516 = vmatmul.mubr.f32.gmra.mxu0 %v1384
      %v1517 = vpop.f32.mrf.mxu0
      %v1518 = vadd.f32 0.0, %v1517
      %v1519 = vpop.f32.mrf.mxu0
      %1520 = vmatprep.mubr.f32.mxu0 0.0
      %1521 = vmatmul.mubr.f32.gmra.mxu0 %v1387
      %v1522 = vpop.f32.mrf.mxu0
      %v1523 = vadd.f32 0.0, %v1522
      %v1524 = vpop.f32.mrf.mxu0
      %1525 = vmatprep.mubr.f32.mxu0 0.0
      %1526 = vmatmul.mubr.f32.gmra.mxu0 %v1390
      %v1527 = vpop.f32.mrf.mxu0
      %v1528 = vadd.f32 0.0, %v1527
      %v1529 = vpop.f32.mrf.mxu0
      %1530 = vmatprep.mubr.f32.mxu0 0.0
      %1531 = vmatmul.mubr.f32.gmra.mxu0 %v1393
      %v1532 = vpop.f32.mrf.mxu0
      %v1533 = vadd.f32 0.0, %v1532
      %v1534 = vpop.f32.mrf.mxu0
      %1535 = vmatprep.mubr.f32.mxu0 0.0
      %1536 = vmatmul.mubr.f32.gmra.mxu0 %v1396
      %v1537 = vpop.f32.mrf.mxu0
      %v1538 = vadd.f32 0.0, %v1537
      %v1539 = vpop.f32.mrf.mxu0
      %1540 = vmatprep.mubr.f32.mxu0 0.0
      %1541 = vmatmul.mubr.f32.gmra.mxu0 %v1399
      %v1542 = vpop.f32.mrf.mxu0
      %v1543 = vadd.f32 0.0, %v1542
      %v1544 = vpop.f32.mrf.mxu0
      %1545 = vmatprep.mubr.f32.mxu0 0.0
      %1546 = vmatmul.mubr.f32.gmra.mxu0 %v1402
      %v1547 = vpop.f32.mrf.mxu0
      %v1548 = vadd.f32 0.0, %v1547
      %v1549 = vpop.f32.mrf.mxu0
      %1550 = vmatprep.mubr.f32.mxu0 0.0
      %1551 = vmatmul.mubr.f32.gmra.mxu0 %v1405
      %v1552 = vpop.f32.mrf.mxu0
      %v1553 = vadd.f32 0.0, %v1552
      %v1554 = vpop.f32.mrf.mxu0
      %1555 = vmatprep.mubr.f32.mxu0 0.0
      %1556 = vmatmul.mubr.f32.gmra.mxu0 %v1408
      %v1557 = vpop.f32.mrf.mxu0
      %v1558 = vadd.f32 0.0, %v1557
      %v1559 = vpop.f32.mrf.mxu0
      %1560 = vmatprep.mubr.f32.mxu0 0.0
      %1561 = vmatmul.mubr.f32.gmra.mxu0 %v1411
      %v1562 = vpop.f32.mrf.mxu0
      %v1563 = vadd.f32 0.0, %v1562
      %v1564 = vpop.f32.mrf.mxu0
      %1565 = vmatprep.mubr.f32.mxu0 0.0
      %1566 = vmatmul.mubr.f32.gmra.mxu0 %v1414
      %v1567 = vpop.f32.mrf.mxu0
      %v1568 = vadd.f32 0.0, %v1567
      %v1569 = vpop.f32.mrf.mxu0
      %1570 = vdwg.mxu0
      %v1572 = vsel %vm223, %v1318, 0
      %v1575 = vsel %vm223, %v1319, 0
      %v1578 = vsel %vm223, %v1320, 0
      %v1581 = vsel %vm223, %v1321, 0
      %v1584 = vsel %vm223, %v1322, 0
      %v1587 = vsel %vm223, %v1323, 0
      %v1590 = vsel %vm223, %v1324, 0
      %v1593 = vsel %vm223, %v1325, 0
      %v1596 = vsel %vm223, %v1326, 0
      %v1599 = vsel %vm223, %v1327, 0
      %v1602 = vsel %vm223, %v1328, 0
      %v1605 = vsel %vm223, %v1329, 0
      %v1608 = vsel %vm223, %v1330, 0
      %v1611 = vsel %vm223, %v1331, 0
      %v1614 = vsel %vm223, %v1332, 0
      %v1617 = vsel %vm223, %v1333, 0
      %v1620 = vsel %vm223, %v1334, 0
      %v1623 = vsel %vm223, %v1335, 0
      %1625 = vmatprep.subr.mxu0 0.0
      %1626 = vmatpush1.msra.mxu0 0.0
      %1627 = vmatprep.subr.mxu0 0.0
      %1628 = vmatpush1.msra.mxu0 0.0
      %1629 = vmatprep.subr.mxu0 0.0
      %1630 = vmatpush1.msra.mxu0 0.0
      %1631 = vmatprep.subr.mxu0 0.0
      %1632 = vmatpush1.msra.mxu0 0.0
      %1633 = vmatprep.subr.mxu0 0.0
      %1634 = vmatpush1.msra.mxu0 0.0
      %1635 = vmatprep.subr.mxu0 0.0
      %1636 = vmatpush1.msra.mxu0 0.0
      %1637 = vmatprep.subr.mxu0 0.0
      %1638 = vmatpush1.msra.mxu0 0.0
      %1639 = vmatprep.subr.mxu0 0.0
      %1640 = vmatpush1.msra.mxu0 0.0
      %1641 = vmatprep.subr.mxu0 0.0
      %1642 = vmatpush1.msra.mxu0 0.0
      %1643 = vmatprep.subr.mxu0 0.0
      %1644 = vmatpush1.msra.mxu0 0.0
      %1645 = vmatprep.subr.mxu0 0.0
      %1646 = vmatpush1.msra.mxu0 0.0
      %1647 = vmatprep.subr.mxu0 0.0
      %1648 = vmatpush1.msra.mxu0 0.0
      %1649 = vmatprep.subr.mxu0 0.0
      %1650 = vmatpush1.msra.mxu0 %v1339
      %1651 = vmatprep.subr.mxu0 0.0
      %1652 = vmatpush1.msra.mxu0 %v1338
      %1653 = vmatprep.subr.mxu0 0.0
      %1654 = vmatpush1.msra.mxu0 %v1337
      %1655 = vmatprep.subr.mxu0 0.0
      %1656 = vmatpush1.msra.mxu0 %v1336
      %1657 = vmatprep.subr.mxu0 0.0
      %1658 = vmatpush2.msra.mxu0 0.0
      %1659 = vmatprep.subr.mxu0 0.0
      %1660 = vmatpush2.msra.mxu0 0.0
      %1661 = vmatprep.subr.mxu0 0.0
      %1662 = vmatpush2.msra.mxu0 0.0
      %1663 = vmatprep.subr.mxu0 0.0
      %1664 = vmatpush2.msra.mxu0 0.0
      %1665 = vmatprep.subr.mxu0 0.0
      %1666 = vmatpush2.msra.mxu0 0.0
      %1667 = vmatprep.subr.mxu0 0.0
      %1668 = vmatpush2.msra.mxu0 0.0
      %1669 = vmatprep.subr.mxu0 0.0
      %1670 = vmatpush2.msra.mxu0 0.0
      %1671 = vmatprep.subr.mxu0 0.0
      %1672 = vmatpush2.msra.mxu0 0.0
      %1673 = vmatprep.subr.mxu0 0.0
      %1674 = vmatpush2.msra.mxu0 0.0
      %1675 = vmatprep.subr.mxu0 0.0
      %1676 = vmatpush2.msra.mxu0 0.0
      %1677 = vmatprep.subr.mxu0 0.0
      %1678 = vmatpush2.msra.mxu0 0.0
      %1679 = vmatprep.subr.mxu0 0.0
      %1680 = vmatpush2.msra.mxu0 0.0
      %1681 = vmatprep.subr.mxu0 0.0
      %1682 = vmatpush2.msra.mxu0 0.0
      %1683 = vmatprep.subr.mxu0 0.0
      %1684 = vmatpush2.msra.mxu0 0.0
      %1685 = vmatprep.subr.mxu0 0.0
      %1686 = vmatpush2.msra.mxu0 0.0
      %1687 = vmatprep.subr.mxu0 0.0
      %1688 = vmatpush2.msra.mxu0 0.0
      %1689 = vmatprep.mubr.f32.mxu0 0.0
      %1690 = vmatmul.mubr.f32.gmra.mxu0 %v1572
      %v1691 = vpop.f32.mrf.mxu0
      %v1692 = vadd.f32 %v1483, %v1691
      %v1693 = vpop.f32.mrf.mxu0
      %1694 = vmatprep.mubr.f32.mxu0 0.0
      %1695 = vmatmul.mubr.f32.gmra.mxu0 %v1575
      %v1696 = vpop.f32.mrf.mxu0
      %v1697 = vadd.f32 %v1488, %v1696
      %v1698 = vpop.f32.mrf.mxu0
      %1699 = vmatprep.mubr.f32.mxu0 0.0
      %1700 = vmatmul.mubr.f32.gmra.mxu0 %v1578
      %v1701 = vpop.f32.mrf.mxu0
      %v1702 = vadd.f32 %v1493, %v1701
      %v1703 = vpop.f32.mrf.mxu0
      %1704 = vmatprep.mubr.f32.mxu0 0.0
      %1705 = vmatmul.mubr.f32.gmra.mxu0 %v1581
      %v1706 = vpop.f32.mrf.mxu0
      %v1707 = vadd.f32 %v1498, %v1706
      %v1708 = vpop.f32.mrf.mxu0
      %1709 = vmatprep.mubr.f32.mxu0 0.0
      %1710 = vmatmul.mubr.f32.gmra.mxu0 %v1584
      %v1711 = vpop.f32.mrf.mxu0
      %v1712 = vadd.f32 %v1503, %v1711
      %v1713 = vpop.f32.mrf.mxu0
      %1714 = vmatprep.mubr.f32.mxu0 0.0
      %1715 = vmatmul.mubr.f32.gmra.mxu0 %v1587
      %v1716 = vpop.f32.mrf.mxu0
      %v1717 = vadd.f32 %v1508, %v1716
      %v1718 = vpop.f32.mrf.mxu0
      %1719 = vmatprep.mubr.f32.mxu0 0.0
      %1720 = vmatmul.mubr.f32.gmra.mxu0 %v1590
      %v1721 = vpop.f32.mrf.mxu0
      %v1722 = vadd.f32 %v1513, %v1721
      %v1723 = vpop.f32.mrf.mxu0
      %1724 = vmatprep.mubr.f32.mxu0 0.0
      %1725 = vmatmul.mubr.f32.gmra.mxu0 %v1593
      %v1726 = vpop.f32.mrf.mxu0
      %v1727 = vadd.f32 %v1518, %v1726
      %v1728 = vpop.f32.mrf.mxu0
      %1729 = vmatprep.mubr.f32.mxu0 0.0
      %1730 = vmatmul.mubr.f32.gmra.mxu0 %v1596
      %v1731 = vpop.f32.mrf.mxu0
      %v1732 = vadd.f32 %v1523, %v1731
      %v1733 = vpop.f32.mrf.mxu0
      %1734 = vmatprep.mubr.f32.mxu0 0.0
      %1735 = vmatmul.mubr.f32.gmra.mxu0 %v1599
      %v1736 = vpop.f32.mrf.mxu0
      %v1737 = vadd.f32 %v1528, %v1736
      %v1738 = vpop.f32.mrf.mxu0
      %1739 = vmatprep.mubr.f32.mxu0 0.0
      %1740 = vmatmul.mubr.f32.gmra.mxu0 %v1602
      %v1741 = vpop.f32.mrf.mxu0
      %v1742 = vadd.f32 %v1533, %v1741
      %v1743 = vpop.f32.mrf.mxu0
      %1744 = vmatprep.mubr.f32.mxu0 0.0
      %1745 = vmatmul.mubr.f32.gmra.mxu0 %v1605
      %v1746 = vpop.f32.mrf.mxu0
      %v1747 = vadd.f32 %v1538, %v1746
      %v1748 = vpop.f32.mrf.mxu0
      %1749 = vmatprep.mubr.f32.mxu0 0.0
      %1750 = vmatmul.mubr.f32.gmra.mxu0 %v1608
      %v1751 = vpop.f32.mrf.mxu0
      %v1752 = vadd.f32 %v1543, %v1751
      %v1753 = vpop.f32.mrf.mxu0
      %1754 = vmatprep.mubr.f32.mxu0 0.0
      %1755 = vmatmul.mubr.f32.gmra.mxu0 %v1611
      %v1756 = vpop.f32.mrf.mxu0
      %v1757 = vadd.f32 %v1548, %v1756
      %v1758 = vpop.f32.mrf.mxu0
      %1759 = vmatprep.mubr.f32.mxu0 0.0
      %1760 = vmatmul.mubr.f32.gmra.mxu0 %v1614
      %v1761 = vpop.f32.mrf.mxu0
      %v1762 = vadd.f32 %v1553, %v1761
      %v1763 = vpop.f32.mrf.mxu0
      %1764 = vmatprep.mubr.f32.mxu0 0.0
      %1765 = vmatmul.mubr.f32.gmra.mxu0 %v1617
      %v1766 = vpop.f32.mrf.mxu0
      %v1767 = vadd.f32 %v1558, %v1766
      %v1768 = vpop.f32.mrf.mxu0
      %1769 = vmatprep.mubr.f32.mxu0 0.0
      %1770 = vmatmul.mubr.f32.gmra.mxu0 %v1620
      %v1771 = vpop.f32.mrf.mxu0
      %v1772 = vadd.f32 %v1563, %v1771
      %v1773 = vpop.f32.mrf.mxu0
      %1774 = vmatprep.mubr.f32.mxu0 0.0
      %1775 = vmatmul.mubr.f32.gmra.mxu0 %v1623
      %v1776 = vpop.f32.mrf.mxu0
      %v1777 = vadd.f32 %v1568, %v1776
      %v1778 = vpop.f32.mrf.mxu0
      %1779 = vdwg.mxu0
      %v1780 = vld [vmem:[#allocation6 + $0x2] sm:$0xff]
      %v1781 = vld [vmem:[#allocation6 + $0xa] sm:$0xff]
      %v1782 = vld [vmem:[#allocation6 + $0x12] sm:$0xff]
      %v1783 = vld [vmem:[#allocation6 + $0x1a] sm:$0xff]
      %v1784 = vld [vmem:[#allocation6 + $0x22] sm:$0xff]
      %v1785 = vld [vmem:[#allocation6 + $0x2a] sm:$0xff]
      %v1786 = vld [vmem:[#allocation6 + $0x32] sm:$0xff]
      %v1787 = vld [vmem:[#allocation6 + $0x3a] sm:$0xff]
      %v1788 = vld [vmem:[#allocation6 + $0x42] sm:$0xff]
      %v1789 = vld [vmem:[#allocation6 + $0x4a] sm:$0xff]
      %v1790 = vld [vmem:[#allocation6 + $0x52] sm:$0xff]
      %v1791 = vld [vmem:[#allocation6 + $0x5a] sm:$0xff]
      %v1792 = vld [vmem:[#allocation6 + $0x62] sm:$0xff]
      %v1793 = vld [vmem:[#allocation6 + $0x6a] sm:$0xff]
      %v1794 = vld [vmem:[#allocation6 + $0x72] sm:$0xff]
      %v1795 = vld [vmem:[#allocation6 + $0x7a] sm:$0xff]
      %v1796 = vld [vmem:[#allocation6 + $0x82] sm:$0xff]
      %v1797 = vld [vmem:[#allocation6 + $0x8a] sm:$0x1]
      %v1798 = vld [vmem:[%s2 + $0x6b] sm:$0xff]
      %v1799 = vld [vmem:[%s2 + $0x73] sm:$0xff]
      %v1800 = vld [vmem:[%s2 + $0x7b] sm:$0xff]
      %v1801 = vld [vmem:[%s2 + $0x83] sm:$0xff]
      %v1803 = vsel %vm223, %v1780, 0
      %v1806 = vsel %vm223, %v1781, 0
      %v1809 = vsel %vm223, %v1782, 0
      %v1812 = vsel %vm223, %v1783, 0
      %v1815 = vsel %vm223, %v1784, 0
      %v1818 = vsel %vm223, %v1785, 0
      %v1821 = vsel %vm223, %v1786, 0
      %v1824 = vsel %vm223, %v1787, 0
      %v1827 = vsel %vm223, %v1788, 0
      %v1830 = vsel %vm223, %v1789, 0
      %v1833 = vsel %vm223, %v1790, 0
      %v1836 = vsel %vm223, %v1791, 0
      %v1839 = vsel %vm223, %v1792, 0
      %v1842 = vsel %vm223, %v1793, 0
      %v1845 = vsel %vm223, %v1794, 0
      %v1848 = vsel %vm223, %v1795, 0
      %v1851 = vsel %vm223, %v1796, 0
      %v1854 = vsel %vm223, %v1797, 0
      %1856 = vmatprep.subr.mxu0 0.0
      %1857 = vmatpush1.msra.mxu0 0.0
      %1858 = vmatprep.subr.mxu0 0.0
      %1859 = vmatpush1.msra.mxu0 0.0
      %1860 = vmatprep.subr.mxu0 0.0
      %1861 = vmatpush1.msra.mxu0 0.0
      %1862 = vmatprep.subr.mxu0 0.0
      %1863 = vmatpush1.msra.mxu0 0.0
      %1864 = vmatprep.subr.mxu0 0.0
      %1865 = vmatpush1.msra.mxu0 0.0
      %1866 = vmatprep.subr.mxu0 0.0
      %1867 = vmatpush1.msra.mxu0 0.0
      %1868 = vmatprep.subr.mxu0 0.0
      %1869 = vmatpush1.msra.mxu0 0.0
      %1870 = vmatprep.subr.mxu0 0.0
      %1871 = vmatpush1.msra.mxu0 0.0
      %1872 = vmatprep.subr.mxu0 0.0
      %1873 = vmatpush1.msra.mxu0 0.0
      %1874 = vmatprep.subr.mxu0 0.0
      %1875 = vmatpush1.msra.mxu0 0.0
      %1876 = vmatprep.subr.mxu0 0.0
      %1877 = vmatpush1.msra.mxu0 0.0
      %1878 = vmatprep.subr.mxu0 0.0
      %1879 = vmatpush1.msra.mxu0 0.0
      %1880 = vmatprep.subr.mxu0 0.0
      %1881 = vmatpush1.msra.mxu0 %v1801
      %1882 = vmatprep.subr.mxu0 0.0
      %1883 = vmatpush1.msra.mxu0 %v1800
      %1884 = vmatprep.subr.mxu0 0.0
      %1885 = vmatpush1.msra.mxu0 %v1799
      %1886 = vmatprep.subr.mxu0 0.0
      %1887 = vmatpush1.msra.mxu0 %v1798
      %1888 = vmatprep.subr.mxu0 0.0
      %1889 = vmatpush2.msra.mxu0 0.0
      %1890 = vmatprep.subr.mxu0 0.0
      %1891 = vmatpush2.msra.mxu0 0.0
      %1892 = vmatprep.subr.mxu0 0.0
      %1893 = vmatpush2.msra.mxu0 0.0
      %1894 = vmatprep.subr.mxu0 0.0
      %1895 = vmatpush2.msra.mxu0 0.0
      %1896 = vmatprep.subr.mxu0 0.0
      %1897 = vmatpush2.msra.mxu0 0.0
      %1898 = vmatprep.subr.mxu0 0.0
      %1899 = vmatpush2.msra.mxu0 0.0
      %1900 = vmatprep.subr.mxu0 0.0
      %1901 = vmatpush2.msra.mxu0 0.0
      %1902 = vmatprep.subr.mxu0 0.0
      %1903 = vmatpush2.msra.mxu0 0.0
      %1904 = vmatprep.subr.mxu0 0.0
      %1905 = vmatpush2.msra.mxu0 0.0
      %1906 = vmatprep.subr.mxu0 0.0
      %1907 = vmatpush2.msra.mxu0 0.0
      %1908 = vmatprep.subr.mxu0 0.0
      %1909 = vmatpush2.msra.mxu0 0.0
      %1910 = vmatprep.subr.mxu0 0.0
      %1911 = vmatpush2.msra.mxu0 0.0
      %1912 = vmatprep.subr.mxu0 0.0
      %1913 = vmatpush2.msra.mxu0 0.0
      %1914 = vmatprep.subr.mxu0 0.0
      %1915 = vmatpush2.msra.mxu0 0.0
      %1916 = vmatprep.subr.mxu0 0.0
      %1917 = vmatpush2.msra.mxu0 0.0
      %1918 = vmatprep.subr.mxu0 0.0
      %1919 = vmatpush2.msra.mxu0 0.0
      %1920 = vmatprep.mubr.f32.mxu0 0.0
      %1921 = vmatmul.mubr.f32.gmra.mxu0 %v1803
      %v1922 = vpop.f32.mrf.mxu0
      %v1923 = vadd.f32 0.0, %v1922
      %v1924 = vpop.f32.mrf.mxu0
      %1925 = vmatprep.mubr.f32.mxu0 0.0
      %1926 = vmatmul.mubr.f32.gmra.mxu0 %v1806
      %v1927 = vpop.f32.mrf.mxu0
      %v1928 = vadd.f32 0.0, %v1927
      %v1929 = vpop.f32.mrf.mxu0
      %1930 = vmatprep.mubr.f32.mxu0 0.0
      %1931 = vmatmul.mubr.f32.gmra.mxu0 %v1809
      %v1932 = vpop.f32.mrf.mxu0
      %v1933 = vadd.f32 0.0, %v1932
      %v1934 = vpop.f32.mrf.mxu0
      %1935 = vmatprep.mubr.f32.mxu0 0.0
      %1936 = vmatmul.mubr.f32.gmra.mxu0 %v1812
      %v1937 = vpop.f32.mrf.mxu0
      %v1938 = vadd.f32 0.0, %v1937
      %v1939 = vpop.f32.mrf.mxu0
      %1940 = vmatprep.mubr.f32.mxu0 0.0
      %1941 = vmatmul.mubr.f32.gmra.mxu0 %v1815
      %v1942 = vpop.f32.mrf.mxu0
      %v1943 = vadd.f32 0.0, %v1942
      %v1944 = vpop.f32.mrf.mxu0
      %1945 = vmatprep.mubr.f32.mxu0 0.0
      %1946 = vmatmul.mubr.f32.gmra.mxu0 %v1818
      %v1947 = vpop.f32.mrf.mxu0
      %v1948 = vadd.f32 0.0, %v1947
      %v1949 = vpop.f32.mrf.mxu0
      %1950 = vmatprep.mubr.f32.mxu0 0.0
      %1951 = vmatmul.mubr.f32.gmra.mxu0 %v1821
      %v1952 = vpop.f32.mrf.mxu0
      %v1953 = vadd.f32 0.0, %v1952
      %v1954 = vpop.f32.mrf.mxu0
      %1955 = vmatprep.mubr.f32.mxu0 0.0
      %1956 = vmatmul.mubr.f32.gmra.mxu0 %v1824
      %v1957 = vpop.f32.mrf.mxu0
      %v1958 = vadd.f32 0.0, %v1957
      %v1959 = vpop.f32.mrf.mxu0
      %1960 = vmatprep.mubr.f32.mxu0 0.0
      %1961 = vmatmul.mubr.f32.gmra.mxu0 %v1827
      %v1962 = vpop.f32.mrf.mxu0
      %v1963 = vadd.f32 0.0, %v1962
      %v1964 = vpop.f32.mrf.mxu0
      %1965 = vmatprep.mubr.f32.mxu0 0.0
      %1966 = vmatmul.mubr.f32.gmra.mxu0 %v1830
      %v1967 = vpop.f32.mrf.mxu0
      %v1968 = vadd.f32 0.0, %v1967
      %v1969 = vpop.f32.mrf.mxu0
      %1970 = vmatprep.mubr.f32.mxu0 0.0
      %1971 = vmatmul.mubr.f32.gmra.mxu0 %v1833
      %v1972 = vpop.f32.mrf.mxu0
      %v1973 = vadd.f32 0.0, %v1972
      %v1974 = vpop.f32.mrf.mxu0
      %1975 = vmatprep.mubr.f32.mxu0 0.0
      %1976 = vmatmul.mubr.f32.gmra.mxu0 %v1836
      %v1977 = vpop.f32.mrf.mxu0
      %v1978 = vadd.f32 0.0, %v1977
      %v1979 = vpop.f32.mrf.mxu0
      %1980 = vmatprep.mubr.f32.mxu0 0.0
      %1981 = vmatmul.mubr.f32.gmra.mxu0 %v1839
      %v1982 = vpop.f32.mrf.mxu0
      %v1983 = vadd.f32 0.0, %v1982
      %v1984 = vpop.f32.mrf.mxu0
      %1985 = vmatprep.mubr.f32.mxu0 0.0
      %1986 = vmatmul.mubr.f32.gmra.mxu0 %v1842
      %v1987 = vpop.f32.mrf.mxu0
      %v1988 = vadd.f32 0.0, %v1987
      %v1989 = vpop.f32.mrf.mxu0
      %1990 = vmatprep.mubr.f32.mxu0 0.0
      %1991 = vmatmul.mubr.f32.gmra.mxu0 %v1845
      %v1992 = vpop.f32.mrf.mxu0
      %v1993 = vadd.f32 0.0, %v1992
      %v1994 = vpop.f32.mrf.mxu0
      %1995 = vmatprep.mubr.f32.mxu0 0.0
      %1996 = vmatmul.mubr.f32.gmra.mxu0 %v1848
      %v1997 = vpop.f32.mrf.mxu0
      %v1998 = vadd.f32 0.0, %v1997
      %v1999 = vpop.f32.mrf.mxu0
      %2000 = vmatprep.mubr.f32.mxu0 0.0
      %2001 = vmatmul.mubr.f32.gmra.mxu0 %v1851
      %v2002 = vpop.f32.mrf.mxu0
      %v2003 = vadd.f32 0.0, %v2002
      %v2004 = vpop.f32.mrf.mxu0
      %2005 = vmatprep.mubr.f32.mxu0 0.0
      %2006 = vmatmul.mubr.f32.gmra.mxu0 %v1854
      %v2007 = vpop.f32.mrf.mxu0
      %v2008 = vadd.f32 0.0, %v2007
      %v2009 = vpop.f32.mrf.mxu0
      %2010 = vdwg.mxu0
      %v2011 = vadd.f32 %v1692, %v1923
      %v2012 = vadd.f32 %v1697, %v1928
      %v2013 = vadd.f32 %v1702, %v1933
      %v2014 = vadd.f32 %v1707, %v1938
      %v2015 = vadd.f32 %v1712, %v1943
      %v2016 = vadd.f32 %v1717, %v1948
      %v2017 = vadd.f32 %v1722, %v1953
      %v2018 = vadd.f32 %v1727, %v1958
      %v2019 = vadd.f32 %v1732, %v1963
      %v2020 = vadd.f32 %v1737, %v1968
      %v2021 = vadd.f32 %v1742, %v1973
      %v2022 = vadd.f32 %v1747, %v1978
      %v2023 = vadd.f32 %v1752, %v1983
      %v2024 = vadd.f32 %v1757, %v1988
      %v2025 = vadd.f32 %v1762, %v1993
      %v2026 = vadd.f32 %v1767, %v1998
      %v2027 = vadd.f32 %v1772, %v2003
      %v2028 = vadd.f32 %v1777, %v2008
      %v2029 = vld [vmem:[#allocation6 + $0x10] sm:$0xff]
      %v2030 = vld [vmem:[#allocation6 + $0x18] sm:$0xff]
      %v2031 = vld [vmem:[#allocation6 + $0x20] sm:$0xff]
      %v2032 = vld [vmem:[#allocation6 + $0x28] sm:$0xff]
      %v2033 = vld [vmem:[#allocation6 + $0x30] sm:$0xff]
      %v2034 = vld [vmem:[#allocation6 + $0x38] sm:$0xff]
      %v2035 = vld [vmem:[#allocation6 + $0x40] sm:$0xff]
      %v2036 = vld [vmem:[#allocation6 + $0x48] sm:$0xff]
      %v2037 = vld [vmem:[#allocation6 + $0x50] sm:$0xff]
      %v2038 = vld [vmem:[#allocation6 + $0x58] sm:$0xff]
      %v2039 = vld [vmem:[#allocation6 + $0x60] sm:$0xff]
      %v2040 = vld [vmem:[#allocation6 + $0x68] sm:$0xff]
      %v2041 = vld [vmem:[#allocation6 + $0x70] sm:$0xff]
      %v2042 = vld [vmem:[#allocation6 + $0x78] sm:$0xff]
      %v2043 = vld [vmem:[#allocation6 + $0x80] sm:$0xff]
      %v2044 = vld [vmem:[#allocation6 + $0x88] sm:$0xff]
      %v2045 = vld [vmem:[#allocation6 + $0x90] sm:$0xff]
      %v2046 = vld [vmem:[#allocation6 + $0x98] sm:$0x1]
      %v2047 = vld [vmem:[%s2 + $0x8b] sm:$0xff]
      %v2048 = vld [vmem:[%s2 + $0x93] sm:$0xff]
      %v2049 = vld [vmem:[%s2 + $0x9b] sm:$0xff]
      %v2050 = vld [vmem:[%s2 + $0xa3] sm:$0xff]
      %v2052 = vsel %vm223, %v2029, 0
      %v2055 = vsel %vm223, %v2030, 0
      %v2058 = vsel %vm223, %v2031, 0
      %v2061 = vsel %vm223, %v2032, 0
      %v2064 = vsel %vm223, %v2033, 0
      %v2067 = vsel %vm223, %v2034, 0
      %v2070 = vsel %vm223, %v2035, 0
      %v2073 = vsel %vm223, %v2036, 0
      %v2076 = vsel %vm223, %v2037, 0
      %v2079 = vsel %vm223, %v2038, 0
      %v2082 = vsel %vm223, %v2039, 0
      %v2085 = vsel %vm223, %v2040, 0
      %v2088 = vsel %vm223, %v2041, 0
      %v2091 = vsel %vm223, %v2042, 0
      %v2094 = vsel %vm223, %v2043, 0
      %v2097 = vsel %vm223, %v2044, 0
      %v2100 = vsel %vm223, %v2045, 0
      %v2103 = vsel %vm223, %v2046, 0
      %2105 = vmatprep.subr.mxu0 0.0
      %2106 = vmatpush1.msra.mxu0 0.0
      %2107 = vmatprep.subr.mxu0 0.0
      %2108 = vmatpush1.msra.mxu0 0.0
      %2109 = vmatprep.subr.mxu0 0.0
      %2110 = vmatpush1.msra.mxu0 0.0
      %2111 = vmatprep.subr.mxu0 0.0
      %2112 = vmatpush1.msra.mxu0 0.0
      %2113 = vmatprep.subr.mxu0 0.0
      %2114 = vmatpush1.msra.mxu0 0.0
      %2115 = vmatprep.subr.mxu0 0.0
      %2116 = vmatpush1.msra.mxu0 0.0
      %2117 = vmatprep.subr.mxu0 0.0
      %2118 = vmatpush1.msra.mxu0 0.0
      %2119 = vmatprep.subr.mxu0 0.0
      %2120 = vmatpush1.msra.mxu0 0.0
      %2121 = vmatprep.subr.mxu0 0.0
      %2122 = vmatpush1.msra.mxu0 0.0
      %2123 = vmatprep.subr.mxu0 0.0
      %2124 = vmatpush1.msra.mxu0 0.0
      %2125 = vmatprep.subr.mxu0 0.0
      %2126 = vmatpush1.msra.mxu0 0.0
      %2127 = vmatprep.subr.mxu0 0.0
      %2128 = vmatpush1.msra.mxu0 0.0
      %2129 = vmatprep.subr.mxu0 0.0
      %2130 = vmatpush1.msra.mxu0 %v2050
      %2131 = vmatprep.subr.mxu0 0.0
      %2132 = vmatpush1.msra.mxu0 %v2049
      %2133 = vmatprep.subr.mxu0 0.0
      %2134 = vmatpush1.msra.mxu0 %v2048
      %2135 = vmatprep.subr.mxu0 0.0
      %2136 = vmatpush1.msra.mxu0 %v2047
      %2137 = vmatprep.subr.mxu0 0.0
      %2138 = vmatpush2.msra.mxu0 0.0
      %2139 = vmatprep.subr.mxu0 0.0
      %2140 = vmatpush2.msra.mxu0 0.0
      %2141 = vmatprep.subr.mxu0 0.0
      %2142 = vmatpush2.msra.mxu0 0.0
      %2143 = vmatprep.subr.mxu0 0.0
      %2144 = vmatpush2.msra.mxu0 0.0
      %2145 = vmatprep.subr.mxu0 0.0
      %2146 = vmatpush2.msra.mxu0 0.0
      %2147 = vmatprep.subr.mxu0 0.0
      %2148 = vmatpush2.msra.mxu0 0.0
      %2149 = vmatprep.subr.mxu0 0.0
      %2150 = vmatpush2.msra.mxu0 0.0
      %2151 = vmatprep.subr.mxu0 0.0
      %2152 = vmatpush2.msra.mxu0 0.0
      %2153 = vmatprep.subr.mxu0 0.0
      %2154 = vmatpush2.msra.mxu0 0.0
      %2155 = vmatprep.subr.mxu0 0.0
      %2156 = vmatpush2.msra.mxu0 0.0
      %2157 = vmatprep.subr.mxu0 0.0
      %2158 = vmatpush2.msra.mxu0 0.0
      %2159 = vmatprep.subr.mxu0 0.0
      %2160 = vmatpush2.msra.mxu0 0.0
      %2161 = vmatprep.subr.mxu0 0.0
      %2162 = vmatpush2.msra.mxu0 0.0
      %2163 = vmatprep.subr.mxu0 0.0
      %2164 = vmatpush2.msra.mxu0 0.0
      %2165 = vmatprep.subr.mxu0 0.0
      %2166 = vmatpush2.msra.mxu0 0.0
      %2167 = vmatprep.subr.mxu0 0.0
      %2168 = vmatpush2.msra.mxu0 0.0
      %2169 = vmatprep.mubr.f32.mxu0 0.0
      %2170 = vmatmul.mubr.f32.gmra.mxu0 %v2052
      %v2171 = vpop.f32.mrf.mxu0
      %v2172 = vadd.f32 0.0, %v2171
      %v2173 = vpop.f32.mrf.mxu0
      %2174 = vmatprep.mubr.f32.mxu0 0.0
      %2175 = vmatmul.mubr.f32.gmra.mxu0 %v2055
      %v2176 = vpop.f32.mrf.mxu0
      %v2177 = vadd.f32 0.0, %v2176
      %v2178 = vpop.f32.mrf.mxu0
      %2179 = vmatprep.mubr.f32.mxu0 0.0
      %2180 = vmatmul.mubr.f32.gmra.mxu0 %v2058
      %v2181 = vpop.f32.mrf.mxu0
      %v2182 = vadd.f32 0.0, %v2181
      %v2183 = vpop.f32.mrf.mxu0
      %2184 = vmatprep.mubr.f32.mxu0 0.0
      %2185 = vmatmul.mubr.f32.gmra.mxu0 %v2061
      %v2186 = vpop.f32.mrf.mxu0
      %v2187 = vadd.f32 0.0, %v2186
      %v2188 = vpop.f32.mrf.mxu0
      %2189 = vmatprep.mubr.f32.mxu0 0.0
      %2190 = vmatmul.mubr.f32.gmra.mxu0 %v2064
      %v2191 = vpop.f32.mrf.mxu0
      %v2192 = vadd.f32 0.0, %v2191
      %v2193 = vpop.f32.mrf.mxu0
      %2194 = vmatprep.mubr.f32.mxu0 0.0
      %2195 = vmatmul.mubr.f32.gmra.mxu0 %v2067
      %v2196 = vpop.f32.mrf.mxu0
      %v2197 = vadd.f32 0.0, %v2196
      %v2198 = vpop.f32.mrf.mxu0
      %2199 = vmatprep.mubr.f32.mxu0 0.0
      %2200 = vmatmul.mubr.f32.gmra.mxu0 %v2070
      %v2201 = vpop.f32.mrf.mxu0
      %v2202 = vadd.f32 0.0, %v2201
      %v2203 = vpop.f32.mrf.mxu0
      %2204 = vmatprep.mubr.f32.mxu0 0.0
      %2205 = vmatmul.mubr.f32.gmra.mxu0 %v2073
      %v2206 = vpop.f32.mrf.mxu0
      %v2207 = vadd.f32 0.0, %v2206
      %v2208 = vpop.f32.mrf.mxu0
      %2209 = vmatprep.mubr.f32.mxu0 0.0
      %2210 = vmatmul.mubr.f32.gmra.mxu0 %v2076
      %v2211 = vpop.f32.mrf.mxu0
      %v2212 = vadd.f32 0.0, %v2211
      %v2213 = vpop.f32.mrf.mxu0
      %2214 = vmatprep.mubr.f32.mxu0 0.0
      %2215 = vmatmul.mubr.f32.gmra.mxu0 %v2079
      %v2216 = vpop.f32.mrf.mxu0
      %v2217 = vadd.f32 0.0, %v2216
      %v2218 = vpop.f32.mrf.mxu0
      %2219 = vmatprep.mubr.f32.mxu0 0.0
      %2220 = vmatmul.mubr.f32.gmra.mxu0 %v2082
      %v2221 = vpop.f32.mrf.mxu0
      %v2222 = vadd.f32 0.0, %v2221
      %v2223 = vpop.f32.mrf.mxu0
      %2224 = vmatprep.mubr.f32.mxu0 0.0
      %2225 = vmatmul.mubr.f32.gmra.mxu0 %v2085
      %v2226 = vpop.f32.mrf.mxu0
      %v2227 = vadd.f32 0.0, %v2226
      %v2228 = vpop.f32.mrf.mxu0
      %2229 = vmatprep.mubr.f32.mxu0 0.0
      %2230 = vmatmul.mubr.f32.gmra.mxu0 %v2088
      %v2231 = vpop.f32.mrf.mxu0
      %v2232 = vadd.f32 0.0, %v2231
      %v2233 = vpop.f32.mrf.mxu0
      %2234 = vmatprep.mubr.f32.mxu0 0.0
      %2235 = vmatmul.mubr.f32.gmra.mxu0 %v2091
      %v2236 = vpop.f32.mrf.mxu0
      %v2237 = vadd.f32 0.0, %v2236
      %v2238 = vpop.f32.mrf.mxu0
      %2239 = vmatprep.mubr.f32.mxu0 0.0
      %2240 = vmatmul.mubr.f32.gmra.mxu0 %v2094
      %v2241 = vpop.f32.mrf.mxu0
      %v2242 = vadd.f32 0.0, %v2241
      %v2243 = vpop.f32.mrf.mxu0
      %2244 = vmatprep.mubr.f32.mxu0 0.0
      %2245 = vmatmul.mubr.f32.gmra.mxu0 %v2097
      %v2246 = vpop.f32.mrf.mxu0
      %v2247 = vadd.f32 0.0, %v2246
      %v2248 = vpop.f32.mrf.mxu0
      %2249 = vmatprep.mubr.f32.mxu0 0.0
      %2250 = vmatmul.mubr.f32.gmra.mxu0 %v2100
      %v2251 = vpop.f32.mrf.mxu0
      %v2252 = vadd.f32 0.0, %v2251
      %v2253 = vpop.f32.mrf.mxu0
      %2254 = vmatprep.mubr.f32.mxu0 0.0
      %2255 = vmatmul.mubr.f32.gmra.mxu0 %v2103
      %v2256 = vpop.f32.mrf.mxu0
      %v2257 = vadd.f32 0.0, %v2256
      %v2258 = vpop.f32.mrf.mxu0
      %2259 = vdwg.mxu0
      %v2260 = vadd.f32 %v2011, %v2172
      %v2261 = vadd.f32 %v2012, %v2177
      %v2262 = vadd.f32 %v2013, %v2182
      %v2263 = vadd.f32 %v2014, %v2187
      %v2264 = vadd.f32 %v2015, %v2192
      %v2265 = vadd.f32 %v2016, %v2197
      %v2266 = vadd.f32 %v2017, %v2202
      %v2267 = vadd.f32 %v2018, %v2207
      %v2268 = vadd.f32 %v2019, %v2212
      %v2269 = vadd.f32 %v2020, %v2217
      %v2270 = vadd.f32 %v2021, %v2222
      %v2271 = vadd.f32 %v2022, %v2227
      %v2272 = vadd.f32 %v2023, %v2232
      %v2273 = vadd.f32 %v2024, %v2237
      %v2274 = vadd.f32 %v2025, %v2242
      %v2275 = vadd.f32 %v2026, %v2247
      %v2276 = vadd.f32 %v2027, %v2252
      %v2277 = vadd.f32 %v2028, %v2257
      %v2278 = vld [vmem:[#allocation6 + $0x11] sm:$0xff]
      %v2279 = vld [vmem:[#allocation6 + $0x19] sm:$0xff]
      %v2280 = vld [vmem:[#allocation6 + $0x21] sm:$0xff]
      %v2281 = vld [vmem:[#allocation6 + $0x29] sm:$0xff]
      %v2282 = vld [vmem:[#allocation6 + $0x31] sm:$0xff]
      %v2283 = vld [vmem:[#allocation6 + $0x39] sm:$0xff]
      %v2284 = vld [vmem:[#allocation6 + $0x41] sm:$0xff]
      %v2285 = vld [vmem:[#allocation6 + $0x49] sm:$0xff]
      %v2286 = vld [vmem:[#allocation6 + $0x51] sm:$0xff]
      %v2287 = vld [vmem:[#allocation6 + $0x59] sm:$0xff]
      %v2288 = vld [vmem:[#allocation6 + $0x61] sm:$0xff]
      %v2289 = vld [vmem:[#allocation6 + $0x69] sm:$0xff]
      %v2290 = vld [vmem:[#allocation6 + $0x71] sm:$0xff]
      %v2291 = vld [vmem:[#allocation6 + $0x79] sm:$0xff]
      %v2292 = vld [vmem:[#allocation6 + $0x81] sm:$0xff]
      %v2293 = vld [vmem:[#allocation6 + $0x89] sm:$0xff]
      %v2294 = vld [vmem:[#allocation6 + $0x91] sm:$0xff]
      %v2295 = vld [vmem:[#allocation6 + $0x99] sm:$0x1]
      %v2296 = vld [vmem:[%s2 + $0xab] sm:$0xff]
      %v2297 = vld [vmem:[%s2 + $0xb3] sm:$0xff]
      %v2298 = vld [vmem:[%s2 + $0xbb] sm:$0xff]
      %v2299 = vld [vmem:[%s2 + $0xc3] sm:$0xff]
      %v2301 = vsel %vm223, %v2278, 0
      %v2304 = vsel %vm223, %v2279, 0
      %v2307 = vsel %vm223, %v2280, 0
      %v2310 = vsel %vm223, %v2281, 0
      %v2313 = vsel %vm223, %v2282, 0
      %v2316 = vsel %vm223, %v2283, 0
      %v2319 = vsel %vm223, %v2284, 0
      %v2322 = vsel %vm223, %v2285, 0
      %v2325 = vsel %vm223, %v2286, 0
      %v2328 = vsel %vm223, %v2287, 0
      %v2331 = vsel %vm223, %v2288, 0
      %v2334 = vsel %vm223, %v2289, 0
      %v2337 = vsel %vm223, %v2290, 0
      %v2340 = vsel %vm223, %v2291, 0
      %v2343 = vsel %vm223, %v2292, 0
      %v2346 = vsel %vm223, %v2293, 0
      %v2349 = vsel %vm223, %v2294, 0
      %v2352 = vsel %vm223, %v2295, 0
      %2354 = vmatprep.subr.mxu0 0.0
      %2355 = vmatpush1.msra.mxu0 0.0
      %2356 = vmatprep.subr.mxu0 0.0
      %2357 = vmatpush1.msra.mxu0 0.0
      %2358 = vmatprep.subr.mxu0 0.0
      %2359 = vmatpush1.msra.mxu0 0.0
      %2360 = vmatprep.subr.mxu0 0.0
      %2361 = vmatpush1.msra.mxu0 0.0
      %2362 = vmatprep.subr.mxu0 0.0
      %2363 = vmatpush1.msra.mxu0 0.0
      %2364 = vmatprep.subr.mxu0 0.0
      %2365 = vmatpush1.msra.mxu0 0.0
      %2366 = vmatprep.subr.mxu0 0.0
      %2367 = vmatpush1.msra.mxu0 0.0
      %2368 = vmatprep.subr.mxu0 0.0
      %2369 = vmatpush1.msra.mxu0 0.0
      %2370 = vmatprep.subr.mxu0 0.0
      %2371 = vmatpush1.msra.mxu0 0.0
      %2372 = vmatprep.subr.mxu0 0.0
      %2373 = vmatpush1.msra.mxu0 0.0
      %2374 = vmatprep.subr.mxu0 0.0
      %2375 = vmatpush1.msra.mxu0 0.0
      %2376 = vmatprep.subr.mxu0 0.0
      %2377 = vmatpush1.msra.mxu0 0.0
      %2378 = vmatprep.subr.mxu0 0.0
      %2379 = vmatpush1.msra.mxu0 %v2299
      %2380 = vmatprep.subr.mxu0 0.0
      %2381 = vmatpush1.msra.mxu0 %v2298
      %2382 = vmatprep.subr.mxu0 0.0
      %2383 = vmatpush1.msra.mxu0 %v2297
      %2384 = vmatprep.subr.mxu0 0.0
      %2385 = vmatpush1.msra.mxu0 %v2296
      %2386 = vmatprep.subr.mxu0 0.0
      %2387 = vmatpush2.msra.mxu0 0.0
      %2388 = vmatprep.subr.mxu0 0.0
      %2389 = vmatpush2.msra.mxu0 0.0
      %2390 = vmatprep.subr.mxu0 0.0
      %2391 = vmatpush2.msra.mxu0 0.0
      %2392 = vmatprep.subr.mxu0 0.0
      %2393 = vmatpush2.msra.mxu0 0.0
      %2394 = vmatprep.subr.mxu0 0.0
      %2395 = vmatpush2.msra.mxu0 0.0
      %2396 = vmatprep.subr.mxu0 0.0
      %2397 = vmatpush2.msra.mxu0 0.0
      %2398 = vmatprep.subr.mxu0 0.0
      %2399 = vmatpush2.msra.mxu0 0.0
      %2400 = vmatprep.subr.mxu0 0.0
      %2401 = vmatpush2.msra.mxu0 0.0
      %2402 = vmatprep.subr.mxu0 0.0
      %2403 = vmatpush2.msra.mxu0 0.0
      %2404 = vmatprep.subr.mxu0 0.0
      %2405 = vmatpush2.msra.mxu0 0.0
      %2406 = vmatprep.subr.mxu0 0.0
      %2407 = vmatpush2.msra.mxu0 0.0
      %2408 = vmatprep.subr.mxu0 0.0
      %2409 = vmatpush2.msra.mxu0 0.0
      %2410 = vmatprep.subr.mxu0 0.0
      %2411 = vmatpush2.msra.mxu0 0.0
      %2412 = vmatprep.subr.mxu0 0.0
      %2413 = vmatpush2.msra.mxu0 0.0
      %2414 = vmatprep.subr.mxu0 0.0
      %2415 = vmatpush2.msra.mxu0 0.0
      %2416 = vmatprep.subr.mxu0 0.0
      %2417 = vmatpush2.msra.mxu0 0.0
      %2418 = vmatprep.mubr.f32.mxu0 0.0
      %2419 = vmatmul.mubr.f32.gmra.mxu0 %v2301
      %v2420 = vpop.f32.mrf.mxu0
      %v2421 = vadd.f32 0.0, %v2420
      %v2422 = vpop.f32.mrf.mxu0
      %2423 = vmatprep.mubr.f32.mxu0 0.0
      %2424 = vmatmul.mubr.f32.gmra.mxu0 %v2304
      %v2425 = vpop.f32.mrf.mxu0
      %v2426 = vadd.f32 0.0, %v2425
      %v2427 = vpop.f32.mrf.mxu0
      %2428 = vmatprep.mubr.f32.mxu0 0.0
      %2429 = vmatmul.mubr.f32.gmra.mxu0 %v2307
      %v2430 = vpop.f32.mrf.mxu0
      %v2431 = vadd.f32 0.0, %v2430
      %v2432 = vpop.f32.mrf.mxu0
      %2433 = vmatprep.mubr.f32.mxu0 0.0
      %2434 = vmatmul.mubr.f32.gmra.mxu0 %v2310
      %v2435 = vpop.f32.mrf.mxu0
      %v2436 = vadd.f32 0.0, %v2435
      %v2437 = vpop.f32.mrf.mxu0
      %2438 = vmatprep.mubr.f32.mxu0 0.0
      %2439 = vmatmul.mubr.f32.gmra.mxu0 %v2313
      %v2440 = vpop.f32.mrf.mxu0
      %v2441 = vadd.f32 0.0, %v2440
      %v2442 = vpop.f32.mrf.mxu0
      %2443 = vmatprep.mubr.f32.mxu0 0.0
      %2444 = vmatmul.mubr.f32.gmra.mxu0 %v2316
      %v2445 = vpop.f32.mrf.mxu0
      %v2446 = vadd.f32 0.0, %v2445
      %v2447 = vpop.f32.mrf.mxu0
      %2448 = vmatprep.mubr.f32.mxu0 0.0
      %2449 = vmatmul.mubr.f32.gmra.mxu0 %v2319
      %v2450 = vpop.f32.mrf.mxu0
      %v2451 = vadd.f32 0.0, %v2450
      %v2452 = vpop.f32.mrf.mxu0
      %2453 = vmatprep.mubr.f32.mxu0 0.0
      %2454 = vmatmul.mubr.f32.gmra.mxu0 %v2322
      %v2455 = vpop.f32.mrf.mxu0
      %v2456 = vadd.f32 0.0, %v2455
      %v2457 = vpop.f32.mrf.mxu0
      %2458 = vmatprep.mubr.f32.mxu0 0.0
      %2459 = vmatmul.mubr.f32.gmra.mxu0 %v2325
      %v2460 = vpop.f32.mrf.mxu0
      %v2461 = vadd.f32 0.0, %v2460
      %v2462 = vpop.f32.mrf.mxu0
      %2463 = vmatprep.mubr.f32.mxu0 0.0
      %2464 = vmatmul.mubr.f32.gmra.mxu0 %v2328
      %v2465 = vpop.f32.mrf.mxu0
      %v2466 = vadd.f32 0.0, %v2465
      %v2467 = vpop.f32.mrf.mxu0
      %2468 = vmatprep.mubr.f32.mxu0 0.0
      %2469 = vmatmul.mubr.f32.gmra.mxu0 %v2331
      %v2470 = vpop.f32.mrf.mxu0
      %v2471 = vadd.f32 0.0, %v2470
      %v2472 = vpop.f32.mrf.mxu0
      %2473 = vmatprep.mubr.f32.mxu0 0.0
      %2474 = vmatmul.mubr.f32.gmra.mxu0 %v2334
      %v2475 = vpop.f32.mrf.mxu0
      %v2476 = vadd.f32 0.0, %v2475
      %v2477 = vpop.f32.mrf.mxu0
      %2478 = vmatprep.mubr.f32.mxu0 0.0
      %2479 = vmatmul.mubr.f32.gmra.mxu0 %v2337
      %v2480 = vpop.f32.mrf.mxu0
      %v2481 = vadd.f32 0.0, %v2480
      %v2482 = vpop.f32.mrf.mxu0
      %2483 = vmatprep.mubr.f32.mxu0 0.0
      %2484 = vmatmul.mubr.f32.gmra.mxu0 %v2340
      %v2485 = vpop.f32.mrf.mxu0
      %v2486 = vadd.f32 0.0, %v2485
      %v2487 = vpop.f32.mrf.mxu0
      %2488 = vmatprep.mubr.f32.mxu0 0.0
      %2489 = vmatmul.mubr.f32.gmra.mxu0 %v2343
      %v2490 = vpop.f32.mrf.mxu0
      %v2491 = vadd.f32 0.0, %v2490
      %v2492 = vpop.f32.mrf.mxu0
      %2493 = vmatprep.mubr.f32.mxu0 0.0
      %2494 = vmatmul.mubr.f32.gmra.mxu0 %v2346
      %v2495 = vpop.f32.mrf.mxu0
      %v2496 = vadd.f32 0.0, %v2495
      %v2497 = vpop.f32.mrf.mxu0
      %2498 = vmatprep.mubr.f32.mxu0 0.0
      %2499 = vmatmul.mubr.f32.gmra.mxu0 %v2349
      %v2500 = vpop.f32.mrf.mxu0
      %v2501 = vadd.f32 0.0, %v2500
      %v2502 = vpop.f32.mrf.mxu0
      %2503 = vmatprep.mubr.f32.mxu0 0.0
      %2504 = vmatmul.mubr.f32.gmra.mxu0 %v2352
      %v2505 = vpop.f32.mrf.mxu0
      %v2506 = vadd.f32 0.0, %v2505
      %v2507 = vpop.f32.mrf.mxu0
      %2508 = vdwg.mxu0
      %v2509 = vadd.f32 %v2260, %v2421
      %v2510 = vadd.f32 %v2261, %v2426
      %v2511 = vadd.f32 %v2262, %v2431
      %v2512 = vadd.f32 %v2263, %v2436
      %v2513 = vadd.f32 %v2264, %v2441
      %v2514 = vadd.f32 %v2265, %v2446
      %v2515 = vadd.f32 %v2266, %v2451
      %v2516 = vadd.f32 %v2267, %v2456
      %v2517 = vadd.f32 %v2268, %v2461
      %v2518 = vadd.f32 %v2269, %v2466
      %v2519 = vadd.f32 %v2270, %v2471
      %v2520 = vadd.f32 %v2271, %v2476
      %v2521 = vadd.f32 %v2272, %v2481
      %v2522 = vadd.f32 %v2273, %v2486
      %v2523 = vadd.f32 %v2274, %v2491
      %v2524 = vadd.f32 %v2275, %v2496
      %v2525 = vadd.f32 %v2276, %v2501
      %v2526 = vadd.f32 %v2277, %v2506
      %v2527 = vld [vmem:[#allocation6 + $0x12] sm:$0xff]
      %v2528 = vld [vmem:[#allocation6 + $0x1a] sm:$0xff]
      %v2529 = vld [vmem:[#allocation6 + $0x22] sm:$0xff]
      %v2530 = vld [vmem:[#allocation6 + $0x2a] sm:$0xff]
      %v2531 = vld [vmem:[#allocation6 + $0x32] sm:$0xff]
      %v2532 = vld [vmem:[#allocation6 + $0x3a] sm:$0xff]
      %v2533 = vld [vmem:[#allocation6 + $0x42] sm:$0xff]
      %v2534 = vld [vmem:[#allocation6 + $0x4a] sm:$0xff]
      %v2535 = vld [vmem:[#allocation6 + $0x52] sm:$0xff]
      %v2536 = vld [vmem:[#allocation6 + $0x5a] sm:$0xff]
      %v2537 = vld [vmem:[#allocation6 + $0x62] sm:$0xff]
      %v2538 = vld [vmem:[#allocation6 + $0x6a] sm:$0xff]
      %v2539 = vld [vmem:[#allocation6 + $0x72] sm:$0xff]
      %v2540 = vld [vmem:[#allocation6 + $0x7a] sm:$0xff]
      %v2541 = vld [vmem:[#allocation6 + $0x82] sm:$0xff]
      %v2542 = vld [vmem:[#allocation6 + $0x8a] sm:$0xff]
      %v2543 = vld [vmem:[#allocation6 + $0x92] sm:$0xff]
      %v2544 = vld [vmem:[#allocation6 + $0x9a] sm:$0x1]
      %v2545 = vld [vmem:[%s2 + $0xcb] sm:$0xff]
      %v2546 = vld [vmem:[%s2 + $0xd3] sm:$0xff]
      %v2547 = vld [vmem:[%s2 + $0xdb] sm:$0xff]
      %v2548 = vld [vmem:[%s2 + $0xe3] sm:$0xff]
      %v2550 = vsel %vm223, %v2527, 0
      %v2553 = vsel %vm223, %v2528, 0
      %v2556 = vsel %vm223, %v2529, 0
      %v2559 = vsel %vm223, %v2530, 0
      %v2562 = vsel %vm223, %v2531, 0
      %v2565 = vsel %vm223, %v2532, 0
      %v2568 = vsel %vm223, %v2533, 0
      %v2571 = vsel %vm223, %v2534, 0
      %v2574 = vsel %vm223, %v2535, 0
      %v2577 = vsel %vm223, %v2536, 0
      %v2580 = vsel %vm223, %v2537, 0
      %v2583 = vsel %vm223, %v2538, 0
      %v2586 = vsel %vm223, %v2539, 0
      %v2589 = vsel %vm223, %v2540, 0
      %v2592 = vsel %vm223, %v2541, 0
      %v2595 = vsel %vm223, %v2542, 0
      %v2598 = vsel %vm223, %v2543, 0
      %v2601 = vsel %vm223, %v2544, 0
      %2603 = vmatprep.subr.mxu0 0.0
      %2604 = vmatpush1.msra.mxu0 0.0
      %2605 = vmatprep.subr.mxu0 0.0
      %2606 = vmatpush1.msra.mxu0 0.0
      %2607 = vmatprep.subr.mxu0 0.0
      %2608 = vmatpush1.msra.mxu0 0.0
      %2609 = vmatprep.subr.mxu0 0.0
      %2610 = vmatpush1.msra.mxu0 0.0
      %2611 = vmatprep.subr.mxu0 0.0
      %2612 = vmatpush1.msra.mxu0 0.0
      %2613 = vmatprep.subr.mxu0 0.0
      %2614 = vmatpush1.msra.mxu0 0.0
      %2615 = vmatprep.subr.mxu0 0.0
      %2616 = vmatpush1.msra.mxu0 0.0
      %2617 = vmatprep.subr.mxu0 0.0
      %2618 = vmatpush1.msra.mxu0 0.0
      %2619 = vmatprep.subr.mxu0 0.0
      %2620 = vmatpush1.msra.mxu0 0.0
      %2621 = vmatprep.subr.mxu0 0.0
      %2622 = vmatpush1.msra.mxu0 0.0
      %2623 = vmatprep.subr.mxu0 0.0
      %2624 = vmatpush1.msra.mxu0 0.0
      %2625 = vmatprep.subr.mxu0 0.0
      %2626 = vmatpush1.msra.mxu0 0.0
      %2627 = vmatprep.subr.mxu0 0.0
      %2628 = vmatpush1.msra.mxu0 %v2548
      %2629 = vmatprep.subr.mxu0 0.0
      %2630 = vmatpush1.msra.mxu0 %v2547
      %2631 = vmatprep.subr.mxu0 0.0
      %2632 = vmatpush1.msra.mxu0 %v2546
      %2633 = vmatprep.subr.mxu0 0.0
      %2634 = vmatpush1.msra.mxu0 %v2545
      %2635 = vmatprep.subr.mxu0 0.0
      %2636 = vmatpush2.msra.mxu0 0.0
      %2637 = vmatprep.subr.mxu0 0.0
      %2638 = vmatpush2.msra.mxu0 0.0
      %2639 = vmatprep.subr.mxu0 0.0
      %2640 = vmatpush2.msra.mxu0 0.0
      %2641 = vmatprep.subr.mxu0 0.0
      %2642 = vmatpush2.msra.mxu0 0.0
      %2643 = vmatprep.subr.mxu0 0.0
      %2644 = vmatpush2.msra.mxu0 0.0
      %2645 = vmatprep.subr.mxu0 0.0
      %2646 = vmatpush2.msra.mxu0 0.0
      %2647 = vmatprep.subr.mxu0 0.0
      %2648 = vmatpush2.msra.mxu0 0.0
      %2649 = vmatprep.subr.mxu0 0.0
      %2650 = vmatpush2.msra.mxu0 0.0
      %2651 = vmatprep.subr.mxu0 0.0
      %2652 = vmatpush2.msra.mxu0 0.0
      %2653 = vmatprep.subr.mxu0 0.0
      %2654 = vmatpush2.msra.mxu0 0.0
      %2655 = vmatprep.subr.mxu0 0.0
      %2656 = vmatpush2.msra.mxu0 0.0
      %2657 = vmatprep.subr.mxu0 0.0
      %2658 = vmatpush2.msra.mxu0 0.0
      %2659 = vmatprep.subr.mxu0 0.0
      %2660 = vmatpush2.msra.mxu0 0.0
      %2661 = vmatprep.subr.mxu0 0.0
      %2662 = vmatpush2.msra.mxu0 0.0
      %2663 = vmatprep.subr.mxu0 0.0
      %2664 = vmatpush2.msra.mxu0 0.0
      %2665 = vmatprep.subr.mxu0 0.0
      %2666 = vmatpush2.msra.mxu0 0.0
      %2667 = vmatprep.mubr.f32.mxu0 0.0
      %2668 = vmatmul.mubr.f32.gmra.mxu0 %v2550
      %v2669 = vpop.f32.mrf.mxu0
      %v2670 = vadd.f32 0.0, %v2669
      %v2671 = vpop.f32.mrf.mxu0
      %2672 = vmatprep.mubr.f32.mxu0 0.0
      %2673 = vmatmul.mubr.f32.gmra.mxu0 %v2553
      %v2674 = vpop.f32.mrf.mxu0
      %v2675 = vadd.f32 0.0, %v2674
      %v2676 = vpop.f32.mrf.mxu0
      %2677 = vmatprep.mubr.f32.mxu0 0.0
      %2678 = vmatmul.mubr.f32.gmra.mxu0 %v2556
      %v2679 = vpop.f32.mrf.mxu0
      %v2680 = vadd.f32 0.0, %v2679
      %v2681 = vpop.f32.mrf.mxu0
      %2682 = vmatprep.mubr.f32.mxu0 0.0
      %2683 = vmatmul.mubr.f32.gmra.mxu0 %v2559
      %v2684 = vpop.f32.mrf.mxu0
      %v2685 = vadd.f32 0.0, %v2684
      %v2686 = vpop.f32.mrf.mxu0
      %2687 = vmatprep.mubr.f32.mxu0 0.0
      %2688 = vmatmul.mubr.f32.gmra.mxu0 %v2562
      %v2689 = vpop.f32.mrf.mxu0
      %v2690 = vadd.f32 0.0, %v2689
      %v2691 = vpop.f32.mrf.mxu0
      %2692 = vmatprep.mubr.f32.mxu0 0.0
      %2693 = vmatmul.mubr.f32.gmra.mxu0 %v2565
      %v2694 = vpop.f32.mrf.mxu0
      %v2695 = vadd.f32 0.0, %v2694
      %v2696 = vpop.f32.mrf.mxu0
      %2697 = vmatprep.mubr.f32.mxu0 0.0
      %2698 = vmatmul.mubr.f32.gmra.mxu0 %v2568
      %v2699 = vpop.f32.mrf.mxu0
      %v2700 = vadd.f32 0.0, %v2699
      %v2701 = vpop.f32.mrf.mxu0
      %2702 = vmatprep.mubr.f32.mxu0 0.0
      %2703 = vmatmul.mubr.f32.gmra.mxu0 %v2571
      %v2704 = vpop.f32.mrf.mxu0
      %v2705 = vadd.f32 0.0, %v2704
      %v2706 = vpop.f32.mrf.mxu0
      %2707 = vmatprep.mubr.f32.mxu0 0.0
      %2708 = vmatmul.mubr.f32.gmra.mxu0 %v2574
      %v2709 = vpop.f32.mrf.mxu0
      %v2710 = vadd.f32 0.0, %v2709
      %v2711 = vpop.f32.mrf.mxu0
      %2712 = vmatprep.mubr.f32.mxu0 0.0
      %2713 = vmatmul.mubr.f32.gmra.mxu0 %v2577
      %v2714 = vpop.f32.mrf.mxu0
      %v2715 = vadd.f32 0.0, %v2714
      %v2716 = vpop.f32.mrf.mxu0
      %2717 = vmatprep.mubr.f32.mxu0 0.0
      %2718 = vmatmul.mubr.f32.gmra.mxu0 %v2580
      %v2719 = vpop.f32.mrf.mxu0
      %v2720 = vadd.f32 0.0, %v2719
      %v2721 = vpop.f32.mrf.mxu0
      %2722 = vmatprep.mubr.f32.mxu0 0.0
      %2723 = vmatmul.mubr.f32.gmra.mxu0 %v2583
      %v2724 = vpop.f32.mrf.mxu0
      %v2725 = vadd.f32 0.0, %v2724
      %v2726 = vpop.f32.mrf.mxu0
      %2727 = vmatprep.mubr.f32.mxu0 0.0
      %2728 = vmatmul.mubr.f32.gmra.mxu0 %v2586
      %v2729 = vpop.f32.mrf.mxu0
      %v2730 = vadd.f32 0.0, %v2729
      %v2731 = vpop.f32.mrf.mxu0
      %2732 = vmatprep.mubr.f32.mxu0 0.0
      %2733 = vmatmul.mubr.f32.gmra.mxu0 %v2589
      %v2734 = vpop.f32.mrf.mxu0
      %v2735 = vadd.f32 0.0, %v2734
      %v2736 = vpop.f32.mrf.mxu0
      %2737 = vmatprep.mubr.f32.mxu0 0.0
      %2738 = vmatmul.mubr.f32.gmra.mxu0 %v2592
      %v2739 = vpop.f32.mrf.mxu0
      %v2740 = vadd.f32 0.0, %v2739
      %v2741 = vpop.f32.mrf.mxu0
      %2742 = vmatprep.mubr.f32.mxu0 0.0
      %2743 = vmatmul.mubr.f32.gmra.mxu0 %v2595
      %v2744 = vpop.f32.mrf.mxu0
      %v2745 = vadd.f32 0.0, %v2744
      %v2746 = vpop.f32.mrf.mxu0
      %2747 = vmatprep.mubr.f32.mxu0 0.0
      %2748 = vmatmul.mubr.f32.gmra.mxu0 %v2598
      %v2749 = vpop.f32.mrf.mxu0
      %v2750 = vadd.f32 0.0, %v2749
      %v2751 = vpop.f32.mrf.mxu0
      %2752 = vmatprep.mubr.f32.mxu0 0.0
      %2753 = vmatmul.mubr.f32.gmra.mxu0 %v2601
      %v2754 = vpop.f32.mrf.mxu0
      %v2755 = vadd.f32 0.0, %v2754
      %v2756 = vpop.f32.mrf.mxu0
      %2757 = vdwg.mxu0
      %v2758 = vadd.f32 %v2509, %v2670
      %v2759 = vadd.f32 %v2510, %v2675
      %v2760 = vadd.f32 %v2511, %v2680
      %v2761 = vadd.f32 %v2512, %v2685
      %v2762 = vadd.f32 %v2513, %v2690
      %v2763 = vadd.f32 %v2514, %v2695
      %v2764 = vadd.f32 %v2515, %v2700
      %v2765 = vadd.f32 %v2516, %v2705
      %v2766 = vadd.f32 %v2517, %v2710
      %v2767 = vadd.f32 %v2518, %v2715
      %v2768 = vadd.f32 %v2519, %v2720
      %v2769 = vadd.f32 %v2520, %v2725
      %v2770 = vadd.f32 %v2521, %v2730
      %v2771 = vadd.f32 %v2522, %v2735
      %v2772 = vadd.f32 %v2523, %v2740
      %v2773 = vadd.f32 %v2524, %v2745
      %v2774 = vadd.f32 %v2525, %v2750
      %v2775 = vadd.f32 %v2526, %v2755
      %v2776 = vld [vmem:[#allocation6 + $0x20] sm:$0xff]
      %v2777 = vld [vmem:[#allocation6 + $0x28] sm:$0xff]
      %v2778 = vld [vmem:[#allocation6 + $0x30] sm:$0xff]
      %v2779 = vld [vmem:[#allocation6 + $0x38] sm:$0xff]
      %v2780 = vld [vmem:[#allocation6 + $0x40] sm:$0xff]
      %v2781 = vld [vmem:[#allocation6 + $0x48] sm:$0xff]
      %v2782 = vld [vmem:[#allocation6 + $0x50] sm:$0xff]
      %v2783 = vld [vmem:[#allocation6 + $0x58] sm:$0xff]
      %v2784 = vld [vmem:[#allocation6 + $0x60] sm:$0xff]
      %v2785 = vld [vmem:[#allocation6 + $0x68] sm:$0xff]
      %v2786 = vld [vmem:[#allocation6 + $0x70] sm:$0xff]
      %v2787 = vld [vmem:[#allocation6 + $0x78] sm:$0xff]
      %v2788 = vld [vmem:[#allocation6 + $0x80] sm:$0xff]
      %v2789 = vld [vmem:[#allocation6 + $0x88] sm:$0xff]
      %v2790 = vld [vmem:[#allocation6 + $0x90] sm:$0xff]
      %v2791 = vld [vmem:[#allocation6 + $0x98] sm:$0xff]
      %v2792 = vld [vmem:[#allocation6 + $0xa0] sm:$0xff]
      %v2793 = vld [vmem:[#allocation6 + $0xa8] sm:$0x1]
      %v2794 = vld [vmem:[%s2 + $0xeb] sm:$0xff]
      %v2795 = vld [vmem:[%s2 + $0xf3] sm:$0xff]
      %v2796 = vld [vmem:[%s2 + $0xfb] sm:$0xff]
      %v2797 = vld [vmem:[%s2 + $0x103] sm:$0xff]
      %v2799 = vsel %vm223, %v2776, 0
      %v2802 = vsel %vm223, %v2777, 0
      %v2805 = vsel %vm223, %v2778, 0
      %v2808 = vsel %vm223, %v2779, 0
      %v2811 = vsel %vm223, %v2780, 0
      %v2814 = vsel %vm223, %v2781, 0
      %v2817 = vsel %vm223, %v2782, 0
      %v2820 = vsel %vm223, %v2783, 0
      %v2823 = vsel %vm223, %v2784, 0
      %v2826 = vsel %vm223, %v2785, 0
      %v2829 = vsel %vm223, %v2786, 0
      %v2832 = vsel %vm223, %v2787, 0
      %v2835 = vsel %vm223, %v2788, 0
      %v2838 = vsel %vm223, %v2789, 0
      %v2841 = vsel %vm223, %v2790, 0
      %v2844 = vsel %vm223, %v2791, 0
      %v2847 = vsel %vm223, %v2792, 0
      %v2850 = vsel %vm223, %v2793, 0
      %2852 = vmatprep.subr.mxu0 0.0
      %2853 = vmatpush1.msra.mxu0 0.0
      %2854 = vmatprep.subr.mxu0 0.0
      %2855 = vmatpush1.msra.mxu0 0.0
      %2856 = vmatprep.subr.mxu0 0.0
      %2857 = vmatpush1.msra.mxu0 0.0
      %2858 = vmatprep.subr.mxu0 0.0
      %2859 = vmatpush1.msra.mxu0 0.0
      %2860 = vmatprep.subr.mxu0 0.0
      %2861 = vmatpush1.msra.mxu0 0.0
      %2862 = vmatprep.subr.mxu0 0.0
      %2863 = vmatpush1.msra.mxu0 0.0
      %2864 = vmatprep.subr.mxu0 0.0
      %2865 = vmatpush1.msra.mxu0 0.0
      %2866 = vmatprep.subr.mxu0 0.0
      %2867 = vmatpush1.msra.mxu0 0.0
      %2868 = vmatprep.subr.mxu0 0.0
      %2869 = vmatpush1.msra.mxu0 0.0
      %2870 = vmatprep.subr.mxu0 0.0
      %2871 = vmatpush1.msra.mxu0 0.0
      %2872 = vmatprep.subr.mxu0 0.0
      %2873 = vmatpush1.msra.mxu0 0.0
      %2874 = vmatprep.subr.mxu0 0.0
      %2875 = vmatpush1.msra.mxu0 0.0
      %2876 = vmatprep.subr.mxu0 0.0
      %2877 = vmatpush1.msra.mxu0 %v2797
      %2878 = vmatprep.subr.mxu0 0.0
      %2879 = vmatpush1.msra.mxu0 %v2796
      %2880 = vmatprep.subr.mxu0 0.0
      %2881 = vmatpush1.msra.mxu0 %v2795
      %2882 = vmatprep.subr.mxu0 0.0
      %2883 = vmatpush1.msra.mxu0 %v2794
      %2884 = vmatprep.subr.mxu0 0.0
      %2885 = vmatpush2.msra.mxu0 0.0
      %2886 = vmatprep.subr.mxu0 0.0
      %2887 = vmatpush2.msra.mxu0 0.0
      %2888 = vmatprep.subr.mxu0 0.0
      %2889 = vmatpush2.msra.mxu0 0.0
      %2890 = vmatprep.subr.mxu0 0.0
      %2891 = vmatpush2.msra.mxu0 0.0
      %2892 = vmatprep.subr.mxu0 0.0
      %2893 = vmatpush2.msra.mxu0 0.0
      %2894 = vmatprep.subr.mxu0 0.0
      %2895 = vmatpush2.msra.mxu0 0.0
      %2896 = vmatprep.subr.mxu0 0.0
      %2897 = vmatpush2.msra.mxu0 0.0
      %2898 = vmatprep.subr.mxu0 0.0
      %2899 = vmatpush2.msra.mxu0 0.0
      %2900 = vmatprep.subr.mxu0 0.0
      %2901 = vmatpush2.msra.mxu0 0.0
      %2902 = vmatprep.subr.mxu0 0.0
      %2903 = vmatpush2.msra.mxu0 0.0
      %2904 = vmatprep.subr.mxu0 0.0
      %2905 = vmatpush2.msra.mxu0 0.0
      %2906 = vmatprep.subr.mxu0 0.0
      %2907 = vmatpush2.msra.mxu0 0.0
      %2908 = vmatprep.subr.mxu0 0.0
      %2909 = vmatpush2.msra.mxu0 0.0
      %2910 = vmatprep.subr.mxu0 0.0
      %2911 = vmatpush2.msra.mxu0 0.0
      %2912 = vmatprep.subr.mxu0 0.0
      %2913 = vmatpush2.msra.mxu0 0.0
      %2914 = vmatprep.subr.mxu0 0.0
      %2915 = vmatpush2.msra.mxu0 0.0
      %2916 = vmatprep.mubr.f32.mxu0 0.0
      %2917 = vmatmul.mubr.f32.gmra.mxu0 %v2799
      %v2918 = vpop.f32.mrf.mxu0
      %v2919 = vadd.f32 0.0, %v2918
      %v2920 = vpop.f32.mrf.mxu0
      %2921 = vmatprep.mubr.f32.mxu0 0.0
      %2922 = vmatmul.mubr.f32.gmra.mxu0 %v2802
      %v2923 = vpop.f32.mrf.mxu0
      %v2924 = vadd.f32 0.0, %v2923
      %v2925 = vpop.f32.mrf.mxu0
      %2926 = vmatprep.mubr.f32.mxu0 0.0
      %2927 = vmatmul.mubr.f32.gmra.mxu0 %v2805
      %v2928 = vpop.f32.mrf.mxu0
      %v2929 = vadd.f32 0.0, %v2928
      %v2930 = vpop.f32.mrf.mxu0
      %2931 = vmatprep.mubr.f32.mxu0 0.0
      %2932 = vmatmul.mubr.f32.gmra.mxu0 %v2808
      %v2933 = vpop.f32.mrf.mxu0
      %v2934 = vadd.f32 0.0, %v2933
      %v2935 = vpop.f32.mrf.mxu0
      %2936 = vmatprep.mubr.f32.mxu0 0.0
      %2937 = vmatmul.mubr.f32.gmra.mxu0 %v2811
      %v2938 = vpop.f32.mrf.mxu0
      %v2939 = vadd.f32 0.0, %v2938
      %v2940 = vpop.f32.mrf.mxu0
      %2941 = vmatprep.mubr.f32.mxu0 0.0
      %2942 = vmatmul.mubr.f32.gmra.mxu0 %v2814
      %v2943 = vpop.f32.mrf.mxu0
      %v2944 = vadd.f32 0.0, %v2943
      %v2945 = vpop.f32.mrf.mxu0
      %2946 = vmatprep.mubr.f32.mxu0 0.0
      %2947 = vmatmul.mubr.f32.gmra.mxu0 %v2817
      %v2948 = vpop.f32.mrf.mxu0
      %v2949 = vadd.f32 0.0, %v2948
      %v2950 = vpop.f32.mrf.mxu0
      %2951 = vmatprep.mubr.f32.mxu0 0.0
      %2952 = vmatmul.mubr.f32.gmra.mxu0 %v2820
      %v2953 = vpop.f32.mrf.mxu0
      %v2954 = vadd.f32 0.0, %v2953
      %v2955 = vpop.f32.mrf.mxu0
      %2956 = vmatprep.mubr.f32.mxu0 0.0
      %2957 = vmatmul.mubr.f32.gmra.mxu0 %v2823
      %v2958 = vpop.f32.mrf.mxu0
      %v2959 = vadd.f32 0.0, %v2958
      %v2960 = vpop.f32.mrf.mxu0
      %2961 = vmatprep.mubr.f32.mxu0 0.0
      %2962 = vmatmul.mubr.f32.gmra.mxu0 %v2826
      %v2963 = vpop.f32.mrf.mxu0
      %v2964 = vadd.f32 0.0, %v2963
      %v2965 = vpop.f32.mrf.mxu0
      %2966 = vmatprep.mubr.f32.mxu0 0.0
      %2967 = vmatmul.mubr.f32.gmra.mxu0 %v2829
      %v2968 = vpop.f32.mrf.mxu0
      %v2969 = vadd.f32 0.0, %v2968
      %v2970 = vpop.f32.mrf.mxu0
      %2971 = vmatprep.mubr.f32.mxu0 0.0
      %2972 = vmatmul.mubr.f32.gmra.mxu0 %v2832
      %v2973 = vpop.f32.mrf.mxu0
      %v2974 = vadd.f32 0.0, %v2973
      %v2975 = vpop.f32.mrf.mxu0
      %2976 = vmatprep.mubr.f32.mxu0 0.0
      %2977 = vmatmul.mubr.f32.gmra.mxu0 %v2835
      %v2978 = vpop.f32.mrf.mxu0
      %v2979 = vadd.f32 0.0, %v2978
      %v2980 = vpop.f32.mrf.mxu0
      %2981 = vmatprep.mubr.f32.mxu0 0.0
      %2982 = vmatmul.mubr.f32.gmra.mxu0 %v2838
      %v2983 = vpop.f32.mrf.mxu0
      %v2984 = vadd.f32 0.0, %v2983
      %v2985 = vpop.f32.mrf.mxu0
      %2986 = vmatprep.mubr.f32.mxu0 0.0
      %2987 = vmatmul.mubr.f32.gmra.mxu0 %v2841
      %v2988 = vpop.f32.mrf.mxu0
      %v2989 = vadd.f32 0.0, %v2988
      %v2990 = vpop.f32.mrf.mxu0
      %2991 = vmatprep.mubr.f32.mxu0 0.0
      %2992 = vmatmul.mubr.f32.gmra.mxu0 %v2844
      %v2993 = vpop.f32.mrf.mxu0
      %v2994 = vadd.f32 0.0, %v2993
      %v2995 = vpop.f32.mrf.mxu0
      %2996 = vmatprep.mubr.f32.mxu0 0.0
      %2997 = vmatmul.mubr.f32.gmra.mxu0 %v2847
      %v2998 = vpop.f32.mrf.mxu0
      %v2999 = vadd.f32 0.0, %v2998
      %v3000 = vpop.f32.mrf.mxu0
      %3001 = vmatprep.mubr.f32.mxu0 0.0
      %3002 = vmatmul.mubr.f32.gmra.mxu0 %v2850
      %v3003 = vpop.f32.mrf.mxu0
      %v3004 = vadd.f32 0.0, %v3003
      %v3005 = vpop.f32.mrf.mxu0
      %3006 = vdwg.mxu0
      %v3007 = vadd.f32 %v2758, %v2919
      %v3008 = vadd.f32 %v2759, %v2924
      %v3009 = vadd.f32 %v2760, %v2929
      %v3010 = vadd.f32 %v2761, %v2934
      %v3011 = vadd.f32 %v2762, %v2939
      %v3012 = vadd.f32 %v2763, %v2944
      %v3013 = vadd.f32 %v2764, %v2949
      %v3014 = vadd.f32 %v2765, %v2954
      %v3015 = vadd.f32 %v2766, %v2959
      %v3016 = vadd.f32 %v2767, %v2964
      %v3017 = vadd.f32 %v2768, %v2969
      %v3018 = vadd.f32 %v2769, %v2974
      %v3019 = vadd.f32 %v2770, %v2979
      %v3020 = vadd.f32 %v2771, %v2984
      %v3021 = vadd.f32 %v2772, %v2989
      %v3022 = vadd.f32 %v2773, %v2994
      %v3023 = vadd.f32 %v2774, %v2999
      %v3024 = vadd.f32 %v2775, %v3004
      %v3025 = vld [vmem:[#allocation6 + $0x21] sm:$0xff]
      %v3026 = vld [vmem:[#allocation6 + $0x29] sm:$0xff]
      %v3027 = vld [vmem:[#allocation6 + $0x31] sm:$0xff]
      %v3028 = vld [vmem:[#allocation6 + $0x39] sm:$0xff]
      %v3029 = vld [vmem:[#allocation6 + $0x41] sm:$0xff]
      %v3030 = vld [vmem:[#allocation6 + $0x49] sm:$0xff]
      %v3031 = vld [vmem:[#allocation6 + $0x51] sm:$0xff]
      %v3032 = vld [vmem:[#allocation6 + $0x59] sm:$0xff]
      %v3033 = vld [vmem:[#allocation6 + $0x61] sm:$0xff]
      %v3034 = vld [vmem:[#allocation6 + $0x69] sm:$0xff]
      %v3035 = vld [vmem:[#allocation6 + $0x71] sm:$0xff]
      %v3036 = vld [vmem:[#allocation6 + $0x79] sm:$0xff]
      %v3037 = vld [vmem:[#allocation6 + $0x81] sm:$0xff]
      %v3038 = vld [vmem:[#allocation6 + $0x89] sm:$0xff]
      %v3039 = vld [vmem:[#allocation6 + $0x91] sm:$0xff]
      %v3040 = vld [vmem:[#allocation6 + $0x99] sm:$0xff]
      %v3041 = vld [vmem:[#allocation6 + $0xa1] sm:$0xff]
      %v3042 = vld [vmem:[#allocation6 + $0xa9] sm:$0x1]
      %v3043 = vld [vmem:[%s2 + $0x10b] sm:$0xff]
      %v3044 = vld [vmem:[%s2 + $0x113] sm:$0xff]
      %v3045 = vld [vmem:[%s2 + $0x11b] sm:$0xff]
      %v3046 = vld [vmem:[%s2 + $0x123] sm:$0xff]
      %v3048 = vsel %vm223, %v3025, 0
      %v3051 = vsel %vm223, %v3026, 0
      %v3054 = vsel %vm223, %v3027, 0
      %v3057 = vsel %vm223, %v3028, 0
      %v3060 = vsel %vm223, %v3029, 0
      %v3063 = vsel %vm223, %v3030, 0
      %v3066 = vsel %vm223, %v3031, 0
      %v3069 = vsel %vm223, %v3032, 0
      %v3072 = vsel %vm223, %v3033, 0
      %v3075 = vsel %vm223, %v3034, 0
      %v3078 = vsel %vm223, %v3035, 0
      %v3081 = vsel %vm223, %v3036, 0
      %v3084 = vsel %vm223, %v3037, 0
      %v3087 = vsel %vm223, %v3038, 0
      %v3090 = vsel %vm223, %v3039, 0
      %v3093 = vsel %vm223, %v3040, 0
      %v3096 = vsel %vm223, %v3041, 0
      %v3099 = vsel %vm223, %v3042, 0
      %3101 = vmatprep.subr.mxu0 0.0
      %3102 = vmatpush1.msra.mxu0 0.0
      %3103 = vmatprep.subr.mxu0 0.0
      %3104 = vmatpush1.msra.mxu0 0.0
      %3105 = vmatprep.subr.mxu0 0.0
      %3106 = vmatpush1.msra.mxu0 0.0
      %3107 = vmatprep.subr.mxu0 0.0
      %3108 = vmatpush1.msra.mxu0 0.0
      %3109 = vmatprep.subr.mxu0 0.0
      %3110 = vmatpush1.msra.mxu0 0.0
      %3111 = vmatprep.subr.mxu0 0.0
      %3112 = vmatpush1.msra.mxu0 0.0
      %3113 = vmatprep.subr.mxu0 0.0
      %3114 = vmatpush1.msra.mxu0 0.0
      %3115 = vmatprep.subr.mxu0 0.0
      %3116 = vmatpush1.msra.mxu0 0.0
      %3117 = vmatprep.subr.mxu0 0.0
      %3118 = vmatpush1.msra.mxu0 0.0
      %3119 = vmatprep.subr.mxu0 0.0
      %3120 = vmatpush1.msra.mxu0 0.0
      %3121 = vmatprep.subr.mxu0 0.0
      %3122 = vmatpush1.msra.mxu0 0.0
      %3123 = vmatprep.subr.mxu0 0.0
      %3124 = vmatpush1.msra.mxu0 0.0
      %3125 = vmatprep.subr.mxu0 0.0
      %3126 = vmatpush1.msra.mxu0 %v3046
      %3127 = vmatprep.subr.mxu0 0.0
      %3128 = vmatpush1.msra.mxu0 %v3045
      %3129 = vmatprep.subr.mxu0 0.0
      %3130 = vmatpush1.msra.mxu0 %v3044
      %3131 = vmatprep.subr.mxu0 0.0
      %3132 = vmatpush1.msra.mxu0 %v3043
      %3133 = vmatprep.subr.mxu0 0.0
      %3134 = vmatpush2.msra.mxu0 0.0
      %3135 = vmatprep.subr.mxu0 0.0
      %3136 = vmatpush2.msra.mxu0 0.0
      %3137 = vmatprep.subr.mxu0 0.0
      %3138 = vmatpush2.msra.mxu0 0.0
      %3139 = vmatprep.subr.mxu0 0.0
      %3140 = vmatpush2.msra.mxu0 0.0
      %3141 = vmatprep.subr.mxu0 0.0
      %3142 = vmatpush2.msra.mxu0 0.0
      %3143 = vmatprep.subr.mxu0 0.0
      %3144 = vmatpush2.msra.mxu0 0.0
      %3145 = vmatprep.subr.mxu0 0.0
      %3146 = vmatpush2.msra.mxu0 0.0
      %3147 = vmatprep.subr.mxu0 0.0
      %3148 = vmatpush2.msra.mxu0 0.0
      %3149 = vmatprep.subr.mxu0 0.0
      %3150 = vmatpush2.msra.mxu0 0.0
      %3151 = vmatprep.subr.mxu0 0.0
      %3152 = vmatpush2.msra.mxu0 0.0
      %3153 = vmatprep.subr.mxu0 0.0
      %3154 = vmatpush2.msra.mxu0 0.0
      %3155 = vmatprep.subr.mxu0 0.0
      %3156 = vmatpush2.msra.mxu0 0.0
      %3157 = vmatprep.subr.mxu0 0.0
      %3158 = vmatpush2.msra.mxu0 0.0
      %3159 = vmatprep.subr.mxu0 0.0
      %3160 = vmatpush2.msra.mxu0 0.0
      %3161 = vmatprep.subr.mxu0 0.0
      %3162 = vmatpush2.msra.mxu0 0.0
      %3163 = vmatprep.subr.mxu0 0.0
      %3164 = vmatpush2.msra.mxu0 0.0
      %3165 = vmatprep.mubr.f32.mxu0 0.0
      %3166 = vmatmul.mubr.f32.gmra.mxu0 %v3048
      %v3167 = vpop.f32.mrf.mxu0
      %v3168 = vadd.f32 0.0, %v3167
      %v3169 = vpop.f32.mrf.mxu0
      %3170 = vmatprep.mubr.f32.mxu0 0.0
      %3171 = vmatmul.mubr.f32.gmra.mxu0 %v3051
      %v3172 = vpop.f32.mrf.mxu0
      %v3173 = vadd.f32 0.0, %v3172
      %v3174 = vpop.f32.mrf.mxu0
      %3175 = vmatprep.mubr.f32.mxu0 0.0
      %3176 = vmatmul.mubr.f32.gmra.mxu0 %v3054
      %v3177 = vpop.f32.mrf.mxu0
      %v3178 = vadd.f32 0.0, %v3177
      %v3179 = vpop.f32.mrf.mxu0
      %3180 = vmatprep.mubr.f32.mxu0 0.0
      %3181 = vmatmul.mubr.f32.gmra.mxu0 %v3057
      %v3182 = vpop.f32.mrf.mxu0
      %v3183 = vadd.f32 0.0, %v3182
      %v3184 = vpop.f32.mrf.mxu0
      %3185 = vmatprep.mubr.f32.mxu0 0.0
      %3186 = vmatmul.mubr.f32.gmra.mxu0 %v3060
      %v3187 = vpop.f32.mrf.mxu0
      %v3188 = vadd.f32 0.0, %v3187
      %v3189 = vpop.f32.mrf.mxu0
      %3190 = vmatprep.mubr.f32.mxu0 0.0
      %3191 = vmatmul.mubr.f32.gmra.mxu0 %v3063
      %v3192 = vpop.f32.mrf.mxu0
      %v3193 = vadd.f32 0.0, %v3192
      %v3194 = vpop.f32.mrf.mxu0
      %3195 = vmatprep.mubr.f32.mxu0 0.0
      %3196 = vmatmul.mubr.f32.gmra.mxu0 %v3066
      %v3197 = vpop.f32.mrf.mxu0
      %v3198 = vadd.f32 0.0, %v3197
      %v3199 = vpop.f32.mrf.mxu0
      %3200 = vmatprep.mubr.f32.mxu0 0.0
      %3201 = vmatmul.mubr.f32.gmra.mxu0 %v3069
      %v3202 = vpop.f32.mrf.mxu0
      %v3203 = vadd.f32 0.0, %v3202
      %v3204 = vpop.f32.mrf.mxu0
      %3205 = vmatprep.mubr.f32.mxu0 0.0
      %3206 = vmatmul.mubr.f32.gmra.mxu0 %v3072
      %v3207 = vpop.f32.mrf.mxu0
      %v3208 = vadd.f32 0.0, %v3207
      %v3209 = vpop.f32.mrf.mxu0
      %3210 = vmatprep.mubr.f32.mxu0 0.0
      %3211 = vmatmul.mubr.f32.gmra.mxu0 %v3075
      %v3212 = vpop.f32.mrf.mxu0
      %v3213 = vadd.f32 0.0, %v3212
      %v3214 = vpop.f32.mrf.mxu0
      %3215 = vmatprep.mubr.f32.mxu0 0.0
      %3216 = vmatmul.mubr.f32.gmra.mxu0 %v3078
      %v3217 = vpop.f32.mrf.mxu0
      %v3218 = vadd.f32 0.0, %v3217
      %v3219 = vpop.f32.mrf.mxu0
      %3220 = vmatprep.mubr.f32.mxu0 0.0
      %3221 = vmatmul.mubr.f32.gmra.mxu0 %v3081
      %v3222 = vpop.f32.mrf.mxu0
      %v3223 = vadd.f32 0.0, %v3222
      %v3224 = vpop.f32.mrf.mxu0
      %3225 = vmatprep.mubr.f32.mxu0 0.0
      %3226 = vmatmul.mubr.f32.gmra.mxu0 %v3084
      %v3227 = vpop.f32.mrf.mxu0
      %v3228 = vadd.f32 0.0, %v3227
      %v3229 = vpop.f32.mrf.mxu0
      %3230 = vmatprep.mubr.f32.mxu0 0.0
      %3231 = vmatmul.mubr.f32.gmra.mxu0 %v3087
      %v3232 = vpop.f32.mrf.mxu0
      %v3233 = vadd.f32 0.0, %v3232
      %v3234 = vpop.f32.mrf.mxu0
      %3235 = vmatprep.mubr.f32.mxu0 0.0
      %3236 = vmatmul.mubr.f32.gmra.mxu0 %v3090
      %v3237 = vpop.f32.mrf.mxu0
      %v3238 = vadd.f32 0.0, %v3237
      %v3239 = vpop.f32.mrf.mxu0
      %3240 = vmatprep.mubr.f32.mxu0 0.0
      %3241 = vmatmul.mubr.f32.gmra.mxu0 %v3093
      %v3242 = vpop.f32.mrf.mxu0
      %v3243 = vadd.f32 0.0, %v3242
      %v3244 = vpop.f32.mrf.mxu0
      %3245 = vmatprep.mubr.f32.mxu0 0.0
      %3246 = vmatmul.mubr.f32.gmra.mxu0 %v3096
      %v3247 = vpop.f32.mrf.mxu0
      %v3248 = vadd.f32 0.0, %v3247
      %v3249 = vpop.f32.mrf.mxu0
      %3250 = vmatprep.mubr.f32.mxu0 0.0
      %3251 = vmatmul.mubr.f32.gmra.mxu0 %v3099
      %v3252 = vpop.f32.mrf.mxu0
      %v3253 = vadd.f32 0.0, %v3252
      %v3254 = vpop.f32.mrf.mxu0
      %3255 = vdwg.mxu0
      %v3256 = vadd.f32 %v3007, %v3168
      %v3257 = vadd.f32 %v3008, %v3173
      %v3258 = vadd.f32 %v3009, %v3178
      %v3259 = vadd.f32 %v3010, %v3183
      %v3260 = vadd.f32 %v3011, %v3188
      %v3261 = vadd.f32 %v3012, %v3193
      %v3262 = vadd.f32 %v3013, %v3198
      %v3263 = vadd.f32 %v3014, %v3203
      %v3264 = vadd.f32 %v3015, %v3208
      %v3265 = vadd.f32 %v3016, %v3213
      %v3266 = vadd.f32 %v3017, %v3218
      %v3267 = vadd.f32 %v3018, %v3223
      %v3268 = vadd.f32 %v3019, %v3228
      %v3269 = vadd.f32 %v3020, %v3233
      %v3270 = vadd.f32 %v3021, %v3238
      %v3271 = vadd.f32 %v3022, %v3243
      %v3272 = vadd.f32 %v3023, %v3248
      %v3273 = vadd.f32 %v3024, %v3253
      %v3274 = vld [vmem:[#allocation6 + $0x22] sm:$0xff]
      %v3275 = vld [vmem:[#allocation6 + $0x2a] sm:$0xff]
      %v3276 = vld [vmem:[#allocation6 + $0x32] sm:$0xff]
      %v3277 = vld [vmem:[#allocation6 + $0x3a] sm:$0xff]
      %v3278 = vld [vmem:[#allocation6 + $0x42] sm:$0xff]
      %v3279 = vld [vmem:[#allocation6 + $0x4a] sm:$0xff]
      %v3280 = vld [vmem:[#allocation6 + $0x52] sm:$0xff]
      %v3281 = vld [vmem:[#allocation6 + $0x5a] sm:$0xff]
      %v3282 = vld [vmem:[#allocation6 + $0x62] sm:$0xff]
      %v3283 = vld [vmem:[#allocation6 + $0x6a] sm:$0xff]
      %v3284 = vld [vmem:[#allocation6 + $0x72] sm:$0xff]
      %v3285 = vld [vmem:[#allocation6 + $0x7a] sm:$0xff]
      %v3286 = vld [vmem:[#allocation6 + $0x82] sm:$0xff]
      %v3287 = vld [vmem:[#allocation6 + $0x8a] sm:$0xff]
      %v3288 = vld [vmem:[#allocation6 + $0x92] sm:$0xff]
      %v3289 = vld [vmem:[#allocation6 + $0x9a] sm:$0xff]
      %v3290 = vld [vmem:[#allocation6 + $0xa2] sm:$0xff]
      %v3291 = vld [vmem:[#allocation6 + $0xaa] sm:$0x1]
      %v3292 = vld [vmem:[%s2 + $0x12b] sm:$0xff]
      %v3293 = vld [vmem:[%s2 + $0x133] sm:$0xff]
      %v3294 = vld [vmem:[%s2 + $0x13b] sm:$0xff]
      %v3295 = vld [vmem:[%s2 + $0x143] sm:$0xff]
      %v3297 = vsel %vm223, %v3274, 0
      %v3300 = vsel %vm223, %v3275, 0
      %v3303 = vsel %vm223, %v3276, 0
      %v3306 = vsel %vm223, %v3277, 0
      %v3309 = vsel %vm223, %v3278, 0
      %v3312 = vsel %vm223, %v3279, 0
      %v3315 = vsel %vm223, %v3280, 0
      %v3318 = vsel %vm223, %v3281, 0
      %v3321 = vsel %vm223, %v3282, 0
      %v3324 = vsel %vm223, %v3283, 0
      %v3327 = vsel %vm223, %v3284, 0
      %v3330 = vsel %vm223, %v3285, 0
      %v3333 = vsel %vm223, %v3286, 0
      %v3336 = vsel %vm223, %v3287, 0
      %v3339 = vsel %vm223, %v3288, 0
      %v3342 = vsel %vm223, %v3289, 0
      %v3345 = vsel %vm223, %v3290, 0
      %v3348 = vsel %vm223, %v3291, 0
      %3350 = vmatprep.subr.mxu0 0.0
      %3351 = vmatpush1.msra.mxu0 0.0
      %3352 = vmatprep.subr.mxu0 0.0
      %3353 = vmatpush1.msra.mxu0 0.0
      %3354 = vmatprep.subr.mxu0 0.0
      %3355 = vmatpush1.msra.mxu0 0.0
      %3356 = vmatprep.subr.mxu0 0.0
      %3357 = vmatpush1.msra.mxu0 0.0
      %3358 = vmatprep.subr.mxu0 0.0
      %3359 = vmatpush1.msra.mxu0 0.0
      %3360 = vmatprep.subr.mxu0 0.0
      %3361 = vmatpush1.msra.mxu0 0.0
      %3362 = vmatprep.subr.mxu0 0.0
      %3363 = vmatpush1.msra.mxu0 0.0
      %3364 = vmatprep.subr.mxu0 0.0
      %3365 = vmatpush1.msra.mxu0 0.0
      %3366 = vmatprep.subr.mxu0 0.0
      %3367 = vmatpush1.msra.mxu0 0.0
      %3368 = vmatprep.subr.mxu0 0.0
      %3369 = vmatpush1.msra.mxu0 0.0
      %3370 = vmatprep.subr.mxu0 0.0
      %3371 = vmatpush1.msra.mxu0 0.0
      %3372 = vmatprep.subr.mxu0 0.0
      %3373 = vmatpush1.msra.mxu0 0.0
      %3374 = vmatprep.subr.mxu0 0.0
      %3375 = vmatpush1.msra.mxu0 %v3295
      %3376 = vmatprep.subr.mxu0 0.0
      %3377 = vmatpush1.msra.mxu0 %v3294
      %3378 = vmatprep.subr.mxu0 0.0
      %3379 = vmatpush1.msra.mxu0 %v3293
      %3380 = vmatprep.subr.mxu0 0.0
      %3381 = vmatpush1.msra.mxu0 %v3292
      %3382 = vmatprep.subr.mxu0 0.0
      %3383 = vmatpush2.msra.mxu0 0.0
      %3384 = vmatprep.subr.mxu0 0.0
      %3385 = vmatpush2.msra.mxu0 0.0
      %3386 = vmatprep.subr.mxu0 0.0
      %3387 = vmatpush2.msra.mxu0 0.0
      %3388 = vmatprep.subr.mxu0 0.0
      %3389 = vmatpush2.msra.mxu0 0.0
      %3390 = vmatprep.subr.mxu0 0.0
      %3391 = vmatpush2.msra.mxu0 0.0
      %3392 = vmatprep.subr.mxu0 0.0
      %3393 = vmatpush2.msra.mxu0 0.0
      %3394 = vmatprep.subr.mxu0 0.0
      %3395 = vmatpush2.msra.mxu0 0.0
      %3396 = vmatprep.subr.mxu0 0.0
      %3397 = vmatpush2.msra.mxu0 0.0
      %3398 = vmatprep.subr.mxu0 0.0
      %3399 = vmatpush2.msra.mxu0 0.0
      %3400 = vmatprep.subr.mxu0 0.0
      %3401 = vmatpush2.msra.mxu0 0.0
      %3402 = vmatprep.subr.mxu0 0.0
      %3403 = vmatpush2.msra.mxu0 0.0
      %3404 = vmatprep.subr.mxu0 0.0
      %3405 = vmatpush2.msra.mxu0 0.0
      %3406 = vmatprep.subr.mxu0 0.0
      %3407 = vmatpush2.msra.mxu0 0.0
      %3408 = vmatprep.subr.mxu0 0.0
      %3409 = vmatpush2.msra.mxu0 0.0
      %3410 = vmatprep.subr.mxu0 0.0
      %3411 = vmatpush2.msra.mxu0 0.0
      %3412 = vmatprep.subr.mxu0 0.0
      %3413 = vmatpush2.msra.mxu0 0.0
      %3414 = vmatprep.mubr.f32.mxu0 0.0
      %3415 = vmatmul.mubr.f32.gmra.mxu0 %v3297
      %v3416 = vpop.f32.mrf.mxu0
      %v3417 = vadd.f32 0.0, %v3416
      %v3418 = vpop.f32.mrf.mxu0
      %3419 = vmatprep.mubr.f32.mxu0 0.0
      %3420 = vmatmul.mubr.f32.gmra.mxu0 %v3300
      %v3421 = vpop.f32.mrf.mxu0
      %v3422 = vadd.f32 0.0, %v3421
      %v3423 = vpop.f32.mrf.mxu0
      %3424 = vmatprep.mubr.f32.mxu0 0.0
      %3425 = vmatmul.mubr.f32.gmra.mxu0 %v3303
      %v3426 = vpop.f32.mrf.mxu0
      %v3427 = vadd.f32 0.0, %v3426
      %v3428 = vpop.f32.mrf.mxu0
      %3429 = vmatprep.mubr.f32.mxu0 0.0
      %3430 = vmatmul.mubr.f32.gmra.mxu0 %v3306
      %v3431 = vpop.f32.mrf.mxu0
      %v3432 = vadd.f32 0.0, %v3431
      %v3433 = vpop.f32.mrf.mxu0
      %3434 = vmatprep.mubr.f32.mxu0 0.0
      %3435 = vmatmul.mubr.f32.gmra.mxu0 %v3309
      %v3436 = vpop.f32.mrf.mxu0
      %v3437 = vadd.f32 0.0, %v3436
      %v3438 = vpop.f32.mrf.mxu0
      %3439 = vmatprep.mubr.f32.mxu0 0.0
      %3440 = vmatmul.mubr.f32.gmra.mxu0 %v3312
      %v3441 = vpop.f32.mrf.mxu0
      %v3442 = vadd.f32 0.0, %v3441
      %v3443 = vpop.f32.mrf.mxu0
      %3444 = vmatprep.mubr.f32.mxu0 0.0
      %3445 = vmatmul.mubr.f32.gmra.mxu0 %v3315
      %v3446 = vpop.f32.mrf.mxu0
      %v3447 = vadd.f32 0.0, %v3446
      %v3448 = vpop.f32.mrf.mxu0
      %3449 = vmatprep.mubr.f32.mxu0 0.0
      %3450 = vmatmul.mubr.f32.gmra.mxu0 %v3318
      %v3451 = vpop.f32.mrf.mxu0
      %v3452 = vadd.f32 0.0, %v3451
      %v3453 = vpop.f32.mrf.mxu0
      %3454 = vmatprep.mubr.f32.mxu0 0.0
      %3455 = vmatmul.mubr.f32.gmra.mxu0 %v3321
      %v3456 = vpop.f32.mrf.mxu0
      %v3457 = vadd.f32 0.0, %v3456
      %v3458 = vpop.f32.mrf.mxu0
      %3459 = vmatprep.mubr.f32.mxu0 0.0
      %3460 = vmatmul.mubr.f32.gmra.mxu0 %v3324
      %v3461 = vpop.f32.mrf.mxu0
      %v3462 = vadd.f32 0.0, %v3461
      %v3463 = vpop.f32.mrf.mxu0
      %3464 = vmatprep.mubr.f32.mxu0 0.0
      %3465 = vmatmul.mubr.f32.gmra.mxu0 %v3327
      %v3466 = vpop.f32.mrf.mxu0
      %v3467 = vadd.f32 0.0, %v3466
      %v3468 = vpop.f32.mrf.mxu0
      %3469 = vmatprep.mubr.f32.mxu0 0.0
      %3470 = vmatmul.mubr.f32.gmra.mxu0 %v3330
      %v3471 = vpop.f32.mrf.mxu0
      %v3472 = vadd.f32 0.0, %v3471
      %v3473 = vpop.f32.mrf.mxu0
      %3474 = vmatprep.mubr.f32.mxu0 0.0
      %3475 = vmatmul.mubr.f32.gmra.mxu0 %v3333
      %v3476 = vpop.f32.mrf.mxu0
      %v3477 = vadd.f32 0.0, %v3476
      %v3478 = vpop.f32.mrf.mxu0
      %3479 = vmatprep.mubr.f32.mxu0 0.0
      %3480 = vmatmul.mubr.f32.gmra.mxu0 %v3336
      %v3481 = vpop.f32.mrf.mxu0
      %v3482 = vadd.f32 0.0, %v3481
      %v3483 = vpop.f32.mrf.mxu0
      %3484 = vmatprep.mubr.f32.mxu0 0.0
      %3485 = vmatmul.mubr.f32.gmra.mxu0 %v3339
      %v3486 = vpop.f32.mrf.mxu0
      %v3487 = vadd.f32 0.0, %v3486
      %v3488 = vpop.f32.mrf.mxu0
      %3489 = vmatprep.mubr.f32.mxu0 0.0
      %3490 = vmatmul.mubr.f32.gmra.mxu0 %v3342
      %v3491 = vpop.f32.mrf.mxu0
      %v3492 = vadd.f32 0.0, %v3491
      %v3493 = vpop.f32.mrf.mxu0
      %3494 = vmatprep.mubr.f32.mxu0 0.0
      %3495 = vmatmul.mubr.f32.gmra.mxu0 %v3345
      %v3496 = vpop.f32.mrf.mxu0
      %v3497 = vadd.f32 0.0, %v3496
      %v3498 = vpop.f32.mrf.mxu0
      %3499 = vmatprep.mubr.f32.mxu0 0.0
      %3500 = vmatmul.mubr.f32.gmra.mxu0 %v3348
      %v3501 = vpop.f32.mrf.mxu0
      %v3502 = vadd.f32 0.0, %v3501
      %v3503 = vpop.f32.mrf.mxu0
      %3504 = vdwg.mxu0
      %v3505 = vadd.f32 %v3256, %v3417
      %v3506 = vadd.f32 %v3257, %v3422
      %v3507 = vadd.f32 %v3258, %v3427
      %v3508 = vadd.f32 %v3259, %v3432
      %v3509 = vadd.f32 %v3260, %v3437
      %v3510 = vadd.f32 %v3261, %v3442
      %v3511 = vadd.f32 %v3262, %v3447
      %v3512 = vadd.f32 %v3263, %v3452
      %v3513 = vadd.f32 %v3264, %v3457
      %v3514 = vadd.f32 %v3265, %v3462
      %v3515 = vadd.f32 %v3266, %v3467
      %v3516 = vadd.f32 %v3267, %v3472
      %v3517 = vadd.f32 %v3268, %v3477
      %v3518 = vadd.f32 %v3269, %v3482
      %v3519 = vadd.f32 %v3270, %v3487
      %v3520 = vadd.f32 %v3271, %v3492
      %v3521 = vadd.f32 %v3272, %v3497
      %v3522 = vadd.f32 %v3273, %v3502
      %v3523 = vld [vmem:[%s2 + $0x14b] sm:$0x1]
      %v3524 = vlaneseq
      %v3525 = vshrl.u32 %v3524, 7
      %v3526 = vsub.s32 0, %v3525
      %v3527 = vrot.slane %v3523, %v3526
      %v3528 = vadd.f32 %v3505, %v3527
      %v3529 = vadd.f32 %v3506, %v3527
      %v3530 = vadd.f32 %v3507, %v3527
      %v3531 = vadd.f32 %v3508, %v3527
      %v3532 = vadd.f32 %v3509, %v3527
      %v3533 = vadd.f32 %v3510, %v3527
      %v3534 = vadd.f32 %v3511, %v3527
      %v3535 = vadd.f32 %v3512, %v3527
      %v3536 = vadd.f32 %v3513, %v3527
      %v3537 = vadd.f32 %v3514, %v3527
      %v3538 = vadd.f32 %v3515, %v3527
      %v3539 = vadd.f32 %v3516, %v3527
      %v3540 = vadd.f32 %v3517, %v3527
      %v3541 = vadd.f32 %v3518, %v3527
      %v3542 = vadd.f32 %v3519, %v3527
      %v3543 = vadd.f32 %v3520, %v3527
      %v3544 = vadd.f32 %v3521, %v3527
      %v3545 = vadd.f32 %v3522, %v3527
      %v3546 = vmax.f32 %v3528, 0.0
      %v3547 = vmax.f32 %v3529, 0.0
      %v3548 = vmax.f32 %v3530, 0.0
      %v3549 = vmax.f32 %v3531, 0.0
      %v3550 = vmax.f32 %v3532, 0.0
      %v3551 = vmax.f32 %v3533, 0.0
      %v3552 = vmax.f32 %v3534, 0.0
      %v3553 = vmax.f32 %v3535, 0.0
      %v3554 = vmax.f32 %v3536, 0.0
      %v3555 = vmax.f32 %v3537, 0.0
      %v3556 = vmax.f32 %v3538, 0.0
      %v3557 = vmax.f32 %v3539, 0.0
      %v3558 = vmax.f32 %v3540, 0.0
      %v3559 = vmax.f32 %v3541, 0.0
      %v3560 = vmax.f32 %v3542, 0.0
      %v3561 = vmax.f32 %v3543, 0.0
      %v3562 = vmax.f32 %v3544, 0.0
      %v3563 = vmax.f32 %v3545, 0.0
      %v3564 = vld [vmem:[%s1] sm:$0xff]
      %v3565 = vld [vmem:[%s1 + $0x8] sm:$0xff]
      %v3566 = vld [vmem:[%s1 + $0x10] sm:$0xff]
      %v3567 = vld [vmem:[%s1 + $0x18] sm:$0xff]
      %v3568 = vld [vmem:[%s1 + $0x20] sm:$0xff]
      %v3569 = vld [vmem:[%s1 + $0x28] sm:$0xff]
      %v3570 = vld [vmem:[%s1 + $0x30] sm:$0xff]
      %v3571 = vld [vmem:[%s1 + $0x38] sm:$0xff]
      %v3572 = vld [vmem:[%s1 + $0x40] sm:$0xff]
      %v3573 = vld [vmem:[%s1 + $0x48] sm:$0xff]
      %v3574 = vld [vmem:[%s1 + $0x50] sm:$0xff]
      %v3575 = vld [vmem:[%s1 + $0x58] sm:$0xff]
      %v3576 = vld [vmem:[%s1 + $0x60] sm:$0xff]
      %v3577 = vld [vmem:[%s1 + $0x68] sm:$0xff]
      %v3578 = vld [vmem:[%s1 + $0x70] sm:$0xff]
      %v3579 = vld [vmem:[%s1 + $0x78] sm:$0xff]
      %v3580 = vld [vmem:[%s1 + $0x80] sm:$0xff]
      %v3581 = vld [vmem:[%s1 + $0x88] sm:$0x1]
      %vm3582 = vcmp.gt.f32.partialorder %v3564, 0.5
      %vm3583 = vcmp.gt.f32.partialorder %v3565, 0.5
      %vm3584 = vcmp.gt.f32.partialorder %v3566, 0.5
      %vm3585 = vcmp.gt.f32.partialorder %v3567, 0.5
      %vm3586 = vcmp.gt.f32.partialorder %v3568, 0.5
      %vm3587 = vcmp.gt.f32.partialorder %v3569, 0.5
      %vm3588 = vcmp.gt.f32.partialorder %v3570, 0.5
      %vm3589 = vcmp.gt.f32.partialorder %v3571, 0.5
      %vm3590 = vcmp.gt.f32.partialorder %v3572, 0.5
      %vm3591 = vcmp.gt.f32.partialorder %v3573, 0.5
      %vm3592 = vcmp.gt.f32.partialorder %v3574, 0.5
      %vm3593 = vcmp.gt.f32.partialorder %v3575, 0.5
      %vm3594 = vcmp.gt.f32.partialorder %v3576, 0.5
      %vm3595 = vcmp.gt.f32.partialorder %v3577, 0.5
      %vm3596 = vcmp.gt.f32.partialorder %v3578, 0.5
      %vm3597 = vcmp.gt.f32.partialorder %v3579, 0.5
      %vm3598 = vcmp.gt.f32.partialorder %v3580, 0.5
      %vm3599 = vcmp.gt.f32.partialorder %v3581, 0.5
      %v3600 = vsel %vm3582, 1, 0
      %v3601 = vsel %vm3583, 1, 0
      %v3602 = vsel %vm3584, 1, 0
      %v3603 = vsel %vm3585, 1, 0
      %v3604 = vsel %vm3586, 1, 0
      %v3605 = vsel %vm3587, 1, 0
      %v3606 = vsel %vm3588, 1, 0
      %v3607 = vsel %vm3589, 1, 0
      %v3608 = vsel %vm3590, 1, 0
      %v3609 = vsel %vm3591, 1, 0
      %v3610 = vsel %vm3592, 1, 0
      %v3611 = vsel %vm3593, 1, 0
      %v3612 = vsel %vm3594, 1, 0
      %v3613 = vsel %vm3595, 1, 0
      %v3614 = vsel %vm3596, 1, 0
      %v3615 = vsel %vm3597, 1, 0
      %v3616 = vsel %vm3598, 1, 0
      %v3617 = vsel %vm3599, 1, 0
      %3618 = vset.pattern.permute.xlu0 1
      %3619 = vperm.xlu0 %3618, %v3600
      %v3620 = vpop.permute.xlu0 %3619
      %3621 = vset.pattern.permute.xlu0 1
      %3622 = vperm.xlu0 %3621, %v3601
      %v3623 = vpop.permute.xlu0 %3622
      %3624 = vset.pattern.permute.xlu0 1
      %3625 = vperm.xlu0 %3624, %v3602
      %v3626 = vpop.permute.xlu0 %3625
      %3627 = vset.pattern.permute.xlu0 1
      %3628 = vperm.xlu0 %3627, %v3603
      %v3629 = vpop.permute.xlu0 %3628
      %3630 = vset.pattern.permute.xlu0 1
      %3631 = vperm.xlu0 %3630, %v3604
      %v3632 = vpop.permute.xlu0 %3631
      %3633 = vset.pattern.permute.xlu0 1
      %3634 = vperm.xlu0 %3633, %v3605
      %v3635 = vpop.permute.xlu0 %3634
      %3636 = vset.pattern.permute.xlu0 1
      %3637 = vperm.xlu0 %3636, %v3606
      %v3638 = vpop.permute.xlu0 %3637
      %3639 = vset.pattern.permute.xlu0 1
      %3640 = vperm.xlu0 %3639, %v3607
      %v3641 = vpop.permute.xlu0 %3640
      %3642 = vset.pattern.permute.xlu0 1
      %3643 = vperm.xlu0 %3642, %v3608
      %v3644 = vpop.permute.xlu0 %3643
      %3645 = vset.pattern.permute.xlu0 1
      %3646 = vperm.xlu0 %3645, %v3609
      %v3647 = vpop.permute.xlu0 %3646
      %3648 = vset.pattern.permute.xlu0 1
      %3649 = vperm.xlu0 %3648, %v3610
      %v3650 = vpop.permute.xlu0 %3649
      %3651 = vset.pattern.permute.xlu0 1
      %3652 = vperm.xlu0 %3651, %v3611
      %v3653 = vpop.permute.xlu0 %3652
      %3654 = vset.pattern.permute.xlu0 1
      %3655 = vperm.xlu0 %3654, %v3612
      %v3656 = vpop.permute.xlu0 %3655
      %3657 = vset.pattern.permute.xlu0 1
      %3658 = vperm.xlu0 %3657, %v3613
      %v3659 = vpop.permute.xlu0 %3658
      %3660 = vset.pattern.permute.xlu0 1
      %3661 = vperm.xlu0 %3660, %v3614
      %v3662 = vpop.permute.xlu0 %3661
      %3663 = vset.pattern.permute.xlu0 1
      %3664 = vperm.xlu0 %3663, %v3615
      %v3665 = vpop.permute.xlu0 %3664
      %3666 = vset.pattern.permute.xlu0 1
      %3667 = vperm.xlu0 %3666, %v3616
      %v3668 = vpop.permute.xlu0 %3667
      %3669 = vset.pattern.permute.xlu0 1
      %3670 = vperm.xlu0 %3669, %v3617
      %v3671 = vpop.permute.xlu0 %3670
      %vm3672 = vcmp.eq.s32.totalorder %v3620, 1
      %vm3673 = vcmp.eq.s32.totalorder %v3623, 1
      %vm3674 = vcmp.eq.s32.totalorder %v3626, 1
      %vm3675 = vcmp.eq.s32.totalorder %v3629, 1
      %vm3676 = vcmp.eq.s32.totalorder %v3632, 1
      %vm3677 = vcmp.eq.s32.totalorder %v3635, 1
      %vm3678 = vcmp.eq.s32.totalorder %v3638, 1
      %vm3679 = vcmp.eq.s32.totalorder %v3641, 1
      %vm3680 = vcmp.eq.s32.totalorder %v3644, 1
      %vm3681 = vcmp.eq.s32.totalorder %v3647, 1
      %vm3682 = vcmp.eq.s32.totalorder %v3650, 1
      %vm3683 = vcmp.eq.s32.totalorder %v3653, 1
      %vm3684 = vcmp.eq.s32.totalorder %v3656, 1
      %vm3685 = vcmp.eq.s32.totalorder %v3659, 1
      %vm3686 = vcmp.eq.s32.totalorder %v3662, 1
      %vm3687 = vcmp.eq.s32.totalorder %v3665, 1
      %vm3688 = vcmp.eq.s32.totalorder %v3668, 1
      %vm3689 = vcmp.eq.s32.totalorder %v3671, 1
      %v3690 = vsel %vm3672, %v3546, 0.0
      %v3691 = vsel %vm3673, %v3547, 0.0
      %v3692 = vsel %vm3674, %v3548, 0.0
      %v3693 = vsel %vm3675, %v3549, 0.0
      %v3694 = vsel %vm3676, %v3550, 0.0
      %v3695 = vsel %vm3677, %v3551, 0.0
      %v3696 = vsel %vm3678, %v3552, 0.0
      %v3697 = vsel %vm3679, %v3553, 0.0
      %v3698 = vsel %vm3680, %v3554, 0.0
      %v3699 = vsel %vm3681, %v3555, 0.0
      %v3700 = vsel %vm3682, %v3556, 0.0
      %v3701 = vsel %vm3683, %v3557, 0.0
      %v3702 = vsel %vm3684, %v3558, 0.0
      %v3703 = vsel %vm3685, %v3559, 0.0
      %v3704 = vsel %vm3686, %v3560, 0.0
      %v3705 = vsel %vm3687, %v3561, 0.0
      %v3706 = vsel %vm3688, %v3562, 0.0
      %v3707 = vsel %vm3689, %v3563, 0.0
      %3708 = vst.msk [vmem:[#allocation3 + $0x11] sm:$0xff] %vm223, %v3690
      %3709 = vst.msk [vmem:[#allocation3 + $0x19] sm:$0xff] %vm223, %v3691
      %3710 = vst.msk [vmem:[#allocation3 + $0x21] sm:$0xff] %vm223, %v3692
      %3711 = vst.msk [vmem:[#allocation3 + $0x29] sm:$0xff] %vm223, %v3693
      %3712 = vst.msk [vmem:[#allocation3 + $0x31] sm:$0xff] %vm223, %v3694
      %3713 = vst.msk [vmem:[#allocation3 + $0x39] sm:$0xff] %vm223, %v3695
      %3714 = vst.msk [vmem:[#allocation3 + $0x41] sm:$0xff] %vm223, %v3696
      %3715 = vst.msk [vmem:[#allocation3 + $0x49] sm:$0xff] %vm223, %v3697
      %3716 = vst.msk [vmem:[#allocation3 + $0x51] sm:$0xff] %vm223, %v3698
      %3717 = vst.msk [vmem:[#allocation3 + $0x59] sm:$0xff] %vm223, %v3699
      %3718 = vst.msk [vmem:[#allocation3 + $0x61] sm:$0xff] %vm223, %v3700
      %3719 = vst.msk [vmem:[#allocation3 + $0x69] sm:$0xff] %vm223, %v3701
      %3720 = vst.msk [vmem:[#allocation3 + $0x71] sm:$0xff] %vm223, %v3702
      %3721 = vst.msk [vmem:[#allocation3 + $0x79] sm:$0xff] %vm223, %v3703
      %3722 = vst.msk [vmem:[#allocation3 + $0x81] sm:$0xff] %vm223, %v3704
      %3723 = vst.msk [vmem:[#allocation3 + $0x89] sm:$0xff] %vm223, %v3705
      %3724 = vst.msk [vmem:[#allocation3 + $0x91] sm:$0xff] %vm223, %v3706
      %3725 = vst.msk [vmem:[#allocation3 + $0x99] sm:$0x1] %vm226, %v3707
      %v3726 = vld [vmem:[#allocation3] sm:$0xff]
      %v3727 = vld [vmem:[#allocation3 + $0x8] sm:$0xff]
      %v3728 = vld [vmem:[#allocation3 + $0x10] sm:$0xff]
      %v3729 = vld [vmem:[#allocation3 + $0x18] sm:$0xff]
      %v3730 = vld [vmem:[#allocation3 + $0x20] sm:$0xff]
      %v3731 = vld [vmem:[#allocation3 + $0x28] sm:$0xff]
      %v3732 = vld [vmem:[#allocation3 + $0x30] sm:$0xff]
      %v3733 = vld [vmem:[#allocation3 + $0x38] sm:$0xff]
      %v3734 = vld [vmem:[#allocation3 + $0x40] sm:$0xff]
      %v3735 = vld [vmem:[#allocation3 + $0x48] sm:$0xff]
      %v3736 = vld [vmem:[#allocation3 + $0x50] sm:$0xff]
      %v3737 = vld [vmem:[#allocation3 + $0x58] sm:$0xff]
      %v3738 = vld [vmem:[#allocation3 + $0x60] sm:$0xff]
      %v3739 = vld [vmem:[#allocation3 + $0x68] sm:$0xff]
      %v3740 = vld [vmem:[#allocation3 + $0x70] sm:$0xff]
      %v3741 = vld [vmem:[#allocation3 + $0x78] sm:$0xff]
      %v3742 = vld [vmem:[#allocation3 + $0x80] sm:$0xff]
      %v3743 = vld [vmem:[#allocation3 + $0x88] sm:$0x1]
      %v3744 = vld [vmem:[%s2 + $0x14c] sm:$0x1]
      %v3745 = vlaneseq
      %v3746 = vshrl.u32 %v3745, 7
      %v3747 = vsub.s32 0, %v3746
      %v3748 = vrot.slane %v3744, %v3747
      %v3749 = vmul.f32 %v3726, %v3748
      %v3750 = vmul.f32 %v3727, %v3748
      %v3751 = vmul.f32 %v3728, %v3748
      %v3752 = vmul.f32 %v3729, %v3748
      %v3753 = vmul.f32 %v3730, %v3748
      %v3754 = vmul.f32 %v3731, %v3748
      %v3755 = vmul.f32 %v3732, %v3748
      %v3756 = vmul.f32 %v3733, %v3748
      %v3757 = vmul.f32 %v3734, %v3748
      %v3758 = vmul.f32 %v3735, %v3748
      %v3759 = vmul.f32 %v3736, %v3748
      %v3760 = vmul.f32 %v3737, %v3748
      %v3761 = vmul.f32 %v3738, %v3748
      %v3762 = vmul.f32 %v3739, %v3748
      %v3763 = vmul.f32 %v3740, %v3748
      %v3764 = vmul.f32 %v3741, %v3748
      %v3765 = vmul.f32 %v3742, %v3748
      %v3766 = vmul.f32 %v3743, %v3748
      %v3767 = vld [vmem:[#allocation3 + $0x1] sm:$0xff]
      %v3768 = vld [vmem:[#allocation3 + $0x9] sm:$0xff]
      %v3769 = vld [vmem:[#allocation3 + $0x11] sm:$0xff]
      %v3770 = vld [vmem:[#allocation3 + $0x19] sm:$0xff]
      %v3771 = vld [vmem:[#allocation3 + $0x21] sm:$0xff]
      %v3772 = vld [vmem:[#allocation3 + $0x29] sm:$0xff]
      %v3773 = vld [vmem:[#allocation3 + $0x31] sm:$0xff]
      %v3774 = vld [vmem:[#allocation3 + $0x39] sm:$0xff]
      %v3775 = vld [vmem:[#allocation3 + $0x41] sm:$0xff]
      %v3776 = vld [vmem:[#allocation3 + $0x49] sm:$0xff]
      %v3777 = vld [vmem:[#allocation3 + $0x51] sm:$0xff]
      %v3778 = vld [vmem:[#allocation3 + $0x59] sm:$0xff]
      %v3779 = vld [vmem:[#allocation3 + $0x61] sm:$0xff]
      %v3780 = vld [vmem:[#allocation3 + $0x69] sm:$0xff]
      %v3781 = vld [vmem:[#allocation3 + $0x71] sm:$0xff]
      %v3782 = vld [vmem:[#allocation3 + $0x79] sm:$0xff]
      %v3783 = vld [vmem:[#allocation3 + $0x81] sm:$0xff]
      %v3784 = vld [vmem:[#allocation3 + $0x89] sm:$0x1]
      %v3785 = vld [vmem:[%s2 + $0x14d] sm:$0x1]
      %v3786 = vlaneseq
      %v3787 = vshrl.u32 %v3786, 7
      %v3788 = vsub.s32 0, %v3787
      %v3789 = vrot.slane %v3785, %v3788
      %v3790 = vmul.f32 %v3767, %v3789
      %v3791 = vmul.f32 %v3768, %v3789
      %v3792 = vmul.f32 %v3769, %v3789
      %v3793 = vmul.f32 %v3770, %v3789
      %v3794 = vmul.f32 %v3771, %v3789
      %v3795 = vmul.f32 %v3772, %v3789
      %v3796 = vmul.f32 %v3773, %v3789
      %v3797 = vmul.f32 %v3774, %v3789
      %v3798 = vmul.f32 %v3775, %v3789
      %v3799 = vmul.f32 %v3776, %v3789
      %v3800 = vmul.f32 %v3777, %v3789
      %v3801 = vmul.f32 %v3778, %v3789
      %v3802 = vmul.f32 %v3779, %v3789
      %v3803 = vmul.f32 %v3780, %v3789
      %v3804 = vmul.f32 %v3781, %v3789
      %v3805 = vmul.f32 %v3782, %v3789
      %v3806 = vmul.f32 %v3783, %v3789
      %v3807 = vmul.f32 %v3784, %v3789
      %v3808 = vadd.f32 %v3749, %v3790
      %v3809 = vadd.f32 %v3750, %v3791
      %v3810 = vadd.f32 %v3751, %v3792
      %v3811 = vadd.f32 %v3752, %v3793
      %v3812 = vadd.f32 %v3753, %v3794
      %v3813 = vadd.f32 %v3754, %v3795
      %v3814 = vadd.f32 %v3755, %v3796
      %v3815 = vadd.f32 %v3756, %v3797
      %v3816 = vadd.f32 %v3757, %v3798
      %v3817 = vadd.f32 %v3758, %v3799
      %v3818 = vadd.f32 %v3759, %v3800
      %v3819 = vadd.f32 %v3760, %v3801
      %v3820 = vadd.f32 %v3761, %v3802
      %v3821 = vadd.f32 %v3762, %v3803
      %v3822 = vadd.f32 %v3763, %v3804
      %v3823 = vadd.f32 %v3764, %v3805
      %v3824 = vadd.f32 %v3765, %v3806
      %v3825 = vadd.f32 %v3766, %v3807
      %v3826 = vld [vmem:[#allocation3 + $0x2] sm:$0xff]
      %v3827 = vld [vmem:[#allocation3 + $0xa] sm:$0xff]
      %v3828 = vld [vmem:[#allocation3 + $0x12] sm:$0xff]
      %v3829 = vld [vmem:[#allocation3 + $0x1a] sm:$0xff]
      %v3830 = vld [vmem:[#allocation3 + $0x22] sm:$0xff]
      %v3831 = vld [vmem:[#allocation3 + $0x2a] sm:$0xff]
      %v3832 = vld [vmem:[#allocation3 + $0x32] sm:$0xff]
      %v3833 = vld [vmem:[#allocation3 + $0x3a] sm:$0xff]
      %v3834 = vld [vmem:[#allocation3 + $0x42] sm:$0xff]
      %v3835 = vld [vmem:[#allocation3 + $0x4a] sm:$0xff]
      %v3836 = vld [vmem:[#allocation3 + $0x52] sm:$0xff]
      %v3837 = vld [vmem:[#allocation3 + $0x5a] sm:$0xff]
      %v3838 = vld [vmem:[#allocation3 + $0x62] sm:$0xff]
      %v3839 = vld [vmem:[#allocation3 + $0x6a] sm:$0xff]
      %v3840 = vld [vmem:[#allocation3 + $0x72] sm:$0xff]
      %v3841 = vld [vmem:[#allocation3 + $0x7a] sm:$0xff]
      %v3842 = vld [vmem:[#allocation3 + $0x82] sm:$0xff]
      %v3843 = vld [vmem:[#allocation3 + $0x8a] sm:$0x1]
      %v3844 = vld [vmem:[%s2 + $0x14e] sm:$0x1]
      %v3845 = vlaneseq
      %v3846 = vshrl.u32 %v3845, 7
      %v3847 = vsub.s32 0, %v3846
      %v3848 = vrot.slane %v3844, %v3847
      %v3849 = vmul.f32 %v3826, %v3848
      %v3850 = vmul.f32 %v3827, %v3848
      %v3851 = vmul.f32 %v3828, %v3848
      %v3852 = vmul.f32 %v3829, %v3848
      %v3853 = vmul.f32 %v3830, %v3848
      %v3854 = vmul.f32 %v3831, %v3848
      %v3855 = vmul.f32 %v3832, %v3848
      %v3856 = vmul.f32 %v3833, %v3848
      %v3857 = vmul.f32 %v3834, %v3848
      %v3858 = vmul.f32 %v3835, %v3848
      %v3859 = vmul.f32 %v3836, %v3848
      %v3860 = vmul.f32 %v3837, %v3848
      %v3861 = vmul.f32 %v3838, %v3848
      %v3862 = vmul.f32 %v3839, %v3848
      %v3863 = vmul.f32 %v3840, %v3848
      %v3864 = vmul.f32 %v3841, %v3848
      %v3865 = vmul.f32 %v3842, %v3848
      %v3866 = vmul.f32 %v3843, %v3848
      %v3867 = vadd.f32 %v3808, %v3849
      %v3868 = vadd.f32 %v3809, %v3850
      %v3869 = vadd.f32 %v3810, %v3851
      %v3870 = vadd.f32 %v3811, %v3852
      %v3871 = vadd.f32 %v3812, %v3853
      %v3872 = vadd.f32 %v3813, %v3854
      %v3873 = vadd.f32 %v3814, %v3855
      %v3874 = vadd.f32 %v3815, %v3856
      %v3875 = vadd.f32 %v3816, %v3857
      %v3876 = vadd.f32 %v3817, %v3858
      %v3877 = vadd.f32 %v3818, %v3859
      %v3878 = vadd.f32 %v3819, %v3860
      %v3879 = vadd.f32 %v3820, %v3861
      %v3880 = vadd.f32 %v3821, %v3862
      %v3881 = vadd.f32 %v3822, %v3863
      %v3882 = vadd.f32 %v3823, %v3864
      %v3883 = vadd.f32 %v3824, %v3865
      %v3884 = vadd.f32 %v3825, %v3866
      %v3885 = vld [vmem:[#allocation3 + $0x88] sm:$0xff]
      %v3886 = vld [vmem:[#allocation3 + $0x90] sm:$0xff]
      %v3887 = vld [vmem:[#allocation3 + $0x98] sm:$0x1]
      %v3888 = vld [vmem:[%s2 + $0x14f] sm:$0x1]
      %v3889 = vlaneseq
      %v3890 = vshrl.u32 %v3889, 7
      %v3891 = vsub.s32 0, %v3890
      %v3892 = vrot.slane %v3888, %v3891
      %v3893 = vmul.f32 %v3728, %v3892
      %v3894 = vmul.f32 %v3729, %v3892
      %v3895 = vmul.f32 %v3730, %v3892
      %v3896 = vmul.f32 %v3731, %v3892
      %v3897 = vmul.f32 %v3732, %v3892
      %v3898 = vmul.f32 %v3733, %v3892
      %v3899 = vmul.f32 %v3734, %v3892
      %v3900 = vmul.f32 %v3735, %v3892
      %v3901 = vmul.f32 %v3736, %v3892
      %v3902 = vmul.f32 %v3737, %v3892
      %v3903 = vmul.f32 %v3738, %v3892
      %v3904 = vmul.f32 %v3739, %v3892
      %v3905 = vmul.f32 %v3740, %v3892
      %v3906 = vmul.f32 %v3741, %v3892
      %v3907 = vmul.f32 %v3742, %v3892
      %v3908 = vmul.f32 %v3885, %v3892
      %v3909 = vmul.f32 %v3886, %v3892
      %v3910 = vmul.f32 %v3887, %v3892
      %v3911 = vadd.f32 %v3867, %v3893
      %v3912 = vadd.f32 %v3868, %v3894
      %v3913 = vadd.f32 %v3869, %v3895
      %v3914 = vadd.f32 %v3870, %v3896
      %v3915 = vadd.f32 %v3871, %v3897
      %v3916 = vadd.f32 %v3872, %v3898
      %v3917 = vadd.f32 %v3873, %v3899
      %v3918 = vadd.f32 %v3874, %v3900
      %v3919 = vadd.f32 %v3875, %v3901
      %v3920 = vadd.f32 %v3876, %v3902
      %v3921 = vadd.f32 %v3877, %v3903
      %v3922 = vadd.f32 %v3878, %v3904
      %v3923 = vadd.f32 %v3879, %v3905
      %v3924 = vadd.f32 %v3880, %v3906
      %v3925 = vadd.f32 %v3881, %v3907
      %v3926 = vadd.f32 %v3882, %v3908
      %v3927 = vadd.f32 %v3883, %v3909
      %v3928 = vadd.f32 %v3884, %v3910
      %v3929 = vld [vmem:[#allocation3 + $0x89] sm:$0xff]
      %v3930 = vld [vmem:[#allocation3 + $0x91] sm:$0xff]
      %v3931 = vld [vmem:[#allocation3 + $0x99] sm:$0x1]
      %v3932 = vld [vmem:[%s2 + $0x150] sm:$0x1]
      %v3933 = vlaneseq
      %v3934 = vshrl.u32 %v3933, 7
      %v3935 = vsub.s32 0, %v3934
      %v3936 = vrot.slane %v3932, %v3935
      %v3937 = vmul.f32 %v3769, %v3936
      %v3938 = vmul.f32 %v3770, %v3936
      %v3939 = vmul.f32 %v3771, %v3936
      %v3940 = vmul.f32 %v3772, %v3936
      %v3941 = vmul.f32 %v3773, %v3936
      %v3942 = vmul.f32 %v3774, %v3936
      %v3943 = vmul.f32 %v3775, %v3936
      %v3944 = vmul.f32 %v3776, %v3936
      %v3945 = vmul.f32 %v3777, %v3936
      %v3946 = vmul.f32 %v3778, %v3936
      %v3947 = vmul.f32 %v3779, %v3936
      %v3948 = vmul.f32 %v3780, %v3936
      %v3949 = vmul.f32 %v3781, %v3936
      %v3950 = vmul.f32 %v3782, %v3936
      %v3951 = vmul.f32 %v3783, %v3936
      %v3952 = vmul.f32 %v3929, %v3936
      %v3953 = vmul.f32 %v3930, %v3936
      %v3954 = vmul.f32 %v3931, %v3936
      %v3955 = vadd.f32 %v3911, %v3937
      %v3956 = vadd.f32 %v3912, %v3938
      %v3957 = vadd.f32 %v3913, %v3939
      %v3958 = vadd.f32 %v3914, %v3940
      %v3959 = vadd.f32 %v3915, %v3941
      %v3960 = vadd.f32 %v3916, %v3942
      %v3961 = vadd.f32 %v3917, %v3943
      %v3962 = vadd.f32 %v3918, %v3944
      %v3963 = vadd.f32 %v3919, %v3945
      %v3964 = vadd.f32 %v3920, %v3946
      %v3965 = vadd.f32 %v3921, %v3947
      %v3966 = vadd.f32 %v3922, %v3948
      %v3967 = vadd.f32 %v3923, %v3949
      %v3968 = vadd.f32 %v3924, %v3950
      %v3969 = vadd.f32 %v3925, %v3951
      %v3970 = vadd.f32 %v3926, %v3952
      %v3971 = vadd.f32 %v3927, %v3953
      %v3972 = vadd.f32 %v3928, %v3954
      %v3973 = vld [vmem:[#allocation3 + $0x8a] sm:$0xff]
      %v3974 = vld [vmem:[#allocation3 + $0x92] sm:$0xff]
      %v3975 = vld [vmem:[#allocation3 + $0x9a] sm:$0x1]
      %v3976 = vld [vmem:[%s2 + $0x151] sm:$0x1]
      %v3977 = vlaneseq
      %v3978 = vshrl.u32 %v3977, 7
      %v3979 = vsub.s32 0, %v3978
      %v3980 = vrot.slane %v3976, %v3979
      %v3981 = vmul.f32 %v3828, %v3980
      %v3982 = vmul.f32 %v3829, %v3980
      %v3983 = vmul.f32 %v3830, %v3980
      %v3984 = vmul.f32 %v3831, %v3980
      %v3985 = vmul.f32 %v3832, %v3980
      %v3986 = vmul.f32 %v3833, %v3980
      %v3987 = vmul.f32 %v3834, %v3980
      %v3988 = vmul.f32 %v3835, %v3980
      %v3989 = vmul.f32 %v3836, %v3980
      %v3990 = vmul.f32 %v3837, %v3980
      %v3991 = vmul.f32 %v3838, %v3980
      %v3992 = vmul.f32 %v3839, %v3980
      %v3993 = vmul.f32 %v3840, %v3980
      %v3994 = vmul.f32 %v3841, %v3980
      %v3995 = vmul.f32 %v3842, %v3980
      %v3996 = vmul.f32 %v3973, %v3980
      %v3997 = vmul.f32 %v3974, %v3980
      %v3998 = vmul.f32 %v3975, %v3980
      %v3999 = vadd.f32 %v3955, %v3981
      %v4000 = vadd.f32 %v3956, %v3982
      %v4001 = vadd.f32 %v3957, %v3983
      %v4002 = vadd.f32 %v3958, %v3984
      %v4003 = vadd.f32 %v3959, %v3985
      %v4004 = vadd.f32 %v3960, %v3986
      %v4005 = vadd.f32 %v3961, %v3987
      %v4006 = vadd.f32 %v3962, %v3988
      %v4007 = vadd.f32 %v3963, %v3989
      %v4008 = vadd.f32 %v3964, %v3990
      %v4009 = vadd.f32 %v3965, %v3991
      %v4010 = vadd.f32 %v3966, %v3992
      %v4011 = vadd.f32 %v3967, %v3993
      %v4012 = vadd.f32 %v3968, %v3994
      %v4013 = vadd.f32 %v3969, %v3995
      %v4014 = vadd.f32 %v3970, %v3996
      %v4015 = vadd.f32 %v3971, %v3997
      %v4016 = vadd.f32 %v3972, %v3998
      %v4017 = vld [vmem:[#allocation3 + $0x98] sm:$0xff]
      %v4018 = vld [vmem:[#allocation3 + $0xa0] sm:$0xff]
      %v4019 = vld [vmem:[#allocation3 + $0xa8] sm:$0x1]
      %v4020 = vld [vmem:[%s2 + $0x152] sm:$0x1]
      %v4021 = vlaneseq
      %v4022 = vshrl.u32 %v4021, 7
      %v4023 = vsub.s32 0, %v4022
      %v4024 = vrot.slane %v4020, %v4023
      %v4025 = vmul.f32 %v3730, %v4024
      %v4026 = vmul.f32 %v3731, %v4024
      %v4027 = vmul.f32 %v3732, %v4024
      %v4028 = vmul.f32 %v3733, %v4024
      %v4029 = vmul.f32 %v3734, %v4024
      %v4030 = vmul.f32 %v3735, %v4024
      %v4031 = vmul.f32 %v3736, %v4024
      %v4032 = vmul.f32 %v3737, %v4024
      %v4033 = vmul.f32 %v3738, %v4024
      %v4034 = vmul.f32 %v3739, %v4024
      %v4035 = vmul.f32 %v3740, %v4024
      %v4036 = vmul.f32 %v3741, %v4024
      %v4037 = vmul.f32 %v3742, %v4024
      %v4038 = vmul.f32 %v3885, %v4024
      %v4039 = vmul.f32 %v3886, %v4024
      %v4040 = vmul.f32 %v4017, %v4024
      %v4041 = vmul.f32 %v4018, %v4024
      %v4042 = vmul.f32 %v4019, %v4024
      %v4043 = vadd.f32 %v3999, %v4025
      %v4044 = vadd.f32 %v4000, %v4026
      %v4045 = vadd.f32 %v4001, %v4027
      %v4046 = vadd.f32 %v4002, %v4028
      %v4047 = vadd.f32 %v4003, %v4029
      %v4048 = vadd.f32 %v4004, %v4030
      %v4049 = vadd.f32 %v4005, %v4031
      %v4050 = vadd.f32 %v4006, %v4032
      %v4051 = vadd.f32 %v4007, %v4033
      %v4052 = vadd.f32 %v4008, %v4034
      %v4053 = vadd.f32 %v4009, %v4035
      %v4054 = vadd.f32 %v4010, %v4036
      %v4055 = vadd.f32 %v4011, %v4037
      %v4056 = vadd.f32 %v4012, %v4038
      %v4057 = vadd.f32 %v4013, %v4039
      %v4058 = vadd.f32 %v4014, %v4040
      %v4059 = vadd.f32 %v4015, %v4041
      %v4060 = vadd.f32 %v4016, %v4042
      %v4061 = vld [vmem:[#allocation3 + $0x99] sm:$0xff]
      %v4062 = vld [vmem:[#allocation3 + $0xa1] sm:$0xff]
      %v4063 = vld [vmem:[#allocation3 + $0xa9] sm:$0x1]
      %v4064 = vld [vmem:[%s2 + $0x153] sm:$0x1]
      %v4065 = vlaneseq
      %v4066 = vshrl.u32 %v4065, 7
      %v4067 = vsub.s32 0, %v4066
      %v4068 = vrot.slane %v4064, %v4067
      %v4069 = vmul.f32 %v3771, %v4068
      %v4070 = vmul.f32 %v3772, %v4068
      %v4071 = vmul.f32 %v3773, %v4068
      %v4072 = vmul.f32 %v3774, %v4068
      %v4073 = vmul.f32 %v3775, %v4068
      %v4074 = vmul.f32 %v3776, %v4068
      %v4075 = vmul.f32 %v3777, %v4068
      %v4076 = vmul.f32 %v3778, %v4068
      %v4077 = vmul.f32 %v3779, %v4068
      %v4078 = vmul.f32 %v3780, %v4068
      %v4079 = vmul.f32 %v3781, %v4068
      %v4080 = vmul.f32 %v3782, %v4068
      %v4081 = vmul.f32 %v3783, %v4068
      %v4082 = vmul.f32 %v3929, %v4068
      %v4083 = vmul.f32 %v3930, %v4068
      %v4084 = vmul.f32 %v4061, %v4068
      %v4085 = vmul.f32 %v4062, %v4068
      %v4086 = vmul.f32 %v4063, %v4068
      %v4087 = vadd.f32 %v4043, %v4069
      %v4088 = vadd.f32 %v4044, %v4070
      %v4089 = vadd.f32 %v4045, %v4071
      %v4090 = vadd.f32 %v4046, %v4072
      %v4091 = vadd.f32 %v4047, %v4073
      %v4092 = vadd.f32 %v4048, %v4074
      %v4093 = vadd.f32 %v4049, %v4075
      %v4094 = vadd.f32 %v4050, %v4076
      %v4095 = vadd.f32 %v4051, %v4077
      %v4096 = vadd.f32 %v4052, %v4078
      %v4097 = vadd.f32 %v4053, %v4079
      %v4098 = vadd.f32 %v4054, %v4080
      %v4099 = vadd.f32 %v4055, %v4081
      %v4100 = vadd.f32 %v4056, %v4082
      %v4101 = vadd.f32 %v4057, %v4083
      %v4102 = vadd.f32 %v4058, %v4084
      %v4103 = vadd.f32 %v4059, %v4085
      %v4104 = vadd.f32 %v4060, %v4086
      %v4105 = vld [vmem:[#allocation3 + $0x9a] sm:$0xff]
      %v4106 = vld [vmem:[#allocation3 + $0xa2] sm:$0xff]
      %v4107 = vld [vmem:[#allocation3 + $0xaa] sm:$0x1]
      %v4108 = vld [vmem:[%s2 + $0x154] sm:$0x1]
      %v4109 = vlaneseq
      %v4110 = vshrl.u32 %v4109, 7
      %v4111 = vsub.s32 0, %v4110
      %v4112 = vrot.slane %v4108, %v4111
      %v4113 = vmul.f32 %v3830, %v4112
      %v4114 = vmul.f32 %v3831, %v4112
      %v4115 = vmul.f32 %v3832, %v4112
      %v4116 = vmul.f32 %v3833, %v4112
      %v4117 = vmul.f32 %v3834, %v4112
      %v4118 = vmul.f32 %v3835, %v4112
      %v4119 = vmul.f32 %v3836, %v4112
      %v4120 = vmul.f32 %v3837, %v4112
      %v4121 = vmul.f32 %v3838, %v4112
      %v4122 = vmul.f32 %v3839, %v4112
      %v4123 = vmul.f32 %v3840, %v4112
      %v4124 = vmul.f32 %v3841, %v4112
      %v4125 = vmul.f32 %v3842, %v4112
      %v4126 = vmul.f32 %v3973, %v4112
      %v4127 = vmul.f32 %v3974, %v4112
      %v4128 = vmul.f32 %v4105, %v4112
      %v4129 = vmul.f32 %v4106, %v4112
      %v4130 = vmul.f32 %v4107, %v4112
      %v4131 = vadd.f32 %v4087, %v4113
      %v4132 = vadd.f32 %v4088, %v4114
      %v4133 = vadd.f32 %v4089, %v4115
      %v4134 = vadd.f32 %v4090, %v4116
      %v4135 = vadd.f32 %v4091, %v4117
      %v4136 = vadd.f32 %v4092, %v4118
      %v4137 = vadd.f32 %v4093, %v4119
      %v4138 = vadd.f32 %v4094, %v4120
      %v4139 = vadd.f32 %v4095, %v4121
      %v4140 = vadd.f32 %v4096, %v4122
      %v4141 = vadd.f32 %v4097, %v4123
      %v4142 = vadd.f32 %v4098, %v4124
      %v4143 = vadd.f32 %v4099, %v4125
      %v4144 = vadd.f32 %v4100, %v4126
      %v4145 = vadd.f32 %v4101, %v4127
      %v4146 = vadd.f32 %v4102, %v4128
      %v4147 = vadd.f32 %v4103, %v4129
      %v4148 = vadd.f32 %v4104, %v4130
      %v4149 = vld [vmem:[%s2 + $0x155] sm:$0x1]
      %v4150 = vlaneseq
      %v4151 = vshrl.u32 %v4150, 7
      %v4152 = vsub.s32 0, %v4151
      %v4153 = vrot.slane %v4149, %v4152
      %v4154 = vadd.f32 %v4131, %v4153
      %v4155 = vadd.f32 %v4132, %v4153
      %v4156 = vadd.f32 %v4133, %v4153
      %v4157 = vadd.f32 %v4134, %v4153
      %v4158 = vadd.f32 %v4135, %v4153
      %v4159 = vadd.f32 %v4136, %v4153
      %v4160 = vadd.f32 %v4137, %v4153
      %v4161 = vadd.f32 %v4138, %v4153
      %v4162 = vadd.f32 %v4139, %v4153
      %v4163 = vadd.f32 %v4140, %v4153
      %v4164 = vadd.f32 %v4141, %v4153
      %v4165 = vadd.f32 %v4142, %v4153
      %v4166 = vadd.f32 %v4143, %v4153
      %v4167 = vadd.f32 %v4144, %v4153
      %v4168 = vadd.f32 %v4145, %v4153
      %v4169 = vadd.f32 %v4146, %v4153
      %v4170 = vadd.f32 %v4147, %v4153
      %v4171 = vadd.f32 %v4148, %v4153
      %v4172 = vmax.f32 %v4154, 0.0
      %v4173 = vmax.f32 %v4155, 0.0
      %v4174 = vmax.f32 %v4156, 0.0
      %v4175 = vmax.f32 %v4157, 0.0
      %v4176 = vmax.f32 %v4158, 0.0
      %v4177 = vmax.f32 %v4159, 0.0
      %v4178 = vmax.f32 %v4160, 0.0
      %v4179 = vmax.f32 %v4161, 0.0
      %v4180 = vmax.f32 %v4162, 0.0
      %v4181 = vmax.f32 %v4163, 0.0
      %v4182 = vmax.f32 %v4164, 0.0
      %v4183 = vmax.f32 %v4165, 0.0
      %v4184 = vmax.f32 %v4166, 0.0
      %v4185 = vmax.f32 %v4167, 0.0
      %v4186 = vmax.f32 %v4168, 0.0
      %v4187 = vmax.f32 %v4169, 0.0
      %v4188 = vmax.f32 %v4170, 0.0
      %v4189 = vmax.f32 %v4171, 0.0
      %4190 = vst.msk [vmem:[#allocation7] sm:$0xff] %vm223, %v4172
      %4191 = vst.msk [vmem:[#allocation7 + $0x8] sm:$0xff] %vm223, %v4173
      %4192 = vst.msk [vmem:[#allocation7 + $0x10] sm:$0xff] %vm223, %v4174
      %4193 = vst.msk [vmem:[#allocation7 + $0x18] sm:$0xff] %vm223, %v4175
      %4194 = vst.msk [vmem:[#allocation7 + $0x20] sm:$0xff] %vm223, %v4176
      %4195 = vst.msk [vmem:[#allocation7 + $0x28] sm:$0xff] %vm223, %v4177
      %4196 = vst.msk [vmem:[#allocation7 + $0x30] sm:$0xff] %vm223, %v4178
      %4197 = vst.msk [vmem:[#allocation7 + $0x38] sm:$0xff] %vm223, %v4179
      %4198 = vst.msk [vmem:[#allocation7 + $0x40] sm:$0xff] %vm223, %v4180
      %4199 = vst.msk [vmem:[#allocation7 + $0x48] sm:$0xff] %vm223, %v4181
      %4200 = vst.msk [vmem:[#allocation7 + $0x50] sm:$0xff] %vm223, %v4182
      %4201 = vst.msk [vmem:[#allocation7 + $0x58] sm:$0xff] %vm223, %v4183
      %4202 = vst.msk [vmem:[#allocation7 + $0x60] sm:$0xff] %vm223, %v4184
      %4203 = vst.msk [vmem:[#allocation7 + $0x68] sm:$0xff] %vm223, %v4185
      %4204 = vst.msk [vmem:[#allocation7 + $0x70] sm:$0xff] %vm223, %v4186
      %4205 = vst.msk [vmem:[#allocation7 + $0x78] sm:$0xff] %vm223, %v4187
      %4206 = vst.msk [vmem:[#allocation7 + $0x80] sm:$0xff] %vm223, %v4188
      %4207 = vst.msk [vmem:[#allocation7 + $0x88] sm:$0x1] %vm226, %v4189
      %v4208 = vld [vmem:[#allocation7] sm:$0xff]
      %v4209 = vld [vmem:[#allocation7 + $0x8] sm:$0xff]
      %v4210 = vld [vmem:[#allocation7 + $0x10] sm:$0xff]
      %v4211 = vld [vmem:[#allocation7 + $0x18] sm:$0xff]
      %v4212 = vld [vmem:[#allocation7 + $0x20] sm:$0xff]
      %v4213 = vld [vmem:[#allocation7 + $0x28] sm:$0xff]
      %v4214 = vld [vmem:[#allocation7 + $0x30] sm:$0xff]
      %v4215 = vld [vmem:[#allocation7 + $0x38] sm:$0xff]
      %v4216 = vld [vmem:[#allocation7 + $0x40] sm:$0xff]
      %v4217 = vld [vmem:[#allocation7 + $0x48] sm:$0xff]
      %v4218 = vld [vmem:[#allocation7 + $0x50] sm:$0xff]
      %v4219 = vld [vmem:[#allocation7 + $0x58] sm:$0xff]
      %v4220 = vld [vmem:[#allocation7 + $0x60] sm:$0x7f]
      %v4221 = vld [vmem:[%s2 + $0x156] sm:$0xff]
      %v4222 = vld [vmem:[%s2 + $0x15e] sm:$0xff]
      %v4223 = vld [vmem:[%s2 + $0x166] sm:$0xff]
      %v4224 = vld [vmem:[%s2 + $0x16e] sm:$0xff]
      %v4225 = vld [vmem:[#allocation7 + $0x1] sm:$0xff]
      %v4226 = vld [vmem:[#allocation7 + $0x9] sm:$0xff]
      %v4227 = vld [vmem:[#allocation7 + $0x11] sm:$0xff]
      %v4228 = vld [vmem:[#allocation7 + $0x19] sm:$0xff]
      %v4229 = vld [vmem:[#allocation7 + $0x21] sm:$0xff]
      %v4230 = vld [vmem:[#allocation7 + $0x29] sm:$0xff]
      %v4231 = vld [vmem:[#allocation7 + $0x31] sm:$0xff]
      %v4232 = vld [vmem:[#allocation7 + $0x39] sm:$0xff]
      %v4233 = vld [vmem:[#allocation7 + $0x41] sm:$0xff]
      %v4234 = vld [vmem:[#allocation7 + $0x49] sm:$0xff]
      %v4235 = vld [vmem:[#allocation7 + $0x51] sm:$0xff]
      %v4236 = vld [vmem:[#allocation7 + $0x59] sm:$0xff]
      %v4237 = vld [vmem:[#allocation7 + $0x61] sm:$0x7f]
      %v4238 = vld [vmem:[%s2 + $0x176] sm:$0xff]
      %v4239 = vld [vmem:[%s2 + $0x17e] sm:$0xff]
      %v4240 = vld [vmem:[%s2 + $0x186] sm:$0xff]
      %v4241 = vld [vmem:[%s2 + $0x18e] sm:$0xff]
      %v4243 = vsel %vm223, %v4225, 0
      %v4246 = vsel %vm223, %v4226, 0
      %v4249 = vsel %vm223, %v4227, 0
      %v4252 = vsel %vm223, %v4228, 0
      %v4255 = vsel %vm223, %v4229, 0
      %v4258 = vsel %vm223, %v4230, 0
      %v4261 = vsel %vm223, %v4231, 0
      %v4264 = vsel %vm223, %v4232, 0
      %v4267 = vsel %vm223, %v4233, 0
      %v4270 = vsel %vm223, %v4234, 0
      %v4273 = vsel %vm223, %v4235, 0
      %v4276 = vsel %vm223, %v4236, 0
      %v4279 = vsel %vm223, %v4237, 0
      %4281 = vmatprep.subr.mxu0 0.0
      %4282 = vmatpush1.msra.mxu0 0.0
      %4283 = vmatprep.subr.mxu0 0.0
      %4284 = vmatpush1.msra.mxu0 0.0
      %4285 = vmatprep.subr.mxu0 0.0
      %4286 = vmatpush1.msra.mxu0 0.0
      %4287 = vmatprep.subr.mxu0 0.0
      %4288 = vmatpush1.msra.mxu0 0.0
      %4289 = vmatprep.subr.mxu0 0.0
      %4290 = vmatpush1.msra.mxu0 0.0
      %4291 = vmatprep.subr.mxu0 0.0
      %4292 = vmatpush1.msra.mxu0 0.0
      %4293 = vmatprep.subr.mxu0 0.0
      %4294 = vmatpush1.msra.mxu0 0.0
      %4295 = vmatprep.subr.mxu0 0.0
      %4296 = vmatpush1.msra.mxu0 0.0
      %4297 = vmatprep.subr.mxu0 0.0
      %4298 = vmatpush1.msra.mxu0 0.0
      %4299 = vmatprep.subr.mxu0 0.0
      %4300 = vmatpush1.msra.mxu0 0.0
      %4301 = vmatprep.subr.mxu0 0.0
      %4302 = vmatpush1.msra.mxu0 0.0
      %4303 = vmatprep.subr.mxu0 0.0
      %4304 = vmatpush1.msra.mxu0 0.0
      %4305 = vmatprep.subr.mxu0 0.0
      %4306 = vmatpush1.msra.mxu0 %v4241
      %4307 = vmatprep.subr.mxu0 0.0
      %4308 = vmatpush1.msra.mxu0 %v4240
      %4309 = vmatprep.subr.mxu0 0.0
      %4310 = vmatpush1.msra.mxu0 %v4239
      %4311 = vmatprep.subr.mxu0 0.0
      %4312 = vmatpush1.msra.mxu0 %v4238
      %4313 = vmatprep.subr.mxu0 0.0
      %4314 = vmatpush2.msra.mxu0 0.0
      %4315 = vmatprep.subr.mxu0 0.0
      %4316 = vmatpush2.msra.mxu0 0.0
      %4317 = vmatprep.subr.mxu0 0.0
      %4318 = vmatpush2.msra.mxu0 0.0
      %4319 = vmatprep.subr.mxu0 0.0
      %4320 = vmatpush2.msra.mxu0 0.0
      %4321 = vmatprep.subr.mxu0 0.0
      %4322 = vmatpush2.msra.mxu0 0.0
      %4323 = vmatprep.subr.mxu0 0.0
      %4324 = vmatpush2.msra.mxu0 0.0
      %4325 = vmatprep.subr.mxu0 0.0
      %4326 = vmatpush2.msra.mxu0 0.0
      %4327 = vmatprep.subr.mxu0 0.0
      %4328 = vmatpush2.msra.mxu0 0.0
      %4329 = vmatprep.subr.mxu0 0.0
      %4330 = vmatpush2.msra.mxu0 0.0
      %4331 = vmatprep.subr.mxu0 0.0
      %4332 = vmatpush2.msra.mxu0 0.0
      %4333 = vmatprep.subr.mxu0 0.0
      %4334 = vmatpush2.msra.mxu0 0.0
      %4335 = vmatprep.subr.mxu0 0.0
      %4336 = vmatpush2.msra.mxu0 0.0
      %4337 = vmatprep.subr.mxu0 0.0
      %4338 = vmatpush2.msra.mxu0 0.0
      %4339 = vmatprep.subr.mxu0 0.0
      %4340 = vmatpush2.msra.mxu0 0.0
      %4341 = vmatprep.subr.mxu0 0.0
      %4342 = vmatpush2.msra.mxu0 0.0
      %4343 = vmatprep.subr.mxu0 0.0
      %4344 = vmatpush2.msra.mxu0 0.0
      %4345 = vmatprep.mubr.f32.mxu0 0.0
      %4346 = vmatmul.mubr.f32.gmra.mxu0 %v4243
      %v4347 = vpop.f32.mrf.mxu0
      %v4348 = vadd.f32 0.0, %v4347
      %v4349 = vpop.f32.mrf.mxu0
      %4350 = vmatprep.mubr.f32.mxu0 0.0
      %4351 = vmatmul.mubr.f32.gmra.mxu0 %v4246
      %v4352 = vpop.f32.mrf.mxu0
      %v4353 = vadd.f32 0.0, %v4352
      %v4354 = vpop.f32.mrf.mxu0
      %4355 = vmatprep.mubr.f32.mxu0 0.0
      %4356 = vmatmul.mubr.f32.gmra.mxu0 %v4249
      %v4357 = vpop.f32.mrf.mxu0
      %v4358 = vadd.f32 0.0, %v4357
      %v4359 = vpop.f32.mrf.mxu0
      %4360 = vmatprep.mubr.f32.mxu0 0.0
      %4361 = vmatmul.mubr.f32.gmra.mxu0 %v4252
      %v4362 = vpop.f32.mrf.mxu0
      %v4363 = vadd.f32 0.0, %v4362
      %v4364 = vpop.f32.mrf.mxu0
      %4365 = vmatprep.mubr.f32.mxu0 0.0
      %4366 = vmatmul.mubr.f32.gmra.mxu0 %v4255
      %v4367 = vpop.f32.mrf.mxu0
      %v4368 = vadd.f32 0.0, %v4367
      %v4369 = vpop.f32.mrf.mxu0
      %4370 = vmatprep.mubr.f32.mxu0 0.0
      %4371 = vmatmul.mubr.f32.gmra.mxu0 %v4258
      %v4372 = vpop.f32.mrf.mxu0
      %v4373 = vadd.f32 0.0, %v4372
      %v4374 = vpop.f32.mrf.mxu0
      %4375 = vmatprep.mubr.f32.mxu0 0.0
      %4376 = vmatmul.mubr.f32.gmra.mxu0 %v4261
      %v4377 = vpop.f32.mrf.mxu0
      %v4378 = vadd.f32 0.0, %v4377
      %v4379 = vpop.f32.mrf.mxu0
      %4380 = vmatprep.mubr.f32.mxu0 0.0
      %4381 = vmatmul.mubr.f32.gmra.mxu0 %v4264
      %v4382 = vpop.f32.mrf.mxu0
      %v4383 = vadd.f32 0.0, %v4382
      %v4384 = vpop.f32.mrf.mxu0
      %4385 = vmatprep.mubr.f32.mxu0 0.0
      %4386 = vmatmul.mubr.f32.gmra.mxu0 %v4267
      %v4387 = vpop.f32.mrf.mxu0
      %v4388 = vadd.f32 0.0, %v4387
      %v4389 = vpop.f32.mrf.mxu0
      %4390 = vmatprep.mubr.f32.mxu0 0.0
      %4391 = vmatmul.mubr.f32.gmra.mxu0 %v4270
      %v4392 = vpop.f32.mrf.mxu0
      %v4393 = vadd.f32 0.0, %v4392
      %v4394 = vpop.f32.mrf.mxu0
      %4395 = vmatprep.mubr.f32.mxu0 0.0
      %4396 = vmatmul.mubr.f32.gmra.mxu0 %v4273
      %v4397 = vpop.f32.mrf.mxu0
      %v4398 = vadd.f32 0.0, %v4397
      %v4399 = vpop.f32.mrf.mxu0
      %4400 = vmatprep.mubr.f32.mxu0 0.0
      %4401 = vmatmul.mubr.f32.gmra.mxu0 %v4276
      %v4402 = vpop.f32.mrf.mxu0
      %v4403 = vadd.f32 0.0, %v4402
      %v4404 = vpop.f32.mrf.mxu0
      %4405 = vmatprep.mubr.f32.mxu0 0.0
      %4406 = vmatmul.mubr.f32.gmra.mxu0 %v4279
      %v4407 = vpop.f32.mrf.mxu0
      %v4408 = vadd.f32 0.0, %v4407
      %v4409 = vpop.f32.mrf.mxu0
      %4410 = vdwg.mxu0
      %v4412 = vsel %vm223, %v4208, 0
      %v4415 = vsel %vm223, %v4209, 0
      %v4418 = vsel %vm223, %v4210, 0
      %v4421 = vsel %vm223, %v4211, 0
      %v4424 = vsel %vm223, %v4212, 0
      %v4427 = vsel %vm223, %v4213, 0
      %v4430 = vsel %vm223, %v4214, 0
      %v4433 = vsel %vm223, %v4215, 0
      %v4436 = vsel %vm223, %v4216, 0
      %v4439 = vsel %vm223, %v4217, 0
      %v4442 = vsel %vm223, %v4218, 0
      %v4445 = vsel %vm223, %v4219, 0
      %v4448 = vsel %vm223, %v4220, 0
      %4450 = vmatprep.subr.mxu0 0.0
      %4451 = vmatpush1.msra.mxu0 0.0
      %4452 = vmatprep.subr.mxu0 0.0
      %4453 = vmatpush1.msra.mxu0 0.0
      %4454 = vmatprep.subr.mxu0 0.0
      %4455 = vmatpush1.msra.mxu0 0.0
      %4456 = vmatprep.subr.mxu0 0.0
      %4457 = vmatpush1.msra.mxu0 0.0
      %4458 = vmatprep.subr.mxu0 0.0
      %4459 = vmatpush1.msra.mxu0 0.0
      %4460 = vmatprep.subr.mxu0 0.0
      %4461 = vmatpush1.msra.mxu0 0.0
      %4462 = vmatprep.subr.mxu0 0.0
      %4463 = vmatpush1.msra.mxu0 0.0
      %4464 = vmatprep.subr.mxu0 0.0
      %4465 = vmatpush1.msra.mxu0 0.0
      %4466 = vmatprep.subr.mxu0 0.0
      %4467 = vmatpush1.msra.mxu0 0.0
      %4468 = vmatprep.subr.mxu0 0.0
      %4469 = vmatpush1.msra.mxu0 0.0
      %4470 = vmatprep.subr.mxu0 0.0
      %4471 = vmatpush1.msra.mxu0 0.0
      %4472 = vmatprep.subr.mxu0 0.0
      %4473 = vmatpush1.msra.mxu0 0.0
      %4474 = vmatprep.subr.mxu0 0.0
      %4475 = vmatpush1.msra.mxu0 %v4224
      %4476 = vmatprep.subr.mxu0 0.0
      %4477 = vmatpush1.msra.mxu0 %v4223
      %4478 = vmatprep.subr.mxu0 0.0
      %4479 = vmatpush1.msra.mxu0 %v4222
      %4480 = vmatprep.subr.mxu0 0.0
      %4481 = vmatpush1.msra.mxu0 %v4221
      %4482 = vmatprep.subr.mxu0 0.0
      %4483 = vmatpush2.msra.mxu0 0.0
      %4484 = vmatprep.subr.mxu0 0.0
      %4485 = vmatpush2.msra.mxu0 0.0
      %4486 = vmatprep.subr.mxu0 0.0
      %4487 = vmatpush2.msra.mxu0 0.0
      %4488 = vmatprep.subr.mxu0 0.0
      %4489 = vmatpush2.msra.mxu0 0.0
      %4490 = vmatprep.subr.mxu0 0.0
      %4491 = vmatpush2.msra.mxu0 0.0
      %4492 = vmatprep.subr.mxu0 0.0
      %4493 = vmatpush2.msra.mxu0 0.0
      %4494 = vmatprep.subr.mxu0 0.0
      %4495 = vmatpush2.msra.mxu0 0.0
      %4496 = vmatprep.subr.mxu0 0.0
      %4497 = vmatpush2.msra.mxu0 0.0
      %4498 = vmatprep.subr.mxu0 0.0
      %4499 = vmatpush2.msra.mxu0 0.0
      %4500 = vmatprep.subr.mxu0 0.0
      %4501 = vmatpush2.msra.mxu0 0.0
      %4502 = vmatprep.subr.mxu0 0.0
      %4503 = vmatpush2.msra.mxu0 0.0
      %4504 = vmatprep.subr.mxu0 0.0
      %4505 = vmatpush2.msra.mxu0 0.0
      %4506 = vmatprep.subr.mxu0 0.0
      %4507 = vmatpush2.msra.mxu0 0.0
      %4508 = vmatprep.subr.mxu0 0.0
      %4509 = vmatpush2.msra.mxu0 0.0
      %4510 = vmatprep.subr.mxu0 0.0
      %4511 = vmatpush2.msra.mxu0 0.0
      %4512 = vmatprep.subr.mxu0 0.0
      %4513 = vmatpush2.msra.mxu0 0.0
      %4514 = vmatprep.mubr.f32.mxu0 0.0
      %4515 = vmatmul.mubr.f32.gmra.mxu0 %v4412
      %v4516 = vpop.f32.mrf.mxu0
      %v4517 = vadd.f32 %v4348, %v4516
      %v4518 = vpop.f32.mrf.mxu0
      %4519 = vmatprep.mubr.f32.mxu0 0.0
      %4520 = vmatmul.mubr.f32.gmra.mxu0 %v4415
      %v4521 = vpop.f32.mrf.mxu0
      %v4522 = vadd.f32 %v4353, %v4521
      %v4523 = vpop.f32.mrf.mxu0
      %4524 = vmatprep.mubr.f32.mxu0 0.0
      %4525 = vmatmul.mubr.f32.gmra.mxu0 %v4418
      %v4526 = vpop.f32.mrf.mxu0
      %v4527 = vadd.f32 %v4358, %v4526
      %v4528 = vpop.f32.mrf.mxu0
      %4529 = vmatprep.mubr.f32.mxu0 0.0
      %4530 = vmatmul.mubr.f32.gmra.mxu0 %v4421
      %v4531 = vpop.f32.mrf.mxu0
      %v4532 = vadd.f32 %v4363, %v4531
      %v4533 = vpop.f32.mrf.mxu0
      %4534 = vmatprep.mubr.f32.mxu0 0.0
      %4535 = vmatmul.mubr.f32.gmra.mxu0 %v4424
      %v4536 = vpop.f32.mrf.mxu0
      %v4537 = vadd.f32 %v4368, %v4536
      %v4538 = vpop.f32.mrf.mxu0
      %4539 = vmatprep.mubr.f32.mxu0 0.0
      %4540 = vmatmul.mubr.f32.gmra.mxu0 %v4427
      %v4541 = vpop.f32.mrf.mxu0
      %v4542 = vadd.f32 %v4373, %v4541
      %v4543 = vpop.f32.mrf.mxu0
      %4544 = vmatprep.mubr.f32.mxu0 0.0
      %4545 = vmatmul.mubr.f32.gmra.mxu0 %v4430
      %v4546 = vpop.f32.mrf.mxu0
      %v4547 = vadd.f32 %v4378, %v4546
      %v4548 = vpop.f32.mrf.mxu0
      %4549 = vmatprep.mubr.f32.mxu0 0.0
      %4550 = vmatmul.mubr.f32.gmra.mxu0 %v4433
      %v4551 = vpop.f32.mrf.mxu0
      %v4552 = vadd.f32 %v4383, %v4551
      %v4553 = vpop.f32.mrf.mxu0
      %4554 = vmatprep.mubr.f32.mxu0 0.0
      %4555 = vmatmul.mubr.f32.gmra.mxu0 %v4436
      %v4556 = vpop.f32.mrf.mxu0
      %v4557 = vadd.f32 %v4388, %v4556
      %v4558 = vpop.f32.mrf.mxu0
      %4559 = vmatprep.mubr.f32.mxu0 0.0
      %4560 = vmatmul.mubr.f32.gmra.mxu0 %v4439
      %v4561 = vpop.f32.mrf.mxu0
      %v4562 = vadd.f32 %v4393, %v4561
      %v4563 = vpop.f32.mrf.mxu0
      %4564 = vmatprep.mubr.f32.mxu0 0.0
      %4565 = vmatmul.mubr.f32.gmra.mxu0 %v4442
      %v4566 = vpop.f32.mrf.mxu0
      %v4567 = vadd.f32 %v4398, %v4566
      %v4568 = vpop.f32.mrf.mxu0
      %4569 = vmatprep.mubr.f32.mxu0 0.0
      %4570 = vmatmul.mubr.f32.gmra.mxu0 %v4445
      %v4571 = vpop.f32.mrf.mxu0
      %v4572 = vadd.f32 %v4403, %v4571
      %v4573 = vpop.f32.mrf.mxu0
      %4574 = vmatprep.mubr.f32.mxu0 0.0
      %4575 = vmatmul.mubr.f32.gmra.mxu0 %v4448
      %v4576 = vpop.f32.mrf.mxu0
      %v4577 = vadd.f32 %v4408, %v4576
      %v4578 = vpop.f32.mrf.mxu0
      %4579 = vdwg.mxu0
      %v4580 = vld [vmem:[#allocation7 + $0x2] sm:$0xff]
      %v4581 = vld [vmem:[#allocation7 + $0xa] sm:$0xff]
      %v4582 = vld [vmem:[#allocation7 + $0x12] sm:$0xff]
      %v4583 = vld [vmem:[#allocation7 + $0x1a] sm:$0xff]
      %v4584 = vld [vmem:[#allocation7 + $0x22] sm:$0xff]
      %v4585 = vld [vmem:[#allocation7 + $0x2a] sm:$0xff]
      %v4586 = vld [vmem:[#allocation7 + $0x32] sm:$0xff]
      %v4587 = vld [vmem:[#allocation7 + $0x3a] sm:$0xff]
      %v4588 = vld [vmem:[#allocation7 + $0x42] sm:$0xff]
      %v4589 = vld [vmem:[#allocation7 + $0x4a] sm:$0xff]
      %v4590 = vld [vmem:[#allocation7 + $0x52] sm:$0xff]
      %v4591 = vld [vmem:[#allocation7 + $0x5a] sm:$0xff]
      %v4592 = vld [vmem:[#allocation7 + $0x62] sm:$0x7f]
      %v4593 = vld [vmem:[%s2 + $0x196] sm:$0xff]
      %v4594 = vld [vmem:[%s2 + $0x19e] sm:$0xff]
      %v4595 = vld [vmem:[%s2 + $0x1a6] sm:$0xff]
      %v4596 = vld [vmem:[%s2 + $0x1ae] sm:$0xff]
      %v4598 = vsel %vm223, %v4580, 0
      %v4601 = vsel %vm223, %v4581, 0
      %v4604 = vsel %vm223, %v4582, 0
      %v4607 = vsel %vm223, %v4583, 0
      %v4610 = vsel %vm223, %v4584, 0
      %v4613 = vsel %vm223, %v4585, 0
      %v4616 = vsel %vm223, %v4586, 0
      %v4619 = vsel %vm223, %v4587, 0
      %v4622 = vsel %vm223, %v4588, 0
      %v4625 = vsel %vm223, %v4589, 0
      %v4628 = vsel %vm223, %v4590, 0
      %v4631 = vsel %vm223, %v4591, 0
      %v4634 = vsel %vm223, %v4592, 0
      %4636 = vmatprep.subr.mxu0 0.0
      %4637 = vmatpush1.msra.mxu0 0.0
      %4638 = vmatprep.subr.mxu0 0.0
      %4639 = vmatpush1.msra.mxu0 0.0
      %4640 = vmatprep.subr.mxu0 0.0
      %4641 = vmatpush1.msra.mxu0 0.0
      %4642 = vmatprep.subr.mxu0 0.0
      %4643 = vmatpush1.msra.mxu0 0.0
      %4644 = vmatprep.subr.mxu0 0.0
      %4645 = vmatpush1.msra.mxu0 0.0
      %4646 = vmatprep.subr.mxu0 0.0
      %4647 = vmatpush1.msra.mxu0 0.0
      %4648 = vmatprep.subr.mxu0 0.0
      %4649 = vmatpush1.msra.mxu0 0.0
      %4650 = vmatprep.subr.mxu0 0.0
      %4651 = vmatpush1.msra.mxu0 0.0
      %4652 = vmatprep.subr.mxu0 0.0
      %4653 = vmatpush1.msra.mxu0 0.0
      %4654 = vmatprep.subr.mxu0 0.0
      %4655 = vmatpush1.msra.mxu0 0.0
      %4656 = vmatprep.subr.mxu0 0.0
      %4657 = vmatpush1.msra.mxu0 0.0
      %4658 = vmatprep.subr.mxu0 0.0
      %4659 = vmatpush1.msra.mxu0 0.0
      %4660 = vmatprep.subr.mxu0 0.0
      %4661 = vmatpush1.msra.mxu0 %v4596
      %4662 = vmatprep.subr.mxu0 0.0
      %4663 = vmatpush1.msra.mxu0 %v4595
      %4664 = vmatprep.subr.mxu0 0.0
      %4665 = vmatpush1.msra.mxu0 %v4594
      %4666 = vmatprep.subr.mxu0 0.0
      %4667 = vmatpush1.msra.mxu0 %v4593
      %4668 = vmatprep.subr.mxu0 0.0
      %4669 = vmatpush2.msra.mxu0 0.0
      %4670 = vmatprep.subr.mxu0 0.0
      %4671 = vmatpush2.msra.mxu0 0.0
      %4672 = vmatprep.subr.mxu0 0.0
      %4673 = vmatpush2.msra.mxu0 0.0
      %4674 = vmatprep.subr.mxu0 0.0
      %4675 = vmatpush2.msra.mxu0 0.0
      %4676 = vmatprep.subr.mxu0 0.0
      %4677 = vmatpush2.msra.mxu0 0.0
      %4678 = vmatprep.subr.mxu0 0.0
      %4679 = vmatpush2.msra.mxu0 0.0
      %4680 = vmatprep.subr.mxu0 0.0
      %4681 = vmatpush2.msra.mxu0 0.0
      %4682 = vmatprep.subr.mxu0 0.0
      %4683 = vmatpush2.msra.mxu0 0.0
      %4684 = vmatprep.subr.mxu0 0.0
      %4685 = vmatpush2.msra.mxu0 0.0
      %4686 = vmatprep.subr.mxu0 0.0
      %4687 = vmatpush2.msra.mxu0 0.0
      %4688 = vmatprep.subr.mxu0 0.0
      %4689 = vmatpush2.msra.mxu0 0.0
      %4690 = vmatprep.subr.mxu0 0.0
      %4691 = vmatpush2.msra.mxu0 0.0
      %4692 = vmatprep.subr.mxu0 0.0
      %4693 = vmatpush2.msra.mxu0 0.0
      %4694 = vmatprep.subr.mxu0 0.0
      %4695 = vmatpush2.msra.mxu0 0.0
      %4696 = vmatprep.subr.mxu0 0.0
      %4697 = vmatpush2.msra.mxu0 0.0
      %4698 = vmatprep.subr.mxu0 0.0
      %4699 = vmatpush2.msra.mxu0 0.0
      %4700 = vmatprep.mubr.f32.mxu0 0.0
      %4701 = vmatmul.mubr.f32.gmra.mxu0 %v4598
      %v4702 = vpop.f32.mrf.mxu0
      %v4703 = vadd.f32 0.0, %v4702
      %v4704 = vpop.f32.mrf.mxu0
      %4705 = vmatprep.mubr.f32.mxu0 0.0
      %4706 = vmatmul.mubr.f32.gmra.mxu0 %v4601
      %v4707 = vpop.f32.mrf.mxu0
      %v4708 = vadd.f32 0.0, %v4707
      %v4709 = vpop.f32.mrf.mxu0
      %4710 = vmatprep.mubr.f32.mxu0 0.0
      %4711 = vmatmul.mubr.f32.gmra.mxu0 %v4604
      %v4712 = vpop.f32.mrf.mxu0
      %v4713 = vadd.f32 0.0, %v4712
      %v4714 = vpop.f32.mrf.mxu0
      %4715 = vmatprep.mubr.f32.mxu0 0.0
      %4716 = vmatmul.mubr.f32.gmra.mxu0 %v4607
      %v4717 = vpop.f32.mrf.mxu0
      %v4718 = vadd.f32 0.0, %v4717
      %v4719 = vpop.f32.mrf.mxu0
      %4720 = vmatprep.mubr.f32.mxu0 0.0
      %4721 = vmatmul.mubr.f32.gmra.mxu0 %v4610
      %v4722 = vpop.f32.mrf.mxu0
      %v4723 = vadd.f32 0.0, %v4722
      %v4724 = vpop.f32.mrf.mxu0
      %4725 = vmatprep.mubr.f32.mxu0 0.0
      %4726 = vmatmul.mubr.f32.gmra.mxu0 %v4613
      %v4727 = vpop.f32.mrf.mxu0
      %v4728 = vadd.f32 0.0, %v4727
      %v4729 = vpop.f32.mrf.mxu0
      %4730 = vmatprep.mubr.f32.mxu0 0.0
      %4731 = vmatmul.mubr.f32.gmra.mxu0 %v4616
      %v4732 = vpop.f32.mrf.mxu0
      %v4733 = vadd.f32 0.0, %v4732
      %v4734 = vpop.f32.mrf.mxu0
      %4735 = vmatprep.mubr.f32.mxu0 0.0
      %4736 = vmatmul.mubr.f32.gmra.mxu0 %v4619
      %v4737 = vpop.f32.mrf.mxu0
      %v4738 = vadd.f32 0.0, %v4737
      %v4739 = vpop.f32.mrf.mxu0
      %4740 = vmatprep.mubr.f32.mxu0 0.0
      %4741 = vmatmul.mubr.f32.gmra.mxu0 %v4622
      %v4742 = vpop.f32.mrf.mxu0
      %v4743 = vadd.f32 0.0, %v4742
      %v4744 = vpop.f32.mrf.mxu0
      %4745 = vmatprep.mubr.f32.mxu0 0.0
      %4746 = vmatmul.mubr.f32.gmra.mxu0 %v4625
      %v4747 = vpop.f32.mrf.mxu0
      %v4748 = vadd.f32 0.0, %v4747
      %v4749 = vpop.f32.mrf.mxu0
      %4750 = vmatprep.mubr.f32.mxu0 0.0
      %4751 = vmatmul.mubr.f32.gmra.mxu0 %v4628
      %v4752 = vpop.f32.mrf.mxu0
      %v4753 = vadd.f32 0.0, %v4752
      %v4754 = vpop.f32.mrf.mxu0
      %4755 = vmatprep.mubr.f32.mxu0 0.0
      %4756 = vmatmul.mubr.f32.gmra.mxu0 %v4631
      %v4757 = vpop.f32.mrf.mxu0
      %v4758 = vadd.f32 0.0, %v4757
      %v4759 = vpop.f32.mrf.mxu0
      %4760 = vmatprep.mubr.f32.mxu0 0.0
      %4761 = vmatmul.mubr.f32.gmra.mxu0 %v4634
      %v4762 = vpop.f32.mrf.mxu0
      %v4763 = vadd.f32 0.0, %v4762
      %v4764 = vpop.f32.mrf.mxu0
      %4765 = vdwg.mxu0
      %v4766 = vadd.f32 %v4517, %v4703
      %v4767 = vadd.f32 %v4522, %v4708
      %v4768 = vadd.f32 %v4527, %v4713
      %v4769 = vadd.f32 %v4532, %v4718
      %v4770 = vadd.f32 %v4537, %v4723
      %v4771 = vadd.f32 %v4542, %v4728
      %v4772 = vadd.f32 %v4547, %v4733
      %v4773 = vadd.f32 %v4552, %v4738
      %v4774 = vadd.f32 %v4557, %v4743
      %v4775 = vadd.f32 %v4562, %v4748
      %v4776 = vadd.f32 %v4567, %v4753
      %v4777 = vadd.f32 %v4572, %v4758
      %v4778 = vadd.f32 %v4577, %v4763
      %v4779 = vld [vmem:[#allocation7 + $0x10] sm:$0xff]
      %v4780 = vld [vmem:[#allocation7 + $0x18] sm:$0xff]
      %v4781 = vld [vmem:[#allocation7 + $0x20] sm:$0xff]
      %v4782 = vld [vmem:[#allocation7 + $0x28] sm:$0xff]
      %v4783 = vld [vmem:[#allocation7 + $0x30] sm:$0xff]
      %v4784 = vld [vmem:[#allocation7 + $0x38] sm:$0xff]
      %v4785 = vld [vmem:[#allocation7 + $0x40] sm:$0xff]
      %v4786 = vld [vmem:[#allocation7 + $0x48] sm:$0xff]
      %v4787 = vld [vmem:[#allocation7 + $0x50] sm:$0xff]
      %v4788 = vld [vmem:[#allocation7 + $0x58] sm:$0xff]
      %v4789 = vld [vmem:[#allocation7 + $0x60] sm:$0xff]
      %v4790 = vld [vmem:[#allocation7 + $0x68] sm:$0xff]
      %v4791 = vld [vmem:[#allocation7 + $0x70] sm:$0x7f]
      %v4792 = vld [vmem:[%s2 + $0x1b6] sm:$0xff]
      %v4793 = vld [vmem:[%s2 + $0x1be] sm:$0xff]
      %v4794 = vld [vmem:[%s2 + $0x1c6] sm:$0xff]
      %v4795 = vld [vmem:[%s2 + $0x1ce] sm:$0xff]
      %v4797 = vsel %vm223, %v4779, 0
      %v4800 = vsel %vm223, %v4780, 0
      %v4803 = vsel %vm223, %v4781, 0
      %v4806 = vsel %vm223, %v4782, 0
      %v4809 = vsel %vm223, %v4783, 0
      %v4812 = vsel %vm223, %v4784, 0
      %v4815 = vsel %vm223, %v4785, 0
      %v4818 = vsel %vm223, %v4786, 0
      %v4821 = vsel %vm223, %v4787, 0
      %v4824 = vsel %vm223, %v4788, 0
      %v4827 = vsel %vm223, %v4789, 0
      %v4830 = vsel %vm223, %v4790, 0
      %v4833 = vsel %vm223, %v4791, 0
      %4835 = vmatprep.subr.mxu0 0.0
      %4836 = vmatpush1.msra.mxu0 0.0
      %4837 = vmatprep.subr.mxu0 0.0
      %4838 = vmatpush1.msra.mxu0 0.0
      %4839 = vmatprep.subr.mxu0 0.0
      %4840 = vmatpush1.msra.mxu0 0.0
      %4841 = vmatprep.subr.mxu0 0.0
      %4842 = vmatpush1.msra.mxu0 0.0
      %4843 = vmatprep.subr.mxu0 0.0
      %4844 = vmatpush1.msra.mxu0 0.0
      %4845 = vmatprep.subr.mxu0 0.0
      %4846 = vmatpush1.msra.mxu0 0.0
      %4847 = vmatprep.subr.mxu0 0.0
      %4848 = vmatpush1.msra.mxu0 0.0
      %4849 = vmatprep.subr.mxu0 0.0
      %4850 = vmatpush1.msra.mxu0 0.0
      %4851 = vmatprep.subr.mxu0 0.0
      %4852 = vmatpush1.msra.mxu0 0.0
      %4853 = vmatprep.subr.mxu0 0.0
      %4854 = vmatpush1.msra.mxu0 0.0
      %4855 = vmatprep.subr.mxu0 0.0
      %4856 = vmatpush1.msra.mxu0 0.0
      %4857 = vmatprep.subr.mxu0 0.0
      %4858 = vmatpush1.msra.mxu0 0.0
      %4859 = vmatprep.subr.mxu0 0.0
      %4860 = vmatpush1.msra.mxu0 %v4795
      %4861 = vmatprep.subr.mxu0 0.0
      %4862 = vmatpush1.msra.mxu0 %v4794
      %4863 = vmatprep.subr.mxu0 0.0
      %4864 = vmatpush1.msra.mxu0 %v4793
      %4865 = vmatprep.subr.mxu0 0.0
      %4866 = vmatpush1.msra.mxu0 %v4792
      %4867 = vmatprep.subr.mxu0 0.0
      %4868 = vmatpush2.msra.mxu0 0.0
      %4869 = vmatprep.subr.mxu0 0.0
      %4870 = vmatpush2.msra.mxu0 0.0
      %4871 = vmatprep.subr.mxu0 0.0
      %4872 = vmatpush2.msra.mxu0 0.0
      %4873 = vmatprep.subr.mxu0 0.0
      %4874 = vmatpush2.msra.mxu0 0.0
      %4875 = vmatprep.subr.mxu0 0.0
      %4876 = vmatpush2.msra.mxu0 0.0
      %4877 = vmatprep.subr.mxu0 0.0
      %4878 = vmatpush2.msra.mxu0 0.0
      %4879 = vmatprep.subr.mxu0 0.0
      %4880 = vmatpush2.msra.mxu0 0.0
      %4881 = vmatprep.subr.mxu0 0.0
      %4882 = vmatpush2.msra.mxu0 0.0
      %4883 = vmatprep.subr.mxu0 0.0
      %4884 = vmatpush2.msra.mxu0 0.0
      %4885 = vmatprep.subr.mxu0 0.0
      %4886 = vmatpush2.msra.mxu0 0.0
      %4887 = vmatprep.subr.mxu0 0.0
      %4888 = vmatpush2.msra.mxu0 0.0
      %4889 = vmatprep.subr.mxu0 0.0
      %4890 = vmatpush2.msra.mxu0 0.0
      %4891 = vmatprep.subr.mxu0 0.0
      %4892 = vmatpush2.msra.mxu0 0.0
      %4893 = vmatprep.subr.mxu0 0.0
      %4894 = vmatpush2.msra.mxu0 0.0
      %4895 = vmatprep.subr.mxu0 0.0
      %4896 = vmatpush2.msra.mxu0 0.0
      %4897 = vmatprep.subr.mxu0 0.0
      %4898 = vmatpush2.msra.mxu0 0.0
      %4899 = vmatprep.mubr.f32.mxu0 0.0
      %4900 = vmatmul.mubr.f32.gmra.mxu0 %v4797
      %v4901 = vpop.f32.mrf.mxu0
      %v4902 = vadd.f32 0.0, %v4901
      %v4903 = vpop.f32.mrf.mxu0
      %4904 = vmatprep.mubr.f32.mxu0 0.0
      %4905 = vmatmul.mubr.f32.gmra.mxu0 %v4800
      %v4906 = vpop.f32.mrf.mxu0
      %v4907 = vadd.f32 0.0, %v4906
      %v4908 = vpop.f32.mrf.mxu0
      %4909 = vmatprep.mubr.f32.mxu0 0.0
      %4910 = vmatmul.mubr.f32.gmra.mxu0 %v4803
      %v4911 = vpop.f32.mrf.mxu0
      %v4912 = vadd.f32 0.0, %v4911
      %v4913 = vpop.f32.mrf.mxu0
      %4914 = vmatprep.mubr.f32.mxu0 0.0
      %4915 = vmatmul.mubr.f32.gmra.mxu0 %v4806
      %v4916 = vpop.f32.mrf.mxu0
      %v4917 = vadd.f32 0.0, %v4916
      %v4918 = vpop.f32.mrf.mxu0
      %4919 = vmatprep.mubr.f32.mxu0 0.0
      %4920 = vmatmul.mubr.f32.gmra.mxu0 %v4809
      %v4921 = vpop.f32.mrf.mxu0
      %v4922 = vadd.f32 0.0, %v4921
      %v4923 = vpop.f32.mrf.mxu0
      %4924 = vmatprep.mubr.f32.mxu0 0.0
      %4925 = vmatmul.mubr.f32.gmra.mxu0 %v4812
      %v4926 = vpop.f32.mrf.mxu0
      %v4927 = vadd.f32 0.0, %v4926
      %v4928 = vpop.f32.mrf.mxu0
      %4929 = vmatprep.mubr.f32.mxu0 0.0
      %4930 = vmatmul.mubr.f32.gmra.mxu0 %v4815
      %v4931 = vpop.f32.mrf.mxu0
      %v4932 = vadd.f32 0.0, %v4931
      %v4933 = vpop.f32.mrf.mxu0
      %4934 = vmatprep.mubr.f32.mxu0 0.0
      %4935 = vmatmul.mubr.f32.gmra.mxu0 %v4818
      %v4936 = vpop.f32.mrf.mxu0
      %v4937 = vadd.f32 0.0, %v4936
      %v4938 = vpop.f32.mrf.mxu0
      %4939 = vmatprep.mubr.f32.mxu0 0.0
      %4940 = vmatmul.mubr.f32.gmra.mxu0 %v4821
      %v4941 = vpop.f32.mrf.mxu0
      %v4942 = vadd.f32 0.0, %v4941
      %v4943 = vpop.f32.mrf.mxu0
      %4944 = vmatprep.mubr.f32.mxu0 0.0
      %4945 = vmatmul.mubr.f32.gmra.mxu0 %v4824
      %v4946 = vpop.f32.mrf.mxu0
      %v4947 = vadd.f32 0.0, %v4946
      %v4948 = vpop.f32.mrf.mxu0
      %4949 = vmatprep.mubr.f32.mxu0 0.0
      %4950 = vmatmul.mubr.f32.gmra.mxu0 %v4827
      %v4951 = vpop.f32.mrf.mxu0
      %v4952 = vadd.f32 0.0, %v4951
      %v4953 = vpop.f32.mrf.mxu0
      %4954 = vmatprep.mubr.f32.mxu0 0.0
      %4955 = vmatmul.mubr.f32.gmra.mxu0 %v4830
      %v4956 = vpop.f32.mrf.mxu0
      %v4957 = vadd.f32 0.0, %v4956
      %v4958 = vpop.f32.mrf.mxu0
      %4959 = vmatprep.mubr.f32.mxu0 0.0
      %4960 = vmatmul.mubr.f32.gmra.mxu0 %v4833
      %v4961 = vpop.f32.mrf.mxu0
      %v4962 = vadd.f32 0.0, %v4961
      %v4963 = vpop.f32.mrf.mxu0
      %4964 = vdwg.mxu0
      %v4965 = vadd.f32 %v4766, %v4902
      %v4966 = vadd.f32 %v4767, %v4907
      %v4967 = vadd.f32 %v4768, %v4912
      %v4968 = vadd.f32 %v4769, %v4917
      %v4969 = vadd.f32 %v4770, %v4922
      %v4970 = vadd.f32 %v4771, %v4927
      %v4971 = vadd.f32 %v4772, %v4932
      %v4972 = vadd.f32 %v4773, %v4937
      %v4973 = vadd.f32 %v4774, %v4942
      %v4974 = vadd.f32 %v4775, %v4947
      %v4975 = vadd.f32 %v4776, %v4952
      %v4976 = vadd.f32 %v4777, %v4957
      %v4977 = vadd.f32 %v4778, %v4962
      %v4978 = vld [vmem:[#allocation7 + $0x11] sm:$0xff]
      %v4979 = vld [vmem:[#allocation7 + $0x19] sm:$0xff]
      %v4980 = vld [vmem:[#allocation7 + $0x21] sm:$0xff]
      %v4981 = vld [vmem:[#allocation7 + $0x29] sm:$0xff]
      %v4982 = vld [vmem:[#allocation7 + $0x31] sm:$0xff]
      %v4983 = vld [vmem:[#allocation7 + $0x39] sm:$0xff]
      %v4984 = vld [vmem:[#allocation7 + $0x41] sm:$0xff]
      %v4985 = vld [vmem:[#allocation7 + $0x49] sm:$0xff]
      %v4986 = vld [vmem:[#allocation7 + $0x51] sm:$0xff]
      %v4987 = vld [vmem:[#allocation7 + $0x59] sm:$0xff]
      %v4988 = vld [vmem:[#allocation7 + $0x61] sm:$0xff]
      %v4989 = vld [vmem:[#allocation7 + $0x69] sm:$0xff]
      %v4990 = vld [vmem:[#allocation7 + $0x71] sm:$0x7f]
      %v4991 = vld [vmem:[%s2 + $0x1d6] sm:$0xff]
      %v4992 = vld [vmem:[%s2 + $0x1de] sm:$0xff]
      %v4993 = vld [vmem:[%s2 + $0x1e6] sm:$0xff]
      %v4994 = vld [vmem:[%s2 + $0x1ee] sm:$0xff]
      %v4996 = vsel %vm223, %v4978, 0
      %v4999 = vsel %vm223, %v4979, 0
      %v5002 = vsel %vm223, %v4980, 0
      %v5005 = vsel %vm223, %v4981, 0
      %v5008 = vsel %vm223, %v4982, 0
      %v5011 = vsel %vm223, %v4983, 0
      %v5014 = vsel %vm223, %v4984, 0
      %v5017 = vsel %vm223, %v4985, 0
      %v5020 = vsel %vm223, %v4986, 0
      %v5023 = vsel %vm223, %v4987, 0
      %v5026 = vsel %vm223, %v4988, 0
      %v5029 = vsel %vm223, %v4989, 0
      %v5032 = vsel %vm223, %v4990, 0
      %5034 = vmatprep.subr.mxu0 0.0
      %5035 = vmatpush1.msra.mxu0 0.0
      %5036 = vmatprep.subr.mxu0 0.0
      %5037 = vmatpush1.msra.mxu0 0.0
      %5038 = vmatprep.subr.mxu0 0.0
      %5039 = vmatpush1.msra.mxu0 0.0
      %5040 = vmatprep.subr.mxu0 0.0
      %5041 = vmatpush1.msra.mxu0 0.0
      %5042 = vmatprep.subr.mxu0 0.0
      %5043 = vmatpush1.msra.mxu0 0.0
      %5044 = vmatprep.subr.mxu0 0.0
      %5045 = vmatpush1.msra.mxu0 0.0
      %5046 = vmatprep.subr.mxu0 0.0
      %5047 = vmatpush1.msra.mxu0 0.0
      %5048 = vmatprep.subr.mxu0 0.0
      %5049 = vmatpush1.msra.mxu0 0.0
      %5050 = vmatprep.subr.mxu0 0.0
      %5051 = vmatpush1.msra.mxu0 0.0
      %5052 = vmatprep.subr.mxu0 0.0
      %5053 = vmatpush1.msra.mxu0 0.0
      %5054 = vmatprep.subr.mxu0 0.0
      %5055 = vmatpush1.msra.mxu0 0.0
      %5056 = vmatprep.subr.mxu0 0.0
      %5057 = vmatpush1.msra.mxu0 0.0
      %5058 = vmatprep.subr.mxu0 0.0
      %5059 = vmatpush1.msra.mxu0 %v4994
      %5060 = vmatprep.subr.mxu0 0.0
      %5061 = vmatpush1.msra.mxu0 %v4993
      %5062 = vmatprep.subr.mxu0 0.0
      %5063 = vmatpush1.msra.mxu0 %v4992
      %5064 = vmatprep.subr.mxu0 0.0
      %5065 = vmatpush1.msra.mxu0 %v4991
      %5066 = vmatprep.subr.mxu0 0.0
      %5067 = vmatpush2.msra.mxu0 0.0
      %5068 = vmatprep.subr.mxu0 0.0
      %5069 = vmatpush2.msra.mxu0 0.0
      %5070 = vmatprep.subr.mxu0 0.0
      %5071 = vmatpush2.msra.mxu0 0.0
      %5072 = vmatprep.subr.mxu0 0.0
      %5073 = vmatpush2.msra.mxu0 0.0
      %5074 = vmatprep.subr.mxu0 0.0
      %5075 = vmatpush2.msra.mxu0 0.0
      %5076 = vmatprep.subr.mxu0 0.0
      %5077 = vmatpush2.msra.mxu0 0.0
      %5078 = vmatprep.subr.mxu0 0.0
      %5079 = vmatpush2.msra.mxu0 0.0
      %5080 = vmatprep.subr.mxu0 0.0
      %5081 = vmatpush2.msra.mxu0 0.0
      %5082 = vmatprep.subr.mxu0 0.0
      %5083 = vmatpush2.msra.mxu0 0.0
      %5084 = vmatprep.subr.mxu0 0.0
      %5085 = vmatpush2.msra.mxu0 0.0
      %5086 = vmatprep.subr.mxu0 0.0
      %5087 = vmatpush2.msra.mxu0 0.0
      %5088 = vmatprep.subr.mxu0 0.0
      %5089 = vmatpush2.msra.mxu0 0.0
      %5090 = vmatprep.subr.mxu0 0.0
      %5091 = vmatpush2.msra.mxu0 0.0
      %5092 = vmatprep.subr.mxu0 0.0
      %5093 = vmatpush2.msra.mxu0 0.0
      %5094 = vmatprep.subr.mxu0 0.0
      %5095 = vmatpush2.msra.mxu0 0.0
      %5096 = vmatprep.subr.mxu0 0.0
      %5097 = vmatpush2.msra.mxu0 0.0
      %5098 = vmatprep.mubr.f32.mxu0 0.0
      %5099 = vmatmul.mubr.f32.gmra.mxu0 %v4996
      %v5100 = vpop.f32.mrf.mxu0
      %v5101 = vadd.f32 0.0, %v5100
      %v5102 = vpop.f32.mrf.mxu0
      %5103 = vmatprep.mubr.f32.mxu0 0.0
      %5104 = vmatmul.mubr.f32.gmra.mxu0 %v4999
      %v5105 = vpop.f32.mrf.mxu0
      %v5106 = vadd.f32 0.0, %v5105
      %v5107 = vpop.f32.mrf.mxu0
      %5108 = vmatprep.mubr.f32.mxu0 0.0
      %5109 = vmatmul.mubr.f32.gmra.mxu0 %v5002
      %v5110 = vpop.f32.mrf.mxu0
      %v5111 = vadd.f32 0.0, %v5110
      %v5112 = vpop.f32.mrf.mxu0
      %5113 = vmatprep.mubr.f32.mxu0 0.0
      %5114 = vmatmul.mubr.f32.gmra.mxu0 %v5005
      %v5115 = vpop.f32.mrf.mxu0
      %v5116 = vadd.f32 0.0, %v5115
      %v5117 = vpop.f32.mrf.mxu0
      %5118 = vmatprep.mubr.f32.mxu0 0.0
      %5119 = vmatmul.mubr.f32.gmra.mxu0 %v5008
      %v5120 = vpop.f32.mrf.mxu0
      %v5121 = vadd.f32 0.0, %v5120
      %v5122 = vpop.f32.mrf.mxu0
      %5123 = vmatprep.mubr.f32.mxu0 0.0
      %5124 = vmatmul.mubr.f32.gmra.mxu0 %v5011
      %v5125 = vpop.f32.mrf.mxu0
      %v5126 = vadd.f32 0.0, %v5125
      %v5127 = vpop.f32.mrf.mxu0
      %5128 = vmatprep.mubr.f32.mxu0 0.0
      %5129 = vmatmul.mubr.f32.gmra.mxu0 %v5014
      %v5130 = vpop.f32.mrf.mxu0
      %v5131 = vadd.f32 0.0, %v5130
      %v5132 = vpop.f32.mrf.mxu0
      %5133 = vmatprep.mubr.f32.mxu0 0.0
      %5134 = vmatmul.mubr.f32.gmra.mxu0 %v5017
      %v5135 = vpop.f32.mrf.mxu0
      %v5136 = vadd.f32 0.0, %v5135
      %v5137 = vpop.f32.mrf.mxu0
      %5138 = vmatprep.mubr.f32.mxu0 0.0
      %5139 = vmatmul.mubr.f32.gmra.mxu0 %v5020
      %v5140 = vpop.f32.mrf.mxu0
      %v5141 = vadd.f32 0.0, %v5140
      %v5142 = vpop.f32.mrf.mxu0
      %5143 = vmatprep.mubr.f32.mxu0 0.0
      %5144 = vmatmul.mubr.f32.gmra.mxu0 %v5023
      %v5145 = vpop.f32.mrf.mxu0
      %v5146 = vadd.f32 0.0, %v5145
      %v5147 = vpop.f32.mrf.mxu0
      %5148 = vmatprep.mubr.f32.mxu0 0.0
      %5149 = vmatmul.mubr.f32.gmra.mxu0 %v5026
      %v5150 = vpop.f32.mrf.mxu0
      %v5151 = vadd.f32 0.0, %v5150
      %v5152 = vpop.f32.mrf.mxu0
      %5153 = vmatprep.mubr.f32.mxu0 0.0
      %5154 = vmatmul.mubr.f32.gmra.mxu0 %v5029
      %v5155 = vpop.f32.mrf.mxu0
      %v5156 = vadd.f32 0.0, %v5155
      %v5157 = vpop.f32.mrf.mxu0
      %5158 = vmatprep.mubr.f32.mxu0 0.0
      %5159 = vmatmul.mubr.f32.gmra.mxu0 %v5032
      %v5160 = vpop.f32.mrf.mxu0
      %v5161 = vadd.f32 0.0, %v5160
      %v5162 = vpop.f32.mrf.mxu0
      %5163 = vdwg.mxu0
      %v5164 = vadd.f32 %v4965, %v5101
      %v5165 = vadd.f32 %v4966, %v5106
      %v5166 = vadd.f32 %v4967, %v5111
      %v5167 = vadd.f32 %v4968, %v5116
      %v5168 = vadd.f32 %v4969, %v5121
      %v5169 = vadd.f32 %v4970, %v5126
      %v5170 = vadd.f32 %v4971, %v5131
      %v5171 = vadd.f32 %v4972, %v5136
      %v5172 = vadd.f32 %v4973, %v5141
      %v5173 = vadd.f32 %v4974, %v5146
      %v5174 = vadd.f32 %v4975, %v5151
      %v5175 = vadd.f32 %v4976, %v5156
      %v5176 = vadd.f32 %v4977, %v5161
      %v5177 = vld [vmem:[#allocation7 + $0x12] sm:$0xff]
      %v5178 = vld [vmem:[#allocation7 + $0x1a] sm:$0xff]
      %v5179 = vld [vmem:[#allocation7 + $0x22] sm:$0xff]
      %v5180 = vld [vmem:[#allocation7 + $0x2a] sm:$0xff]
      %v5181 = vld [vmem:[#allocation7 + $0x32] sm:$0xff]
      %v5182 = vld [vmem:[#allocation7 + $0x3a] sm:$0xff]
      %v5183 = vld [vmem:[#allocation7 + $0x42] sm:$0xff]
      %v5184 = vld [vmem:[#allocation7 + $0x4a] sm:$0xff]
      %v5185 = vld [vmem:[#allocation7 + $0x52] sm:$0xff]
      %v5186 = vld [vmem:[#allocation7 + $0x5a] sm:$0xff]
      %v5187 = vld [vmem:[#allocation7 + $0x62] sm:$0xff]
      %v5188 = vld [vmem:[#allocation7 + $0x6a] sm:$0xff]
      %v5189 = vld [vmem:[#allocation7 + $0x72] sm:$0x7f]
      %v5190 = vld [vmem:[%s2 + $0x1f6] sm:$0xff]
      %v5191 = vld [vmem:[%s2 + $0x1fe] sm:$0xff]
      %v5192 = vld [vmem:[%s2 + $0x206] sm:$0xff]
      %v5193 = vld [vmem:[%s2 + $0x20e] sm:$0xff]
      %v5195 = vsel %vm223, %v5177, 0
      %v5198 = vsel %vm223, %v5178, 0
      %v5201 = vsel %vm223, %v5179, 0
      %v5204 = vsel %vm223, %v5180, 0
      %v5207 = vsel %vm223, %v5181, 0
      %v5210 = vsel %vm223, %v5182, 0
      %v5213 = vsel %vm223, %v5183, 0
      %v5216 = vsel %vm223, %v5184, 0
      %v5219 = vsel %vm223, %v5185, 0
      %v5222 = vsel %vm223, %v5186, 0
      %v5225 = vsel %vm223, %v5187, 0
      %v5228 = vsel %vm223, %v5188, 0
      %v5231 = vsel %vm223, %v5189, 0
      %5233 = vmatprep.subr.mxu0 0.0
      %5234 = vmatpush1.msra.mxu0 0.0
      %5235 = vmatprep.subr.mxu0 0.0
      %5236 = vmatpush1.msra.mxu0 0.0
      %5237 = vmatprep.subr.mxu0 0.0
      %5238 = vmatpush1.msra.mxu0 0.0
      %5239 = vmatprep.subr.mxu0 0.0
      %5240 = vmatpush1.msra.mxu0 0.0
      %5241 = vmatprep.subr.mxu0 0.0
      %5242 = vmatpush1.msra.mxu0 0.0
      %5243 = vmatprep.subr.mxu0 0.0
      %5244 = vmatpush1.msra.mxu0 0.0
      %5245 = vmatprep.subr.mxu0 0.0
      %5246 = vmatpush1.msra.mxu0 0.0
      %5247 = vmatprep.subr.mxu0 0.0
      %5248 = vmatpush1.msra.mxu0 0.0
      %5249 = vmatprep.subr.mxu0 0.0
      %5250 = vmatpush1.msra.mxu0 0.0
      %5251 = vmatprep.subr.mxu0 0.0
      %5252 = vmatpush1.msra.mxu0 0.0
      %5253 = vmatprep.subr.mxu0 0.0
      %5254 = vmatpush1.msra.mxu0 0.0
      %5255 = vmatprep.subr.mxu0 0.0
      %5256 = vmatpush1.msra.mxu0 0.0
      %5257 = vmatprep.subr.mxu0 0.0
      %5258 = vmatpush1.msra.mxu0 %v5193
      %5259 = vmatprep.subr.mxu0 0.0
      %5260 = vmatpush1.msra.mxu0 %v5192
      %5261 = vmatprep.subr.mxu0 0.0
      %5262 = vmatpush1.msra.mxu0 %v5191
      %5263 = vmatprep.subr.mxu0 0.0
      %5264 = vmatpush1.msra.mxu0 %v5190
      %5265 = vmatprep.subr.mxu0 0.0
      %5266 = vmatpush2.msra.mxu0 0.0
      %5267 = vmatprep.subr.mxu0 0.0
      %5268 = vmatpush2.msra.mxu0 0.0
      %5269 = vmatprep.subr.mxu0 0.0
      %5270 = vmatpush2.msra.mxu0 0.0
      %5271 = vmatprep.subr.mxu0 0.0
      %5272 = vmatpush2.msra.mxu0 0.0
      %5273 = vmatprep.subr.mxu0 0.0
      %5274 = vmatpush2.msra.mxu0 0.0
      %5275 = vmatprep.subr.mxu0 0.0
      %5276 = vmatpush2.msra.mxu0 0.0
      %5277 = vmatprep.subr.mxu0 0.0
      %5278 = vmatpush2.msra.mxu0 0.0
      %5279 = vmatprep.subr.mxu0 0.0
      %5280 = vmatpush2.msra.mxu0 0.0
      %5281 = vmatprep.subr.mxu0 0.0
      %5282 = vmatpush2.msra.mxu0 0.0
      %5283 = vmatprep.subr.mxu0 0.0
      %5284 = vmatpush2.msra.mxu0 0.0
      %5285 = vmatprep.subr.mxu0 0.0
      %5286 = vmatpush2.msra.mxu0 0.0
      %5287 = vmatprep.subr.mxu0 0.0
      %5288 = vmatpush2.msra.mxu0 0.0
      %5289 = vmatprep.subr.mxu0 0.0
      %5290 = vmatpush2.msra.mxu0 0.0
      %5291 = vmatprep.subr.mxu0 0.0
      %5292 = vmatpush2.msra.mxu0 0.0
      %5293 = vmatprep.subr.mxu0 0.0
      %5294 = vmatpush2.msra.mxu0 0.0
      %5295 = vmatprep.subr.mxu0 0.0
      %5296 = vmatpush2.msra.mxu0 0.0
      %5297 = vmatprep.mubr.f32.mxu0 0.0
      %5298 = vmatmul.mubr.f32.gmra.mxu0 %v5195
      %v5299 = vpop.f32.mrf.mxu0
      %v5300 = vadd.f32 0.0, %v5299
      %v5301 = vpop.f32.mrf.mxu0
      %5302 = vmatprep.mubr.f32.mxu0 0.0
      %5303 = vmatmul.mubr.f32.gmra.mxu0 %v5198
      %v5304 = vpop.f32.mrf.mxu0
      %v5305 = vadd.f32 0.0, %v5304
      %v5306 = vpop.f32.mrf.mxu0
      %5307 = vmatprep.mubr.f32.mxu0 0.0
      %5308 = vmatmul.mubr.f32.gmra.mxu0 %v5201
      %v5309 = vpop.f32.mrf.mxu0
      %v5310 = vadd.f32 0.0, %v5309
      %v5311 = vpop.f32.mrf.mxu0
      %5312 = vmatprep.mubr.f32.mxu0 0.0
      %5313 = vmatmul.mubr.f32.gmra.mxu0 %v5204
      %v5314 = vpop.f32.mrf.mxu0
      %v5315 = vadd.f32 0.0, %v5314
      %v5316 = vpop.f32.mrf.mxu0
      %5317 = vmatprep.mubr.f32.mxu0 0.0
      %5318 = vmatmul.mubr.f32.gmra.mxu0 %v5207
      %v5319 = vpop.f32.mrf.mxu0
      %v5320 = vadd.f32 0.0, %v5319
      %v5321 = vpop.f32.mrf.mxu0
      %5322 = vmatprep.mubr.f32.mxu0 0.0
      %5323 = vmatmul.mubr.f32.gmra.mxu0 %v5210
      %v5324 = vpop.f32.mrf.mxu0
      %v5325 = vadd.f32 0.0, %v5324
      %v5326 = vpop.f32.mrf.mxu0
      %5327 = vmatprep.mubr.f32.mxu0 0.0
      %5328 = vmatmul.mubr.f32.gmra.mxu0 %v5213
      %v5329 = vpop.f32.mrf.mxu0
      %v5330 = vadd.f32 0.0, %v5329
      %v5331 = vpop.f32.mrf.mxu0
      %5332 = vmatprep.mubr.f32.mxu0 0.0
      %5333 = vmatmul.mubr.f32.gmra.mxu0 %v5216
      %v5334 = vpop.f32.mrf.mxu0
      %v5335 = vadd.f32 0.0, %v5334
      %v5336 = vpop.f32.mrf.mxu0
      %5337 = vmatprep.mubr.f32.mxu0 0.0
      %5338 = vmatmul.mubr.f32.gmra.mxu0 %v5219
      %v5339 = vpop.f32.mrf.mxu0
      %v5340 = vadd.f32 0.0, %v5339
      %v5341 = vpop.f32.mrf.mxu0
      %5342 = vmatprep.mubr.f32.mxu0 0.0
      %5343 = vmatmul.mubr.f32.gmra.mxu0 %v5222
      %v5344 = vpop.f32.mrf.mxu0
      %v5345 = vadd.f32 0.0, %v5344
      %v5346 = vpop.f32.mrf.mxu0
      %5347 = vmatprep.mubr.f32.mxu0 0.0
      %5348 = vmatmul.mubr.f32.gmra.mxu0 %v5225
      %v5349 = vpop.f32.mrf.mxu0
      %v5350 = vadd.f32 0.0, %v5349
      %v5351 = vpop.f32.mrf.mxu0
      %5352 = vmatprep.mubr.f32.mxu0 0.0
      %5353 = vmatmul.mubr.f32.gmra.mxu0 %v5228
      %v5354 = vpop.f32.mrf.mxu0
      %v5355 = vadd.f32 0.0, %v5354
      %v5356 = vpop.f32.mrf.mxu0
      %5357 = vmatprep.mubr.f32.mxu0 0.0
      %5358 = vmatmul.mubr.f32.gmra.mxu0 %v5231
      %v5359 = vpop.f32.mrf.mxu0
      %v5360 = vadd.f32 0.0, %v5359
      %v5361 = vpop.f32.mrf.mxu0
      %5362 = vdwg.mxu0
      %v5363 = vadd.f32 %v5164, %v5300
      %v5364 = vadd.f32 %v5165, %v5305
      %v5365 = vadd.f32 %v5166, %v5310
      %v5366 = vadd.f32 %v5167, %v5315
      %v5367 = vadd.f32 %v5168, %v5320
      %v5368 = vadd.f32 %v5169, %v5325
      %v5369 = vadd.f32 %v5170, %v5330
      %v5370 = vadd.f32 %v5171, %v5335
      %v5371 = vadd.f32 %v5172, %v5340
      %v5372 = vadd.f32 %v5173, %v5345
      %v5373 = vadd.f32 %v5174, %v5350
      %v5374 = vadd.f32 %v5175, %v5355
      %v5375 = vadd.f32 %v5176, %v5360
      %v5376 = vld [vmem:[#allocation7 + $0x20] sm:$0xff]
      %v5377 = vld [vmem:[#allocation7 + $0x28] sm:$0xff]
      %v5378 = vld [vmem:[#allocation7 + $0x30] sm:$0xff]
      %v5379 = vld [vmem:[#allocation7 + $0x38] sm:$0xff]
      %v5380 = vld [vmem:[#allocation7 + $0x40] sm:$0xff]
      %v5381 = vld [vmem:[#allocation7 + $0x48] sm:$0xff]
      %v5382 = vld [vmem:[#allocation7 + $0x50] sm:$0xff]
      %v5383 = vld [vmem:[#allocation7 + $0x58] sm:$0xff]
      %v5384 = vld [vmem:[#allocation7 + $0x60] sm:$0xff]
      %v5385 = vld [vmem:[#allocation7 + $0x68] sm:$0xff]
      %v5386 = vld [vmem:[#allocation7 + $0x70] sm:$0xff]
      %v5387 = vld [vmem:[#allocation7 + $0x78] sm:$0xff]
      %v5388 = vld [vmem:[#allocation7 + $0x80] sm:$0x7f]
      %v5389 = vld [vmem:[%s2 + $0x216] sm:$0xff]
      %v5390 = vld [vmem:[%s2 + $0x21e] sm:$0xff]
      %v5391 = vld [vmem:[%s2 + $0x226] sm:$0xff]
      %v5392 = vld [vmem:[%s2 + $0x22e] sm:$0xff]
      %v5394 = vsel %vm223, %v5376, 0
      %v5397 = vsel %vm223, %v5377, 0
      %v5400 = vsel %vm223, %v5378, 0
      %v5403 = vsel %vm223, %v5379, 0
      %v5406 = vsel %vm223, %v5380, 0
      %v5409 = vsel %vm223, %v5381, 0
      %v5412 = vsel %vm223, %v5382, 0
      %v5415 = vsel %vm223, %v5383, 0
      %v5418 = vsel %vm223, %v5384, 0
      %v5421 = vsel %vm223, %v5385, 0
      %v5424 = vsel %vm223, %v5386, 0
      %v5427 = vsel %vm223, %v5387, 0
      %v5430 = vsel %vm223, %v5388, 0
      %5432 = vmatprep.subr.mxu0 0.0
      %5433 = vmatpush1.msra.mxu0 0.0
      %5434 = vmatprep.subr.mxu0 0.0
      %5435 = vmatpush1.msra.mxu0 0.0
      %5436 = vmatprep.subr.mxu0 0.0
      %5437 = vmatpush1.msra.mxu0 0.0
      %5438 = vmatprep.subr.mxu0 0.0
      %5439 = vmatpush1.msra.mxu0 0.0
      %5440 = vmatprep.subr.mxu0 0.0
      %5441 = vmatpush1.msra.mxu0 0.0
      %5442 = vmatprep.subr.mxu0 0.0
      %5443 = vmatpush1.msra.mxu0 0.0
      %5444 = vmatprep.subr.mxu0 0.0
      %5445 = vmatpush1.msra.mxu0 0.0
      %5446 = vmatprep.subr.mxu0 0.0
      %5447 = vmatpush1.msra.mxu0 0.0
      %5448 = vmatprep.subr.mxu0 0.0
      %5449 = vmatpush1.msra.mxu0 0.0
      %5450 = vmatprep.subr.mxu0 0.0
      %5451 = vmatpush1.msra.mxu0 0.0
      %5452 = vmatprep.subr.mxu0 0.0
      %5453 = vmatpush1.msra.mxu0 0.0
      %5454 = vmatprep.subr.mxu0 0.0
      %5455 = vmatpush1.msra.mxu0 0.0
      %5456 = vmatprep.subr.mxu0 0.0
      %5457 = vmatpush1.msra.mxu0 %v5392
      %5458 = vmatprep.subr.mxu0 0.0
      %5459 = vmatpush1.msra.mxu0 %v5391
      %5460 = vmatprep.subr.mxu0 0.0
      %5461 = vmatpush1.msra.mxu0 %v5390
      %5462 = vmatprep.subr.mxu0 0.0
      %5463 = vmatpush1.msra.mxu0 %v5389
      %5464 = vmatprep.subr.mxu0 0.0
      %5465 = vmatpush2.msra.mxu0 0.0
      %5466 = vmatprep.subr.mxu0 0.0
      %5467 = vmatpush2.msra.mxu0 0.0
      %5468 = vmatprep.subr.mxu0 0.0
      %5469 = vmatpush2.msra.mxu0 0.0
      %5470 = vmatprep.subr.mxu0 0.0
      %5471 = vmatpush2.msra.mxu0 0.0
      %5472 = vmatprep.subr.mxu0 0.0
      %5473 = vmatpush2.msra.mxu0 0.0
      %5474 = vmatprep.subr.mxu0 0.0
      %5475 = vmatpush2.msra.mxu0 0.0
      %5476 = vmatprep.subr.mxu0 0.0
      %5477 = vmatpush2.msra.mxu0 0.0
      %5478 = vmatprep.subr.mxu0 0.0
      %5479 = vmatpush2.msra.mxu0 0.0
      %5480 = vmatprep.subr.mxu0 0.0
      %5481 = vmatpush2.msra.mxu0 0.0
      %5482 = vmatprep.subr.mxu0 0.0
      %5483 = vmatpush2.msra.mxu0 0.0
      %5484 = vmatprep.subr.mxu0 0.0
      %5485 = vmatpush2.msra.mxu0 0.0
      %5486 = vmatprep.subr.mxu0 0.0
      %5487 = vmatpush2.msra.mxu0 0.0
      %5488 = vmatprep.subr.mxu0 0.0
      %5489 = vmatpush2.msra.mxu0 0.0
      %5490 = vmatprep.subr.mxu0 0.0
      %5491 = vmatpush2.msra.mxu0 0.0
      %5492 = vmatprep.subr.mxu0 0.0
      %5493 = vmatpush2.msra.mxu0 0.0
      %5494 = vmatprep.subr.mxu0 0.0
      %5495 = vmatpush2.msra.mxu0 0.0
      %5496 = vmatprep.mubr.f32.mxu0 0.0
      %5497 = vmatmul.mubr.f32.gmra.mxu0 %v5394
      %v5498 = vpop.f32.mrf.mxu0
      %v5499 = vadd.f32 0.0, %v5498
      %v5500 = vpop.f32.mrf.mxu0
      %5501 = vmatprep.mubr.f32.mxu0 0.0
      %5502 = vmatmul.mubr.f32.gmra.mxu0 %v5397
      %v5503 = vpop.f32.mrf.mxu0
      %v5504 = vadd.f32 0.0, %v5503
      %v5505 = vpop.f32.mrf.mxu0
      %5506 = vmatprep.mubr.f32.mxu0 0.0
      %5507 = vmatmul.mubr.f32.gmra.mxu0 %v5400
      %v5508 = vpop.f32.mrf.mxu0
      %v5509 = vadd.f32 0.0, %v5508
      %v5510 = vpop.f32.mrf.mxu0
      %5511 = vmatprep.mubr.f32.mxu0 0.0
      %5512 = vmatmul.mubr.f32.gmra.mxu0 %v5403
      %v5513 = vpop.f32.mrf.mxu0
      %v5514 = vadd.f32 0.0, %v5513
      %v5515 = vpop.f32.mrf.mxu0
      %5516 = vmatprep.mubr.f32.mxu0 0.0
      %5517 = vmatmul.mubr.f32.gmra.mxu0 %v5406
      %v5518 = vpop.f32.mrf.mxu0
      %v5519 = vadd.f32 0.0, %v5518
      %v5520 = vpop.f32.mrf.mxu0
      %5521 = vmatprep.mubr.f32.mxu0 0.0
      %5522 = vmatmul.mubr.f32.gmra.mxu0 %v5409
      %v5523 = vpop.f32.mrf.mxu0
      %v5524 = vadd.f32 0.0, %v5523
      %v5525 = vpop.f32.mrf.mxu0
      %5526 = vmatprep.mubr.f32.mxu0 0.0
      %5527 = vmatmul.mubr.f32.gmra.mxu0 %v5412
      %v5528 = vpop.f32.mrf.mxu0
      %v5529 = vadd.f32 0.0, %v5528
      %v5530 = vpop.f32.mrf.mxu0
      %5531 = vmatprep.mubr.f32.mxu0 0.0
      %5532 = vmatmul.mubr.f32.gmra.mxu0 %v5415
      %v5533 = vpop.f32.mrf.mxu0
      %v5534 = vadd.f32 0.0, %v5533
      %v5535 = vpop.f32.mrf.mxu0
      %5536 = vmatprep.mubr.f32.mxu0 0.0
      %5537 = vmatmul.mubr.f32.gmra.mxu0 %v5418
      %v5538 = vpop.f32.mrf.mxu0
      %v5539 = vadd.f32 0.0, %v5538
      %v5540 = vpop.f32.mrf.mxu0
      %5541 = vmatprep.mubr.f32.mxu0 0.0
      %5542 = vmatmul.mubr.f32.gmra.mxu0 %v5421
      %v5543 = vpop.f32.mrf.mxu0
      %v5544 = vadd.f32 0.0, %v5543
      %v5545 = vpop.f32.mrf.mxu0
      %5546 = vmatprep.mubr.f32.mxu0 0.0
      %5547 = vmatmul.mubr.f32.gmra.mxu0 %v5424
      %v5548 = vpop.f32.mrf.mxu0
      %v5549 = vadd.f32 0.0, %v5548
      %v5550 = vpop.f32.mrf.mxu0
      %5551 = vmatprep.mubr.f32.mxu0 0.0
      %5552 = vmatmul.mubr.f32.gmra.mxu0 %v5427
      %v5553 = vpop.f32.mrf.mxu0
      %v5554 = vadd.f32 0.0, %v5553
      %v5555 = vpop.f32.mrf.mxu0
      %5556 = vmatprep.mubr.f32.mxu0 0.0
      %5557 = vmatmul.mubr.f32.gmra.mxu0 %v5430
      %v5558 = vpop.f32.mrf.mxu0
      %v5559 = vadd.f32 0.0, %v5558
      %v5560 = vpop.f32.mrf.mxu0
      %5561 = vdwg.mxu0
      %v5562 = vadd.f32 %v5363, %v5499
      %v5563 = vadd.f32 %v5364, %v5504
      %v5564 = vadd.f32 %v5365, %v5509
      %v5565 = vadd.f32 %v5366, %v5514
      %v5566 = vadd.f32 %v5367, %v5519
      %v5567 = vadd.f32 %v5368, %v5524
      %v5568 = vadd.f32 %v5369, %v5529
      %v5569 = vadd.f32 %v5370, %v5534
      %v5570 = vadd.f32 %v5371, %v5539
      %v5571 = vadd.f32 %v5372, %v5544
      %v5572 = vadd.f32 %v5373, %v5549
      %v5573 = vadd.f32 %v5374, %v5554
      %v5574 = vadd.f32 %v5375, %v5559
      %v5575 = vld [vmem:[#allocation7 + $0x21] sm:$0xff]
      %v5576 = vld [vmem:[#allocation7 + $0x29] sm:$0xff]
      %v5577 = vld [vmem:[#allocation7 + $0x31] sm:$0xff]
      %v5578 = vld [vmem:[#allocation7 + $0x39] sm:$0xff]
      %v5579 = vld [vmem:[#allocation7 + $0x41] sm:$0xff]
      %v5580 = vld [vmem:[#allocation7 + $0x49] sm:$0xff]
      %v5581 = vld [vmem:[#allocation7 + $0x51] sm:$0xff]
      %v5582 = vld [vmem:[#allocation7 + $0x59] sm:$0xff]
      %v5583 = vld [vmem:[#allocation7 + $0x61] sm:$0xff]
      %v5584 = vld [vmem:[#allocation7 + $0x69] sm:$0xff]
      %v5585 = vld [vmem:[#allocation7 + $0x71] sm:$0xff]
      %v5586 = vld [vmem:[#allocation7 + $0x79] sm:$0xff]
      %v5587 = vld [vmem:[#allocation7 + $0x81] sm:$0x7f]
      %v5588 = vld [vmem:[%s2 + $0x236] sm:$0xff]
      %v5589 = vld [vmem:[%s2 + $0x23e] sm:$0xff]
      %v5590 = vld [vmem:[%s2 + $0x246] sm:$0xff]
      %v5591 = vld [vmem:[%s2 + $0x24e] sm:$0xff]
      %v5593 = vsel %vm223, %v5575, 0
      %v5596 = vsel %vm223, %v5576, 0
      %v5599 = vsel %vm223, %v5577, 0
      %v5602 = vsel %vm223, %v5578, 0
      %v5605 = vsel %vm223, %v5579, 0
      %v5608 = vsel %vm223, %v5580, 0
      %v5611 = vsel %vm223, %v5581, 0
      %v5614 = vsel %vm223, %v5582, 0
      %v5617 = vsel %vm223, %v5583, 0
      %v5620 = vsel %vm223, %v5584, 0
      %v5623 = vsel %vm223, %v5585, 0
      %v5626 = vsel %vm223, %v5586, 0
      %v5629 = vsel %vm223, %v5587, 0
      %5631 = vmatprep.subr.mxu0 0.0
      %5632 = vmatpush1.msra.mxu0 0.0
      %5633 = vmatprep.subr.mxu0 0.0
      %5634 = vmatpush1.msra.mxu0 0.0
      %5635 = vmatprep.subr.mxu0 0.0
      %5636 = vmatpush1.msra.mxu0 0.0
      %5637 = vmatprep.subr.mxu0 0.0
      %5638 = vmatpush1.msra.mxu0 0.0
      %5639 = vmatprep.subr.mxu0 0.0
      %5640 = vmatpush1.msra.mxu0 0.0
      %5641 = vmatprep.subr.mxu0 0.0
      %5642 = vmatpush1.msra.mxu0 0.0
      %5643 = vmatprep.subr.mxu0 0.0
      %5644 = vmatpush1.msra.mxu0 0.0
      %5645 = vmatprep.subr.mxu0 0.0
      %5646 = vmatpush1.msra.mxu0 0.0
      %5647 = vmatprep.subr.mxu0 0.0
      %5648 = vmatpush1.msra.mxu0 0.0
      %5649 = vmatprep.subr.mxu0 0.0
      %5650 = vmatpush1.msra.mxu0 0.0
      %5651 = vmatprep.subr.mxu0 0.0
      %5652 = vmatpush1.msra.mxu0 0.0
      %5653 = vmatprep.subr.mxu0 0.0
      %5654 = vmatpush1.msra.mxu0 0.0
      %5655 = vmatprep.subr.mxu0 0.0
      %5656 = vmatpush1.msra.mxu0 %v5591
      %5657 = vmatprep.subr.mxu0 0.0
      %5658 = vmatpush1.msra.mxu0 %v5590
      %5659 = vmatprep.subr.mxu0 0.0
      %5660 = vmatpush1.msra.mxu0 %v5589
      %5661 = vmatprep.subr.mxu0 0.0
      %5662 = vmatpush1.msra.mxu0 %v5588
      %5663 = vmatprep.subr.mxu0 0.0
      %5664 = vmatpush2.msra.mxu0 0.0
      %5665 = vmatprep.subr.mxu0 0.0
      %5666 = vmatpush2.msra.mxu0 0.0
      %5667 = vmatprep.subr.mxu0 0.0
      %5668 = vmatpush2.msra.mxu0 0.0
      %5669 = vmatprep.subr.mxu0 0.0
      %5670 = vmatpush2.msra.mxu0 0.0
      %5671 = vmatprep.subr.mxu0 0.0
      %5672 = vmatpush2.msra.mxu0 0.0
      %5673 = vmatprep.subr.mxu0 0.0
      %5674 = vmatpush2.msra.mxu0 0.0
      %5675 = vmatprep.subr.mxu0 0.0
      %5676 = vmatpush2.msra.mxu0 0.0
      %5677 = vmatprep.subr.mxu0 0.0
      %5678 = vmatpush2.msra.mxu0 0.0
      %5679 = vmatprep.subr.mxu0 0.0
      %5680 = vmatpush2.msra.mxu0 0.0
      %5681 = vmatprep.subr.mxu0 0.0
      %5682 = vmatpush2.msra.mxu0 0.0
      %5683 = vmatprep.subr.mxu0 0.0
      %5684 = vmatpush2.msra.mxu0 0.0
      %5685 = vmatprep.subr.mxu0 0.0
      %5686 = vmatpush2.msra.mxu0 0.0
      %5687 = vmatprep.subr.mxu0 0.0
      %5688 = vmatpush2.msra.mxu0 0.0
      %5689 = vmatprep.subr.mxu0 0.0
      %5690 = vmatpush2.msra.mxu0 0.0
      %5691 = vmatprep.subr.mxu0 0.0
      %5692 = vmatpush2.msra.mxu0 0.0
      %5693 = vmatprep.subr.mxu0 0.0
      %5694 = vmatpush2.msra.mxu0 0.0
      %5695 = vmatprep.mubr.f32.mxu0 0.0
      %5696 = vmatmul.mubr.f32.gmra.mxu0 %v5593
      %v5697 = vpop.f32.mrf.mxu0
      %v5698 = vadd.f32 0.0, %v5697
      %v5699 = vpop.f32.mrf.mxu0
      %5700 = vmatprep.mubr.f32.mxu0 0.0
      %5701 = vmatmul.mubr.f32.gmra.mxu0 %v5596
      %v5702 = vpop.f32.mrf.mxu0
      %v5703 = vadd.f32 0.0, %v5702
      %v5704 = vpop.f32.mrf.mxu0
      %5705 = vmatprep.mubr.f32.mxu0 0.0
      %5706 = vmatmul.mubr.f32.gmra.mxu0 %v5599
      %v5707 = vpop.f32.mrf.mxu0
      %v5708 = vadd.f32 0.0, %v5707
      %v5709 = vpop.f32.mrf.mxu0
      %5710 = vmatprep.mubr.f32.mxu0 0.0
      %5711 = vmatmul.mubr.f32.gmra.mxu0 %v5602
      %v5712 = vpop.f32.mrf.mxu0
      %v5713 = vadd.f32 0.0, %v5712
      %v5714 = vpop.f32.mrf.mxu0
      %5715 = vmatprep.mubr.f32.mxu0 0.0
      %5716 = vmatmul.mubr.f32.gmra.mxu0 %v5605
      %v5717 = vpop.f32.mrf.mxu0
      %v5718 = vadd.f32 0.0, %v5717
      %v5719 = vpop.f32.mrf.mxu0
      %5720 = vmatprep.mubr.f32.mxu0 0.0
      %5721 = vmatmul.mubr.f32.gmra.mxu0 %v5608
      %v5722 = vpop.f32.mrf.mxu0
      %v5723 = vadd.f32 0.0, %v5722
      %v5724 = vpop.f32.mrf.mxu0
      %5725 = vmatprep.mubr.f32.mxu0 0.0
      %5726 = vmatmul.mubr.f32.gmra.mxu0 %v5611
      %v5727 = vpop.f32.mrf.mxu0
      %v5728 = vadd.f32 0.0, %v5727
      %v5729 = vpop.f32.mrf.mxu0
      %5730 = vmatprep.mubr.f32.mxu0 0.0
      %5731 = vmatmul.mubr.f32.gmra.mxu0 %v5614
      %v5732 = vpop.f32.mrf.mxu0
      %v5733 = vadd.f32 0.0, %v5732
      %v5734 = vpop.f32.mrf.mxu0
      %5735 = vmatprep.mubr.f32.mxu0 0.0
      %5736 = vmatmul.mubr.f32.gmra.mxu0 %v5617
      %v5737 = vpop.f32.mrf.mxu0
      %v5738 = vadd.f32 0.0, %v5737
      %v5739 = vpop.f32.mrf.mxu0
      %5740 = vmatprep.mubr.f32.mxu0 0.0
      %5741 = vmatmul.mubr.f32.gmra.mxu0 %v5620
      %v5742 = vpop.f32.mrf.mxu0
      %v5743 = vadd.f32 0.0, %v5742
      %v5744 = vpop.f32.mrf.mxu0
      %5745 = vmatprep.mubr.f32.mxu0 0.0
      %5746 = vmatmul.mubr.f32.gmra.mxu0 %v5623
      %v5747 = vpop.f32.mrf.mxu0
      %v5748 = vadd.f32 0.0, %v5747
      %v5749 = vpop.f32.mrf.mxu0
      %5750 = vmatprep.mubr.f32.mxu0 0.0
      %5751 = vmatmul.mubr.f32.gmra.mxu0 %v5626
      %v5752 = vpop.f32.mrf.mxu0
      %v5753 = vadd.f32 0.0, %v5752
      %v5754 = vpop.f32.mrf.mxu0
      %5755 = vmatprep.mubr.f32.mxu0 0.0
      %5756 = vmatmul.mubr.f32.gmra.mxu0 %v5629
      %v5757 = vpop.f32.mrf.mxu0
      %v5758 = vadd.f32 0.0, %v5757
      %v5759 = vpop.f32.mrf.mxu0
      %5760 = vdwg.mxu0
      %v5761 = vadd.f32 %v5562, %v5698
      %v5762 = vadd.f32 %v5563, %v5703
      %v5763 = vadd.f32 %v5564, %v5708
      %v5764 = vadd.f32 %v5565, %v5713
      %v5765 = vadd.f32 %v5566, %v5718
      %v5766 = vadd.f32 %v5567, %v5723
      %v5767 = vadd.f32 %v5568, %v5728
      %v5768 = vadd.f32 %v5569, %v5733
      %v5769 = vadd.f32 %v5570, %v5738
      %v5770 = vadd.f32 %v5571, %v5743
      %v5771 = vadd.f32 %v5572, %v5748
      %v5772 = vadd.f32 %v5573, %v5753
      %v5773 = vadd.f32 %v5574, %v5758
      %v5774 = vld [vmem:[#allocation7 + $0x22] sm:$0xff]
      %v5775 = vld [vmem:[#allocation7 + $0x2a] sm:$0xff]
      %v5776 = vld [vmem:[#allocation7 + $0x32] sm:$0xff]
      %v5777 = vld [vmem:[#allocation7 + $0x3a] sm:$0xff]
      %v5778 = vld [vmem:[#allocation7 + $0x42] sm:$0xff]
      %v5779 = vld [vmem:[#allocation7 + $0x4a] sm:$0xff]
      %v5780 = vld [vmem:[#allocation7 + $0x52] sm:$0xff]
      %v5781 = vld [vmem:[#allocation7 + $0x5a] sm:$0xff]
      %v5782 = vld [vmem:[#allocation7 + $0x62] sm:$0xff]
      %v5783 = vld [vmem:[#allocation7 + $0x6a] sm:$0xff]
      %v5784 = vld [vmem:[#allocation7 + $0x72] sm:$0xff]
      %v5785 = vld [vmem:[#allocation7 + $0x7a] sm:$0xff]
      %v5786 = vld [vmem:[#allocation7 + $0x82] sm:$0x7f]
      %v5787 = vld [vmem:[%s2 + $0x256] sm:$0xff]
      %v5788 = vld [vmem:[%s2 + $0x25e] sm:$0xff]
      %v5789 = vld [vmem:[%s2 + $0x266] sm:$0xff]
      %v5790 = vld [vmem:[%s2 + $0x26e] sm:$0xff]
      %v5792 = vsel %vm223, %v5774, 0
      %v5795 = vsel %vm223, %v5775, 0
      %v5798 = vsel %vm223, %v5776, 0
      %v5801 = vsel %vm223, %v5777, 0
      %v5804 = vsel %vm223, %v5778, 0
      %v5807 = vsel %vm223, %v5779, 0
      %v5810 = vsel %vm223, %v5780, 0
      %v5813 = vsel %vm223, %v5781, 0
      %v5816 = vsel %vm223, %v5782, 0
      %v5819 = vsel %vm223, %v5783, 0
      %v5822 = vsel %vm223, %v5784, 0
      %v5825 = vsel %vm223, %v5785, 0
      %v5828 = vsel %vm223, %v5786, 0
      %5830 = vmatprep.subr.mxu0 0.0
      %5831 = vmatpush1.msra.mxu0 0.0
      %5832 = vmatprep.subr.mxu0 0.0
      %5833 = vmatpush1.msra.mxu0 0.0
      %5834 = vmatprep.subr.mxu0 0.0
      %5835 = vmatpush1.msra.mxu0 0.0
      %5836 = vmatprep.subr.mxu0 0.0
      %5837 = vmatpush1.msra.mxu0 0.0
      %5838 = vmatprep.subr.mxu0 0.0
      %5839 = vmatpush1.msra.mxu0 0.0
      %5840 = vmatprep.subr.mxu0 0.0
      %5841 = vmatpush1.msra.mxu0 0.0
      %5842 = vmatprep.subr.mxu0 0.0
      %5843 = vmatpush1.msra.mxu0 0.0
      %5844 = vmatprep.subr.mxu0 0.0
      %5845 = vmatpush1.msra.mxu0 0.0
      %5846 = vmatprep.subr.mxu0 0.0
      %5847 = vmatpush1.msra.mxu0 0.0
      %5848 = vmatprep.subr.mxu0 0.0
      %5849 = vmatpush1.msra.mxu0 0.0
      %5850 = vmatprep.subr.mxu0 0.0
      %5851 = vmatpush1.msra.mxu0 0.0
      %5852 = vmatprep.subr.mxu0 0.0
      %5853 = vmatpush1.msra.mxu0 0.0
      %5854 = vmatprep.subr.mxu0 0.0
      %5855 = vmatpush1.msra.mxu0 %v5790
      %5856 = vmatprep.subr.mxu0 0.0
      %5857 = vmatpush1.msra.mxu0 %v5789
      %5858 = vmatprep.subr.mxu0 0.0
      %5859 = vmatpush1.msra.mxu0 %v5788
      %5860 = vmatprep.subr.mxu0 0.0
      %5861 = vmatpush1.msra.mxu0 %v5787
      %5862 = vmatprep.subr.mxu0 0.0
      %5863 = vmatpush2.msra.mxu0 0.0
      %5864 = vmatprep.subr.mxu0 0.0
      %5865 = vmatpush2.msra.mxu0 0.0
      %5866 = vmatprep.subr.mxu0 0.0
      %5867 = vmatpush2.msra.mxu0 0.0
      %5868 = vmatprep.subr.mxu0 0.0
      %5869 = vmatpush2.msra.mxu0 0.0
      %5870 = vmatprep.subr.mxu0 0.0
      %5871 = vmatpush2.msra.mxu0 0.0
      %5872 = vmatprep.subr.mxu0 0.0
      %5873 = vmatpush2.msra.mxu0 0.0
      %5874 = vmatprep.subr.mxu0 0.0
      %5875 = vmatpush2.msra.mxu0 0.0
      %5876 = vmatprep.subr.mxu0 0.0
      %5877 = vmatpush2.msra.mxu0 0.0
      %5878 = vmatprep.subr.mxu0 0.0
      %5879 = vmatpush2.msra.mxu0 0.0
      %5880 = vmatprep.subr.mxu0 0.0
      %5881 = vmatpush2.msra.mxu0 0.0
      %5882 = vmatprep.subr.mxu0 0.0
      %5883 = vmatpush2.msra.mxu0 0.0
      %5884 = vmatprep.subr.mxu0 0.0
      %5885 = vmatpush2.msra.mxu0 0.0
      %5886 = vmatprep.subr.mxu0 0.0
      %5887 = vmatpush2.msra.mxu0 0.0
      %5888 = vmatprep.subr.mxu0 0.0
      %5889 = vmatpush2.msra.mxu0 0.0
      %5890 = vmatprep.subr.mxu0 0.0
      %5891 = vmatpush2.msra.mxu0 0.0
      %5892 = vmatprep.subr.mxu0 0.0
      %5893 = vmatpush2.msra.mxu0 0.0
      %5894 = vmatprep.mubr.f32.mxu0 0.0
      %5895 = vmatmul.mubr.f32.gmra.mxu0 %v5792
      %v5896 = vpop.f32.mrf.mxu0
      %v5897 = vadd.f32 0.0, %v5896
      %v5898 = vpop.f32.mrf.mxu0
      %5899 = vmatprep.mubr.f32.mxu0 0.0
      %5900 = vmatmul.mubr.f32.gmra.mxu0 %v5795
      %v5901 = vpop.f32.mrf.mxu0
      %v5902 = vadd.f32 0.0, %v5901
      %v5903 = vpop.f32.mrf.mxu0
      %5904 = vmatprep.mubr.f32.mxu0 0.0
      %5905 = vmatmul.mubr.f32.gmra.mxu0 %v5798
      %v5906 = vpop.f32.mrf.mxu0
      %v5907 = vadd.f32 0.0, %v5906
      %v5908 = vpop.f32.mrf.mxu0
      %5909 = vmatprep.mubr.f32.mxu0 0.0
      %5910 = vmatmul.mubr.f32.gmra.mxu0 %v5801
      %v5911 = vpop.f32.mrf.mxu0
      %v5912 = vadd.f32 0.0, %v5911
      %v5913 = vpop.f32.mrf.mxu0
      %5914 = vmatprep.mubr.f32.mxu0 0.0
      %5915 = vmatmul.mubr.f32.gmra.mxu0 %v5804
      %v5916 = vpop.f32.mrf.mxu0
      %v5917 = vadd.f32 0.0, %v5916
      %v5918 = vpop.f32.mrf.mxu0
      %5919 = vmatprep.mubr.f32.mxu0 0.0
      %5920 = vmatmul.mubr.f32.gmra.mxu0 %v5807
      %v5921 = vpop.f32.mrf.mxu0
      %v5922 = vadd.f32 0.0, %v5921
      %v5923 = vpop.f32.mrf.mxu0
      %5924 = vmatprep.mubr.f32.mxu0 0.0
      %5925 = vmatmul.mubr.f32.gmra.mxu0 %v5810
      %v5926 = vpop.f32.mrf.mxu0
      %v5927 = vadd.f32 0.0, %v5926
      %v5928 = vpop.f32.mrf.mxu0
      %5929 = vmatprep.mubr.f32.mxu0 0.0
      %5930 = vmatmul.mubr.f32.gmra.mxu0 %v5813
      %v5931 = vpop.f32.mrf.mxu0
      %v5932 = vadd.f32 0.0, %v5931
      %v5933 = vpop.f32.mrf.mxu0
      %5934 = vmatprep.mubr.f32.mxu0 0.0
      %5935 = vmatmul.mubr.f32.gmra.mxu0 %v5816
      %v5936 = vpop.f32.mrf.mxu0
      %v5937 = vadd.f32 0.0, %v5936
      %v5938 = vpop.f32.mrf.mxu0
      %5939 = vmatprep.mubr.f32.mxu0 0.0
      %5940 = vmatmul.mubr.f32.gmra.mxu0 %v5819
      %v5941 = vpop.f32.mrf.mxu0
      %v5942 = vadd.f32 0.0, %v5941
      %v5943 = vpop.f32.mrf.mxu0
      %5944 = vmatprep.mubr.f32.mxu0 0.0
      %5945 = vmatmul.mubr.f32.gmra.mxu0 %v5822
      %v5946 = vpop.f32.mrf.mxu0
      %v5947 = vadd.f32 0.0, %v5946
      %v5948 = vpop.f32.mrf.mxu0
      %5949 = vmatprep.mubr.f32.mxu0 0.0
      %5950 = vmatmul.mubr.f32.gmra.mxu0 %v5825
      %v5951 = vpop.f32.mrf.mxu0
      %v5952 = vadd.f32 0.0, %v5951
      %v5953 = vpop.f32.mrf.mxu0
      %5954 = vmatprep.mubr.f32.mxu0 0.0
      %5955 = vmatmul.mubr.f32.gmra.mxu0 %v5828
      %v5956 = vpop.f32.mrf.mxu0
      %v5957 = vadd.f32 0.0, %v5956
      %v5958 = vpop.f32.mrf.mxu0
      %5959 = vdwg.mxu0
      %v5960 = vadd.f32 %v5761, %v5897
      %v5961 = vadd.f32 %v5762, %v5902
      %v5962 = vadd.f32 %v5763, %v5907
      %v5963 = vadd.f32 %v5764, %v5912
      %v5964 = vadd.f32 %v5765, %v5917
      %v5965 = vadd.f32 %v5766, %v5922
      %v5966 = vadd.f32 %v5767, %v5927
      %v5967 = vadd.f32 %v5768, %v5932
      %v5968 = vadd.f32 %v5769, %v5937
      %v5969 = vadd.f32 %v5770, %v5942
      %v5970 = vadd.f32 %v5771, %v5947
      %v5971 = vadd.f32 %v5772, %v5952
      %v5972 = vadd.f32 %v5773, %v5957
      %v5973 = vld [vmem:[%s2 + $0x276] sm:$0x1]
      %v5974 = vlaneseq
      %v5975 = vshrl.u32 %v5974, 7
      %v5976 = vsub.s32 0, %v5975
      %v5977 = vrot.slane %v5973, %v5976
      %v5978 = vadd.f32 %v5960, %v5977
      %v5979 = vadd.f32 %v5961, %v5977
      %v5980 = vadd.f32 %v5962, %v5977
      %v5981 = vadd.f32 %v5963, %v5977
      %v5982 = vadd.f32 %v5964, %v5977
      %v5983 = vadd.f32 %v5965, %v5977
      %v5984 = vadd.f32 %v5966, %v5977
      %v5985 = vadd.f32 %v5967, %v5977
      %v5986 = vadd.f32 %v5968, %v5977
      %v5987 = vadd.f32 %v5969, %v5977
      %v5988 = vadd.f32 %v5970, %v5977
      %v5989 = vadd.f32 %v5971, %v5977
      %v5990 = vadd.f32 %v5972, %v5977
      %v5991 = vmax.f32 %v5978, 0.0
      %v5992 = vmax.f32 %v5979, 0.0
      %v5993 = vmax.f32 %v5980, 0.0
      %v5994 = vmax.f32 %v5981, 0.0
      %v5995 = vmax.f32 %v5982, 0.0
      %v5996 = vmax.f32 %v5983, 0.0
      %v5997 = vmax.f32 %v5984, 0.0
      %v5998 = vmax.f32 %v5985, 0.0
      %v5999 = vmax.f32 %v5986, 0.0
      %v6000 = vmax.f32 %v5987, 0.0
      %v6001 = vmax.f32 %v5988, 0.0
      %v6002 = vmax.f32 %v5989, 0.0
      %v6003 = vmax.f32 %v5990, 0.0
      %v6004 = vld [vmem:[%s1] sm:$0xff]
      %v6005 = vld [vmem:[%s1 + $0x8] sm:$0xff]
      %v6006 = vld [vmem:[%s1 + $0x10] sm:$0xff]
      %v6007 = vld [vmem:[%s1 + $0x18] sm:$0xff]
      %v6008 = vld [vmem:[%s1 + $0x20] sm:$0xff]
      %v6009 = vld [vmem:[%s1 + $0x28] sm:$0xff]
      %v6010 = vld [vmem:[%s1 + $0x30] sm:$0xff]
      %v6011 = vld [vmem:[%s1 + $0x38] sm:$0xff]
      %v6012 = vld [vmem:[%s1 + $0x40] sm:$0xff]
      %v6013 = vld [vmem:[%s1 + $0x48] sm:$0xff]
      %v6014 = vld [vmem:[%s1 + $0x50] sm:$0xff]
      %v6015 = vld [vmem:[%s1 + $0x58] sm:$0xff]
      %v6016 = vld [vmem:[%s1 + $0x60] sm:$0x7f]
      %vm6017 = vcmp.gt.f32.partialorder %v6004, 0.5
      %vm6018 = vcmp.gt.f32.partialorder %v6005, 0.5
      %vm6019 = vcmp.gt.f32.partialorder %v6006, 0.5
      %vm6020 = vcmp.gt.f32.partialorder %v6007, 0.5
      %vm6021 = vcmp.gt.f32.partialorder %v6008, 0.5
      %vm6022 = vcmp.gt.f32.partialorder %v6009, 0.5
      %vm6023 = vcmp.gt.f32.partialorder %v6010, 0.5
      %vm6024 = vcmp.gt.f32.partialorder %v6011, 0.5
      %vm6025 = vcmp.gt.f32.partialorder %v6012, 0.5
      %vm6026 = vcmp.gt.f32.partialorder %v6013, 0.5
      %vm6027 = vcmp.gt.f32.partialorder %v6014, 0.5
      %vm6028 = vcmp.gt.f32.partialorder %v6015, 0.5
      %vm6029 = vcmp.gt.f32.partialorder %v6016, 0.5
      %v6030 = vsel %vm6017, 1, 0
      %v6031 = vsel %vm6018, 1, 0
      %v6032 = vsel %vm6019, 1, 0
      %v6033 = vsel %vm6020, 1, 0
      %v6034 = vsel %vm6021, 1, 0
      %v6035 = vsel %vm6022, 1, 0
      %v6036 = vsel %vm6023, 1, 0
      %v6037 = vsel %vm6024, 1, 0
      %v6038 = vsel %vm6025, 1, 0
      %v6039 = vsel %vm6026, 1, 0
      %v6040 = vsel %vm6027, 1, 0
      %v6041 = vsel %vm6028, 1, 0
      %v6042 = vsel %vm6029, 1, 0
      %6043 = vset.pattern.permute.xlu0 2
      %6044 = vperm.xlu0 %6043, %v6030
      %v6045 = vpop.permute.xlu0 %6044
      %6046 = vset.pattern.permute.xlu0 2
      %6047 = vperm.xlu0 %6046, %v6031
      %v6048 = vpop.permute.xlu0 %6047
      %6049 = vset.pattern.permute.xlu0 2
      %6050 = vperm.xlu0 %6049, %v6032
      %v6051 = vpop.permute.xlu0 %6050
      %6052 = vset.pattern.permute.xlu0 2
      %6053 = vperm.xlu0 %6052, %v6033
      %v6054 = vpop.permute.xlu0 %6053
      %6055 = vset.pattern.permute.xlu0 2
      %6056 = vperm.xlu0 %6055, %v6034
      %v6057 = vpop.permute.xlu0 %6056
      %6058 = vset.pattern.permute.xlu0 2
      %6059 = vperm.xlu0 %6058, %v6035
      %v6060 = vpop.permute.xlu0 %6059
      %6061 = vset.pattern.permute.xlu0 2
      %6062 = vperm.xlu0 %6061, %v6036
      %v6063 = vpop.permute.xlu0 %6062
      %6064 = vset.pattern.permute.xlu0 2
      %6065 = vperm.xlu0 %6064, %v6037
      %v6066 = vpop.permute.xlu0 %6065
      %6067 = vset.pattern.permute.xlu0 2
      %6068 = vperm.xlu0 %6067, %v6038
      %v6069 = vpop.permute.xlu0 %6068
      %6070 = vset.pattern.permute.xlu0 2
      %6071 = vperm.xlu0 %6070, %v6039
      %v6072 = vpop.permute.xlu0 %6071
      %6073 = vset.pattern.permute.xlu0 2
      %6074 = vperm.xlu0 %6073, %v6040
      %v6075 = vpop.permute.xlu0 %6074
      %6076 = vset.pattern.permute.xlu0 2
      %6077 = vperm.xlu0 %6076, %v6041
      %v6078 = vpop.permute.xlu0 %6077
      %6079 = vset.pattern.permute.xlu0 2
      %6080 = vperm.xlu0 %6079, %v6042
      %v6081 = vpop.permute.xlu0 %6080
      %vm6082 = vcmp.eq.s32.totalorder %v6045, 1
      %vm6083 = vcmp.eq.s32.totalorder %v6048, 1
      %vm6084 = vcmp.eq.s32.totalorder %v6051, 1
      %vm6085 = vcmp.eq.s32.totalorder %v6054, 1
      %vm6086 = vcmp.eq.s32.totalorder %v6057, 1
      %vm6087 = vcmp.eq.s32.totalorder %v6060, 1
      %vm6088 = vcmp.eq.s32.totalorder %v6063, 1
      %vm6089 = vcmp.eq.s32.totalorder %v6066, 1
      %vm6090 = vcmp.eq.s32.totalorder %v6069, 1
      %vm6091 = vcmp.eq.s32.totalorder %v6072, 1
      %vm6092 = vcmp.eq.s32.totalorder %v6075, 1
      %vm6093 = vcmp.eq.s32.totalorder %v6078, 1
      %vm6094 = vcmp.eq.s32.totalorder %v6081, 1
      %v6095 = vsel %vm6082, %v5991, 0.0
      %v6096 = vsel %vm6083, %v5992, 0.0
      %v6097 = vsel %vm6084, %v5993, 0.0
      %v6098 = vsel %vm6085, %v5994, 0.0
      %v6099 = vsel %vm6086, %v5995, 0.0
      %v6100 = vsel %vm6087, %v5996, 0.0
      %v6101 = vsel %vm6088, %v5997, 0.0
      %v6102 = vsel %vm6089, %v5998, 0.0
      %v6103 = vsel %vm6090, %v5999, 0.0
      %v6104 = vsel %vm6091, %v6000, 0.0
      %v6105 = vsel %vm6092, %v6001, 0.0
      %v6106 = vsel %vm6093, %v6002, 0.0
      %v6107 = vsel %vm6094, %v6003, 0.0
      %6108 = vst.msk [vmem:[#allocation4 + $0x11] sm:$0xff] %vm237, %v6095
      %6109 = vst.msk [vmem:[#allocation4 + $0x19] sm:$0xff] %vm237, %v6096
      %6110 = vst.msk [vmem:[#allocation4 + $0x21] sm:$0xff] %vm237, %v6097
      %6111 = vst.msk [vmem:[#allocation4 + $0x29] sm:$0xff] %vm237, %v6098
      %6112 = vst.msk [vmem:[#allocation4 + $0x31] sm:$0xff] %vm237, %v6099
      %6113 = vst.msk [vmem:[#allocation4 + $0x39] sm:$0xff] %vm237, %v6100
      %6114 = vst.msk [vmem:[#allocation4 + $0x41] sm:$0xff] %vm237, %v6101
      %6115 = vst.msk [vmem:[#allocation4 + $0x49] sm:$0xff] %vm237, %v6102
      %6116 = vst.msk [vmem:[#allocation4 + $0x51] sm:$0xff] %vm237, %v6103
      %6117 = vst.msk [vmem:[#allocation4 + $0x59] sm:$0xff] %vm237, %v6104
      %6118 = vst.msk [vmem:[#allocation4 + $0x61] sm:$0xff] %vm237, %v6105
      %6119 = vst.msk [vmem:[#allocation4 + $0x69] sm:$0xff] %vm237, %v6106
      %vm6120 = vcmask 522240
      %6121 = vst.msk [vmem:[#allocation4 + $0x71] sm:$0x7f] %vm6120, %v6107
      %v6122 = vld [vmem:[#allocation4] sm:$0xff]
      %v6123 = vld [vmem:[#allocation4 + $0x8] sm:$0xff]
      %v6124 = vld [vmem:[#allocation4 + $0x10] sm:$0xff]
      %v6125 = vld [vmem:[#allocation4 + $0x18] sm:$0xff]
      %v6126 = vld [vmem:[#allocation4 + $0x20] sm:$0xff]
      %v6127 = vld [vmem:[#allocation4 + $0x28] sm:$0xff]
      %v6128 = vld [vmem:[#allocation4 + $0x30] sm:$0xff]
      %v6129 = vld [vmem:[#allocation4 + $0x38] sm:$0xff]
      %v6130 = vld [vmem:[#allocation4 + $0x40] sm:$0xff]
      %v6131 = vld [vmem:[#allocation4 + $0x48] sm:$0xff]
      %v6132 = vld [vmem:[#allocation4 + $0x50] sm:$0xff]
      %v6133 = vld [vmem:[#allocation4 + $0x58] sm:$0xff]
      %v6134 = vld [vmem:[#allocation4 + $0x60] sm:$0x7f]
      %v6135 = vld [vmem:[%s2 + $0x277] sm:$0x1]
      %v6136 = vlaneseq
      %v6137 = vshrl.u32 %v6136, 7
      %v6138 = vsub.s32 0, %v6137
      %v6139 = vrot.slane %v6135, %v6138
      %v6140 = vmul.f32 %v6122, %v6139
      %v6141 = vmul.f32 %v6123, %v6139
      %v6142 = vmul.f32 %v6124, %v6139
      %v6143 = vmul.f32 %v6125, %v6139
      %v6144 = vmul.f32 %v6126, %v6139
      %v6145 = vmul.f32 %v6127, %v6139
      %v6146 = vmul.f32 %v6128, %v6139
      %v6147 = vmul.f32 %v6129, %v6139
      %v6148 = vmul.f32 %v6130, %v6139
      %v6149 = vmul.f32 %v6131, %v6139
      %v6150 = vmul.f32 %v6132, %v6139
      %v6151 = vmul.f32 %v6133, %v6139
      %v6152 = vmul.f32 %v6134, %v6139
      %v6153 = vld [vmem:[#allocation4 + $0x1] sm:$0xff]
      %v6154 = vld [vmem:[#allocation4 + $0x9] sm:$0xff]
      %v6155 = vld [vmem:[#allocation4 + $0x11] sm:$0xff]
      %v6156 = vld [vmem:[#allocation4 + $0x19] sm:$0xff]
      %v6157 = vld [vmem:[#allocation4 + $0x21] sm:$0xff]
      %v6158 = vld [vmem:[#allocation4 + $0x29] sm:$0xff]
      %v6159 = vld [vmem:[#allocation4 + $0x31] sm:$0xff]
      %v6160 = vld [vmem:[#allocation4 + $0x39] sm:$0xff]
      %v6161 = vld [vmem:[#allocation4 + $0x41] sm:$0xff]
      %v6162 = vld [vmem:[#allocation4 + $0x49] sm:$0xff]
      %v6163 = vld [vmem:[#allocation4 + $0x51] sm:$0xff]
      %v6164 = vld [vmem:[#allocation4 + $0x59] sm:$0xff]
      %v6165 = vld [vmem:[#allocation4 + $0x61] sm:$0x7f]
      %v6166 = vld [vmem:[%s2 + $0x278] sm:$0x1]
      %v6167 = vlaneseq
      %v6168 = vshrl.u32 %v6167, 7
      %v6169 = vsub.s32 0, %v6168
      %v6170 = vrot.slane %v6166, %v6169
      %v6171 = vmul.f32 %v6153, %v6170
      %v6172 = vmul.f32 %v6154, %v6170
      %v6173 = vmul.f32 %v6155, %v6170
      %v6174 = vmul.f32 %v6156, %v6170
      %v6175 = vmul.f32 %v6157, %v6170
      %v6176 = vmul.f32 %v6158, %v6170
      %v6177 = vmul.f32 %v6159, %v6170
      %v6178 = vmul.f32 %v6160, %v6170
      %v6179 = vmul.f32 %v6161, %v6170
      %v6180 = vmul.f32 %v6162, %v6170
      %v6181 = vmul.f32 %v6163, %v6170
      %v6182 = vmul.f32 %v6164, %v6170
      %v6183 = vmul.f32 %v6165, %v6170
      %v6184 = vadd.f32 %v6140, %v6171
      %v6185 = vadd.f32 %v6141, %v6172
      %v6186 = vadd.f32 %v6142, %v6173
      %v6187 = vadd.f32 %v6143, %v6174
      %v6188 = vadd.f32 %v6144, %v6175
      %v6189 = vadd.f32 %v6145, %v6176
      %v6190 = vadd.f32 %v6146, %v6177
      %v6191 = vadd.f32 %v6147, %v6178
      %v6192 = vadd.f32 %v6148, %v6179
      %v6193 = vadd.f32 %v6149, %v6180
      %v6194 = vadd.f32 %v6150, %v6181
      %v6195 = vadd.f32 %v6151, %v6182
      %v6196 = vadd.f32 %v6152, %v6183
      %v6197 = vld [vmem:[#allocation4 + $0x2] sm:$0xff]
      %v6198 = vld [vmem:[#allocation4 + $0xa] sm:$0xff]
      %v6199 = vld [vmem:[#allocation4 + $0x12] sm:$0xff]
      %v6200 = vld [vmem:[#allocation4 + $0x1a] sm:$0xff]
      %v6201 = vld [vmem:[#allocation4 + $0x22] sm:$0xff]
      %v6202 = vld [vmem:[#allocation4 + $0x2a] sm:$0xff]
      %v6203 = vld [vmem:[#allocation4 + $0x32] sm:$0xff]
      %v6204 = vld [vmem:[#allocation4 + $0x3a] sm:$0xff]
      %v6205 = vld [vmem:[#allocation4 + $0x42] sm:$0xff]
      %v6206 = vld [vmem:[#allocation4 + $0x4a] sm:$0xff]
      %v6207 = vld [vmem:[#allocation4 + $0x52] sm:$0xff]
      %v6208 = vld [vmem:[#allocation4 + $0x5a] sm:$0xff]
      %v6209 = vld [vmem:[#allocation4 + $0x62] sm:$0x7f]
      %v6210 = vld [vmem:[%s2 + $0x279] sm:$0x1]
      %v6211 = vlaneseq
      %v6212 = vshrl.u32 %v6211, 7
      %v6213 = vsub.s32 0, %v6212
      %v6214 = vrot.slane %v6210, %v6213
      %v6215 = vmul.f32 %v6197, %v6214
      %v6216 = vmul.f32 %v6198, %v6214
      %v6217 = vmul.f32 %v6199, %v6214
      %v6218 = vmul.f32 %v6200, %v6214
      %v6219 = vmul.f32 %v6201, %v6214
      %v6220 = vmul.f32 %v6202, %v6214
      %v6221 = vmul.f32 %v6203, %v6214
      %v6222 = vmul.f32 %v6204, %v6214
      %v6223 = vmul.f32 %v6205, %v6214
      %v6224 = vmul.f32 %v6206, %v6214
      %v6225 = vmul.f32 %v6207, %v6214
      %v6226 = vmul.f32 %v6208, %v6214
      %v6227 = vmul.f32 %v6209, %v6214
      %v6228 = vadd.f32 %v6184, %v6215
      %v6229 = vadd.f32 %v6185, %v6216
      %v6230 = vadd.f32 %v6186, %v6217
      %v6231 = vadd.f32 %v6187, %v6218
      %v6232 = vadd.f32 %v6188, %v6219
      %v6233 = vadd.f32 %v6189, %v6220
      %v6234 = vadd.f32 %v6190, %v6221
      %v6235 = vadd.f32 %v6191, %v6222
      %v6236 = vadd.f32 %v6192, %v6223
      %v6237 = vadd.f32 %v6193, %v6224
      %v6238 = vadd.f32 %v6194, %v6225
      %v6239 = vadd.f32 %v6195, %v6226
      %v6240 = vadd.f32 %v6196, %v6227
      %v6241 = vld [vmem:[#allocation4 + $0x60] sm:$0xff]
      %v6242 = vld [vmem:[#allocation4 + $0x68] sm:$0xff]
      %v6243 = vld [vmem:[#allocation4 + $0x70] sm:$0x7f]
      %v6244 = vld [vmem:[%s2 + $0x27a] sm:$0x1]
      %v6245 = vlaneseq
      %v6246 = vshrl.u32 %v6245, 7
      %v6247 = vsub.s32 0, %v6246
      %v6248 = vrot.slane %v6244, %v6247
      %v6249 = vmul.f32 %v6124, %v6248
      %v6250 = vmul.f32 %v6125, %v6248
      %v6251 = vmul.f32 %v6126, %v6248
      %v6252 = vmul.f32 %v6127, %v6248
      %v6253 = vmul.f32 %v6128, %v6248
      %v6254 = vmul.f32 %v6129, %v6248
      %v6255 = vmul.f32 %v6130, %v6248
      %v6256 = vmul.f32 %v6131, %v6248
      %v6257 = vmul.f32 %v6132, %v6248
      %v6258 = vmul.f32 %v6133, %v6248
      %v6259 = vmul.f32 %v6241, %v6248
      %v6260 = vmul.f32 %v6242, %v6248
      %v6261 = vmul.f32 %v6243, %v6248
      %v6262 = vadd.f32 %v6228, %v6249
      %v6263 = vadd.f32 %v6229, %v6250
      %v6264 = vadd.f32 %v6230, %v6251
      %v6265 = vadd.f32 %v6231, %v6252
      %v6266 = vadd.f32 %v6232, %v6253
      %v6267 = vadd.f32 %v6233, %v6254
      %v6268 = vadd.f32 %v6234, %v6255
      %v6269 = vadd.f32 %v6235, %v6256
      %v6270 = vadd.f32 %v6236, %v6257
      %v6271 = vadd.f32 %v6237, %v6258
      %v6272 = vadd.f32 %v6238, %v6259
      %v6273 = vadd.f32 %v6239, %v6260
      %v6274 = vadd.f32 %v6240, %v6261
      %v6275 = vld [vmem:[#allocation4 + $0x61] sm:$0xff]
      %v6276 = vld [vmem:[#allocation4 + $0x69] sm:$0xff]
      %v6277 = vld [vmem:[#allocation4 + $0x71] sm:$0x7f]
      %v6278 = vld [vmem:[%s2 + $0x27b] sm:$0x1]
      %v6279 = vlaneseq
      %v6280 = vshrl.u32 %v6279, 7
      %v6281 = vsub.s32 0, %v6280
      %v6282 = vrot.slane %v6278, %v6281
      %v6283 = vmul.f32 %v6155, %v6282
      %v6284 = vmul.f32 %v6156, %v6282
      %v6285 = vmul.f32 %v6157, %v6282
      %v6286 = vmul.f32 %v6158, %v6282
      %v6287 = vmul.f32 %v6159, %v6282
      %v6288 = vmul.f32 %v6160, %v6282
      %v6289 = vmul.f32 %v6161, %v6282
      %v6290 = vmul.f32 %v6162, %v6282
      %v6291 = vmul.f32 %v6163, %v6282
      %v6292 = vmul.f32 %v6164, %v6282
      %v6293 = vmul.f32 %v6275, %v6282
      %v6294 = vmul.f32 %v6276, %v6282
      %v6295 = vmul.f32 %v6277, %v6282
      %v6296 = vadd.f32 %v6262, %v6283
      %v6297 = vadd.f32 %v6263, %v6284
      %v6298 = vadd.f32 %v6264, %v6285
      %v6299 = vadd.f32 %v6265, %v6286
      %v6300 = vadd.f32 %v6266, %v6287
      %v6301 = vadd.f32 %v6267, %v6288
      %v6302 = vadd.f32 %v6268, %v6289
      %v6303 = vadd.f32 %v6269, %v6290
      %v6304 = vadd.f32 %v6270, %v6291
      %v6305 = vadd.f32 %v6271, %v6292
      %v6306 = vadd.f32 %v6272, %v6293
      %v6307 = vadd.f32 %v6273, %v6294
      %v6308 = vadd.f32 %v6274, %v6295
      %v6309 = vld [vmem:[#allocation4 + $0x62] sm:$0xff]
      %v6310 = vld [vmem:[#allocation4 + $0x6a] sm:$0xff]
      %v6311 = vld [vmem:[#allocation4 + $0x72] sm:$0x7f]
      %v6312 = vld [vmem:[%s2 + $0x27c] sm:$0x1]
      %v6313 = vlaneseq
      %v6314 = vshrl.u32 %v6313, 7
      %v6315 = vsub.s32 0, %v6314
      %v6316 = vrot.slane %v6312, %v6315
      %v6317 = vmul.f32 %v6199, %v6316
      %v6318 = vmul.f32 %v6200, %v6316
      %v6319 = vmul.f32 %v6201, %v6316
      %v6320 = vmul.f32 %v6202, %v6316
      %v6321 = vmul.f32 %v6203, %v6316
      %v6322 = vmul.f32 %v6204, %v6316
      %v6323 = vmul.f32 %v6205, %v6316
      %v6324 = vmul.f32 %v6206, %v6316
      %v6325 = vmul.f32 %v6207, %v6316
      %v6326 = vmul.f32 %v6208, %v6316
      %v6327 = vmul.f32 %v6309, %v6316
      %v6328 = vmul.f32 %v6310, %v6316
      %v6329 = vmul.f32 %v6311, %v6316
      %v6330 = vadd.f32 %v6296, %v6317
      %v6331 = vadd.f32 %v6297, %v6318
      %v6332 = vadd.f32 %v6298, %v6319
      %v6333 = vadd.f32 %v6299, %v6320
      %v6334 = vadd.f32 %v6300, %v6321
      %v6335 = vadd.f32 %v6301, %v6322
      %v6336 = vadd.f32 %v6302, %v6323
      %v6337 = vadd.f32 %v6303, %v6324
      %v6338 = vadd.f32 %v6304, %v6325
      %v6339 = vadd.f32 %v6305, %v6326
      %v6340 = vadd.f32 %v6306, %v6327
      %v6341 = vadd.f32 %v6307, %v6328
      %v6342 = vadd.f32 %v6308, %v6329
      %v6343 = vld [vmem:[#allocation4 + $0x70] sm:$0xff]
      %v6344 = vld [vmem:[#allocation4 + $0x78] sm:$0xff]
      %v6345 = vld [vmem:[#allocation4 + $0x80] sm:$0x7f]
      %v6346 = vld [vmem:[%s2 + $0x27d] sm:$0x1]
      %v6347 = vlaneseq
      %v6348 = vshrl.u32 %v6347, 7
      %v6349 = vsub.s32 0, %v6348
      %v6350 = vrot.slane %v6346, %v6349
      %v6351 = vmul.f32 %v6126, %v6350
      %v6352 = vmul.f32 %v6127, %v6350
      %v6353 = vmul.f32 %v6128, %v6350
      %v6354 = vmul.f32 %v6129, %v6350
      %v6355 = vmul.f32 %v6130, %v6350
      %v6356 = vmul.f32 %v6131, %v6350
      %v6357 = vmul.f32 %v6132, %v6350
      %v6358 = vmul.f32 %v6133, %v6350
      %v6359 = vmul.f32 %v6241, %v6350
      %v6360 = vmul.f32 %v6242, %v6350
      %v6361 = vmul.f32 %v6343, %v6350
      %v6362 = vmul.f32 %v6344, %v6350
      %v6363 = vmul.f32 %v6345, %v6350
      %v6364 = vadd.f32 %v6330, %v6351
      %v6365 = vadd.f32 %v6331, %v6352
      %v6366 = vadd.f32 %v6332, %v6353
      %v6367 = vadd.f32 %v6333, %v6354
      %v6368 = vadd.f32 %v6334, %v6355
      %v6369 = vadd.f32 %v6335, %v6356
      %v6370 = vadd.f32 %v6336, %v6357
      %v6371 = vadd.f32 %v6337, %v6358
      %v6372 = vadd.f32 %v6338, %v6359
      %v6373 = vadd.f32 %v6339, %v6360
      %v6374 = vadd.f32 %v6340, %v6361
      %v6375 = vadd.f32 %v6341, %v6362
      %v6376 = vadd.f32 %v6342, %v6363
      %v6377 = vld [vmem:[#allocation4 + $0x71] sm:$0xff]
      %v6378 = vld [vmem:[#allocation4 + $0x79] sm:$0xff]
      %v6379 = vld [vmem:[#allocation4 + $0x81] sm:$0x7f]
      %v6380 = vld [vmem:[%s2 + $0x27e] sm:$0x1]
      %v6381 = vlaneseq
      %v6382 = vshrl.u32 %v6381, 7
      %v6383 = vsub.s32 0, %v6382
      %v6384 = vrot.slane %v6380, %v6383
      %v6385 = vmul.f32 %v6157, %v6384
      %v6386 = vmul.f32 %v6158, %v6384
      %v6387 = vmul.f32 %v6159, %v6384
      %v6388 = vmul.f32 %v6160, %v6384
      %v6389 = vmul.f32 %v6161, %v6384
      %v6390 = vmul.f32 %v6162, %v6384
      %v6391 = vmul.f32 %v6163, %v6384
      %v6392 = vmul.f32 %v6164, %v6384
      %v6393 = vmul.f32 %v6275, %v6384
      %v6394 = vmul.f32 %v6276, %v6384
      %v6395 = vmul.f32 %v6377, %v6384
      %v6396 = vmul.f32 %v6378, %v6384
      %v6397 = vmul.f32 %v6379, %v6384
      %v6398 = vadd.f32 %v6364, %v6385
      %v6399 = vadd.f32 %v6365, %v6386
      %v6400 = vadd.f32 %v6366, %v6387
      %v6401 = vadd.f32 %v6367, %v6388
      %v6402 = vadd.f32 %v6368, %v6389
      %v6403 = vadd.f32 %v6369, %v6390
      %v6404 = vadd.f32 %v6370, %v6391
      %v6405 = vadd.f32 %v6371, %v6392
      %v6406 = vadd.f32 %v6372, %v6393
      %v6407 = vadd.f32 %v6373, %v6394
      %v6408 = vadd.f32 %v6374, %v6395
      %v6409 = vadd.f32 %v6375, %v6396
      %v6410 = vadd.f32 %v6376, %v6397
      %v6411 = vld [vmem:[#allocation4 + $0x72] sm:$0xff]
      %v6412 = vld [vmem:[#allocation4 + $0x7a] sm:$0xff]
      %v6413 = vld [vmem:[#allocation4 + $0x82] sm:$0x7f]
      %v6414 = vld [vmem:[%s2 + $0x27f] sm:$0x1]
      %v6415 = vlaneseq
      %v6416 = vshrl.u32 %v6415, 7
      %v6417 = vsub.s32 0, %v6416
      %v6418 = vrot.slane %v6414, %v6417
      %v6419 = vmul.f32 %v6201, %v6418
      %v6420 = vmul.f32 %v6202, %v6418
      %v6421 = vmul.f32 %v6203, %v6418
      %v6422 = vmul.f32 %v6204, %v6418
      %v6423 = vmul.f32 %v6205, %v6418
      %v6424 = vmul.f32 %v6206, %v6418
      %v6425 = vmul.f32 %v6207, %v6418
      %v6426 = vmul.f32 %v6208, %v6418
      %v6427 = vmul.f32 %v6309, %v6418
      %v6428 = vmul.f32 %v6310, %v6418
      %v6429 = vmul.f32 %v6411, %v6418
      %v6430 = vmul.f32 %v6412, %v6418
      %v6431 = vmul.f32 %v6413, %v6418
      %v6432 = vadd.f32 %v6398, %v6419
      %v6433 = vadd.f32 %v6399, %v6420
      %v6434 = vadd.f32 %v6400, %v6421
      %v6435 = vadd.f32 %v6401, %v6422
      %v6436 = vadd.f32 %v6402, %v6423
      %v6437 = vadd.f32 %v6403, %v6424
      %v6438 = vadd.f32 %v6404, %v6425
      %v6439 = vadd.f32 %v6405, %v6426
      %v6440 = vadd.f32 %v6406, %v6427
      %v6441 = vadd.f32 %v6407, %v6428
      %v6442 = vadd.f32 %v6408, %v6429
      %v6443 = vadd.f32 %v6409, %v6430
      %v6444 = vadd.f32 %v6410, %v6431
      %v6445 = vld [vmem:[%s2 + $0x280] sm:$0x1]
      %v6446 = vlaneseq
      %v6447 = vshrl.u32 %v6446, 7
      %v6448 = vsub.s32 0, %v6447
      %v6449 = vrot.slane %v6445, %v6448
      %v6450 = vadd.f32 %v6432, %v6449
      %v6451 = vadd.f32 %v6433, %v6449
      %v6452 = vadd.f32 %v6434, %v6449
      %v6453 = vadd.f32 %v6435, %v6449
      %v6454 = vadd.f32 %v6436, %v6449
      %v6455 = vadd.f32 %v6437, %v6449
      %v6456 = vadd.f32 %v6438, %v6449
      %v6457 = vadd.f32 %v6439, %v6449
      %v6458 = vadd.f32 %v6440, %v6449
      %v6459 = vadd.f32 %v6441, %v6449
      %v6460 = vadd.f32 %v6442, %v6449
      %v6461 = vadd.f32 %v6443, %v6449
      %v6462 = vadd.f32 %v6444, %v6449
      %v6463 = vmax.f32 %v6450, 0.0
      %v6464 = vmax.f32 %v6451, 0.0
      %v6465 = vmax.f32 %v6452, 0.0
      %v6466 = vmax.f32 %v6453, 0.0
      %v6467 = vmax.f32 %v6454, 0.0
      %v6468 = vmax.f32 %v6455, 0.0
      %v6469 = vmax.f32 %v6456, 0.0
      %v6470 = vmax.f32 %v6457, 0.0
      %v6471 = vmax.f32 %v6458, 0.0
      %v6472 = vmax.f32 %v6459, 0.0
      %v6473 = vmax.f32 %v6460, 0.0
      %v6474 = vmax.f32 %v6461, 0.0
      %v6475 = vmax.f32 %v6462, 0.0
      %6476 = vst.msk [vmem:[#allocation8] sm:$0xff] %vm237, %v6463
      %6477 = vst.msk [vmem:[#allocation8 + $0x8] sm:$0xff] %vm237, %v6464
      %6478 = vst.msk [vmem:[#allocation8 + $0x10] sm:$0xff] %vm237, %v6465
      %6479 = vst.msk [vmem:[#allocation8 + $0x18] sm:$0xff] %vm237, %v6466
      %6480 = vst.msk [vmem:[#allocation8 + $0x20] sm:$0xff] %vm237, %v6467
      %6481 = vst.msk [vmem:[#allocation8 + $0x28] sm:$0xff] %vm237, %v6468
      %6482 = vst.msk [vmem:[#allocation8 + $0x30] sm:$0xff] %vm237, %v6469
      %6483 = vst.msk [vmem:[#allocation8 + $0x38] sm:$0xff] %vm237, %v6470
      %6484 = vst.msk [vmem:[#allocation8 + $0x40] sm:$0xff] %vm237, %v6471
      %6485 = vst.msk [vmem:[#allocation8 + $0x48] sm:$0xff] %vm237, %v6472
      %6486 = vst.msk [vmem:[#allocation8 + $0x50] sm:$0xff] %vm237, %v6473
      %6487 = vst.msk [vmem:[#allocation8 + $0x58] sm:$0xff] %vm237, %v6474
      %6488 = vst.msk [vmem:[#allocation8 + $0x60] sm:$0x7f] %vm6120, %v6475
      %v6489 = vld [vmem:[#allocation8] sm:$0xff]
      %v6490 = vld [vmem:[#allocation8 + $0x8] sm:$0xff]
      %v6491 = vld [vmem:[#allocation8 + $0x10] sm:$0xff]
      %v6492 = vld [vmem:[#allocation8 + $0x18] sm:$0xff]
      %v6493 = vld [vmem:[#allocation8 + $0x20] sm:$0xff]
      %v6494 = vld [vmem:[#allocation8 + $0x28] sm:$0xff]
      %v6495 = vld [vmem:[#allocation8 + $0x30] sm:$0xff]
      %v6496 = vld [vmem:[#allocation8 + $0x38] sm:$0xff]
      %v6497 = vld [vmem:[#allocation8 + $0x40] sm:$0x1f]
      %v6498 = vld [vmem:[%s2 + $0x281] sm:$0xff]
      %v6499 = vld [vmem:[%s2 + $0x289] sm:$0xff]
      %v6500 = vld [vmem:[%s2 + $0x291] sm:$0xff]
      %v6501 = vld [vmem:[%s2 + $0x299] sm:$0xff]
      %v6502 = vld [vmem:[%s2 + $0x2a1] sm:$0xff]
      %v6503 = vld [vmem:[%s2 + $0x2a9] sm:$0xff]
      %v6504 = vld [vmem:[%s2 + $0x2b1] sm:$0xff]
      %v6505 = vld [vmem:[%s2 + $0x2b9] sm:$0xff]
      %v6506 = vld [vmem:[#allocation8 + $0x1] sm:$0xff]
      %v6507 = vld [vmem:[#allocation8 + $0x9] sm:$0xff]
      %v6508 = vld [vmem:[#allocation8 + $0x11] sm:$0xff]
      %v6509 = vld [vmem:[#allocation8 + $0x19] sm:$0xff]
      %v6510 = vld [vmem:[#allocation8 + $0x21] sm:$0xff]
      %v6511 = vld [vmem:[#allocation8 + $0x29] sm:$0xff]
      %v6512 = vld [vmem:[#allocation8 + $0x31] sm:$0xff]
      %v6513 = vld [vmem:[#allocation8 + $0x39] sm:$0xff]
      %v6514 = vld [vmem:[#allocation8 + $0x41] sm:$0x1f]
      %v6515 = vld [vmem:[%s2 + $0x2c1] sm:$0xff]
      %v6516 = vld [vmem:[%s2 + $0x2c9] sm:$0xff]
      %v6517 = vld [vmem:[%s2 + $0x2d1] sm:$0xff]
      %v6518 = vld [vmem:[%s2 + $0x2d9] sm:$0xff]
      %v6519 = vld [vmem:[%s2 + $0x2e1] sm:$0xff]
      %v6520 = vld [vmem:[%s2 + $0x2e9] sm:$0xff]
      %v6521 = vld [vmem:[%s2 + $0x2f1] sm:$0xff]
      %v6522 = vld [vmem:[%s2 + $0x2f9] sm:$0xff]
      %v6524 = vsel %vm237, %v6506, 0
      %v6527 = vsel %vm237, %v6507, 0
      %v6530 = vsel %vm237, %v6508, 0
      %v6533 = vsel %vm237, %v6509, 0
      %v6536 = vsel %vm237, %v6510, 0
      %v6539 = vsel %vm237, %v6511, 0
      %v6542 = vsel %vm237, %v6512, 0
      %v6545 = vsel %vm237, %v6513, 0
      %v6548 = vsel %vm237, %v6514, 0
      %6550 = vmatprep.subr.mxu0 0.0
      %6551 = vmatpush1.msra.mxu0 0.0
      %6552 = vmatprep.subr.mxu0 0.0
      %6553 = vmatpush1.msra.mxu0 0.0
      %6554 = vmatprep.subr.mxu0 0.0
      %6555 = vmatpush1.msra.mxu0 0.0
      %6556 = vmatprep.subr.mxu0 0.0
      %6557 = vmatpush1.msra.mxu0 0.0
      %6558 = vmatprep.subr.mxu0 0.0
      %6559 = vmatpush1.msra.mxu0 0.0
      %6560 = vmatprep.subr.mxu0 0.0
      %6561 = vmatpush1.msra.mxu0 0.0
      %6562 = vmatprep.subr.mxu0 0.0
      %6563 = vmatpush1.msra.mxu0 0.0
      %6564 = vmatprep.subr.mxu0 0.0
      %6565 = vmatpush1.msra.mxu0 0.0
      %6566 = vmatprep.subr.mxu0 0.0
      %6567 = vmatpush1.msra.mxu0 %v6522
      %6568 = vmatprep.subr.mxu0 0.0
      %6569 = vmatpush1.msra.mxu0 %v6521
      %6570 = vmatprep.subr.mxu0 0.0
      %6571 = vmatpush1.msra.mxu0 %v6520
      %6572 = vmatprep.subr.mxu0 0.0
      %6573 = vmatpush1.msra.mxu0 %v6519
      %6574 = vmatprep.subr.mxu0 0.0
      %6575 = vmatpush1.msra.mxu0 %v6518
      %6576 = vmatprep.subr.mxu0 0.0
      %6577 = vmatpush1.msra.mxu0 %v6517
      %6578 = vmatprep.subr.mxu0 0.0
      %6579 = vmatpush1.msra.mxu0 %v6516
      %6580 = vmatprep.subr.mxu0 0.0
      %6581 = vmatpush1.msra.mxu0 %v6515
      %6582 = vmatprep.subr.mxu0 0.0
      %6583 = vmatpush2.msra.mxu0 0.0
      %6584 = vmatprep.subr.mxu0 0.0
      %6585 = vmatpush2.msra.mxu0 0.0
      %6586 = vmatprep.subr.mxu0 0.0
      %6587 = vmatpush2.msra.mxu0 0.0
      %6588 = vmatprep.subr.mxu0 0.0
      %6589 = vmatpush2.msra.mxu0 0.0
      %6590 = vmatprep.subr.mxu0 0.0
      %6591 = vmatpush2.msra.mxu0 0.0
      %6592 = vmatprep.subr.mxu0 0.0
      %6593 = vmatpush2.msra.mxu0 0.0
      %6594 = vmatprep.subr.mxu0 0.0
      %6595 = vmatpush2.msra.mxu0 0.0
      %6596 = vmatprep.subr.mxu0 0.0
      %6597 = vmatpush2.msra.mxu0 0.0
      %6598 = vmatprep.subr.mxu0 0.0
      %6599 = vmatpush2.msra.mxu0 0.0
      %6600 = vmatprep.subr.mxu0 0.0
      %6601 = vmatpush2.msra.mxu0 0.0
      %6602 = vmatprep.subr.mxu0 0.0
      %6603 = vmatpush2.msra.mxu0 0.0
      %6604 = vmatprep.subr.mxu0 0.0
      %6605 = vmatpush2.msra.mxu0 0.0
      %6606 = vmatprep.subr.mxu0 0.0
      %6607 = vmatpush2.msra.mxu0 0.0
      %6608 = vmatprep.subr.mxu0 0.0
      %6609 = vmatpush2.msra.mxu0 0.0
      %6610 = vmatprep.subr.mxu0 0.0
      %6611 = vmatpush2.msra.mxu0 0.0
      %6612 = vmatprep.subr.mxu0 0.0
      %6613 = vmatpush2.msra.mxu0 0.0
      %6614 = vmatprep.mubr.f32.mxu0 0.0
      %6615 = vmatmul.mubr.f32.gmra.mxu0 %v6524
      %v6616 = vpop.f32.mrf.mxu0
      %v6617 = vadd.f32 0.0, %v6616
      %v6618 = vpop.f32.mrf.mxu0
      %6619 = vmatprep.mubr.f32.mxu0 0.0
      %6620 = vmatmul.mubr.f32.gmra.mxu0 %v6527
      %v6621 = vpop.f32.mrf.mxu0
      %v6622 = vadd.f32 0.0, %v6621
      %v6623 = vpop.f32.mrf.mxu0
      %6624 = vmatprep.mubr.f32.mxu0 0.0
      %6625 = vmatmul.mubr.f32.gmra.mxu0 %v6530
      %v6626 = vpop.f32.mrf.mxu0
      %v6627 = vadd.f32 0.0, %v6626
      %v6628 = vpop.f32.mrf.mxu0
      %6629 = vmatprep.mubr.f32.mxu0 0.0
      %6630 = vmatmul.mubr.f32.gmra.mxu0 %v6533
      %v6631 = vpop.f32.mrf.mxu0
      %v6632 = vadd.f32 0.0, %v6631
      %v6633 = vpop.f32.mrf.mxu0
      %6634 = vmatprep.mubr.f32.mxu0 0.0
      %6635 = vmatmul.mubr.f32.gmra.mxu0 %v6536
      %v6636 = vpop.f32.mrf.mxu0
      %v6637 = vadd.f32 0.0, %v6636
      %v6638 = vpop.f32.mrf.mxu0
      %6639 = vmatprep.mubr.f32.mxu0 0.0
      %6640 = vmatmul.mubr.f32.gmra.mxu0 %v6539
      %v6641 = vpop.f32.mrf.mxu0
      %v6642 = vadd.f32 0.0, %v6641
      %v6643 = vpop.f32.mrf.mxu0
      %6644 = vmatprep.mubr.f32.mxu0 0.0
      %6645 = vmatmul.mubr.f32.gmra.mxu0 %v6542
      %v6646 = vpop.f32.mrf.mxu0
      %v6647 = vadd.f32 0.0, %v6646
      %v6648 = vpop.f32.mrf.mxu0
      %6649 = vmatprep.mubr.f32.mxu0 0.0
      %6650 = vmatmul.mubr.f32.gmra.mxu0 %v6545
      %v6651 = vpop.f32.mrf.mxu0
      %v6652 = vadd.f32 0.0, %v6651
      %v6653 = vpop.f32.mrf.mxu0
      %6654 = vmatprep.mubr.f32.mxu0 0.0
      %6655 = vmatmul.mubr.f32.gmra.mxu0 %v6548
      %v6656 = vpop.f32.mrf.mxu0
      %v6657 = vadd.f32 0.0, %v6656
      %v6658 = vpop.f32.mrf.mxu0
      %6659 = vdwg.mxu0
      %v6661 = vsel %vm237, %v6489, 0
      %v6664 = vsel %vm237, %v6490, 0
      %v6667 = vsel %vm237, %v6491, 0
      %v6670 = vsel %vm237, %v6492, 0
      %v6673 = vsel %vm237, %v6493, 0
      %v6676 = vsel %vm237, %v6494, 0
      %v6679 = vsel %vm237, %v6495, 0
      %v6682 = vsel %vm237, %v6496, 0
      %v6685 = vsel %vm237, %v6497, 0
      %6687 = vmatprep.subr.mxu0 0.0
      %6688 = vmatpush1.msra.mxu0 0.0
      %6689 = vmatprep.subr.mxu0 0.0
      %6690 = vmatpush1.msra.mxu0 0.0
      %6691 = vmatprep.subr.mxu0 0.0
      %6692 = vmatpush1.msra.mxu0 0.0
      %6693 = vmatprep.subr.mxu0 0.0
      %6694 = vmatpush1.msra.mxu0 0.0
      %6695 = vmatprep.subr.mxu0 0.0
      %6696 = vmatpush1.msra.mxu0 0.0
      %6697 = vmatprep.subr.mxu0 0.0
      %6698 = vmatpush1.msra.mxu0 0.0
      %6699 = vmatprep.subr.mxu0 0.0
      %6700 = vmatpush1.msra.mxu0 0.0
      %6701 = vmatprep.subr.mxu0 0.0
      %6702 = vmatpush1.msra.mxu0 0.0
      %6703 = vmatprep.subr.mxu0 0.0
      %6704 = vmatpush1.msra.mxu0 %v6505
      %6705 = vmatprep.subr.mxu0 0.0
      %6706 = vmatpush1.msra.mxu0 %v6504
      %6707 = vmatprep.subr.mxu0 0.0
      %6708 = vmatpush1.msra.mxu0 %v6503
      %6709 = vmatprep.subr.mxu0 0.0
      %6710 = vmatpush1.msra.mxu0 %v6502
      %6711 = vmatprep.subr.mxu0 0.0
      %6712 = vmatpush1.msra.mxu0 %v6501
      %6713 = vmatprep.subr.mxu0 0.0
      %6714 = vmatpush1.msra.mxu0 %v6500
      %6715 = vmatprep.subr.mxu0 0.0
      %6716 = vmatpush1.msra.mxu0 %v6499
      %6717 = vmatprep.subr.mxu0 0.0
      %6718 = vmatpush1.msra.mxu0 %v6498
      %6719 = vmatprep.subr.mxu0 0.0
      %6720 = vmatpush2.msra.mxu0 0.0
      %6721 = vmatprep.subr.mxu0 0.0
      %6722 = vmatpush2.msra.mxu0 0.0
      %6723 = vmatprep.subr.mxu0 0.0
      %6724 = vmatpush2.msra.mxu0 0.0
      %6725 = vmatprep.subr.mxu0 0.0
      %6726 = vmatpush2.msra.mxu0 0.0
      %6727 = vmatprep.subr.mxu0 0.0
      %6728 = vmatpush2.msra.mxu0 0.0
      %6729 = vmatprep.subr.mxu0 0.0
      %6730 = vmatpush2.msra.mxu0 0.0
      %6731 = vmatprep.subr.mxu0 0.0
      %6732 = vmatpush2.msra.mxu0 0.0
      %6733 = vmatprep.subr.mxu0 0.0
      %6734 = vmatpush2.msra.mxu0 0.0
      %6735 = vmatprep.subr.mxu0 0.0
      %6736 = vmatpush2.msra.mxu0 0.0
      %6737 = vmatprep.subr.mxu0 0.0
      %6738 = vmatpush2.msra.mxu0 0.0
      %6739 = vmatprep.subr.mxu0 0.0
      %6740 = vmatpush2.msra.mxu0 0.0
      %6741 = vmatprep.subr.mxu0 0.0
      %6742 = vmatpush2.msra.mxu0 0.0
      %6743 = vmatprep.subr.mxu0 0.0
      %6744 = vmatpush2.msra.mxu0 0.0
      %6745 = vmatprep.subr.mxu0 0.0
      %6746 = vmatpush2.msra.mxu0 0.0
      %6747 = vmatprep.subr.mxu0 0.0
      %6748 = vmatpush2.msra.mxu0 0.0
      %6749 = vmatprep.subr.mxu0 0.0
      %6750 = vmatpush2.msra.mxu0 0.0
      %6751 = vmatprep.mubr.f32.mxu0 0.0
      %6752 = vmatmul.mubr.f32.gmra.mxu0 %v6661
      %v6753 = vpop.f32.mrf.mxu0
      %v6754 = vadd.f32 %v6617, %v6753
      %v6755 = vpop.f32.mrf.mxu0
      %6756 = vmatprep.mubr.f32.mxu0 0.0
      %6757 = vmatmul.mubr.f32.gmra.mxu0 %v6664
      %v6758 = vpop.f32.mrf.mxu0
      %v6759 = vadd.f32 %v6622, %v6758
      %v6760 = vpop.f32.mrf.mxu0
      %6761 = vmatprep.mubr.f32.mxu0 0.0
      %6762 = vmatmul.mubr.f32.gmra.mxu0 %v6667
      %v6763 = vpop.f32.mrf.mxu0
      %v6764 = vadd.f32 %v6627, %v6763
      %v6765 = vpop.f32.mrf.mxu0
      %6766 = vmatprep.mubr.f32.mxu0 0.0
      %6767 = vmatmul.mubr.f32.gmra.mxu0 %v6670
      %v6768 = vpop.f32.mrf.mxu0
      %v6769 = vadd.f32 %v6632, %v6768
      %v6770 = vpop.f32.mrf.mxu0
      %6771 = vmatprep.mubr.f32.mxu0 0.0
      %6772 = vmatmul.mubr.f32.gmra.mxu0 %v6673
      %v6773 = vpop.f32.mrf.mxu0
      %v6774 = vadd.f32 %v6637, %v6773
      %v6775 = vpop.f32.mrf.mxu0
      %6776 = vmatprep.mubr.f32.mxu0 0.0
      %6777 = vmatmul.mubr.f32.gmra.mxu0 %v6676
      %v6778 = vpop.f32.mrf.mxu0
      %v6779 = vadd.f32 %v6642, %v6778
      %v6780 = vpop.f32.mrf.mxu0
      %6781 = vmatprep.mubr.f32.mxu0 0.0
      %6782 = vmatmul.mubr.f32.gmra.mxu0 %v6679
      %v6783 = vpop.f32.mrf.mxu0
      %v6784 = vadd.f32 %v6647, %v6783
      %v6785 = vpop.f32.mrf.mxu0
      %6786 = vmatprep.mubr.f32.mxu0 0.0
      %6787 = vmatmul.mubr.f32.gmra.mxu0 %v6682
      %v6788 = vpop.f32.mrf.mxu0
      %v6789 = vadd.f32 %v6652, %v6788
      %v6790 = vpop.f32.mrf.mxu0
      %6791 = vmatprep.mubr.f32.mxu0 0.0
      %6792 = vmatmul.mubr.f32.gmra.mxu0 %v6685
      %v6793 = vpop.f32.mrf.mxu0
      %v6794 = vadd.f32 %v6657, %v6793
      %v6795 = vpop.f32.mrf.mxu0
      %6796 = vdwg.mxu0
      %v6797 = vld [vmem:[#allocation8 + $0x2] sm:$0xff]
      %v6798 = vld [vmem:[#allocation8 + $0xa] sm:$0xff]
      %v6799 = vld [vmem:[#allocation8 + $0x12] sm:$0xff]
      %v6800 = vld [vmem:[#allocation8 + $0x1a] sm:$0xff]
      %v6801 = vld [vmem:[#allocation8 + $0x22] sm:$0xff]
      %v6802 = vld [vmem:[#allocation8 + $0x2a] sm:$0xff]
      %v6803 = vld [vmem:[#allocation8 + $0x32] sm:$0xff]
      %v6804 = vld [vmem:[#allocation8 + $0x3a] sm:$0xff]
      %v6805 = vld [vmem:[#allocation8 + $0x42] sm:$0x1f]
      %v6806 = vld [vmem:[%s2 + $0x301] sm:$0xff]
      %v6807 = vld [vmem:[%s2 + $0x309] sm:$0xff]
      %v6808 = vld [vmem:[%s2 + $0x311] sm:$0xff]
      %v6809 = vld [vmem:[%s2 + $0x319] sm:$0xff]
      %v6810 = vld [vmem:[%s2 + $0x321] sm:$0xff]
      %v6811 = vld [vmem:[%s2 + $0x329] sm:$0xff]
      %v6812 = vld [vmem:[%s2 + $0x331] sm:$0xff]
      %v6813 = vld [vmem:[%s2 + $0x339] sm:$0xff]
      %v6815 = vsel %vm237, %v6797, 0
      %v6818 = vsel %vm237, %v6798, 0
      %v6821 = vsel %vm237, %v6799, 0
      %v6824 = vsel %vm237, %v6800, 0
      %v6827 = vsel %vm237, %v6801, 0
      %v6830 = vsel %vm237, %v6802, 0
      %v6833 = vsel %vm237, %v6803, 0
      %v6836 = vsel %vm237, %v6804, 0
      %v6839 = vsel %vm237, %v6805, 0
      %6841 = vmatprep.subr.mxu0 0.0
      %6842 = vmatpush1.msra.mxu0 0.0
      %6843 = vmatprep.subr.mxu0 0.0
      %6844 = vmatpush1.msra.mxu0 0.0
      %6845 = vmatprep.subr.mxu0 0.0
      %6846 = vmatpush1.msra.mxu0 0.0
      %6847 = vmatprep.subr.mxu0 0.0
      %6848 = vmatpush1.msra.mxu0 0.0
      %6849 = vmatprep.subr.mxu0 0.0
      %6850 = vmatpush1.msra.mxu0 0.0
      %6851 = vmatprep.subr.mxu0 0.0
      %6852 = vmatpush1.msra.mxu0 0.0
      %6853 = vmatprep.subr.mxu0 0.0
      %6854 = vmatpush1.msra.mxu0 0.0
      %6855 = vmatprep.subr.mxu0 0.0
      %6856 = vmatpush1.msra.mxu0 0.0
      %6857 = vmatprep.subr.mxu0 0.0
      %6858 = vmatpush1.msra.mxu0 %v6813
      %6859 = vmatprep.subr.mxu0 0.0
      %6860 = vmatpush1.msra.mxu0 %v6812
      %6861 = vmatprep.subr.mxu0 0.0
      %6862 = vmatpush1.msra.mxu0 %v6811
      %6863 = vmatprep.subr.mxu0 0.0
      %6864 = vmatpush1.msra.mxu0 %v6810
      %6865 = vmatprep.subr.mxu0 0.0
      %6866 = vmatpush1.msra.mxu0 %v6809
      %6867 = vmatprep.subr.mxu0 0.0
      %6868 = vmatpush1.msra.mxu0 %v6808
      %6869 = vmatprep.subr.mxu0 0.0
      %6870 = vmatpush1.msra.mxu0 %v6807
      %6871 = vmatprep.subr.mxu0 0.0
      %6872 = vmatpush1.msra.mxu0 %v6806
      %6873 = vmatprep.subr.mxu0 0.0
      %6874 = vmatpush2.msra.mxu0 0.0
      %6875 = vmatprep.subr.mxu0 0.0
      %6876 = vmatpush2.msra.mxu0 0.0
      %6877 = vmatprep.subr.mxu0 0.0
      %6878 = vmatpush2.msra.mxu0 0.0
      %6879 = vmatprep.subr.mxu0 0.0
      %6880 = vmatpush2.msra.mxu0 0.0
      %6881 = vmatprep.subr.mxu0 0.0
      %6882 = vmatpush2.msra.mxu0 0.0
      %6883 = vmatprep.subr.mxu0 0.0
      %6884 = vmatpush2.msra.mxu0 0.0
      %6885 = vmatprep.subr.mxu0 0.0
      %6886 = vmatpush2.msra.mxu0 0.0
      %6887 = vmatprep.subr.mxu0 0.0
      %6888 = vmatpush2.msra.mxu0 0.0
      %6889 = vmatprep.subr.mxu0 0.0
      %6890 = vmatpush2.msra.mxu0 0.0
      %6891 = vmatprep.subr.mxu0 0.0
      %6892 = vmatpush2.msra.mxu0 0.0
      %6893 = vmatprep.subr.mxu0 0.0
      %6894 = vmatpush2.msra.mxu0 0.0
      %6895 = vmatprep.subr.mxu0 0.0
      %6896 = vmatpush2.msra.mxu0 0.0
      %6897 = vmatprep.subr.mxu0 0.0
      %6898 = vmatpush2.msra.mxu0 0.0
      %6899 = vmatprep.subr.mxu0 0.0
      %6900 = vmatpush2.msra.mxu0 0.0
      %6901 = vmatprep.subr.mxu0 0.0
      %6902 = vmatpush2.msra.mxu0 0.0
      %6903 = vmatprep.subr.mxu0 0.0
      %6904 = vmatpush2.msra.mxu0 0.0
      %6905 = vmatprep.mubr.f32.mxu0 0.0
      %6906 = vmatmul.mubr.f32.gmra.mxu0 %v6815
      %v6907 = vpop.f32.mrf.mxu0
      %v6908 = vadd.f32 0.0, %v6907
      %v6909 = vpop.f32.mrf.mxu0
      %6910 = vmatprep.mubr.f32.mxu0 0.0
      %6911 = vmatmul.mubr.f32.gmra.mxu0 %v6818
      %v6912 = vpop.f32.mrf.mxu0
      %v6913 = vadd.f32 0.0, %v6912
      %v6914 = vpop.f32.mrf.mxu0
      %6915 = vmatprep.mubr.f32.mxu0 0.0
      %6916 = vmatmul.mubr.f32.gmra.mxu0 %v6821
      %v6917 = vpop.f32.mrf.mxu0
      %v6918 = vadd.f32 0.0, %v6917
      %v6919 = vpop.f32.mrf.mxu0
      %6920 = vmatprep.mubr.f32.mxu0 0.0
      %6921 = vmatmul.mubr.f32.gmra.mxu0 %v6824
      %v6922 = vpop.f32.mrf.mxu0
      %v6923 = vadd.f32 0.0, %v6922
      %v6924 = vpop.f32.mrf.mxu0
      %6925 = vmatprep.mubr.f32.mxu0 0.0
      %6926 = vmatmul.mubr.f32.gmra.mxu0 %v6827
      %v6927 = vpop.f32.mrf.mxu0
      %v6928 = vadd.f32 0.0, %v6927
      %v6929 = vpop.f32.mrf.mxu0
      %6930 = vmatprep.mubr.f32.mxu0 0.0
      %6931 = vmatmul.mubr.f32.gmra.mxu0 %v6830
      %v6932 = vpop.f32.mrf.mxu0
      %v6933 = vadd.f32 0.0, %v6932
      %v6934 = vpop.f32.mrf.mxu0
      %6935 = vmatprep.mubr.f32.mxu0 0.0
      %6936 = vmatmul.mubr.f32.gmra.mxu0 %v6833
      %v6937 = vpop.f32.mrf.mxu0
      %v6938 = vadd.f32 0.0, %v6937
      %v6939 = vpop.f32.mrf.mxu0
      %6940 = vmatprep.mubr.f32.mxu0 0.0
      %6941 = vmatmul.mubr.f32.gmra.mxu0 %v6836
      %v6942 = vpop.f32.mrf.mxu0
      %v6943 = vadd.f32 0.0, %v6942
      %v6944 = vpop.f32.mrf.mxu0
      %6945 = vmatprep.mubr.f32.mxu0 0.0
      %6946 = vmatmul.mubr.f32.gmra.mxu0 %v6839
      %v6947 = vpop.f32.mrf.mxu0
      %v6948 = vadd.f32 0.0, %v6947
      %v6949 = vpop.f32.mrf.mxu0
      %6950 = vdwg.mxu0
      %v6951 = vadd.f32 %v6754, %v6908
      %v6952 = vadd.f32 %v6759, %v6913
      %v6953 = vadd.f32 %v6764, %v6918
      %v6954 = vadd.f32 %v6769, %v6923
      %v6955 = vadd.f32 %v6774, %v6928
      %v6956 = vadd.f32 %v6779, %v6933
      %v6957 = vadd.f32 %v6784, %v6938
      %v6958 = vadd.f32 %v6789, %v6943
      %v6959 = vadd.f32 %v6794, %v6948
      %v6960 = vld [vmem:[#allocation8 + $0x10] sm:$0xff]
      %v6961 = vld [vmem:[#allocation8 + $0x18] sm:$0xff]
      %v6962 = vld [vmem:[#allocation8 + $0x20] sm:$0xff]
      %v6963 = vld [vmem:[#allocation8 + $0x28] sm:$0xff]
      %v6964 = vld [vmem:[#allocation8 + $0x30] sm:$0xff]
      %v6965 = vld [vmem:[#allocation8 + $0x38] sm:$0xff]
      %v6966 = vld [vmem:[#allocation8 + $0x40] sm:$0xff]
      %v6967 = vld [vmem:[#allocation8 + $0x48] sm:$0xff]
      %v6968 = vld [vmem:[#allocation8 + $0x50] sm:$0x1f]
      %v6969 = vld [vmem:[%s2 + $0x341] sm:$0xff]
      %v6970 = vld [vmem:[%s2 + $0x349] sm:$0xff]
      %v6971 = vld [vmem:[%s2 + $0x351] sm:$0xff]
      %v6972 = vld [vmem:[%s2 + $0x359] sm:$0xff]
      %v6973 = vld [vmem:[%s2 + $0x361] sm:$0xff]
      %v6974 = vld [vmem:[%s2 + $0x369] sm:$0xff]
      %v6975 = vld [vmem:[%s2 + $0x371] sm:$0xff]
      %v6976 = vld [vmem:[%s2 + $0x379] sm:$0xff]
      %v6978 = vsel %vm237, %v6960, 0
      %v6981 = vsel %vm237, %v6961, 0
      %v6984 = vsel %vm237, %v6962, 0
      %v6987 = vsel %vm237, %v6963, 0
      %v6990 = vsel %vm237, %v6964, 0
      %v6993 = vsel %vm237, %v6965, 0
      %v6996 = vsel %vm237, %v6966, 0
      %v6999 = vsel %vm237, %v6967, 0
      %v7002 = vsel %vm237, %v6968, 0
      %7004 = vmatprep.subr.mxu0 0.0
      %7005 = vmatpush1.msra.mxu0 0.0
      %7006 = vmatprep.subr.mxu0 0.0
      %7007 = vmatpush1.msra.mxu0 0.0
      %7008 = vmatprep.subr.mxu0 0.0
      %7009 = vmatpush1.msra.mxu0 0.0
      %7010 = vmatprep.subr.mxu0 0.0
      %7011 = vmatpush1.msra.mxu0 0.0
      %7012 = vmatprep.subr.mxu0 0.0
      %7013 = vmatpush1.msra.mxu0 0.0
      %7014 = vmatprep.subr.mxu0 0.0
      %7015 = vmatpush1.msra.mxu0 0.0
      %7016 = vmatprep.subr.mxu0 0.0
      %7017 = vmatpush1.msra.mxu0 0.0
      %7018 = vmatprep.subr.mxu0 0.0
      %7019 = vmatpush1.msra.mxu0 0.0
      %7020 = vmatprep.subr.mxu0 0.0
      %7021 = vmatpush1.msra.mxu0 %v6976
      %7022 = vmatprep.subr.mxu0 0.0
      %7023 = vmatpush1.msra.mxu0 %v6975
      %7024 = vmatprep.subr.mxu0 0.0
      %7025 = vmatpush1.msra.mxu0 %v6974
      %7026 = vmatprep.subr.mxu0 0.0
      %7027 = vmatpush1.msra.mxu0 %v6973
      %7028 = vmatprep.subr.mxu0 0.0
      %7029 = vmatpush1.msra.mxu0 %v6972
      %7030 = vmatprep.subr.mxu0 0.0
      %7031 = vmatpush1.msra.mxu0 %v6971
      %7032 = vmatprep.subr.mxu0 0.0
      %7033 = vmatpush1.msra.mxu0 %v6970
      %7034 = vmatprep.subr.mxu0 0.0
      %7035 = vmatpush1.msra.mxu0 %v6969
      %7036 = vmatprep.subr.mxu0 0.0
      %7037 = vmatpush2.msra.mxu0 0.0
      %7038 = vmatprep.subr.mxu0 0.0
      %7039 = vmatpush2.msra.mxu0 0.0
      %7040 = vmatprep.subr.mxu0 0.0
      %7041 = vmatpush2.msra.mxu0 0.0
      %7042 = vmatprep.subr.mxu0 0.0
      %7043 = vmatpush2.msra.mxu0 0.0
      %7044 = vmatprep.subr.mxu0 0.0
      %7045 = vmatpush2.msra.mxu0 0.0
      %7046 = vmatprep.subr.mxu0 0.0
      %7047 = vmatpush2.msra.mxu0 0.0
      %7048 = vmatprep.subr.mxu0 0.0
      %7049 = vmatpush2.msra.mxu0 0.0
      %7050 = vmatprep.subr.mxu0 0.0
      %7051 = vmatpush2.msra.mxu0 0.0
      %7052 = vmatprep.subr.mxu0 0.0
      %7053 = vmatpush2.msra.mxu0 0.0
      %7054 = vmatprep.subr.mxu0 0.0
      %7055 = vmatpush2.msra.mxu0 0.0
      %7056 = vmatprep.subr.mxu0 0.0
      %7057 = vmatpush2.msra.mxu0 0.0
      %7058 = vmatprep.subr.mxu0 0.0
      %7059 = vmatpush2.msra.mxu0 0.0
      %7060 = vmatprep.subr.mxu0 0.0
      %7061 = vmatpush2.msra.mxu0 0.0
      %7062 = vmatprep.subr.mxu0 0.0
      %7063 = vmatpush2.msra.mxu0 0.0
      %7064 = vmatprep.subr.mxu0 0.0
      %7065 = vmatpush2.msra.mxu0 0.0
      %7066 = vmatprep.subr.mxu0 0.0
      %7067 = vmatpush2.msra.mxu0 0.0
      %7068 = vmatprep.mubr.f32.mxu0 0.0
      %7069 = vmatmul.mubr.f32.gmra.mxu0 %v6978
      %v7070 = vpop.f32.mrf.mxu0
      %v7071 = vadd.f32 0.0, %v7070
      %v7072 = vpop.f32.mrf.mxu0
      %7073 = vmatprep.mubr.f32.mxu0 0.0
      %7074 = vmatmul.mubr.f32.gmra.mxu0 %v6981
      %v7075 = vpop.f32.mrf.mxu0
      %v7076 = vadd.f32 0.0, %v7075
      %v7077 = vpop.f32.mrf.mxu0
      %7078 = vmatprep.mubr.f32.mxu0 0.0
      %7079 = vmatmul.mubr.f32.gmra.mxu0 %v6984
      %v7080 = vpop.f32.mrf.mxu0
      %v7081 = vadd.f32 0.0, %v7080
      %v7082 = vpop.f32.mrf.mxu0
      %7083 = vmatprep.mubr.f32.mxu0 0.0
      %7084 = vmatmul.mubr.f32.gmra.mxu0 %v6987
      %v7085 = vpop.f32.mrf.mxu0
      %v7086 = vadd.f32 0.0, %v7085
      %v7087 = vpop.f32.mrf.mxu0
      %7088 = vmatprep.mubr.f32.mxu0 0.0
      %7089 = vmatmul.mubr.f32.gmra.mxu0 %v6990
      %v7090 = vpop.f32.mrf.mxu0
      %v7091 = vadd.f32 0.0, %v7090
      %v7092 = vpop.f32.mrf.mxu0
      %7093 = vmatprep.mubr.f32.mxu0 0.0
      %7094 = vmatmul.mubr.f32.gmra.mxu0 %v6993
      %v7095 = vpop.f32.mrf.mxu0
      %v7096 = vadd.f32 0.0, %v7095
      %v7097 = vpop.f32.mrf.mxu0
      %7098 = vmatprep.mubr.f32.mxu0 0.0
      %7099 = vmatmul.mubr.f32.gmra.mxu0 %v6996
      %v7100 = vpop.f32.mrf.mxu0
      %v7101 = vadd.f32 0.0, %v7100
      %v7102 = vpop.f32.mrf.mxu0
      %7103 = vmatprep.mubr.f32.mxu0 0.0
      %7104 = vmatmul.mubr.f32.gmra.mxu0 %v6999
      %v7105 = vpop.f32.mrf.mxu0
      %v7106 = vadd.f32 0.0, %v7105
      %v7107 = vpop.f32.mrf.mxu0
      %7108 = vmatprep.mubr.f32.mxu0 0.0
      %7109 = vmatmul.mubr.f32.gmra.mxu0 %v7002
      %v7110 = vpop.f32.mrf.mxu0
      %v7111 = vadd.f32 0.0, %v7110
      %v7112 = vpop.f32.mrf.mxu0
      %7113 = vdwg.mxu0
      %v7114 = vadd.f32 %v6951, %v7071
      %v7115 = vadd.f32 %v6952, %v7076
      %v7116 = vadd.f32 %v6953, %v7081
      %v7117 = vadd.f32 %v6954, %v7086
      %v7118 = vadd.f32 %v6955, %v7091
      %v7119 = vadd.f32 %v6956, %v7096
      %v7120 = vadd.f32 %v6957, %v7101
      %v7121 = vadd.f32 %v6958, %v7106
      %v7122 = vadd.f32 %v6959, %v7111
      %v7123 = vld [vmem:[#allocation8 + $0x11] sm:$0xff]
      %v7124 = vld [vmem:[#allocation8 + $0x19] sm:$0xff]
      %v7125 = vld [vmem:[#allocation8 + $0x21] sm:$0xff]
      %v7126 = vld [vmem:[#allocation8 + $0x29] sm:$0xff]
      %v7127 = vld [vmem:[#allocation8 + $0x31] sm:$0xff]
      %v7128 = vld [vmem:[#allocation8 + $0x39] sm:$0xff]
      %v7129 = vld [vmem:[#allocation8 + $0x41] sm:$0xff]
      %v7130 = vld [vmem:[#allocation8 + $0x49] sm:$0xff]
      %v7131 = vld [vmem:[#allocation8 + $0x51] sm:$0x1f]
      %v7132 = vld [vmem:[%s2 + $0x381] sm:$0xff]
      %v7133 = vld [vmem:[%s2 + $0x389] sm:$0xff]
      %v7134 = vld [vmem:[%s2 + $0x391] sm:$0xff]
      %v7135 = vld [vmem:[%s2 + $0x399] sm:$0xff]
      %v7136 = vld [vmem:[%s2 + $0x3a1] sm:$0xff]
      %v7137 = vld [vmem:[%s2 + $0x3a9] sm:$0xff]
      %v7138 = vld [vmem:[%s2 + $0x3b1] sm:$0xff]
      %v7139 = vld [vmem:[%s2 + $0x3b9] sm:$0xff]
      %v7141 = vsel %vm237, %v7123, 0
      %v7144 = vsel %vm237, %v7124, 0
      %v7147 = vsel %vm237, %v7125, 0
      %v7150 = vsel %vm237, %v7126, 0
      %v7153 = vsel %vm237, %v7127, 0
      %v7156 = vsel %vm237, %v7128, 0
      %v7159 = vsel %vm237, %v7129, 0
      %v7162 = vsel %vm237, %v7130, 0
      %v7165 = vsel %vm237, %v7131, 0
      %7167 = vmatprep.subr.mxu0 0.0
      %7168 = vmatpush1.msra.mxu0 0.0
      %7169 = vmatprep.subr.mxu0 0.0
      %7170 = vmatpush1.msra.mxu0 0.0
      %7171 = vmatprep.subr.mxu0 0.0
      %7172 = vmatpush1.msra.mxu0 0.0
      %7173 = vmatprep.subr.mxu0 0.0
      %7174 = vmatpush1.msra.mxu0 0.0
      %7175 = vmatprep.subr.mxu0 0.0
      %7176 = vmatpush1.msra.mxu0 0.0
      %7177 = vmatprep.subr.mxu0 0.0
      %7178 = vmatpush1.msra.mxu0 0.0
      %7179 = vmatprep.subr.mxu0 0.0
      %7180 = vmatpush1.msra.mxu0 0.0
      %7181 = vmatprep.subr.mxu0 0.0
      %7182 = vmatpush1.msra.mxu0 0.0
      %7183 = vmatprep.subr.mxu0 0.0
      %7184 = vmatpush1.msra.mxu0 %v7139
      %7185 = vmatprep.subr.mxu0 0.0
      %7186 = vmatpush1.msra.mxu0 %v7138
      %7187 = vmatprep.subr.mxu0 0.0
      %7188 = vmatpush1.msra.mxu0 %v7137
      %7189 = vmatprep.subr.mxu0 0.0
      %7190 = vmatpush1.msra.mxu0 %v7136
      %7191 = vmatprep.subr.mxu0 0.0
      %7192 = vmatpush1.msra.mxu0 %v7135
      %7193 = vmatprep.subr.mxu0 0.0
      %7194 = vmatpush1.msra.mxu0 %v7134
      %7195 = vmatprep.subr.mxu0 0.0
      %7196 = vmatpush1.msra.mxu0 %v7133
      %7197 = vmatprep.subr.mxu0 0.0
      %7198 = vmatpush1.msra.mxu0 %v7132
      %7199 = vmatprep.subr.mxu0 0.0
      %7200 = vmatpush2.msra.mxu0 0.0
      %7201 = vmatprep.subr.mxu0 0.0
      %7202 = vmatpush2.msra.mxu0 0.0
      %7203 = vmatprep.subr.mxu0 0.0
      %7204 = vmatpush2.msra.mxu0 0.0
      %7205 = vmatprep.subr.mxu0 0.0
      %7206 = vmatpush2.msra.mxu0 0.0
      %7207 = vmatprep.subr.mxu0 0.0
      %7208 = vmatpush2.msra.mxu0 0.0
      %7209 = vmatprep.subr.mxu0 0.0
      %7210 = vmatpush2.msra.mxu0 0.0
      %7211 = vmatprep.subr.mxu0 0.0
      %7212 = vmatpush2.msra.mxu0 0.0
      %7213 = vmatprep.subr.mxu0 0.0
      %7214 = vmatpush2.msra.mxu0 0.0
      %7215 = vmatprep.subr.mxu0 0.0
      %7216 = vmatpush2.msra.mxu0 0.0
      %7217 = vmatprep.subr.mxu0 0.0
      %7218 = vmatpush2.msra.mxu0 0.0
      %7219 = vmatprep.subr.mxu0 0.0
      %7220 = vmatpush2.msra.mxu0 0.0
      %7221 = vmatprep.subr.mxu0 0.0
      %7222 = vmatpush2.msra.mxu0 0.0
      %7223 = vmatprep.subr.mxu0 0.0
      %7224 = vmatpush2.msra.mxu0 0.0
      %7225 = vmatprep.subr.mxu0 0.0
      %7226 = vmatpush2.msra.mxu0 0.0
      %7227 = vmatprep.subr.mxu0 0.0
      %7228 = vmatpush2.msra.mxu0 0.0
      %7229 = vmatprep.subr.mxu0 0.0
      %7230 = vmatpush2.msra.mxu0 0.0
      %7231 = vmatprep.mubr.f32.mxu0 0.0
      %7232 = vmatmul.mubr.f32.gmra.mxu0 %v7141
      %v7233 = vpop.f32.mrf.mxu0
      %v7234 = vadd.f32 0.0, %v7233
      %v7235 = vpop.f32.mrf.mxu0
      %7236 = vmatprep.mubr.f32.mxu0 0.0
      %7237 = vmatmul.mubr.f32.gmra.mxu0 %v7144
      %v7238 = vpop.f32.mrf.mxu0
      %v7239 = vadd.f32 0.0, %v7238
      %v7240 = vpop.f32.mrf.mxu0
      %7241 = vmatprep.mubr.f32.mxu0 0.0
      %7242 = vmatmul.mubr.f32.gmra.mxu0 %v7147
      %v7243 = vpop.f32.mrf.mxu0
      %v7244 = vadd.f32 0.0, %v7243
      %v7245 = vpop.f32.mrf.mxu0
      %7246 = vmatprep.mubr.f32.mxu0 0.0
      %7247 = vmatmul.mubr.f32.gmra.mxu0 %v7150
      %v7248 = vpop.f32.mrf.mxu0
      %v7249 = vadd.f32 0.0, %v7248
      %v7250 = vpop.f32.mrf.mxu0
      %7251 = vmatprep.mubr.f32.mxu0 0.0
      %7252 = vmatmul.mubr.f32.gmra.mxu0 %v7153
      %v7253 = vpop.f32.mrf.mxu0
      %v7254 = vadd.f32 0.0, %v7253
      %v7255 = vpop.f32.mrf.mxu0
      %7256 = vmatprep.mubr.f32.mxu0 0.0
      %7257 = vmatmul.mubr.f32.gmra.mxu0 %v7156
      %v7258 = vpop.f32.mrf.mxu0
      %v7259 = vadd.f32 0.0, %v7258
      %v7260 = vpop.f32.mrf.mxu0
      %7261 = vmatprep.mubr.f32.mxu0 0.0
      %7262 = vmatmul.mubr.f32.gmra.mxu0 %v7159
      %v7263 = vpop.f32.mrf.mxu0
      %v7264 = vadd.f32 0.0, %v7263
      %v7265 = vpop.f32.mrf.mxu0
      %7266 = vmatprep.mubr.f32.mxu0 0.0
      %7267 = vmatmul.mubr.f32.gmra.mxu0 %v7162
      %v7268 = vpop.f32.mrf.mxu0
      %v7269 = vadd.f32 0.0, %v7268
      %v7270 = vpop.f32.mrf.mxu0
      %7271 = vmatprep.mubr.f32.mxu0 0.0
      %7272 = vmatmul.mubr.f32.gmra.mxu0 %v7165
      %v7273 = vpop.f32.mrf.mxu0
      %v7274 = vadd.f32 0.0, %v7273
      %v7275 = vpop.f32.mrf.mxu0
      %7276 = vdwg.mxu0
      %v7277 = vadd.f32 %v7114, %v7234
      %v7278 = vadd.f32 %v7115, %v7239
      %v7279 = vadd.f32 %v7116, %v7244
      %v7280 = vadd.f32 %v7117, %v7249
      %v7281 = vadd.f32 %v7118, %v7254
      %v7282 = vadd.f32 %v7119, %v7259
      %v7283 = vadd.f32 %v7120, %v7264
      %v7284 = vadd.f32 %v7121, %v7269
      %v7285 = vadd.f32 %v7122, %v7274
      %v7286 = vld [vmem:[#allocation8 + $0x12] sm:$0xff]
      %v7287 = vld [vmem:[#allocation8 + $0x1a] sm:$0xff]
      %v7288 = vld [vmem:[#allocation8 + $0x22] sm:$0xff]
      %v7289 = vld [vmem:[#allocation8 + $0x2a] sm:$0xff]
      %v7290 = vld [vmem:[#allocation8 + $0x32] sm:$0xff]
      %v7291 = vld [vmem:[#allocation8 + $0x3a] sm:$0xff]
      %v7292 = vld [vmem:[#allocation8 + $0x42] sm:$0xff]
      %v7293 = vld [vmem:[#allocation8 + $0x4a] sm:$0xff]
      %v7294 = vld [vmem:[#allocation8 + $0x52] sm:$0x1f]
      %v7295 = vld [vmem:[%s2 + $0x3c1] sm:$0xff]
      %v7296 = vld [vmem:[%s2 + $0x3c9] sm:$0xff]
      %v7297 = vld [vmem:[%s2 + $0x3d1] sm:$0xff]
      %v7298 = vld [vmem:[%s2 + $0x3d9] sm:$0xff]
      %v7299 = vld [vmem:[%s2 + $0x3e1] sm:$0xff]
      %v7300 = vld [vmem:[%s2 + $0x3e9] sm:$0xff]
      %v7301 = vld [vmem:[%s2 + $0x3f1] sm:$0xff]
      %v7302 = vld [vmem:[%s2 + $0x3f9] sm:$0xff]
      %v7304 = vsel %vm237, %v7286, 0
      %v7307 = vsel %vm237, %v7287, 0
      %v7310 = vsel %vm237, %v7288, 0
      %v7313 = vsel %vm237, %v7289, 0
      %v7316 = vsel %vm237, %v7290, 0
      %v7319 = vsel %vm237, %v7291, 0
      %v7322 = vsel %vm237, %v7292, 0
      %v7325 = vsel %vm237, %v7293, 0
      %v7328 = vsel %vm237, %v7294, 0
      %7330 = vmatprep.subr.mxu0 0.0
      %7331 = vmatpush1.msra.mxu0 0.0
      %7332 = vmatprep.subr.mxu0 0.0
      %7333 = vmatpush1.msra.mxu0 0.0
      %7334 = vmatprep.subr.mxu0 0.0
      %7335 = vmatpush1.msra.mxu0 0.0
      %7336 = vmatprep.subr.mxu0 0.0
      %7337 = vmatpush1.msra.mxu0 0.0
      %7338 = vmatprep.subr.mxu0 0.0
      %7339 = vmatpush1.msra.mxu0 0.0
      %7340 = vmatprep.subr.mxu0 0.0
      %7341 = vmatpush1.msra.mxu0 0.0
      %7342 = vmatprep.subr.mxu0 0.0
      %7343 = vmatpush1.msra.mxu0 0.0
      %7344 = vmatprep.subr.mxu0 0.0
      %7345 = vmatpush1.msra.mxu0 0.0
      %7346 = vmatprep.subr.mxu0 0.0
      %7347 = vmatpush1.msra.mxu0 %v7302
      %7348 = vmatprep.subr.mxu0 0.0
      %7349 = vmatpush1.msra.mxu0 %v7301
      %7350 = vmatprep.subr.mxu0 0.0
      %7351 = vmatpush1.msra.mxu0 %v7300
      %7352 = vmatprep.subr.mxu0 0.0
      %7353 = vmatpush1.msra.mxu0 %v7299
      %7354 = vmatprep.subr.mxu0 0.0
      %7355 = vmatpush1.msra.mxu0 %v7298
      %7356 = vmatprep.subr.mxu0 0.0
      %7357 = vmatpush1.msra.mxu0 %v7297
      %7358 = vmatprep.subr.mxu0 0.0
      %7359 = vmatpush1.msra.mxu0 %v7296
      %7360 = vmatprep.subr.mxu0 0.0
      %7361 = vmatpush1.msra.mxu0 %v7295
      %7362 = vmatprep.subr.mxu0 0.0
      %7363 = vmatpush2.msra.mxu0 0.0
      %7364 = vmatprep.subr.mxu0 0.0
      %7365 = vmatpush2.msra.mxu0 0.0
      %7366 = vmatprep.subr.mxu0 0.0
      %7367 = vmatpush2.msra.mxu0 0.0
      %7368 = vmatprep.subr.mxu0 0.0
      %7369 = vmatpush2.msra.mxu0 0.0
      %7370 = vmatprep.subr.mxu0 0.0
      %7371 = vmatpush2.msra.mxu0 0.0
      %7372 = vmatprep.subr.mxu0 0.0
      %7373 = vmatpush2.msra.mxu0 0.0
      %7374 = vmatprep.subr.mxu0 0.0
      %7375 = vmatpush2.msra.mxu0 0.0
      %7376 = vmatprep.subr.mxu0 0.0
      %7377 = vmatpush2.msra.mxu0 0.0
      %7378 = vmatprep.subr.mxu0 0.0
      %7379 = vmatpush2.msra.mxu0 0.0
      %7380 = vmatprep.subr.mxu0 0.0
      %7381 = vmatpush2.msra.mxu0 0.0
      %7382 = vmatprep.subr.mxu0 0.0
      %7383 = vmatpush2.msra.mxu0 0.0
      %7384 = vmatprep.subr.mxu0 0.0
      %7385 = vmatpush2.msra.mxu0 0.0
      %7386 = vmatprep.subr.mxu0 0.0
      %7387 = vmatpush2.msra.mxu0 0.0
      %7388 = vmatprep.subr.mxu0 0.0
      %7389 = vmatpush2.msra.mxu0 0.0
      %7390 = vmatprep.subr.mxu0 0.0
      %7391 = vmatpush2.msra.mxu0 0.0
      %7392 = vmatprep.subr.mxu0 0.0
      %7393 = vmatpush2.msra.mxu0 0.0
      %7394 = vmatprep.mubr.f32.mxu0 0.0
      %7395 = vmatmul.mubr.f32.gmra.mxu0 %v7304
      %v7396 = vpop.f32.mrf.mxu0
      %v7397 = vadd.f32 0.0, %v7396
      %v7398 = vpop.f32.mrf.mxu0
      %7399 = vmatprep.mubr.f32.mxu0 0.0
      %7400 = vmatmul.mubr.f32.gmra.mxu0 %v7307
      %v7401 = vpop.f32.mrf.mxu0
      %v7402 = vadd.f32 0.0, %v7401
      %v7403 = vpop.f32.mrf.mxu0
      %7404 = vmatprep.mubr.f32.mxu0 0.0
      %7405 = vmatmul.mubr.f32.gmra.mxu0 %v7310
      %v7406 = vpop.f32.mrf.mxu0
      %v7407 = vadd.f32 0.0, %v7406
      %v7408 = vpop.f32.mrf.mxu0
      %7409 = vmatprep.mubr.f32.mxu0 0.0
      %7410 = vmatmul.mubr.f32.gmra.mxu0 %v7313
      %v7411 = vpop.f32.mrf.mxu0
      %v7412 = vadd.f32 0.0, %v7411
      %v7413 = vpop.f32.mrf.mxu0
      %7414 = vmatprep.mubr.f32.mxu0 0.0
      %7415 = vmatmul.mubr.f32.gmra.mxu0 %v7316
      %v7416 = vpop.f32.mrf.mxu0
      %v7417 = vadd.f32 0.0, %v7416
      %v7418 = vpop.f32.mrf.mxu0
      %7419 = vmatprep.mubr.f32.mxu0 0.0
      %7420 = vmatmul.mubr.f32.gmra.mxu0 %v7319
      %v7421 = vpop.f32.mrf.mxu0
      %v7422 = vadd.f32 0.0, %v7421
      %v7423 = vpop.f32.mrf.mxu0
      %7424 = vmatprep.mubr.f32.mxu0 0.0
      %7425 = vmatmul.mubr.f32.gmra.mxu0 %v7322
      %v7426 = vpop.f32.mrf.mxu0
      %v7427 = vadd.f32 0.0, %v7426
      %v7428 = vpop.f32.mrf.mxu0
      %7429 = vmatprep.mubr.f32.mxu0 0.0
      %7430 = vmatmul.mubr.f32.gmra.mxu0 %v7325
      %v7431 = vpop.f32.mrf.mxu0
      %v7432 = vadd.f32 0.0, %v7431
      %v7433 = vpop.f32.mrf.mxu0
      %7434 = vmatprep.mubr.f32.mxu0 0.0
      %7435 = vmatmul.mubr.f32.gmra.mxu0 %v7328
      %v7436 = vpop.f32.mrf.mxu0
      %v7437 = vadd.f32 0.0, %v7436
      %v7438 = vpop.f32.mrf.mxu0
      %7439 = vdwg.mxu0
      %v7440 = vadd.f32 %v7277, %v7397
      %v7441 = vadd.f32 %v7278, %v7402
      %v7442 = vadd.f32 %v7279, %v7407
      %v7443 = vadd.f32 %v7280, %v7412
      %v7444 = vadd.f32 %v7281, %v7417
      %v7445 = vadd.f32 %v7282, %v7422
      %v7446 = vadd.f32 %v7283, %v7427
      %v7447 = vadd.f32 %v7284, %v7432
      %v7448 = vadd.f32 %v7285, %v7437
      %v7449 = vld [vmem:[#allocation8 + $0x20] sm:$0xff]
      %v7450 = vld [vmem:[#allocation8 + $0x28] sm:$0xff]
      %v7451 = vld [vmem:[#allocation8 + $0x30] sm:$0xff]
      %v7452 = vld [vmem:[#allocation8 + $0x38] sm:$0xff]
      %v7453 = vld [vmem:[#allocation8 + $0x40] sm:$0xff]
      %v7454 = vld [vmem:[#allocation8 + $0x48] sm:$0xff]
      %v7455 = vld [vmem:[#allocation8 + $0x50] sm:$0xff]
      %v7456 = vld [vmem:[#allocation8 + $0x58] sm:$0xff]
      %v7457 = vld [vmem:[#allocation8 + $0x60] sm:$0x1f]
      %v7458 = vld [vmem:[%s2 + $0x401] sm:$0xff]
      %v7459 = vld [vmem:[%s2 + $0x409] sm:$0xff]
      %v7460 = vld [vmem:[%s2 + $0x411] sm:$0xff]
      %v7461 = vld [vmem:[%s2 + $0x419] sm:$0xff]
      %v7462 = vld [vmem:[%s2 + $0x421] sm:$0xff]
      %v7463 = vld [vmem:[%s2 + $0x429] sm:$0xff]
      %v7464 = vld [vmem:[%s2 + $0x431] sm:$0xff]
      %v7465 = vld [vmem:[%s2 + $0x439] sm:$0xff]
      %v7467 = vsel %vm237, %v7449, 0
      %v7470 = vsel %vm237, %v7450, 0
      %v7473 = vsel %vm237, %v7451, 0
      %v7476 = vsel %vm237, %v7452, 0
      %v7479 = vsel %vm237, %v7453, 0
      %v7482 = vsel %vm237, %v7454, 0
      %v7485 = vsel %vm237, %v7455, 0
      %v7488 = vsel %vm237, %v7456, 0
      %v7491 = vsel %vm237, %v7457, 0
      %7493 = vmatprep.subr.mxu0 0.0
      %7494 = vmatpush1.msra.mxu0 0.0
      %7495 = vmatprep.subr.mxu0 0.0
      %7496 = vmatpush1.msra.mxu0 0.0
      %7497 = vmatprep.subr.mxu0 0.0
      %7498 = vmatpush1.msra.mxu0 0.0
      %7499 = vmatprep.subr.mxu0 0.0
      %7500 = vmatpush1.msra.mxu0 0.0
      %7501 = vmatprep.subr.mxu0 0.0
      %7502 = vmatpush1.msra.mxu0 0.0
      %7503 = vmatprep.subr.mxu0 0.0
      %7504 = vmatpush1.msra.mxu0 0.0
      %7505 = vmatprep.subr.mxu0 0.0
      %7506 = vmatpush1.msra.mxu0 0.0
      %7507 = vmatprep.subr.mxu0 0.0
      %7508 = vmatpush1.msra.mxu0 0.0
      %7509 = vmatprep.subr.mxu0 0.0
      %7510 = vmatpush1.msra.mxu0 %v7465
      %7511 = vmatprep.subr.mxu0 0.0
      %7512 = vmatpush1.msra.mxu0 %v7464
      %7513 = vmatprep.subr.mxu0 0.0
      %7514 = vmatpush1.msra.mxu0 %v7463
      %7515 = vmatprep.subr.mxu0 0.0
      %7516 = vmatpush1.msra.mxu0 %v7462
      %7517 = vmatprep.subr.mxu0 0.0
      %7518 = vmatpush1.msra.mxu0 %v7461
      %7519 = vmatprep.subr.mxu0 0.0
      %7520 = vmatpush1.msra.mxu0 %v7460
      %7521 = vmatprep.subr.mxu0 0.0
      %7522 = vmatpush1.msra.mxu0 %v7459
      %7523 = vmatprep.subr.mxu0 0.0
      %7524 = vmatpush1.msra.mxu0 %v7458
      %7525 = vmatprep.subr.mxu0 0.0
      %7526 = vmatpush2.msra.mxu0 0.0
      %7527 = vmatprep.subr.mxu0 0.0
      %7528 = vmatpush2.msra.mxu0 0.0
      %7529 = vmatprep.subr.mxu0 0.0
      %7530 = vmatpush2.msra.mxu0 0.0
      %7531 = vmatprep.subr.mxu0 0.0
      %7532 = vmatpush2.msra.mxu0 0.0
      %7533 = vmatprep.subr.mxu0 0.0
      %7534 = vmatpush2.msra.mxu0 0.0
      %7535 = vmatprep.subr.mxu0 0.0
      %7536 = vmatpush2.msra.mxu0 0.0
      %7537 = vmatprep.subr.mxu0 0.0
      %7538 = vmatpush2.msra.mxu0 0.0
      %7539 = vmatprep.subr.mxu0 0.0
      %7540 = vmatpush2.msra.mxu0 0.0
      %7541 = vmatprep.subr.mxu0 0.0
      %7542 = vmatpush2.msra.mxu0 0.0
      %7543 = vmatprep.subr.mxu0 0.0
      %7544 = vmatpush2.msra.mxu0 0.0
      %7545 = vmatprep.subr.mxu0 0.0
      %7546 = vmatpush2.msra.mxu0 0.0
      %7547 = vmatprep.subr.mxu0 0.0
      %7548 = vmatpush2.msra.mxu0 0.0
      %7549 = vmatprep.subr.mxu0 0.0
      %7550 = vmatpush2.msra.mxu0 0.0
      %7551 = vmatprep.subr.mxu0 0.0
      %7552 = vmatpush2.msra.mxu0 0.0
      %7553 = vmatprep.subr.mxu0 0.0
      %7554 = vmatpush2.msra.mxu0 0.0
      %7555 = vmatprep.subr.mxu0 0.0
      %7556 = vmatpush2.msra.mxu0 0.0
      %7557 = vmatprep.mubr.f32.mxu0 0.0
      %7558 = vmatmul.mubr.f32.gmra.mxu0 %v7467
      %v7559 = vpop.f32.mrf.mxu0
      %v7560 = vadd.f32 0.0, %v7559
      %v7561 = vpop.f32.mrf.mxu0
      %7562 = vmatprep.mubr.f32.mxu0 0.0
      %7563 = vmatmul.mubr.f32.gmra.mxu0 %v7470
      %v7564 = vpop.f32.mrf.mxu0
      %v7565 = vadd.f32 0.0, %v7564
      %v7566 = vpop.f32.mrf.mxu0
      %7567 = vmatprep.mubr.f32.mxu0 0.0
      %7568 = vmatmul.mubr.f32.gmra.mxu0 %v7473
      %v7569 = vpop.f32.mrf.mxu0
      %v7570 = vadd.f32 0.0, %v7569
      %v7571 = vpop.f32.mrf.mxu0
      %7572 = vmatprep.mubr.f32.mxu0 0.0
      %7573 = vmatmul.mubr.f32.gmra.mxu0 %v7476
      %v7574 = vpop.f32.mrf.mxu0
      %v7575 = vadd.f32 0.0, %v7574
      %v7576 = vpop.f32.mrf.mxu0
      %7577 = vmatprep.mubr.f32.mxu0 0.0
      %7578 = vmatmul.mubr.f32.gmra.mxu0 %v7479
      %v7579 = vpop.f32.mrf.mxu0
      %v7580 = vadd.f32 0.0, %v7579
      %v7581 = vpop.f32.mrf.mxu0
      %7582 = vmatprep.mubr.f32.mxu0 0.0
      %7583 = vmatmul.mubr.f32.gmra.mxu0 %v7482
      %v7584 = vpop.f32.mrf.mxu0
      %v7585 = vadd.f32 0.0, %v7584
      %v7586 = vpop.f32.mrf.mxu0
      %7587 = vmatprep.mubr.f32.mxu0 0.0
      %7588 = vmatmul.mubr.f32.gmra.mxu0 %v7485
      %v7589 = vpop.f32.mrf.mxu0
      %v7590 = vadd.f32 0.0, %v7589
      %v7591 = vpop.f32.mrf.mxu0
      %7592 = vmatprep.mubr.f32.mxu0 0.0
      %7593 = vmatmul.mubr.f32.gmra.mxu0 %v7488
      %v7594 = vpop.f32.mrf.mxu0
      %v7595 = vadd.f32 0.0, %v7594
      %v7596 = vpop.f32.mrf.mxu0
      %7597 = vmatprep.mubr.f32.mxu0 0.0
      %7598 = vmatmul.mubr.f32.gmra.mxu0 %v7491
      %v7599 = vpop.f32.mrf.mxu0
      %v7600 = vadd.f32 0.0, %v7599
      %v7601 = vpop.f32.mrf.mxu0
      %7602 = vdwg.mxu0
      %v7603 = vadd.f32 %v7440, %v7560
      %v7604 = vadd.f32 %v7441, %v7565
      %v7605 = vadd.f32 %v7442, %v7570
      %v7606 = vadd.f32 %v7443, %v7575
      %v7607 = vadd.f32 %v7444, %v7580
      %v7608 = vadd.f32 %v7445, %v7585
      %v7609 = vadd.f32 %v7446, %v7590
      %v7610 = vadd.f32 %v7447, %v7595
      %v7611 = vadd.f32 %v7448, %v7600
      %v7612 = vld [vmem:[#allocation8 + $0x21] sm:$0xff]
      %v7613 = vld [vmem:[#allocation8 + $0x29] sm:$0xff]
      %v7614 = vld [vmem:[#allocation8 + $0x31] sm:$0xff]
      %v7615 = vld [vmem:[#allocation8 + $0x39] sm:$0xff]
      %v7616 = vld [vmem:[#allocation8 + $0x41] sm:$0xff]
      %v7617 = vld [vmem:[#allocation8 + $0x49] sm:$0xff]
      %v7618 = vld [vmem:[#allocation8 + $0x51] sm:$0xff]
      %v7619 = vld [vmem:[#allocation8 + $0x59] sm:$0xff]
      %v7620 = vld [vmem:[#allocation8 + $0x61] sm:$0x1f]
      %v7621 = vld [vmem:[%s2 + $0x441] sm:$0xff]
      %v7622 = vld [vmem:[%s2 + $0x449] sm:$0xff]
      %v7623 = vld [vmem:[%s2 + $0x451] sm:$0xff]
      %v7624 = vld [vmem:[%s2 + $0x459] sm:$0xff]
      %v7625 = vld [vmem:[%s2 + $0x461] sm:$0xff]
      %v7626 = vld [vmem:[%s2 + $0x469] sm:$0xff]
      %v7627 = vld [vmem:[%s2 + $0x471] sm:$0xff]
      %v7628 = vld [vmem:[%s2 + $0x479] sm:$0xff]
      %v7630 = vsel %vm237, %v7612, 0
      %v7633 = vsel %vm237, %v7613, 0
      %v7636 = vsel %vm237, %v7614, 0
      %v7639 = vsel %vm237, %v7615, 0
      %v7642 = vsel %vm237, %v7616, 0
      %v7645 = vsel %vm237, %v7617, 0
      %v7648 = vsel %vm237, %v7618, 0
      %v7651 = vsel %vm237, %v7619, 0
      %v7654 = vsel %vm237, %v7620, 0
      %7656 = vmatprep.subr.mxu0 0.0
      %7657 = vmatpush1.msra.mxu0 0.0
      %7658 = vmatprep.subr.mxu0 0.0
      %7659 = vmatpush1.msra.mxu0 0.0
      %7660 = vmatprep.subr.mxu0 0.0
      %7661 = vmatpush1.msra.mxu0 0.0
      %7662 = vmatprep.subr.mxu0 0.0
      %7663 = vmatpush1.msra.mxu0 0.0
      %7664 = vmatprep.subr.mxu0 0.0
      %7665 = vmatpush1.msra.mxu0 0.0
      %7666 = vmatprep.subr.mxu0 0.0
      %7667 = vmatpush1.msra.mxu0 0.0
      %7668 = vmatprep.subr.mxu0 0.0
      %7669 = vmatpush1.msra.mxu0 0.0
      %7670 = vmatprep.subr.mxu0 0.0
      %7671 = vmatpush1.msra.mxu0 0.0
      %7672 = vmatprep.subr.mxu0 0.0
      %7673 = vmatpush1.msra.mxu0 %v7628
      %7674 = vmatprep.subr.mxu0 0.0
      %7675 = vmatpush1.msra.mxu0 %v7627
      %7676 = vmatprep.subr.mxu0 0.0
      %7677 = vmatpush1.msra.mxu0 %v7626
      %7678 = vmatprep.subr.mxu0 0.0
      %7679 = vmatpush1.msra.mxu0 %v7625
      %7680 = vmatprep.subr.mxu0 0.0
      %7681 = vmatpush1.msra.mxu0 %v7624
      %7682 = vmatprep.subr.mxu0 0.0
      %7683 = vmatpush1.msra.mxu0 %v7623
      %7684 = vmatprep.subr.mxu0 0.0
      %7685 = vmatpush1.msra.mxu0 %v7622
      %7686 = vmatprep.subr.mxu0 0.0
      %7687 = vmatpush1.msra.mxu0 %v7621
      %7688 = vmatprep.subr.mxu0 0.0
      %7689 = vmatpush2.msra.mxu0 0.0
      %7690 = vmatprep.subr.mxu0 0.0
      %7691 = vmatpush2.msra.mxu0 0.0
      %7692 = vmatprep.subr.mxu0 0.0
      %7693 = vmatpush2.msra.mxu0 0.0
      %7694 = vmatprep.subr.mxu0 0.0
      %7695 = vmatpush2.msra.mxu0 0.0
      %7696 = vmatprep.subr.mxu0 0.0
      %7697 = vmatpush2.msra.mxu0 0.0
      %7698 = vmatprep.subr.mxu0 0.0
      %7699 = vmatpush2.msra.mxu0 0.0
      %7700 = vmatprep.subr.mxu0 0.0
      %7701 = vmatpush2.msra.mxu0 0.0
      %7702 = vmatprep.subr.mxu0 0.0
      %7703 = vmatpush2.msra.mxu0 0.0
      %7704 = vmatprep.subr.mxu0 0.0
      %7705 = vmatpush2.msra.mxu0 0.0
      %7706 = vmatprep.subr.mxu0 0.0
      %7707 = vmatpush2.msra.mxu0 0.0
      %7708 = vmatprep.subr.mxu0 0.0
      %7709 = vmatpush2.msra.mxu0 0.0
      %7710 = vmatprep.subr.mxu0 0.0
      %7711 = vmatpush2.msra.mxu0 0.0
      %7712 = vmatprep.subr.mxu0 0.0
      %7713 = vmatpush2.msra.mxu0 0.0
      %7714 = vmatprep.subr.mxu0 0.0
      %7715 = vmatpush2.msra.mxu0 0.0
      %7716 = vmatprep.subr.mxu0 0.0
      %7717 = vmatpush2.msra.mxu0 0.0
      %7718 = vmatprep.subr.mxu0 0.0
      %7719 = vmatpush2.msra.mxu0 0.0
      %7720 = vmatprep.mubr.f32.mxu0 0.0
      %7721 = vmatmul.mubr.f32.gmra.mxu0 %v7630
      %v7722 = vpop.f32.mrf.mxu0
      %v7723 = vadd.f32 0.0, %v7722
      %v7724 = vpop.f32.mrf.mxu0
      %7725 = vmatprep.mubr.f32.mxu0 0.0
      %7726 = vmatmul.mubr.f32.gmra.mxu0 %v7633
      %v7727 = vpop.f32.mrf.mxu0
      %v7728 = vadd.f32 0.0, %v7727
      %v7729 = vpop.f32.mrf.mxu0
      %7730 = vmatprep.mubr.f32.mxu0 0.0
      %7731 = vmatmul.mubr.f32.gmra.mxu0 %v7636
      %v7732 = vpop.f32.mrf.mxu0
      %v7733 = vadd.f32 0.0, %v7732
      %v7734 = vpop.f32.mrf.mxu0
      %7735 = vmatprep.mubr.f32.mxu0 0.0
      %7736 = vmatmul.mubr.f32.gmra.mxu0 %v7639
      %v7737 = vpop.f32.mrf.mxu0
      %v7738 = vadd.f32 0.0, %v7737
      %v7739 = vpop.f32.mrf.mxu0
      %7740 = vmatprep.mubr.f32.mxu0 0.0
      %7741 = vmatmul.mubr.f32.gmra.mxu0 %v7642
      %v7742 = vpop.f32.mrf.mxu0
      %v7743 = vadd.f32 0.0, %v7742
      %v7744 = vpop.f32.mrf.mxu0
      %7745 = vmatprep.mubr.f32.mxu0 0.0
      %7746 = vmatmul.mubr.f32.gmra.mxu0 %v7645
      %v7747 = vpop.f32.mrf.mxu0
      %v7748 = vadd.f32 0.0, %v7747
      %v7749 = vpop.f32.mrf.mxu0
      %7750 = vmatprep.mubr.f32.mxu0 0.0
      %7751 = vmatmul.mubr.f32.gmra.mxu0 %v7648
      %v7752 = vpop.f32.mrf.mxu0
      %v7753 = vadd.f32 0.0, %v7752
      %v7754 = vpop.f32.mrf.mxu0
      %7755 = vmatprep.mubr.f32.mxu0 0.0
      %7756 = vmatmul.mubr.f32.gmra.mxu0 %v7651
      %v7757 = vpop.f32.mrf.mxu0
      %v7758 = vadd.f32 0.0, %v7757
      %v7759 = vpop.f32.mrf.mxu0
      %7760 = vmatprep.mubr.f32.mxu0 0.0
      %7761 = vmatmul.mubr.f32.gmra.mxu0 %v7654
      %v7762 = vpop.f32.mrf.mxu0
      %v7763 = vadd.f32 0.0, %v7762
      %v7764 = vpop.f32.mrf.mxu0
      %7765 = vdwg.mxu0
      %v7766 = vadd.f32 %v7603, %v7723
      %v7767 = vadd.f32 %v7604, %v7728
      %v7768 = vadd.f32 %v7605, %v7733
      %v7769 = vadd.f32 %v7606, %v7738
      %v7770 = vadd.f32 %v7607, %v7743
      %v7771 = vadd.f32 %v7608, %v7748
      %v7772 = vadd.f32 %v7609, %v7753
      %v7773 = vadd.f32 %v7610, %v7758
      %v7774 = vadd.f32 %v7611, %v7763
      %v7775 = vld [vmem:[#allocation8 + $0x22] sm:$0xff]
      %v7776 = vld [vmem:[#allocation8 + $0x2a] sm:$0xff]
      %v7777 = vld [vmem:[#allocation8 + $0x32] sm:$0xff]
      %v7778 = vld [vmem:[#allocation8 + $0x3a] sm:$0xff]
      %v7779 = vld [vmem:[#allocation8 + $0x42] sm:$0xff]
      %v7780 = vld [vmem:[#allocation8 + $0x4a] sm:$0xff]
      %v7781 = vld [vmem:[#allocation8 + $0x52] sm:$0xff]
      %v7782 = vld [vmem:[#allocation8 + $0x5a] sm:$0xff]
      %v7783 = vld [vmem:[#allocation8 + $0x62] sm:$0x1f]
      %v7784 = vld [vmem:[%s2 + $0x481] sm:$0xff]
      %v7785 = vld [vmem:[%s2 + $0x489] sm:$0xff]
      %v7786 = vld [vmem:[%s2 + $0x491] sm:$0xff]
      %v7787 = vld [vmem:[%s2 + $0x499] sm:$0xff]
      %v7788 = vld [vmem:[%s2 + $0x4a1] sm:$0xff]
      %v7789 = vld [vmem:[%s2 + $0x4a9] sm:$0xff]
      %v7790 = vld [vmem:[%s2 + $0x4b1] sm:$0xff]
      %v7791 = vld [vmem:[%s2 + $0x4b9] sm:$0xff]
      %v7793 = vsel %vm237, %v7775, 0
      %v7796 = vsel %vm237, %v7776, 0
      %v7799 = vsel %vm237, %v7777, 0
      %v7802 = vsel %vm237, %v7778, 0
      %v7805 = vsel %vm237, %v7779, 0
      %v7808 = vsel %vm237, %v7780, 0
      %v7811 = vsel %vm237, %v7781, 0
      %v7814 = vsel %vm237, %v7782, 0
      %v7817 = vsel %vm237, %v7783, 0
      %7819 = vmatprep.subr.mxu0 0.0
      %7820 = vmatpush1.msra.mxu0 0.0
      %7821 = vmatprep.subr.mxu0 0.0
      %7822 = vmatpush1.msra.mxu0 0.0
      %7823 = vmatprep.subr.mxu0 0.0
      %7824 = vmatpush1.msra.mxu0 0.0
      %7825 = vmatprep.subr.mxu0 0.0
      %7826 = vmatpush1.msra.mxu0 0.0
      %7827 = vmatprep.subr.mxu0 0.0
      %7828 = vmatpush1.msra.mxu0 0.0
      %7829 = vmatprep.subr.mxu0 0.0
      %7830 = vmatpush1.msra.mxu0 0.0
      %7831 = vmatprep.subr.mxu0 0.0
      %7832 = vmatpush1.msra.mxu0 0.0
      %7833 = vmatprep.subr.mxu0 0.0
      %7834 = vmatpush1.msra.mxu0 0.0
      %7835 = vmatprep.subr.mxu0 0.0
      %7836 = vmatpush1.msra.mxu0 %v7791
      %7837 = vmatprep.subr.mxu0 0.0
      %7838 = vmatpush1.msra.mxu0 %v7790
      %7839 = vmatprep.subr.mxu0 0.0
      %7840 = vmatpush1.msra.mxu0 %v7789
      %7841 = vmatprep.subr.mxu0 0.0
      %7842 = vmatpush1.msra.mxu0 %v7788
      %7843 = vmatprep.subr.mxu0 0.0
      %7844 = vmatpush1.msra.mxu0 %v7787
      %7845 = vmatprep.subr.mxu0 0.0
      %7846 = vmatpush1.msra.mxu0 %v7786
      %7847 = vmatprep.subr.mxu0 0.0
      %7848 = vmatpush1.msra.mxu0 %v7785
      %7849 = vmatprep.subr.mxu0 0.0
      %7850 = vmatpush1.msra.mxu0 %v7784
      %7851 = vmatprep.subr.mxu0 0.0
      %7852 = vmatpush2.msra.mxu0 0.0
      %7853 = vmatprep.subr.mxu0 0.0
      %7854 = vmatpush2.msra.mxu0 0.0
      %7855 = vmatprep.subr.mxu0 0.0
      %7856 = vmatpush2.msra.mxu0 0.0
      %7857 = vmatprep.subr.mxu0 0.0
      %7858 = vmatpush2.msra.mxu0 0.0
      %7859 = vmatprep.subr.mxu0 0.0
      %7860 = vmatpush2.msra.mxu0 0.0
      %7861 = vmatprep.subr.mxu0 0.0
      %7862 = vmatpush2.msra.mxu0 0.0
      %7863 = vmatprep.subr.mxu0 0.0
      %7864 = vmatpush2.msra.mxu0 0.0
      %7865 = vmatprep.subr.mxu0 0.0
      %7866 = vmatpush2.msra.mxu0 0.0
      %7867 = vmatprep.subr.mxu0 0.0
      %7868 = vmatpush2.msra.mxu0 0.0
      %7869 = vmatprep.subr.mxu0 0.0
      %7870 = vmatpush2.msra.mxu0 0.0
      %7871 = vmatprep.subr.mxu0 0.0
      %7872 = vmatpush2.msra.mxu0 0.0
      %7873 = vmatprep.subr.mxu0 0.0
      %7874 = vmatpush2.msra.mxu0 0.0
      %7875 = vmatprep.subr.mxu0 0.0
      %7876 = vmatpush2.msra.mxu0 0.0
      %7877 = vmatprep.subr.mxu0 0.0
      %7878 = vmatpush2.msra.mxu0 0.0
      %7879 = vmatprep.subr.mxu0 0.0
      %7880 = vmatpush2.msra.mxu0 0.0
      %7881 = vmatprep.subr.mxu0 0.0
      %7882 = vmatpush2.msra.mxu0 0.0
      %7883 = vmatprep.mubr.f32.mxu0 0.0
      %7884 = vmatmul.mubr.f32.gmra.mxu0 %v7793
      %v7885 = vpop.f32.mrf.mxu0
      %v7886 = vadd.f32 0.0, %v7885
      %v7887 = vpop.f32.mrf.mxu0
      %7888 = vmatprep.mubr.f32.mxu0 0.0
      %7889 = vmatmul.mubr.f32.gmra.mxu0 %v7796
      %v7890 = vpop.f32.mrf.mxu0
      %v7891 = vadd.f32 0.0, %v7890
      %v7892 = vpop.f32.mrf.mxu0
      %7893 = vmatprep.mubr.f32.mxu0 0.0
      %7894 = vmatmul.mubr.f32.gmra.mxu0 %v7799
      %v7895 = vpop.f32.mrf.mxu0
      %v7896 = vadd.f32 0.0, %v7895
      %v7897 = vpop.f32.mrf.mxu0
      %7898 = vmatprep.mubr.f32.mxu0 0.0
      %7899 = vmatmul.mubr.f32.gmra.mxu0 %v7802
      %v7900 = vpop.f32.mrf.mxu0
      %v7901 = vadd.f32 0.0, %v7900
      %v7902 = vpop.f32.mrf.mxu0
      %7903 = vmatprep.mubr.f32.mxu0 0.0
      %7904 = vmatmul.mubr.f32.gmra.mxu0 %v7805
      %v7905 = vpop.f32.mrf.mxu0
      %v7906 = vadd.f32 0.0, %v7905
      %v7907 = vpop.f32.mrf.mxu0
      %7908 = vmatprep.mubr.f32.mxu0 0.0
      %7909 = vmatmul.mubr.f32.gmra.mxu0 %v7808
      %v7910 = vpop.f32.mrf.mxu0
      %v7911 = vadd.f32 0.0, %v7910
      %v7912 = vpop.f32.mrf.mxu0
      %7913 = vmatprep.mubr.f32.mxu0 0.0
      %7914 = vmatmul.mubr.f32.gmra.mxu0 %v7811
      %v7915 = vpop.f32.mrf.mxu0
      %v7916 = vadd.f32 0.0, %v7915
      %v7917 = vpop.f32.mrf.mxu0
      %7918 = vmatprep.mubr.f32.mxu0 0.0
      %7919 = vmatmul.mubr.f32.gmra.mxu0 %v7814
      %v7920 = vpop.f32.mrf.mxu0
      %v7921 = vadd.f32 0.0, %v7920
      %v7922 = vpop.f32.mrf.mxu0
      %7923 = vmatprep.mubr.f32.mxu0 0.0
      %7924 = vmatmul.mubr.f32.gmra.mxu0 %v7817
      %v7925 = vpop.f32.mrf.mxu0
      %v7926 = vadd.f32 0.0, %v7925
      %v7927 = vpop.f32.mrf.mxu0
      %7928 = vdwg.mxu0
      %v7929 = vadd.f32 %v7766, %v7886
      %v7930 = vadd.f32 %v7767, %v7891
      %v7931 = vadd.f32 %v7768, %v7896
      %v7932 = vadd.f32 %v7769, %v7901
      %v7933 = vadd.f32 %v7770, %v7906
      %v7934 = vadd.f32 %v7771, %v7911
      %v7935 = vadd.f32 %v7772, %v7916
      %v7936 = vadd.f32 %v7773, %v7921
      %v7937 = vadd.f32 %v7774, %v7926
      %v7938 = vld [vmem:[%s2 + $0x4c1] sm:$0x1]
      %v7939 = vlaneseq
      %v7940 = vshrl.u32 %v7939, 7
      %v7941 = vsub.s32 0, %v7940
      %v7942 = vrot.slane %v7938, %v7941
      %v7943 = vadd.f32 %v7929, %v7942
      %v7944 = vadd.f32 %v7930, %v7942
      %v7945 = vadd.f32 %v7931, %v7942
      %v7946 = vadd.f32 %v7932, %v7942
      %v7947 = vadd.f32 %v7933, %v7942
      %v7948 = vadd.f32 %v7934, %v7942
      %v7949 = vadd.f32 %v7935, %v7942
      %v7950 = vadd.f32 %v7936, %v7942
      %v7951 = vadd.f32 %v7937, %v7942
      %v7952 = vmax.f32 %v7943, 0.0
      %v7953 = vmax.f32 %v7944, 0.0
      %v7954 = vmax.f32 %v7945, 0.0
      %v7955 = vmax.f32 %v7946, 0.0
      %v7956 = vmax.f32 %v7947, 0.0
      %v7957 = vmax.f32 %v7948, 0.0
      %v7958 = vmax.f32 %v7949, 0.0
      %v7959 = vmax.f32 %v7950, 0.0
      %v7960 = vmax.f32 %v7951, 0.0
      %v7961 = vld [vmem:[%s1] sm:$0xff]
      %v7962 = vld [vmem:[%s1 + $0x8] sm:$0xff]
      %v7963 = vld [vmem:[%s1 + $0x10] sm:$0xff]
      %v7964 = vld [vmem:[%s1 + $0x18] sm:$0xff]
      %v7965 = vld [vmem:[%s1 + $0x20] sm:$0xff]
      %v7966 = vld [vmem:[%s1 + $0x28] sm:$0xff]
      %v7967 = vld [vmem:[%s1 + $0x30] sm:$0xff]
      %v7968 = vld [vmem:[%s1 + $0x38] sm:$0xff]
      %v7969 = vld [vmem:[%s1 + $0x40] sm:$0x1f]
      %vm7970 = vcmp.gt.f32.partialorder %v7961, 0.5
      %vm7971 = vcmp.gt.f32.partialorder %v7962, 0.5
      %vm7972 = vcmp.gt.f32.partialorder %v7963, 0.5
      %vm7973 = vcmp.gt.f32.partialorder %v7964, 0.5
      %vm7974 = vcmp.gt.f32.partialorder %v7965, 0.5
      %vm7975 = vcmp.gt.f32.partialorder %v7966, 0.5
      %vm7976 = vcmp.gt.f32.partialorder %v7967, 0.5
      %vm7977 = vcmp.gt.f32.partialorder %v7968, 0.5
      %vm7978 = vcmp.gt.f32.partialorder %v7969, 0.5
      %v7979 = vsel %vm7970, 1, 0
      %v7980 = vsel %vm7971, 1, 0
      %v7981 = vsel %vm7972, 1, 0
      %v7982 = vsel %vm7973, 1, 0
      %v7983 = vsel %vm7974, 1, 0
      %v7984 = vsel %vm7975, 1, 0
      %v7985 = vsel %vm7976, 1, 0
      %v7986 = vsel %vm7977, 1, 0
      %v7987 = vsel %vm7978, 1, 0
      %7988 = vset.pattern.permute.xlu0 3
      %7989 = vperm.xlu0 %7988, %v7979
      %v7990 = vpop.permute.xlu0 %7989
      %7991 = vset.pattern.permute.xlu0 3
      %7992 = vperm.xlu0 %7991, %v7980
      %v7993 = vpop.permute.xlu0 %7992
      %7994 = vset.pattern.permute.xlu0 3
      %7995 = vperm.xlu0 %7994, %v7981
      %v7996 = vpop.permute.xlu0 %7995
      %7997 = vset.pattern.permute.xlu0 3
      %7998 = vperm.xlu0 %7997, %v7982
      %v7999 = vpop.permute.xlu0 %7998
      %8000 = vset.pattern.permute.xlu0 3
      %8001 = vperm.xlu0 %8000, %v7983
      %v8002 = vpop.permute.xlu0 %8001
      %8003 = vset.pattern.permute.xlu0 3
      %8004 = vperm.xlu0 %8003, %v7984
      %v8005 = vpop.permute.xlu0 %8004
      %8006 = vset.pattern.permute.xlu0 3
      %8007 = vperm.xlu0 %8006, %v7985
      %v8008 = vpop.permute.xlu0 %8007
      %8009 = vset.pattern.permute.xlu0 3
      %8010 = vperm.xlu0 %8009, %v7986
      %v8011 = vpop.permute.xlu0 %8010
      %8012 = vset.pattern.permute.xlu0 3
      %8013 = vperm.xlu0 %8012, %v7987
      %v8014 = vpop.permute.xlu0 %8013
      %vm8015 = vcmp.eq.s32.totalorder %v7990, 1
      %vm8016 = vcmp.eq.s32.totalorder %v7993, 1
      %vm8017 = vcmp.eq.s32.totalorder %v7996, 1
      %vm8018 = vcmp.eq.s32.totalorder %v7999, 1
      %vm8019 = vcmp.eq.s32.totalorder %v8002, 1
      %vm8020 = vcmp.eq.s32.totalorder %v8005, 1
      %vm8021 = vcmp.eq.s32.totalorder %v8008, 1
      %vm8022 = vcmp.eq.s32.totalorder %v8011, 1
      %vm8023 = vcmp.eq.s32.totalorder %v8014, 1
      %v8024 = vsel %vm8015, %v7952, 0.0
      %v8025 = vsel %vm8016, %v7953, 0.0
      %v8026 = vsel %vm8017, %v7954, 0.0
      %v8027 = vsel %vm8018, %v7955, 0.0
      %v8028 = vsel %vm8019, %v7956, 0.0
      %v8029 = vsel %vm8020, %v7957, 0.0
      %v8030 = vsel %vm8021, %v7958, 0.0
      %v8031 = vsel %vm8022, %v7959, 0.0
      %v8032 = vsel %vm8023, %v7960, 0.0
      %8033 = vst.msk [vmem:[#allocation5 + $0x11] sm:$0xff] %vm237, %v8024
      %8034 = vst.msk [vmem:[#allocation5 + $0x19] sm:$0xff] %vm237, %v8025
      %8035 = vst.msk [vmem:[#allocation5 + $0x21] sm:$0xff] %vm237, %v8026
      %8036 = vst.msk [vmem:[#allocation5 + $0x29] sm:$0xff] %vm237, %v8027
      %8037 = vst.msk [vmem:[#allocation5 + $0x31] sm:$0xff] %vm237, %v8028
      %8038 = vst.msk [vmem:[#allocation5 + $0x39] sm:$0xff] %vm237, %v8029
      %8039 = vst.msk [vmem:[#allocation5 + $0x41] sm:$0xff] %vm237, %v8030
      %8040 = vst.msk [vmem:[#allocation5 + $0x49] sm:$0xff] %vm237, %v8031
      %vm8041 = vcmask 520192
      %8042 = vst.msk [vmem:[#allocation5 + $0x51] sm:$0x1f] %vm8041, %v8032
      %v8043 = vld [vmem:[#allocation5] sm:$0xff]
      %v8044 = vld [vmem:[#allocation5 + $0x8] sm:$0xff]
      %v8045 = vld [vmem:[#allocation5 + $0x10] sm:$0xff]
      %v8046 = vld [vmem:[#allocation5 + $0x18] sm:$0xff]
      %v8047 = vld [vmem:[#allocation5 + $0x20] sm:$0xff]
      %v8048 = vld [vmem:[#allocation5 + $0x28] sm:$0xff]
      %v8049 = vld [vmem:[#allocation5 + $0x30] sm:$0xff]
      %v8050 = vld [vmem:[#allocation5 + $0x38] sm:$0xff]
      %v8051 = vld [vmem:[#allocation5 + $0x40] sm:$0x1f]
      %v8052 = vld [vmem:[%s2 + $0x4c2] sm:$0x1]
      %v8053 = vlaneseq
      %v8054 = vshrl.u32 %v8053, 7
      %v8055 = vsub.s32 0, %v8054
      %v8056 = vrot.slane %v8052, %v8055
      %v8057 = vmul.f32 %v8043, %v8056
      %v8058 = vmul.f32 %v8044, %v8056
      %v8059 = vmul.f32 %v8045, %v8056
      %v8060 = vmul.f32 %v8046, %v8056
      %v8061 = vmul.f32 %v8047, %v8056
      %v8062 = vmul.f32 %v8048, %v8056
      %v8063 = vmul.f32 %v8049, %v8056
      %v8064 = vmul.f32 %v8050, %v8056
      %v8065 = vmul.f32 %v8051, %v8056
      %v8066 = vld [vmem:[#allocation5 + $0x1] sm:$0xff]
      %v8067 = vld [vmem:[#allocation5 + $0x9] sm:$0xff]
      %v8068 = vld [vmem:[#allocation5 + $0x11] sm:$0xff]
      %v8069 = vld [vmem:[#allocation5 + $0x19] sm:$0xff]
      %v8070 = vld [vmem:[#allocation5 + $0x21] sm:$0xff]
      %v8071 = vld [vmem:[#allocation5 + $0x29] sm:$0xff]
      %v8072 = vld [vmem:[#allocation5 + $0x31] sm:$0xff]
      %v8073 = vld [vmem:[#allocation5 + $0x39] sm:$0xff]
      %v8074 = vld [vmem:[#allocation5 + $0x41] sm:$0x1f]
      %v8075 = vld [vmem:[%s2 + $0x4c3] sm:$0x1]
      %v8076 = vlaneseq
      %v8077 = vshrl.u32 %v8076, 7
      %v8078 = vsub.s32 0, %v8077
      %v8079 = vrot.slane %v8075, %v8078
      %v8080 = vmul.f32 %v8066, %v8079
      %v8081 = vmul.f32 %v8067, %v8079
      %v8082 = vmul.f32 %v8068, %v8079
      %v8083 = vmul.f32 %v8069, %v8079
      %v8084 = vmul.f32 %v8070, %v8079
      %v8085 = vmul.f32 %v8071, %v8079
      %v8086 = vmul.f32 %v8072, %v8079
      %v8087 = vmul.f32 %v8073, %v8079
      %v8088 = vmul.f32 %v8074, %v8079
      %v8089 = vadd.f32 %v8057, %v8080
      %v8090 = vadd.f32 %v8058, %v8081
      %v8091 = vadd.f32 %v8059, %v8082
      %v8092 = vadd.f32 %v8060, %v8083
      %v8093 = vadd.f32 %v8061, %v8084
      %v8094 = vadd.f32 %v8062, %v8085
      %v8095 = vadd.f32 %v8063, %v8086
      %v8096 = vadd.f32 %v8064, %v8087
      %v8097 = vadd.f32 %v8065, %v8088
      %v8098 = vld [vmem:[#allocation5 + $0x2] sm:$0xff]
      %v8099 = vld [vmem:[#allocation5 + $0xa] sm:$0xff]
      %v8100 = vld [vmem:[#allocation5 + $0x12] sm:$0xff]
      %v8101 = vld [vmem:[#allocation5 + $0x1a] sm:$0xff]
      %v8102 = vld [vmem:[#allocation5 + $0x22] sm:$0xff]
      %v8103 = vld [vmem:[#allocation5 + $0x2a] sm:$0xff]
      %v8104 = vld [vmem:[#allocation5 + $0x32] sm:$0xff]
      %v8105 = vld [vmem:[#allocation5 + $0x3a] sm:$0xff]
      %v8106 = vld [vmem:[#allocation5 + $0x42] sm:$0x1f]
      %v8107 = vld [vmem:[%s2 + $0x4c4] sm:$0x1]
      %v8108 = vlaneseq
      %v8109 = vshrl.u32 %v8108, 7
      %v8110 = vsub.s32 0, %v8109
      %v8111 = vrot.slane %v8107, %v8110
      %v8112 = vmul.f32 %v8098, %v8111
      %v8113 = vmul.f32 %v8099, %v8111
      %v8114 = vmul.f32 %v8100, %v8111
      %v8115 = vmul.f32 %v8101, %v8111
      %v8116 = vmul.f32 %v8102, %v8111
      %v8117 = vmul.f32 %v8103, %v8111
      %v8118 = vmul.f32 %v8104, %v8111
      %v8119 = vmul.f32 %v8105, %v8111
      %v8120 = vmul.f32 %v8106, %v8111
      %v8121 = vadd.f32 %v8089, %v8112
      %v8122 = vadd.f32 %v8090, %v8113
      %v8123 = vadd.f32 %v8091, %v8114
      %v8124 = vadd.f32 %v8092, %v8115
      %v8125 = vadd.f32 %v8093, %v8116
      %v8126 = vadd.f32 %v8094, %v8117
      %v8127 = vadd.f32 %v8095, %v8118
      %v8128 = vadd.f32 %v8096, %v8119
      %v8129 = vadd.f32 %v8097, %v8120
      %v8130 = vld [vmem:[#allocation5 + $0x40] sm:$0xff]
      %v8131 = vld [vmem:[#allocation5 + $0x48] sm:$0xff]
      %v8132 = vld [vmem:[#allocation5 + $0x50] sm:$0x1f]
      %v8133 = vld [vmem:[%s2 + $0x4c5] sm:$0x1]
      %v8134 = vlaneseq
      %v8135 = vshrl.u32 %v8134, 7
      %v8136 = vsub.s32 0, %v8135
      %v8137 = vrot.slane %v8133, %v8136
      %v8138 = vmul.f32 %v8045, %v8137
      %v8139 = vmul.f32 %v8046, %v8137
      %v8140 = vmul.f32 %v8047, %v8137
      %v8141 = vmul.f32 %v8048, %v8137
      %v8142 = vmul.f32 %v8049, %v8137
      %v8143 = vmul.f32 %v8050, %v8137
      %v8144 = vmul.f32 %v8130, %v8137
      %v8145 = vmul.f32 %v8131, %v8137
      %v8146 = vmul.f32 %v8132, %v8137
      %v8147 = vadd.f32 %v8121, %v8138
      %v8148 = vadd.f32 %v8122, %v8139
      %v8149 = vadd.f32 %v8123, %v8140
      %v8150 = vadd.f32 %v8124, %v8141
      %v8151 = vadd.f32 %v8125, %v8142
      %v8152 = vadd.f32 %v8126, %v8143
      %v8153 = vadd.f32 %v8127, %v8144
      %v8154 = vadd.f32 %v8128, %v8145
      %v8155 = vadd.f32 %v8129, %v8146
      %v8156 = vld [vmem:[#allocation5 + $0x41] sm:$0xff]
      %v8157 = vld [vmem:[#allocation5 + $0x49] sm:$0xff]
      %v8158 = vld [vmem:[#allocation5 + $0x51] sm:$0x1f]
      %v8159 = vld [vmem:[%s2 + $0x4c6] sm:$0x1]
      %v8160 = vlaneseq
      %v8161 = vshrl.u32 %v8160, 7
      %v8162 = vsub.s32 0, %v8161
      %v8163 = vrot.slane %v8159, %v8162
      %v8164 = vmul.f32 %v8068, %v8163
      %v8165 = vmul.f32 %v8069, %v8163
      %v8166 = vmul.f32 %v8070, %v8163
      %v8167 = vmul.f32 %v8071, %v8163
      %v8168 = vmul.f32 %v8072, %v8163
      %v8169 = vmul.f32 %v8073, %v8163
      %v8170 = vmul.f32 %v8156, %v8163
      %v8171 = vmul.f32 %v8157, %v8163
      %v8172 = vmul.f32 %v8158, %v8163
      %v8173 = vadd.f32 %v8147, %v8164
      %v8174 = vadd.f32 %v8148, %v8165
      %v8175 = vadd.f32 %v8149, %v8166
      %v8176 = vadd.f32 %v8150, %v8167
      %v8177 = vadd.f32 %v8151, %v8168
      %v8178 = vadd.f32 %v8152, %v8169
      %v8179 = vadd.f32 %v8153, %v8170
      %v8180 = vadd.f32 %v8154, %v8171
      %v8181 = vadd.f32 %v8155, %v8172
      %v8182 = vld [vmem:[#allocation5 + $0x42] sm:$0xff]
      %v8183 = vld [vmem:[#allocation5 + $0x4a] sm:$0xff]
      %v8184 = vld [vmem:[#allocation5 + $0x52] sm:$0x1f]
      %v8185 = vld [vmem:[%s2 + $0x4c7] sm:$0x1]
      %v8186 = vlaneseq
      %v8187 = vshrl.u32 %v8186, 7
      %v8188 = vsub.s32 0, %v8187
      %v8189 = vrot.slane %v8185, %v8188
      %v8190 = vmul.f32 %v8100, %v8189
      %v8191 = vmul.f32 %v8101, %v8189
      %v8192 = vmul.f32 %v8102, %v8189
      %v8193 = vmul.f32 %v8103, %v8189
      %v8194 = vmul.f32 %v8104, %v8189
      %v8195 = vmul.f32 %v8105, %v8189
      %v8196 = vmul.f32 %v8182, %v8189
      %v8197 = vmul.f32 %v8183, %v8189
      %v8198 = vmul.f32 %v8184, %v8189
      %v8199 = vadd.f32 %v8173, %v8190
      %v8200 = vadd.f32 %v8174, %v8191
      %v8201 = vadd.f32 %v8175, %v8192
      %v8202 = vadd.f32 %v8176, %v8193
      %v8203 = vadd.f32 %v8177, %v8194
      %v8204 = vadd.f32 %v8178, %v8195
      %v8205 = vadd.f32 %v8179, %v8196
      %v8206 = vadd.f32 %v8180, %v8197
      %v8207 = vadd.f32 %v8181, %v8198
      %v8208 = vld [vmem:[#allocation5 + $0x50] sm:$0xff]
      %v8209 = vld [vmem:[#allocation5 + $0x58] sm:$0xff]
      %v8210 = vld [vmem:[#allocation5 + $0x60] sm:$0x1f]
      %v8211 = vld [vmem:[%s2 + $0x4c8] sm:$0x1]
      %v8212 = vlaneseq
      %v8213 = vshrl.u32 %v8212, 7
      %v8214 = vsub.s32 0, %v8213
      %v8215 = vrot.slane %v8211, %v8214
      %v8216 = vmul.f32 %v8047, %v8215
      %v8217 = vmul.f32 %v8048, %v8215
      %v8218 = vmul.f32 %v8049, %v8215
      %v8219 = vmul.f32 %v8050, %v8215
      %v8220 = vmul.f32 %v8130, %v8215
      %v8221 = vmul.f32 %v8131, %v8215
      %v8222 = vmul.f32 %v8208, %v8215
      %v8223 = vmul.f32 %v8209, %v8215
      %v8224 = vmul.f32 %v8210, %v8215
      %v8225 = vadd.f32 %v8199, %v8216
      %v8226 = vadd.f32 %v8200, %v8217
      %v8227 = vadd.f32 %v8201, %v8218
      %v8228 = vadd.f32 %v8202, %v8219
      %v8229 = vadd.f32 %v8203, %v8220
      %v8230 = vadd.f32 %v8204, %v8221
      %v8231 = vadd.f32 %v8205, %v8222
      %v8232 = vadd.f32 %v8206, %v8223
      %v8233 = vadd.f32 %v8207, %v8224
      %v8234 = vld [vmem:[#allocation5 + $0x51] sm:$0xff]
      %v8235 = vld [vmem:[#allocation5 + $0x59] sm:$0xff]
      %v8236 = vld [vmem:[#allocation5 + $0x61] sm:$0x1f]
      %v8237 = vld [vmem:[%s2 + $0x4c9] sm:$0x1]
      %v8238 = vlaneseq
      %v8239 = vshrl.u32 %v8238, 7
      %v8240 = vsub.s32 0, %v8239
      %v8241 = vrot.slane %v8237, %v8240
      %v8242 = vmul.f32 %v8070, %v8241
      %v8243 = vmul.f32 %v8071, %v8241
      %v8244 = vmul.f32 %v8072, %v8241
      %v8245 = vmul.f32 %v8073, %v8241
      %v8246 = vmul.f32 %v8156, %v8241
      %v8247 = vmul.f32 %v8157, %v8241
      %v8248 = vmul.f32 %v8234, %v8241
      %v8249 = vmul.f32 %v8235, %v8241
      %v8250 = vmul.f32 %v8236, %v8241
      %v8251 = vadd.f32 %v8225, %v8242
      %v8252 = vadd.f32 %v8226, %v8243
      %v8253 = vadd.f32 %v8227, %v8244
      %v8254 = vadd.f32 %v8228, %v8245
      %v8255 = vadd.f32 %v8229, %v8246
      %v8256 = vadd.f32 %v8230, %v8247
      %v8257 = vadd.f32 %v8231, %v8248
      %v8258 = vadd.f32 %v8232, %v8249
      %v8259 = vadd.f32 %v8233, %v8250
      %v8260 = vld [vmem:[#allocation5 + $0x52] sm:$0xff]
      %v8261 = vld [vmem:[#allocation5 + $0x5a] sm:$0xff]
      %v8262 = vld [vmem:[#allocation5 + $0x62] sm:$0x1f]
      %v8263 = vld [vmem:[%s2 + $0x4ca] sm:$0x1]
      %v8264 = vlaneseq
      %v8265 = vshrl.u32 %v8264, 7
      %v8266 = vsub.s32 0, %v8265
      %v8267 = vrot.slane %v8263, %v8266
      %v8268 = vmul.f32 %v8102, %v8267
      %v8269 = vmul.f32 %v8103, %v8267
      %v8270 = vmul.f32 %v8104, %v8267
      %v8271 = vmul.f32 %v8105, %v8267
      %v8272 = vmul.f32 %v8182, %v8267
      %v8273 = vmul.f32 %v8183, %v8267
      %v8274 = vmul.f32 %v8260, %v8267
      %v8275 = vmul.f32 %v8261, %v8267
      %v8276 = vmul.f32 %v8262, %v8267
      %v8277 = vadd.f32 %v8251, %v8268
      %v8278 = vadd.f32 %v8252, %v8269
      %v8279 = vadd.f32 %v8253, %v8270
      %v8280 = vadd.f32 %v8254, %v8271
      %v8281 = vadd.f32 %v8255, %v8272
      %v8282 = vadd.f32 %v8256, %v8273
      %v8283 = vadd.f32 %v8257, %v8274
      %v8284 = vadd.f32 %v8258, %v8275
      %v8285 = vadd.f32 %v8259, %v8276
      %v8286 = vld [vmem:[%s2 + $0x4cb] sm:$0x1]
      %v8287 = vlaneseq
      %v8288 = vshrl.u32 %v8287, 7
      %v8289 = vsub.s32 0, %v8288
      %v8290 = vrot.slane %v8286, %v8289
      %v8291 = vadd.f32 %v8277, %v8290
      %v8292 = vadd.f32 %v8278, %v8290
      %v8293 = vadd.f32 %v8279, %v8290
      %v8294 = vadd.f32 %v8280, %v8290
      %v8295 = vadd.f32 %v8281, %v8290
      %v8296 = vadd.f32 %v8282, %v8290
      %v8297 = vadd.f32 %v8283, %v8290
      %v8298 = vadd.f32 %v8284, %v8290
      %v8299 = vadd.f32 %v8285, %v8290
      %v8300 = vmax.f32 %v8291, 0.0
      %v8301 = vmax.f32 %v8292, 0.0
      %v8302 = vmax.f32 %v8293, 0.0
      %v8303 = vmax.f32 %v8294, 0.0
      %v8304 = vmax.f32 %v8295, 0.0
      %v8305 = vmax.f32 %v8296, 0.0
      %v8306 = vmax.f32 %v8297, 0.0
      %v8307 = vmax.f32 %v8298, 0.0
      %v8308 = vmax.f32 %v8299, 0.0
      %8309 = vst.msk [vmem:[#allocation9] sm:$0xff] %vm237, %v8300
      %8310 = vst.msk [vmem:[#allocation9 + $0x8] sm:$0xff] %vm237, %v8301
      %8311 = vst.msk [vmem:[#allocation9 + $0x10] sm:$0xff] %vm237, %v8302
      %8312 = vst.msk [vmem:[#allocation9 + $0x18] sm:$0xff] %vm237, %v8303
      %8313 = vst.msk [vmem:[#allocation9 + $0x20] sm:$0xff] %vm237, %v8304
      %8314 = vst.msk [vmem:[#allocation9 + $0x28] sm:$0xff] %vm237, %v8305
      %8315 = vst.msk [vmem:[#allocation9 + $0x30] sm:$0xff] %vm237, %v8306
      %8316 = vst.msk [vmem:[#allocation9 + $0x38] sm:$0xff] %vm237, %v8307
      %8317 = vst.msk [vmem:[#allocation9 + $0x40] sm:$0x1f] %vm8041, %v8308
      %v8318 = vld [vmem:[#allocation9] sm:$0xff]
      %v8319 = vld [vmem:[#allocation9 + $0x8] sm:$0xff]
      %v8320 = vld [vmem:[#allocation9 + $0x10] sm:$0xff]
      %v8321 = vld [vmem:[#allocation9 + $0x18] sm:$0xff]
      %v8322 = vld [vmem:[#allocation9 + $0x20] sm:$0xff]
      %v8323 = vld [vmem:[#allocation9 + $0x28] sm:$0xff]
      %v8324 = vld [vmem:[#allocation9 + $0x30] sm:$0xf]
      %v8325 = vld [vmem:[%s3] sm:$0xff]
      %v8326 = vld [vmem:[%s3 + $0x8] sm:$0xff]
      %v8327 = vld [vmem:[%s3 + $0x10] sm:$0xff]
      %v8328 = vld [vmem:[%s3 + $0x18] sm:$0xff]
      %v8329 = vld [vmem:[%s3 + $0x20] sm:$0xff]
      %v8330 = vld [vmem:[%s3 + $0x28] sm:$0xff]
      %v8331 = vld [vmem:[%s3 + $0x30] sm:$0xff]
      %v8332 = vld [vmem:[%s3 + $0x38] sm:$0xff]
      %v8333 = vld [vmem:[#allocation9 + $0x1] sm:$0xff]
      %v8334 = vld [vmem:[#allocation9 + $0x9] sm:$0xff]
      %v8335 = vld [vmem:[#allocation9 + $0x11] sm:$0xff]
      %v8336 = vld [vmem:[#allocation9 + $0x19] sm:$0xff]
      %v8337 = vld [vmem:[#allocation9 + $0x21] sm:$0xff]
      %v8338 = vld [vmem:[#allocation9 + $0x29] sm:$0xff]
      %v8339 = vld [vmem:[#allocation9 + $0x31] sm:$0xf]
      %v8340 = vld [vmem:[%s3 + $0x40] sm:$0xff]
      %v8341 = vld [vmem:[%s3 + $0x48] sm:$0xff]
      %v8342 = vld [vmem:[%s3 + $0x50] sm:$0xff]
      %v8343 = vld [vmem:[%s3 + $0x58] sm:$0xff]
      %v8344 = vld [vmem:[%s3 + $0x60] sm:$0xff]
      %v8345 = vld [vmem:[%s3 + $0x68] sm:$0xff]
      %v8346 = vld [vmem:[%s3 + $0x70] sm:$0xff]
      %v8347 = vld [vmem:[%s3 + $0x78] sm:$0xff]
      %v8349 = vsel %vm237, %v8333, 0
      %v8352 = vsel %vm237, %v8334, 0
      %v8355 = vsel %vm237, %v8335, 0
      %v8358 = vsel %vm237, %v8336, 0
      %v8361 = vsel %vm237, %v8337, 0
      %v8364 = vsel %vm237, %v8338, 0
      %v8367 = vsel %vm237, %v8339, 0
      %8369 = vmatprep.subr.mxu0 0.0
      %8370 = vmatpush1.msra.mxu0 0.0
      %8371 = vmatprep.subr.mxu0 0.0
      %8372 = vmatpush1.msra.mxu0 0.0
      %8373 = vmatprep.subr.mxu0 0.0
      %8374 = vmatpush1.msra.mxu0 0.0
      %8375 = vmatprep.subr.mxu0 0.0
      %8376 = vmatpush1.msra.mxu0 0.0
      %8377 = vmatprep.subr.mxu0 0.0
      %8378 = vmatpush1.msra.mxu0 0.0
      %8379 = vmatprep.subr.mxu0 0.0
      %8380 = vmatpush1.msra.mxu0 0.0
      %8381 = vmatprep.subr.mxu0 0.0
      %8382 = vmatpush1.msra.mxu0 0.0
      %8383 = vmatprep.subr.mxu0 0.0
      %8384 = vmatpush1.msra.mxu0 0.0
      %8385 = vmatprep.subr.mxu0 0.0
      %8386 = vmatpush1.msra.mxu0 %v8347
      %8387 = vmatprep.subr.mxu0 0.0
      %8388 = vmatpush1.msra.mxu0 %v8346
      %8389 = vmatprep.subr.mxu0 0.0
      %8390 = vmatpush1.msra.mxu0 %v8345
      %8391 = vmatprep.subr.mxu0 0.0
      %8392 = vmatpush1.msra.mxu0 %v8344
      %8393 = vmatprep.subr.mxu0 0.0
      %8394 = vmatpush1.msra.mxu0 %v8343
      %8395 = vmatprep.subr.mxu0 0.0
      %8396 = vmatpush1.msra.mxu0 %v8342
      %8397 = vmatprep.subr.mxu0 0.0
      %8398 = vmatpush1.msra.mxu0 %v8341
      %8399 = vmatprep.subr.mxu0 0.0
      %8400 = vmatpush1.msra.mxu0 %v8340
      %8401 = vmatprep.subr.mxu0 0.0
      %8402 = vmatpush2.msra.mxu0 0.0
      %8403 = vmatprep.subr.mxu0 0.0
      %8404 = vmatpush2.msra.mxu0 0.0
      %8405 = vmatprep.subr.mxu0 0.0
      %8406 = vmatpush2.msra.mxu0 0.0
      %8407 = vmatprep.subr.mxu0 0.0
      %8408 = vmatpush2.msra.mxu0 0.0
      %8409 = vmatprep.subr.mxu0 0.0
      %8410 = vmatpush2.msra.mxu0 0.0
      %8411 = vmatprep.subr.mxu0 0.0
      %8412 = vmatpush2.msra.mxu0 0.0
      %8413 = vmatprep.subr.mxu0 0.0
      %8414 = vmatpush2.msra.mxu0 0.0
      %8415 = vmatprep.subr.mxu0 0.0
      %8416 = vmatpush2.msra.mxu0 0.0
      %8417 = vmatprep.subr.mxu0 0.0
      %8418 = vmatpush2.msra.mxu0 0.0
      %8419 = vmatprep.subr.mxu0 0.0
      %8420 = vmatpush2.msra.mxu0 0.0
      %8421 = vmatprep.subr.mxu0 0.0
      %8422 = vmatpush2.msra.mxu0 0.0
      %8423 = vmatprep.subr.mxu0 0.0
      %8424 = vmatpush2.msra.mxu0 0.0
      %8425 = vmatprep.subr.mxu0 0.0
      %8426 = vmatpush2.msra.mxu0 0.0
      %8427 = vmatprep.subr.mxu0 0.0
      %8428 = vmatpush2.msra.mxu0 0.0
      %8429 = vmatprep.subr.mxu0 0.0
      %8430 = vmatpush2.msra.mxu0 0.0
      %8431 = vmatprep.subr.mxu0 0.0
      %8432 = vmatpush2.msra.mxu0 0.0
      %8433 = vmatprep.mubr.f32.mxu0 0.0
      %8434 = vmatmul.mubr.f32.gmra.mxu0 %v8349
      %v8435 = vpop.f32.mrf.mxu0
      %v8436 = vadd.f32 0.0, %v8435
      %v8437 = vpop.f32.mrf.mxu0
      %8438 = vmatprep.mubr.f32.mxu0 0.0
      %8439 = vmatmul.mubr.f32.gmra.mxu0 %v8352
      %v8440 = vpop.f32.mrf.mxu0
      %v8441 = vadd.f32 0.0, %v8440
      %v8442 = vpop.f32.mrf.mxu0
      %8443 = vmatprep.mubr.f32.mxu0 0.0
      %8444 = vmatmul.mubr.f32.gmra.mxu0 %v8355
      %v8445 = vpop.f32.mrf.mxu0
      %v8446 = vadd.f32 0.0, %v8445
      %v8447 = vpop.f32.mrf.mxu0
      %8448 = vmatprep.mubr.f32.mxu0 0.0
      %8449 = vmatmul.mubr.f32.gmra.mxu0 %v8358
      %v8450 = vpop.f32.mrf.mxu0
      %v8451 = vadd.f32 0.0, %v8450
      %v8452 = vpop.f32.mrf.mxu0
      %8453 = vmatprep.mubr.f32.mxu0 0.0
      %8454 = vmatmul.mubr.f32.gmra.mxu0 %v8361
      %v8455 = vpop.f32.mrf.mxu0
      %v8456 = vadd.f32 0.0, %v8455
      %v8457 = vpop.f32.mrf.mxu0
      %8458 = vmatprep.mubr.f32.mxu0 0.0
      %8459 = vmatmul.mubr.f32.gmra.mxu0 %v8364
      %v8460 = vpop.f32.mrf.mxu0
      %v8461 = vadd.f32 0.0, %v8460
      %v8462 = vpop.f32.mrf.mxu0
      %8463 = vmatprep.mubr.f32.mxu0 0.0
      %8464 = vmatmul.mubr.f32.gmra.mxu0 %v8367
      %v8465 = vpop.f32.mrf.mxu0
      %v8466 = vadd.f32 0.0, %v8465
      %v8467 = vpop.f32.mrf.mxu0
      %8468 = vdwg.mxu0
      %v8470 = vsel %vm237, %v8318, 0
      %v8473 = vsel %vm237, %v8319, 0
      %v8476 = vsel %vm237, %v8320, 0
      %v8479 = vsel %vm237, %v8321, 0
      %v8482 = vsel %vm237, %v8322, 0
      %v8485 = vsel %vm237, %v8323, 0
      %v8488 = vsel %vm237, %v8324, 0
      %8490 = vmatprep.subr.mxu0 0.0
      %8491 = vmatpush1.msra.mxu0 0.0
      %8492 = vmatprep.subr.mxu0 0.0
      %8493 = vmatpush1.msra.mxu0 0.0
      %8494 = vmatprep.subr.mxu0 0.0
      %8495 = vmatpush1.msra.mxu0 0.0
      %8496 = vmatprep.subr.mxu0 0.0
      %8497 = vmatpush1.msra.mxu0 0.0
      %8498 = vmatprep.subr.mxu0 0.0
      %8499 = vmatpush1.msra.mxu0 0.0
      %8500 = vmatprep.subr.mxu0 0.0
      %8501 = vmatpush1.msra.mxu0 0.0
      %8502 = vmatprep.subr.mxu0 0.0
      %8503 = vmatpush1.msra.mxu0 0.0
      %8504 = vmatprep.subr.mxu0 0.0
      %8505 = vmatpush1.msra.mxu0 0.0
      %8506 = vmatprep.subr.mxu0 0.0
      %8507 = vmatpush1.msra.mxu0 %v8332
      %8508 = vmatprep.subr.mxu0 0.0
      %8509 = vmatpush1.msra.mxu0 %v8331
      %8510 = vmatprep.subr.mxu0 0.0
      %8511 = vmatpush1.msra.mxu0 %v8330
      %8512 = vmatprep.subr.mxu0 0.0
      %8513 = vmatpush1.msra.mxu0 %v8329
      %8514 = vmatprep.subr.mxu0 0.0
      %8515 = vmatpush1.msra.mxu0 %v8328
      %8516 = vmatprep.subr.mxu0 0.0
      %8517 = vmatpush1.msra.mxu0 %v8327
      %8518 = vmatprep.subr.mxu0 0.0
      %8519 = vmatpush1.msra.mxu0 %v8326
      %8520 = vmatprep.subr.mxu0 0.0
      %8521 = vmatpush1.msra.mxu0 %v8325
      %8522 = vmatprep.subr.mxu0 0.0
      %8523 = vmatpush2.msra.mxu0 0.0
      %8524 = vmatprep.subr.mxu0 0.0
      %8525 = vmatpush2.msra.mxu0 0.0
      %8526 = vmatprep.subr.mxu0 0.0
      %8527 = vmatpush2.msra.mxu0 0.0
      %8528 = vmatprep.subr.mxu0 0.0
      %8529 = vmatpush2.msra.mxu0 0.0
      %8530 = vmatprep.subr.mxu0 0.0
      %8531 = vmatpush2.msra.mxu0 0.0
      %8532 = vmatprep.subr.mxu0 0.0
      %8533 = vmatpush2.msra.mxu0 0.0
      %8534 = vmatprep.subr.mxu0 0.0
      %8535 = vmatpush2.msra.mxu0 0.0
      %8536 = vmatprep.subr.mxu0 0.0
      %8537 = vmatpush2.msra.mxu0 0.0
      %8538 = vmatprep.subr.mxu0 0.0
      %8539 = vmatpush2.msra.mxu0 0.0
      %8540 = vmatprep.subr.mxu0 0.0
      %8541 = vmatpush2.msra.mxu0 0.0
      %8542 = vmatprep.subr.mxu0 0.0
      %8543 = vmatpush2.msra.mxu0 0.0
      %8544 = vmatprep.subr.mxu0 0.0
      %8545 = vmatpush2.msra.mxu0 0.0
      %8546 = vmatprep.subr.mxu0 0.0
      %8547 = vmatpush2.msra.mxu0 0.0
      %8548 = vmatprep.subr.mxu0 0.0
      %8549 = vmatpush2.msra.mxu0 0.0
      %8550 = vmatprep.subr.mxu0 0.0
      %8551 = vmatpush2.msra.mxu0 0.0
      %8552 = vmatprep.subr.mxu0 0.0
      %8553 = vmatpush2.msra.mxu0 0.0
      %8554 = vmatprep.mubr.f32.mxu0 0.0
      %8555 = vmatmul.mubr.f32.gmra.mxu0 %v8470
      %v8556 = vpop.f32.mrf.mxu0
      %v8557 = vadd.f32 %v8436, %v8556
      %v8558 = vpop.f32.mrf.mxu0
      %8559 = vmatprep.mubr.f32.mxu0 0.0
      %8560 = vmatmul.mubr.f32.gmra.mxu0 %v8473
      %v8561 = vpop.f32.mrf.mxu0
      %v8562 = vadd.f32 %v8441, %v8561
      %v8563 = vpop.f32.mrf.mxu0
      %8564 = vmatprep.mubr.f32.mxu0 0.0
      %8565 = vmatmul.mubr.f32.gmra.mxu0 %v8476
      %v8566 = vpop.f32.mrf.mxu0
      %v8567 = vadd.f32 %v8446, %v8566
      %v8568 = vpop.f32.mrf.mxu0
      %8569 = vmatprep.mubr.f32.mxu0 0.0
      %8570 = vmatmul.mubr.f32.gmra.mxu0 %v8479
      %v8571 = vpop.f32.mrf.mxu0
      %v8572 = vadd.f32 %v8451, %v8571
      %v8573 = vpop.f32.mrf.mxu0
      %8574 = vmatprep.mubr.f32.mxu0 0.0
      %8575 = vmatmul.mubr.f32.gmra.mxu0 %v8482
      %v8576 = vpop.f32.mrf.mxu0
      %v8577 = vadd.f32 %v8456, %v8576
      %v8578 = vpop.f32.mrf.mxu0
      %8579 = vmatprep.mubr.f32.mxu0 0.0
      %8580 = vmatmul.mubr.f32.gmra.mxu0 %v8485
      %v8581 = vpop.f32.mrf.mxu0
      %v8582 = vadd.f32 %v8461, %v8581
      %v8583 = vpop.f32.mrf.mxu0
      %8584 = vmatprep.mubr.f32.mxu0 0.0
      %8585 = vmatmul.mubr.f32.gmra.mxu0 %v8488
      %v8586 = vpop.f32.mrf.mxu0
      %v8587 = vadd.f32 %v8466, %v8586
      %v8588 = vpop.f32.mrf.mxu0
      %8589 = vdwg.mxu0
      %v8590 = vld [vmem:[#allocation9 + $0x10] sm:$0xff]
      %v8591 = vld [vmem:[#allocation9 + $0x18] sm:$0xff]
      %v8592 = vld [vmem:[#allocation9 + $0x20] sm:$0xff]
      %v8593 = vld [vmem:[#allocation9 + $0x28] sm:$0xff]
      %v8594 = vld [vmem:[#allocation9 + $0x30] sm:$0xff]
      %v8595 = vld [vmem:[#allocation9 + $0x38] sm:$0xff]
      %v8596 = vld [vmem:[#allocation9 + $0x40] sm:$0xf]
      %v8597 = vld [vmem:[%s3 + $0x80] sm:$0xff]
      %v8598 = vld [vmem:[%s3 + $0x88] sm:$0xff]
      %v8599 = vld [vmem:[%s3 + $0x90] sm:$0xff]
      %v8600 = vld [vmem:[%s3 + $0x98] sm:$0xff]
      %v8601 = vld [vmem:[%s3 + $0xa0] sm:$0xff]
      %v8602 = vld [vmem:[%s3 + $0xa8] sm:$0xff]
      %v8603 = vld [vmem:[%s3 + $0xb0] sm:$0xff]
      %v8604 = vld [vmem:[%s3 + $0xb8] sm:$0xff]
      %v8606 = vsel %vm237, %v8590, 0
      %v8609 = vsel %vm237, %v8591, 0
      %v8612 = vsel %vm237, %v8592, 0
      %v8615 = vsel %vm237, %v8593, 0
      %v8618 = vsel %vm237, %v8594, 0
      %v8621 = vsel %vm237, %v8595, 0
      %v8624 = vsel %vm237, %v8596, 0
      %8626 = vmatprep.subr.mxu0 0.0
      %8627 = vmatpush1.msra.mxu0 0.0
      %8628 = vmatprep.subr.mxu0 0.0
      %8629 = vmatpush1.msra.mxu0 0.0
      %8630 = vmatprep.subr.mxu0 0.0
      %8631 = vmatpush1.msra.mxu0 0.0
      %8632 = vmatprep.subr.mxu0 0.0
      %8633 = vmatpush1.msra.mxu0 0.0
      %8634 = vmatprep.subr.mxu0 0.0
      %8635 = vmatpush1.msra.mxu0 0.0
      %8636 = vmatprep.subr.mxu0 0.0
      %8637 = vmatpush1.msra.mxu0 0.0
      %8638 = vmatprep.subr.mxu0 0.0
      %8639 = vmatpush1.msra.mxu0 0.0
      %8640 = vmatprep.subr.mxu0 0.0
      %8641 = vmatpush1.msra.mxu0 0.0
      %8642 = vmatprep.subr.mxu0 0.0
      %8643 = vmatpush1.msra.mxu0 %v8604
      %8644 = vmatprep.subr.mxu0 0.0
      %8645 = vmatpush1.msra.mxu0 %v8603
      %8646 = vmatprep.subr.mxu0 0.0
      %8647 = vmatpush1.msra.mxu0 %v8602
      %8648 = vmatprep.subr.mxu0 0.0
      %8649 = vmatpush1.msra.mxu0 %v8601
      %8650 = vmatprep.subr.mxu0 0.0
      %8651 = vmatpush1.msra.mxu0 %v8600
      %8652 = vmatprep.subr.mxu0 0.0
      %8653 = vmatpush1.msra.mxu0 %v8599
      %8654 = vmatprep.subr.mxu0 0.0
      %8655 = vmatpush1.msra.mxu0 %v8598
      %8656 = vmatprep.subr.mxu0 0.0
      %8657 = vmatpush1.msra.mxu0 %v8597
      %8658 = vmatprep.subr.mxu0 0.0
      %8659 = vmatpush2.msra.mxu0 0.0
      %8660 = vmatprep.subr.mxu0 0.0
      %8661 = vmatpush2.msra.mxu0 0.0
      %8662 = vmatprep.subr.mxu0 0.0
      %8663 = vmatpush2.msra.mxu0 0.0
      %8664 = vmatprep.subr.mxu0 0.0
      %8665 = vmatpush2.msra.mxu0 0.0
      %8666 = vmatprep.subr.mxu0 0.0
      %8667 = vmatpush2.msra.mxu0 0.0
      %8668 = vmatprep.subr.mxu0 0.0
      %8669 = vmatpush2.msra.mxu0 0.0
      %8670 = vmatprep.subr.mxu0 0.0
      %8671 = vmatpush2.msra.mxu0 0.0
      %8672 = vmatprep.subr.mxu0 0.0
      %8673 = vmatpush2.msra.mxu0 0.0
      %8674 = vmatprep.subr.mxu0 0.0
      %8675 = vmatpush2.msra.mxu0 0.0
      %8676 = vmatprep.subr.mxu0 0.0
      %8677 = vmatpush2.msra.mxu0 0.0
      %8678 = vmatprep.subr.mxu0 0.0
      %8679 = vmatpush2.msra.mxu0 0.0
      %8680 = vmatprep.subr.mxu0 0.0
      %8681 = vmatpush2.msra.mxu0 0.0
      %8682 = vmatprep.subr.mxu0 0.0
      %8683 = vmatpush2.msra.mxu0 0.0
      %8684 = vmatprep.subr.mxu0 0.0
      %8685 = vmatpush2.msra.mxu0 0.0
      %8686 = vmatprep.subr.mxu0 0.0
      %8687 = vmatpush2.msra.mxu0 0.0
      %8688 = vmatprep.subr.mxu0 0.0
      %8689 = vmatpush2.msra.mxu0 0.0
      %8690 = vmatprep.mubr.f32.mxu0 0.0
      %8691 = vmatmul.mubr.f32.gmra.mxu0 %v8606
      %v8692 = vpop.f32.mrf.mxu0
      %v8693 = vadd.f32 0.0, %v8692
      %v8694 = vpop.f32.mrf.mxu0
      %8695 = vmatprep.mubr.f32.mxu0 0.0
      %8696 = vmatmul.mubr.f32.gmra.mxu0 %v8609
      %v8697 = vpop.f32.mrf.mxu0
      %v8698 = vadd.f32 0.0, %v8697
      %v8699 = vpop.f32.mrf.mxu0
      %8700 = vmatprep.mubr.f32.mxu0 0.0
      %8701 = vmatmul.mubr.f32.gmra.mxu0 %v8612
      %v8702 = vpop.f32.mrf.mxu0
      %v8703 = vadd.f32 0.0, %v8702
      %v8704 = vpop.f32.mrf.mxu0
      %8705 = vmatprep.mubr.f32.mxu0 0.0
      %8706 = vmatmul.mubr.f32.gmra.mxu0 %v8615
      %v8707 = vpop.f32.mrf.mxu0
      %v8708 = vadd.f32 0.0, %v8707
      %v8709 = vpop.f32.mrf.mxu0
      %8710 = vmatprep.mubr.f32.mxu0 0.0
      %8711 = vmatmul.mubr.f32.gmra.mxu0 %v8618
      %v8712 = vpop.f32.mrf.mxu0
      %v8713 = vadd.f32 0.0, %v8712
      %v8714 = vpop.f32.mrf.mxu0
      %8715 = vmatprep.mubr.f32.mxu0 0.0
      %8716 = vmatmul.mubr.f32.gmra.mxu0 %v8621
      %v8717 = vpop.f32.mrf.mxu0
      %v8718 = vadd.f32 0.0, %v8717
      %v8719 = vpop.f32.mrf.mxu0
      %8720 = vmatprep.mubr.f32.mxu0 0.0
      %8721 = vmatmul.mubr.f32.gmra.mxu0 %v8624
      %v8722 = vpop.f32.mrf.mxu0
      %v8723 = vadd.f32 0.0, %v8722
      %v8724 = vpop.f32.mrf.mxu0
      %8725 = vdwg.mxu0
      %v8726 = vadd.f32 %v8557, %v8693
      %v8727 = vadd.f32 %v8562, %v8698
      %v8728 = vadd.f32 %v8567, %v8703
      %v8729 = vadd.f32 %v8572, %v8708
      %v8730 = vadd.f32 %v8577, %v8713
      %v8731 = vadd.f32 %v8582, %v8718
      %v8732 = vadd.f32 %v8587, %v8723
      %v8733 = vld [vmem:[#allocation9 + $0x11] sm:$0xff]
      %v8734 = vld [vmem:[#allocation9 + $0x19] sm:$0xff]
      %v8735 = vld [vmem:[#allocation9 + $0x21] sm:$0xff]
      %v8736 = vld [vmem:[#allocation9 + $0x29] sm:$0xff]
      %v8737 = vld [vmem:[#allocation9 + $0x31] sm:$0xff]
      %v8738 = vld [vmem:[#allocation9 + $0x39] sm:$0xff]
      %v8739 = vld [vmem:[#allocation9 + $0x41] sm:$0xf]
      %v8740 = vld [vmem:[%s3 + $0xc0] sm:$0xff]
      %v8741 = vld [vmem:[%s3 + $0xc8] sm:$0xff]
      %v8742 = vld [vmem:[%s3 + $0xd0] sm:$0xff]
      %v8743 = vld [vmem:[%s3 + $0xd8] sm:$0xff]
      %v8744 = vld [vmem:[%s3 + $0xe0] sm:$0xff]
      %v8745 = vld [vmem:[%s3 + $0xe8] sm:$0xff]
      %v8746 = vld [vmem:[%s3 + $0xf0] sm:$0xff]
      %v8747 = vld [vmem:[%s3 + $0xf8] sm:$0xff]
      %v8749 = vsel %vm237, %v8733, 0
      %v8752 = vsel %vm237, %v8734, 0
      %v8755 = vsel %vm237, %v8735, 0
      %v8758 = vsel %vm237, %v8736, 0
      %v8761 = vsel %vm237, %v8737, 0
      %v8764 = vsel %vm237, %v8738, 0
      %v8767 = vsel %vm237, %v8739, 0
      %8769 = vmatprep.subr.mxu0 0.0
      %8770 = vmatpush1.msra.mxu0 0.0
      %8771 = vmatprep.subr.mxu0 0.0
      %8772 = vmatpush1.msra.mxu0 0.0
      %8773 = vmatprep.subr.mxu0 0.0
      %8774 = vmatpush1.msra.mxu0 0.0
      %8775 = vmatprep.subr.mxu0 0.0
      %8776 = vmatpush1.msra.mxu0 0.0
      %8777 = vmatprep.subr.mxu0 0.0
      %8778 = vmatpush1.msra.mxu0 0.0
      %8779 = vmatprep.subr.mxu0 0.0
      %8780 = vmatpush1.msra.mxu0 0.0
      %8781 = vmatprep.subr.mxu0 0.0
      %8782 = vmatpush1.msra.mxu0 0.0
      %8783 = vmatprep.subr.mxu0 0.0
      %8784 = vmatpush1.msra.mxu0 0.0
      %8785 = vmatprep.subr.mxu0 0.0
      %8786 = vmatpush1.msra.mxu0 %v8747
      %8787 = vmatprep.subr.mxu0 0.0
      %8788 = vmatpush1.msra.mxu0 %v8746
      %8789 = vmatprep.subr.mxu0 0.0
      %8790 = vmatpush1.msra.mxu0 %v8745
      %8791 = vmatprep.subr.mxu0 0.0
      %8792 = vmatpush1.msra.mxu0 %v8744
      %8793 = vmatprep.subr.mxu0 0.0
      %8794 = vmatpush1.msra.mxu0 %v8743
      %8795 = vmatprep.subr.mxu0 0.0
      %8796 = vmatpush1.msra.mxu0 %v8742
      %8797 = vmatprep.subr.mxu0 0.0
      %8798 = vmatpush1.msra.mxu0 %v8741
      %8799 = vmatprep.subr.mxu0 0.0
      %8800 = vmatpush1.msra.mxu0 %v8740
      %8801 = vmatprep.subr.mxu0 0.0
      %8802 = vmatpush2.msra.mxu0 0.0
      %8803 = vmatprep.subr.mxu0 0.0
      %8804 = vmatpush2.msra.mxu0 0.0
      %8805 = vmatprep.subr.mxu0 0.0
      %8806 = vmatpush2.msra.mxu0 0.0
      %8807 = vmatprep.subr.mxu0 0.0
      %8808 = vmatpush2.msra.mxu0 0.0
      %8809 = vmatprep.subr.mxu0 0.0
      %8810 = vmatpush2.msra.mxu0 0.0
      %8811 = vmatprep.subr.mxu0 0.0
      %8812 = vmatpush2.msra.mxu0 0.0
      %8813 = vmatprep.subr.mxu0 0.0
      %8814 = vmatpush2.msra.mxu0 0.0
      %8815 = vmatprep.subr.mxu0 0.0
      %8816 = vmatpush2.msra.mxu0 0.0
      %8817 = vmatprep.subr.mxu0 0.0
      %8818 = vmatpush2.msra.mxu0 0.0
      %8819 = vmatprep.subr.mxu0 0.0
      %8820 = vmatpush2.msra.mxu0 0.0
      %8821 = vmatprep.subr.mxu0 0.0
      %8822 = vmatpush2.msra.mxu0 0.0
      %8823 = vmatprep.subr.mxu0 0.0
      %8824 = vmatpush2.msra.mxu0 0.0
      %8825 = vmatprep.subr.mxu0 0.0
      %8826 = vmatpush2.msra.mxu0 0.0
      %8827 = vmatprep.subr.mxu0 0.0
      %8828 = vmatpush2.msra.mxu0 0.0
      %8829 = vmatprep.subr.mxu0 0.0
      %8830 = vmatpush2.msra.mxu0 0.0
      %8831 = vmatprep.subr.mxu0 0.0
      %8832 = vmatpush2.msra.mxu0 0.0
      %8833 = vmatprep.mubr.f32.mxu0 0.0
      %8834 = vmatmul.mubr.f32.gmra.mxu0 %v8749
      %v8835 = vpop.f32.mrf.mxu0
      %v8836 = vadd.f32 0.0, %v8835
      %v8837 = vpop.f32.mrf.mxu0
      %8838 = vmatprep.mubr.f32.mxu0 0.0
      %8839 = vmatmul.mubr.f32.gmra.mxu0 %v8752
      %v8840 = vpop.f32.mrf.mxu0
      %v8841 = vadd.f32 0.0, %v8840
      %v8842 = vpop.f32.mrf.mxu0
      %8843 = vmatprep.mubr.f32.mxu0 0.0
      %8844 = vmatmul.mubr.f32.gmra.mxu0 %v8755
      %v8845 = vpop.f32.mrf.mxu0
      %v8846 = vadd.f32 0.0, %v8845
      %v8847 = vpop.f32.mrf.mxu0
      %8848 = vmatprep.mubr.f32.mxu0 0.0
      %8849 = vmatmul.mubr.f32.gmra.mxu0 %v8758
      %v8850 = vpop.f32.mrf.mxu0
      %v8851 = vadd.f32 0.0, %v8850
      %v8852 = vpop.f32.mrf.mxu0
      %8853 = vmatprep.mubr.f32.mxu0 0.0
      %8854 = vmatmul.mubr.f32.gmra.mxu0 %v8761
      %v8855 = vpop.f32.mrf.mxu0
      %v8856 = vadd.f32 0.0, %v8855
      %v8857 = vpop.f32.mrf.mxu0
      %8858 = vmatprep.mubr.f32.mxu0 0.0
      %8859 = vmatmul.mubr.f32.gmra.mxu0 %v8764
      %v8860 = vpop.f32.mrf.mxu0
      %v8861 = vadd.f32 0.0, %v8860
      %v8862 = vpop.f32.mrf.mxu0
      %8863 = vmatprep.mubr.f32.mxu0 0.0
      %8864 = vmatmul.mubr.f32.gmra.mxu0 %v8767
      %v8865 = vpop.f32.mrf.mxu0
      %v8866 = vadd.f32 0.0, %v8865
      %v8867 = vpop.f32.mrf.mxu0
      %8868 = vdwg.mxu0
      %v8869 = vadd.f32 %v8726, %v8836
      %v8870 = vadd.f32 %v8727, %v8841
      %v8871 = vadd.f32 %v8728, %v8846
      %v8872 = vadd.f32 %v8729, %v8851
      %v8873 = vadd.f32 %v8730, %v8856
      %v8874 = vadd.f32 %v8731, %v8861
      %v8875 = vadd.f32 %v8732, %v8866
      %v8876 = vld [vmem:[%s3 + $0x100] sm:$0x1]
      %v8877 = vlaneseq
      %v8878 = vshrl.u32 %v8877, 7
      %v8879 = vsub.s32 0, %v8878
      %v8880 = vrot.slane %v8876, %v8879
      %v8881 = vadd.f32 %v8869, %v8880
      %v8882 = vadd.f32 %v8870, %v8880
      %v8883 = vadd.f32 %v8871, %v8880
      %v8884 = vadd.f32 %v8872, %v8880
      %v8885 = vadd.f32 %v8873, %v8880
      %v8886 = vadd.f32 %v8874, %v8880
      %v8887 = vadd.f32 %v8875, %v8880
      %v8888 = vmax.f32 %v8881, 0.0
      %v8889 = vmax.f32 %v8882, 0.0
      %v8890 = vmax.f32 %v8883, 0.0
      %v8891 = vmax.f32 %v8884, 0.0
      %v8892 = vmax.f32 %v8885, 0.0
      %v8893 = vmax.f32 %v8886, 0.0
      %v8894 = vmax.f32 %v8887, 0.0
      %8895 = vst [vmem:[#allocation10] sm:$0xff] %v8888
      %8896 = vst [vmem:[#allocation10 + $0x8] sm:$0xff] %v8889
      %8897 = vst [vmem:[#allocation10 + $0x10] sm:$0xff] %v8890
      %8898 = vst [vmem:[#allocation10 + $0x18] sm:$0xff] %v8891
      %8899 = vst [vmem:[#allocation10 + $0x20] sm:$0xff] %v8892
      %8900 = vst [vmem:[#allocation10 + $0x28] sm:$0xff] %v8893
      %8901 = vst [vmem:[#allocation10 + $0x30] sm:$0xf] %v8894
      %v8902 = vld [vmem:[#allocation10] sm:$0x1]
      %v8903 = vld [vmem:[#allocation10 + $0x1] sm:$0x1]
      %v8904 = vmax.f32 %v8902, %v8903
      %v8905 = vld [vmem:[#allocation10 + $0x10] sm:$0x1]
      %v8906 = vld [vmem:[#allocation10 + $0x11] sm:$0x1]
      %v8907 = vmax.f32 %v8905, %v8906
      %v8908 = vmax.f32 %v8904, %v8907
      %v8909 = vld [vmem:[#allocation10 + $0x2] sm:$0x1]
      %v8910 = vld [vmem:[#allocation10 + $0x3] sm:$0x1]
      %v8911 = vmax.f32 %v8909, %v8910
      %v8912 = vld [vmem:[#allocation10 + $0x12] sm:$0x1]
      %v8913 = vld [vmem:[#allocation10 + $0x13] sm:$0x1]
      %v8914 = vmax.f32 %v8912, %v8913
      %v8915 = vmax.f32 %v8911, %v8914
      %v8916 = vld [vmem:[#allocation10 + $0x20] sm:$0x1]
      %v8917 = vld [vmem:[#allocation10 + $0x21] sm:$0x1]
      %v8918 = vmax.f32 %v8916, %v8917
      %v8919 = vld [vmem:[#allocation10 + $0x30] sm:$0x1]
      %v8920 = vld [vmem:[#allocation10 + $0x31] sm:$0x1]
      %v8921 = vmax.f32 %v8919, %v8920
      %v8922 = vmax.f32 %v8918, %v8921
      %v8923 = vld [vmem:[#allocation10 + $0x22] sm:$0x1]
      %v8924 = vld [vmem:[#allocation10 + $0x23] sm:$0x1]
      %v8925 = vmax.f32 %v8923, %v8924
      %v8926 = vld [vmem:[#allocation10 + $0x32] sm:$0x1]
      %v8927 = vld [vmem:[#allocation10 + $0x33] sm:$0x1]
      %v8928 = vmax.f32 %v8926, %v8927
      %v8929 = vmax.f32 %v8925, %v8928
      %v8930 = vld [vmem:[%s4] sm:$0xff]
      %v8931 = vld [vmem:[%s4 + $0x8] sm:$0xff]
      %v8932 = vld [vmem:[%s4 + $0x10] sm:$0xff]
      %v8933 = vld [vmem:[%s4 + $0x18] sm:$0xff]
      %v8934 = vld [vmem:[%s4 + $0x20] sm:$0xff]
      %v8935 = vld [vmem:[%s4 + $0x28] sm:$0xff]
      %v8936 = vld [vmem:[%s4 + $0x30] sm:$0xff]
      %v8937 = vld [vmem:[%s4 + $0x38] sm:$0xff]
      %v8938 = vld [vmem:[%s4 + $0x40] sm:$0xff]
      %v8939 = vld [vmem:[%s4 + $0x48] sm:$0xff]
      %v8940 = vld [vmem:[%s4 + $0x50] sm:$0xff]
      %v8941 = vld [vmem:[%s4 + $0x58] sm:$0xff]
      %v8942 = vld [vmem:[%s4 + $0x60] sm:$0xff]
      %v8943 = vld [vmem:[%s4 + $0x68] sm:$0xff]
      %v8944 = vld [vmem:[%s4 + $0x70] sm:$0xff]
      %v8945 = vld [vmem:[%s4 + $0x78] sm:$0xff]
      %v8946 = vld [vmem:[%s4 + $0x80] sm:$0xff]
      %v8947 = vld [vmem:[%s4 + $0x88] sm:$0xff]
      %v8948 = vld [vmem:[%s4 + $0x90] sm:$0xff]
      %v8949 = vld [vmem:[%s4 + $0x98] sm:$0xff]
      %v8950 = vld [vmem:[%s4 + $0xa0] sm:$0xff]
      %v8951 = vld [vmem:[%s4 + $0xa8] sm:$0xff]
      %v8952 = vld [vmem:[%s4 + $0xb0] sm:$0xff]
      %v8953 = vld [vmem:[%s4 + $0xb8] sm:$0xff]
      %v8954 = vld [vmem:[%s4 + $0xc0] sm:$0xff]
      %v8955 = vld [vmem:[%s4 + $0xc8] sm:$0xff]
      %v8956 = vld [vmem:[%s4 + $0xd0] sm:$0xff]
      %v8957 = vld [vmem:[%s4 + $0xd8] sm:$0xff]
      %v8958 = vld [vmem:[%s4 + $0xe0] sm:$0xff]
      %v8959 = vld [vmem:[%s4 + $0xe8] sm:$0xff]
      %v8960 = vld [vmem:[%s4 + $0xf0] sm:$0xff]
      %v8961 = vld [vmem:[%s4 + $0xf8] sm:$0xff]
      %v8962 = vld [vmem:[%s4 + $0x100] sm:$0xff]
      %v8963 = vld [vmem:[%s4 + $0x108] sm:$0xff]
      %v8964 = vld [vmem:[%s4 + $0x110] sm:$0xff]
      %v8965 = vld [vmem:[%s4 + $0x118] sm:$0xff]
      %v8966 = vld [vmem:[%s4 + $0x120] sm:$0xff]
      %v8967 = vld [vmem:[%s4 + $0x128] sm:$0xff]
      %v8968 = vld [vmem:[%s4 + $0x130] sm:$0xff]
      %v8969 = vld [vmem:[%s4 + $0x138] sm:$0xff]
      %v8970 = vld [vmem:[%s4 + $0x140] sm:$0xff]
      %v8971 = vld [vmem:[%s4 + $0x148] sm:$0xff]
      %v8972 = vld [vmem:[%s4 + $0x150] sm:$0xff]
      %v8973 = vld [vmem:[%s4 + $0x158] sm:$0xff]
      %v8974 = vld [vmem:[%s4 + $0x160] sm:$0xff]
      %v8975 = vld [vmem:[%s4 + $0x168] sm:$0xff]
      %v8976 = vld [vmem:[%s4 + $0x170] sm:$0xff]
      %v8977 = vld [vmem:[%s4 + $0x178] sm:$0xff]
      %v8978 = vld [vmem:[%s4 + $0x180] sm:$0xff]
      %v8979 = vld [vmem:[%s4 + $0x188] sm:$0xff]
      %v8980 = vld [vmem:[%s4 + $0x190] sm:$0xff]
      %v8981 = vld [vmem:[%s4 + $0x198] sm:$0xff]
      %v8982 = vld [vmem:[%s4 + $0x1a0] sm:$0xff]
      %v8983 = vld [vmem:[%s4 + $0x1a8] sm:$0xff]
      %v8984 = vld [vmem:[%s4 + $0x1b0] sm:$0xff]
      %v8985 = vld [vmem:[%s4 + $0x1b8] sm:$0xff]
      %v8986 = vld [vmem:[%s4 + $0x1c0] sm:$0xff]
      %v8987 = vld [vmem:[%s4 + $0x1c8] sm:$0xff]
      %v8988 = vld [vmem:[%s4 + $0x1d0] sm:$0xff]
      %v8989 = vld [vmem:[%s4 + $0x1d8] sm:$0xff]
      %v8990 = vld [vmem:[%s4 + $0x1e0] sm:$0xff]
      %v8991 = vld [vmem:[%s4 + $0x1e8] sm:$0xff]
      %v8992 = vld [vmem:[%s4 + $0x1f0] sm:$0xff]
      %v8993 = vld [vmem:[%s4 + $0x1f8] sm:$0xff]
      %v8994 = vld [vmem:[%s4 + $0x200] sm:$0x11]
      %v8995 = vunpack.c.l.bf16 %v8994
      %v8996 = vunpack.c.h.bf16 %v8994
      %v8997 = vld [vmem:[%s4 + $0x200] sm:$0x1]
      %v8998 = vunpack.c.l.bf16 %v8997
      %v8999 = vpack.c.bf16 %v8908, %v8908
      %v9000 = vpack.c.bf16 %v8915, %v8915
      %v9001 = vpack.c.bf16 %v8922, %v8922
      %v9002 = vpack.c.bf16 %v8929, %v8929
      %v9067 = vunpack.c.l.b16 %v8930
      %v9068 = vunpack.c.h.b16 %v8930
      %v9069 = vunpack.c.l.b16 %v8931
      %v9070 = vunpack.c.h.b16 %v8931
      %v9071 = vunpack.c.l.b16 %v8932
      %v9072 = vunpack.c.h.b16 %v8932
      %v9073 = vunpack.c.l.b16 %v8933
      %v9074 = vunpack.c.h.b16 %v8933
      %v9075 = vunpack.c.l.b16 %v8934
      %v9076 = vunpack.c.h.b16 %v8934
      %v9077 = vunpack.c.l.b16 %v8935
      %v9078 = vunpack.c.h.b16 %v8935
      %v9079 = vunpack.c.l.b16 %v8936
      %v9080 = vunpack.c.h.b16 %v8936
      %v9081 = vunpack.c.l.b16 %v8937
      %v9082 = vunpack.c.h.b16 %v8937
      %v9083 = vunpack.c.l.b16 %v8938
      %v9084 = vunpack.c.h.b16 %v8938
      %v9085 = vunpack.c.l.b16 %v8939
      %v9086 = vunpack.c.h.b16 %v8939
      %v9087 = vunpack.c.l.b16 %v8940
      %v9088 = vunpack.c.h.b16 %v8940
      %v9089 = vunpack.c.l.b16 %v8941
      %v9090 = vunpack.c.h.b16 %v8941
      %v9091 = vunpack.c.l.b16 %v8942
      %v9092 = vunpack.c.h.b16 %v8942
      %v9093 = vunpack.c.l.b16 %v8943
      %v9094 = vunpack.c.h.b16 %v8943
      %v9095 = vunpack.c.l.b16 %v8944
      %v9096 = vunpack.c.h.b16 %v8944
      %v9097 = vunpack.c.l.b16 %v8945
      %v9098 = vunpack.c.h.b16 %v8945
      %v9099 = vunpack.c.l.b16 %v8946
      %v9100 = vunpack.c.h.b16 %v8946
      %v9101 = vunpack.c.l.b16 %v8947
      %v9102 = vunpack.c.h.b16 %v8947
      %v9103 = vunpack.c.l.b16 %v8948
      %v9104 = vunpack.c.h.b16 %v8948
      %v9105 = vunpack.c.l.b16 %v8949
      %v9106 = vunpack.c.h.b16 %v8949
      %v9107 = vunpack.c.l.b16 %v8950
      %v9108 = vunpack.c.h.b16 %v8950
      %v9109 = vunpack.c.l.b16 %v8951
      %v9110 = vunpack.c.h.b16 %v8951
      %v9111 = vunpack.c.l.b16 %v8952
      %v9112 = vunpack.c.h.b16 %v8952
      %v9113 = vunpack.c.l.b16 %v8953
      %v9114 = vunpack.c.h.b16 %v8953
      %v9115 = vunpack.c.l.b16 %v8954
      %v9116 = vunpack.c.h.b16 %v8954
      %v9117 = vunpack.c.l.b16 %v8955
      %v9118 = vunpack.c.h.b16 %v8955
      %v9119 = vunpack.c.l.b16 %v8956
      %v9120 = vunpack.c.h.b16 %v8956
      %v9121 = vunpack.c.l.b16 %v8957
      %v9122 = vunpack.c.h.b16 %v8957
      %v9123 = vunpack.c.l.b16 %v8958
      %v9124 = vunpack.c.h.b16 %v8958
      %v9125 = vunpack.c.l.b16 %v8959
      %v9126 = vunpack.c.h.b16 %v8959
      %v9127 = vunpack.c.l.b16 %v8960
      %v9128 = vunpack.c.h.b16 %v8960
      %v9129 = vunpack.c.l.b16 %v8961
      %v9130 = vunpack.c.h.b16 %v8961
      %v9131 = vunpack.c.l.b16 %v8962
      %v9132 = vunpack.c.h.b16 %v8962
      %v9133 = vunpack.c.l.b16 %v8963
      %v9134 = vunpack.c.h.b16 %v8963
      %v9135 = vunpack.c.l.b16 %v8964
      %v9136 = vunpack.c.h.b16 %v8964
      %v9137 = vunpack.c.l.b16 %v8965
      %v9138 = vunpack.c.h.b16 %v8965
      %v9139 = vunpack.c.l.b16 %v8966
      %v9140 = vunpack.c.h.b16 %v8966
      %v9141 = vunpack.c.l.b16 %v8967
      %v9142 = vunpack.c.h.b16 %v8967
      %v9143 = vunpack.c.l.b16 %v8968
      %v9144 = vunpack.c.h.b16 %v8968
      %v9145 = vunpack.c.l.b16 %v8969
      %v9146 = vunpack.c.h.b16 %v8969
      %v9147 = vunpack.c.l.b16 %v8970
      %v9148 = vunpack.c.h.b16 %v8970
      %v9149 = vunpack.c.l.b16 %v8971
      %v9150 = vunpack.c.h.b16 %v8971
      %v9151 = vunpack.c.l.b16 %v8972
      %v9152 = vunpack.c.h.b16 %v8972
      %v9153 = vunpack.c.l.b16 %v8973
      %v9154 = vunpack.c.h.b16 %v8973
      %v9155 = vunpack.c.l.b16 %v8974
      %v9156 = vunpack.c.h.b16 %v8974
      %v9157 = vunpack.c.l.b16 %v8975
      %v9158 = vunpack.c.h.b16 %v8975
      %v9159 = vunpack.c.l.b16 %v8976
      %v9160 = vunpack.c.h.b16 %v8976
      %v9161 = vunpack.c.l.b16 %v8977
      %v9162 = vunpack.c.h.b16 %v8977
      %v9163 = vunpack.c.l.b16 %v8978
      %v9164 = vunpack.c.h.b16 %v8978
      %v9165 = vunpack.c.l.b16 %v8979
      %v9166 = vunpack.c.h.b16 %v8979
      %v9167 = vunpack.c.l.b16 %v8980
      %v9168 = vunpack.c.h.b16 %v8980
      %v9169 = vunpack.c.l.b16 %v8981
      %v9170 = vunpack.c.h.b16 %v8981
      %v9171 = vunpack.c.l.b16 %v8982
      %v9172 = vunpack.c.h.b16 %v8982
      %v9173 = vunpack.c.l.b16 %v8983
      %v9174 = vunpack.c.h.b16 %v8983
      %v9175 = vunpack.c.l.b16 %v8984
      %v9176 = vunpack.c.h.b16 %v8984
      %v9177 = vunpack.c.l.b16 %v8985
      %v9178 = vunpack.c.h.b16 %v8985
      %v9179 = vunpack.c.l.b16 %v8986
      %v9180 = vunpack.c.h.b16 %v8986
      %v9181 = vunpack.c.l.b16 %v8987
      %v9182 = vunpack.c.h.b16 %v8987
      %v9183 = vunpack.c.l.b16 %v8988
      %v9184 = vunpack.c.h.b16 %v8988
      %v9185 = vunpack.c.l.b16 %v8989
      %v9186 = vunpack.c.h.b16 %v8989
      %v9187 = vunpack.c.l.b16 %v8990
      %v9188 = vunpack.c.h.b16 %v8990
      %v9189 = vunpack.c.l.b16 %v8991
      %v9190 = vunpack.c.h.b16 %v8991
      %v9191 = vunpack.c.l.b16 %v8992
      %v9192 = vunpack.c.h.b16 %v8992
      %v9193 = vunpack.c.l.b16 %v8993
      %v9194 = vunpack.c.h.b16 %v8993
      %v9195 = vpack.c.b16 %v9069, %v9067
      %v9196 = vpack.c.b16 %v9070, %v9068
      %v9197 = vpack.c.b16 %v9073, %v9071
      %v9198 = vpack.c.b16 %v9074, %v9072
      %v9199 = vpack.c.b16 %v9077, %v9075
      %v9200 = vpack.c.b16 %v9078, %v9076
      %v9201 = vpack.c.b16 %v9081, %v9079
      %v9202 = vpack.c.b16 %v9082, %v9080
      %v9203 = vpack.c.b16 %v9085, %v9083
      %v9204 = vpack.c.b16 %v9086, %v9084
      %v9205 = vpack.c.b16 %v9089, %v9087
      %v9206 = vpack.c.b16 %v9090, %v9088
      %v9207 = vpack.c.b16 %v9093, %v9091
      %v9208 = vpack.c.b16 %v9094, %v9092
      %v9209 = vpack.c.b16 %v9097, %v9095
      %v9210 = vpack.c.b16 %v9098, %v9096
      %v9211 = vpack.c.b16 %v9101, %v9099
      %v9212 = vpack.c.b16 %v9102, %v9100
      %v9213 = vpack.c.b16 %v9105, %v9103
      %v9214 = vpack.c.b16 %v9106, %v9104
      %v9215 = vpack.c.b16 %v9109, %v9107
      %v9216 = vpack.c.b16 %v9110, %v9108
      %v9217 = vpack.c.b16 %v9113, %v9111
      %v9218 = vpack.c.b16 %v9114, %v9112
      %v9219 = vpack.c.b16 %v9117, %v9115
      %v9220 = vpack.c.b16 %v9118, %v9116
      %v9221 = vpack.c.b16 %v9121, %v9119
      %v9222 = vpack.c.b16 %v9122, %v9120
      %v9223 = vpack.c.b16 %v9125, %v9123
      %v9224 = vpack.c.b16 %v9126, %v9124
      %v9225 = vpack.c.b16 %v9129, %v9127
      %v9226 = vpack.c.b16 %v9130, %v9128
      %v9227 = vpack.c.b16 %v9133, %v9131
      %v9228 = vpack.c.b16 %v9134, %v9132
      %v9229 = vpack.c.b16 %v9137, %v9135
      %v9230 = vpack.c.b16 %v9138, %v9136
      %v9231 = vpack.c.b16 %v9141, %v9139
      %v9232 = vpack.c.b16 %v9142, %v9140
      %v9233 = vpack.c.b16 %v9145, %v9143
      %v9234 = vpack.c.b16 %v9146, %v9144
      %v9235 = vpack.c.b16 %v9149, %v9147
      %v9236 = vpack.c.b16 %v9150, %v9148
      %v9237 = vpack.c.b16 %v9153, %v9151
      %v9238 = vpack.c.b16 %v9154, %v9152
      %v9239 = vpack.c.b16 %v9157, %v9155
      %v9240 = vpack.c.b16 %v9158, %v9156
      %v9241 = vpack.c.b16 %v9161, %v9159
      %v9242 = vpack.c.b16 %v9162, %v9160
      %v9243 = vpack.c.b16 %v9165, %v9163
      %v9244 = vpack.c.b16 %v9166, %v9164
      %v9245 = vpack.c.b16 %v9169, %v9167
      %v9246 = vpack.c.b16 %v9170, %v9168
      %v9247 = vpack.c.b16 %v9173, %v9171
      %v9248 = vpack.c.b16 %v9174, %v9172
      %v9249 = vpack.c.b16 %v9177, %v9175
      %v9250 = vpack.c.b16 %v9178, %v9176
      %v9251 = vpack.c.b16 %v9181, %v9179
      %v9252 = vpack.c.b16 %v9182, %v9180
      %v9253 = vpack.c.b16 %v9185, %v9183
      %v9254 = vpack.c.b16 %v9186, %v9184
      %v9255 = vpack.c.b16 %v9189, %v9187
      %v9256 = vpack.c.b16 %v9190, %v9188
      %v9257 = vpack.c.b16 %v9193, %v9191
      %v9258 = vpack.c.b16 %v9194, %v9192
      %9323 = vmatprep.subr.bf16.mxu0 %v9210
      %9324 = vmatpush1.bf16.msra.mxu0 %v9209
      %9325 = vmatprep.subr.bf16.mxu0 %v9208
      %9326 = vmatpush1.bf16.msra.mxu0 %v9207
      %9327 = vmatprep.subr.bf16.mxu0 %v9206
      %9328 = vmatpush1.bf16.msra.mxu0 %v9205
      %9329 = vmatprep.subr.bf16.mxu0 %v9204
      %9330 = vmatpush1.bf16.msra.mxu0 %v9203
      %9331 = vmatprep.subr.bf16.mxu0 %v9202
      %9332 = vmatpush1.bf16.msra.mxu0 %v9201
      %9333 = vmatprep.subr.bf16.mxu0 %v9200
      %9334 = vmatpush1.bf16.msra.mxu0 %v9199
      %9335 = vmatprep.subr.bf16.mxu0 %v9198
      %9336 = vmatpush1.bf16.msra.mxu0 %v9197
      %9337 = vmatprep.subr.bf16.mxu0 %v9196
      %9338 = vmatpush1.bf16.msra.mxu0 %v9195
      %9339 = vmatprep.subr.bf16.mxu0 %v9226
      %9340 = vmatpush2.bf16.msra.mxu0 %v9225
      %9341 = vmatprep.subr.bf16.mxu0 %v9224
      %9342 = vmatpush2.bf16.msra.mxu0 %v9223
      %9343 = vmatprep.subr.bf16.mxu0 %v9222
      %9344 = vmatpush2.bf16.msra.mxu0 %v9221
      %9345 = vmatprep.subr.bf16.mxu0 %v9220
      %9346 = vmatpush2.bf16.msra.mxu0 %v9219
      %9347 = vmatprep.subr.bf16.mxu0 %v9218
      %9348 = vmatpush2.bf16.msra.mxu0 %v9217
      %9349 = vmatprep.subr.bf16.mxu0 %v9216
      %9350 = vmatpush2.bf16.msra.mxu0 %v9215
      %9351 = vmatprep.subr.bf16.mxu0 %v9214
      %9352 = vmatpush2.bf16.msra.mxu0 %v9213
      %9353 = vmatprep.subr.bf16.mxu0 %v9212
      %9354 = vmatpush2.bf16.msra.mxu0 %v9211
      %9355 = vmatprep.mubr.bf16.mxu0 %v9000
      %9356 = vmatmul.mubr.bf16.gmra.mxu0 %v8999
      %v9357 = vpop.f32.mrf.mxu0
      %v9358 = vadd.f32 %v8995, %v9357
      %v9359 = vpop.f32.mrf.mxu0
      %v9360 = vadd.f32 %v8996, %v9359
      %v9361 = vpop.f32.mrf.mxu0
      %v9362 = vpop.f32.mrf.mxu0
      %9363 = vdwg.mxu0
      %9364 = vmatprep.subr.bf16.mxu0 %v9242
      %9365 = vmatpush1.bf16.msra.mxu0 %v9241
      %9366 = vmatprep.subr.bf16.mxu0 %v9240
      %9367 = vmatpush1.bf16.msra.mxu0 %v9239
      %9368 = vmatprep.subr.bf16.mxu0 %v9238
      %9369 = vmatpush1.bf16.msra.mxu0 %v9237
      %9370 = vmatprep.subr.bf16.mxu0 %v9236
      %9371 = vmatpush1.bf16.msra.mxu0 %v9235
      %9372 = vmatprep.subr.bf16.mxu0 %v9234
      %9373 = vmatpush1.bf16.msra.mxu0 %v9233
      %9374 = vmatprep.subr.bf16.mxu0 %v9232
      %9375 = vmatpush1.bf16.msra.mxu0 %v9231
      %9376 = vmatprep.subr.bf16.mxu0 %v9230
      %9377 = vmatpush1.bf16.msra.mxu0 %v9229
      %9378 = vmatprep.subr.bf16.mxu0 %v9228
      %9379 = vmatpush1.bf16.msra.mxu0 %v9227
      %9380 = vmatprep.subr.bf16.mxu0 %v9258
      %9381 = vmatpush2.bf16.msra.mxu0 %v9257
      %9382 = vmatprep.subr.bf16.mxu0 %v9256
      %9383 = vmatpush2.bf16.msra.mxu0 %v9255
      %9384 = vmatprep.subr.bf16.mxu0 %v9254
      %9385 = vmatpush2.bf16.msra.mxu0 %v9253
      %9386 = vmatprep.subr.bf16.mxu0 %v9252
      %9387 = vmatpush2.bf16.msra.mxu0 %v9251
      %9388 = vmatprep.subr.bf16.mxu0 %v9250
      %9389 = vmatpush2.bf16.msra.mxu0 %v9249
      %9390 = vmatprep.subr.bf16.mxu0 %v9248
      %9391 = vmatpush2.bf16.msra.mxu0 %v9247
      %9392 = vmatprep.subr.bf16.mxu0 %v9246
      %9393 = vmatpush2.bf16.msra.mxu0 %v9245
      %9394 = vmatprep.subr.bf16.mxu0 %v9244
      %9395 = vmatpush2.bf16.msra.mxu0 %v9243
      %9396 = vmatprep.mubr.bf16.mxu0 %v9002
      %9397 = vmatmul.mubr.bf16.gmra.mxu0 %v9001
      %v9398 = vpop.f32.mrf.mxu0
      %v9399 = vadd.f32 %v9358, %v9398
      %v9400 = vpop.f32.mrf.mxu0
      %v9401 = vadd.f32 %v9360, %v9400
      %v9402 = vpop.f32.mrf.mxu0
      %v9403 = vpop.f32.mrf.mxu0
      %9404 = vdwg.mxu0
      %vm9405 = vcmp.gt.f32.partialorder %v9399, 0.0
      %vm9406 = vcmp.gt.f32.partialorder %v9401, 0.0
      %9408 = vset.pattern.permute.xlu0 0
      %9409 = vperm.xlu0 %9408, %v8998
      %v9410 = vpop.permute.xlu0 %9409
      %v9411 = vrot.slane %v9410, 1
      %v9413 = vmul.f32 %v9399, %v9411
      %v9414 = vmul.f32 %v9401, %v9411
      %v9415 = vsel %vm9405, %v9399, %v9413
      %v9416 = vsel %vm9406, %v9401, %v9414
      %v9417 = vld [vmem:[%s3 + $0x101] sm:$0xff]
      %v9418 = vld [vmem:[%s3 + $0x109] sm:$0xff]
      %v9419 = vld [vmem:[%s3 + $0x111] sm:$0xff]
      %v9420 = vld [vmem:[%s3 + $0x119] sm:$0xff]
      %v9421 = vld [vmem:[%s3 + $0x121] sm:$0xff]
      %v9422 = vld [vmem:[%s3 + $0x129] sm:$0xff]
      %v9423 = vld [vmem:[%s3 + $0x131] sm:$0xff]
      %v9424 = vld [vmem:[%s3 + $0x139] sm:$0xff]
      %v9425 = vld [vmem:[%s3 + $0x141] sm:$0xff]
      %v9426 = vld [vmem:[%s3 + $0x149] sm:$0xff]
      %v9427 = vld [vmem:[%s3 + $0x151] sm:$0xff]
      %v9428 = vld [vmem:[%s3 + $0x159] sm:$0xff]
      %v9429 = vld [vmem:[%s3 + $0x161] sm:$0xff]
      %v9430 = vld [vmem:[%s3 + $0x169] sm:$0xff]
      %v9431 = vld [vmem:[%s3 + $0x171] sm:$0xff]
      %v9432 = vld [vmem:[%s3 + $0x179] sm:$0xff]
      %v9433 = vld [vmem:[%s3 + $0x181] sm:$0xff]
      %v9434 = vld [vmem:[%s3 + $0x189] sm:$0xff]
      %v9435 = vld [vmem:[%s3 + $0x191] sm:$0xff]
      %v9436 = vld [vmem:[%s3 + $0x199] sm:$0xff]
      %v9437 = vld [vmem:[%s3 + $0x1a1] sm:$0xff]
      %v9438 = vld [vmem:[%s3 + $0x1a9] sm:$0xff]
      %v9439 = vld [vmem:[%s3 + $0x1b1] sm:$0xff]
      %v9440 = vld [vmem:[%s3 + $0x1b9] sm:$0xff]
      %v9441 = vld [vmem:[%s3 + $0x1c1] sm:$0xff]
      %v9442 = vld [vmem:[%s3 + $0x1c9] sm:$0xff]
      %v9443 = vld [vmem:[%s3 + $0x1d1] sm:$0xff]
      %v9444 = vld [vmem:[%s3 + $0x1d9] sm:$0xff]
      %v9445 = vld [vmem:[%s3 + $0x1e1] sm:$0xff]
      %v9446 = vld [vmem:[%s3 + $0x1e9] sm:$0xff]
      %v9447 = vld [vmem:[%s3 + $0x1f1] sm:$0xff]
      %v9448 = vld [vmem:[%s3 + $0x1f9] sm:$0xff]
      %v9449 = vld [vmem:[%s3 + $0x201] sm:$0x1]
      %9450 = vmatprep.subr.mxu0 0.0
      %9451 = vmatpush1.msra.mxu0 %v9432
      %9452 = vmatprep.subr.mxu0 0.0
      %9453 = vmatpush1.msra.mxu0 %v9431
      %9454 = vmatprep.subr.mxu0 0.0
      %9455 = vmatpush1.msra.mxu0 %v9430
      %9456 = vmatprep.subr.mxu0 0.0
      %9457 = vmatpush1.msra.mxu0 %v9429
      %9458 = vmatprep.subr.mxu0 0.0
      %9459 = vmatpush1.msra.mxu0 %v9428
      %9460 = vmatprep.subr.mxu0 0.0
      %9461 = vmatpush1.msra.mxu0 %v9427
      %9462 = vmatprep.subr.mxu0 0.0
      %9463 = vmatpush1.msra.mxu0 %v9426
      %9464 = vmatprep.subr.mxu0 0.0
      %9465 = vmatpush1.msra.mxu0 %v9425
      %9466 = vmatprep.subr.mxu0 0.0
      %9467 = vmatpush1.msra.mxu0 %v9424
      %9468 = vmatprep.subr.mxu0 0.0
      %9469 = vmatpush1.msra.mxu0 %v9423
      %9470 = vmatprep.subr.mxu0 0.0
      %9471 = vmatpush1.msra.mxu0 %v9422
      %9472 = vmatprep.subr.mxu0 0.0
      %9473 = vmatpush1.msra.mxu0 %v9421
      %9474 = vmatprep.subr.mxu0 0.0
      %9475 = vmatpush1.msra.mxu0 %v9420
      %9476 = vmatprep.subr.mxu0 0.0
      %9477 = vmatpush1.msra.mxu0 %v9419
      %9478 = vmatprep.subr.mxu0 0.0
      %9479 = vmatpush1.msra.mxu0 %v9418
      %9480 = vmatprep.subr.mxu0 0.0
      %9481 = vmatpush1.msra.mxu0 %v9417
      %9482 = vmatprep.subr.mxu0 0.0
      %9483 = vmatpush2.msra.mxu0 %v9448
      %9484 = vmatprep.subr.mxu0 0.0
      %9485 = vmatpush2.msra.mxu0 %v9447
      %9486 = vmatprep.subr.mxu0 0.0
      %9487 = vmatpush2.msra.mxu0 %v9446
      %9488 = vmatprep.subr.mxu0 0.0
      %9489 = vmatpush2.msra.mxu0 %v9445
      %9490 = vmatprep.subr.mxu0 0.0
      %9491 = vmatpush2.msra.mxu0 %v9444
      %9492 = vmatprep.subr.mxu0 0.0
      %9493 = vmatpush2.msra.mxu0 %v9443
      %9494 = vmatprep.subr.mxu0 0.0
      %9495 = vmatpush2.msra.mxu0 %v9442
      %9496 = vmatprep.subr.mxu0 0.0
      %9497 = vmatpush2.msra.mxu0 %v9441
      %9498 = vmatprep.subr.mxu0 0.0
      %9499 = vmatpush2.msra.mxu0 %v9440
      %9500 = vmatprep.subr.mxu0 0.0
      %9501 = vmatpush2.msra.mxu0 %v9439
      %9502 = vmatprep.subr.mxu0 0.0
      %9503 = vmatpush2.msra.mxu0 %v9438
      %9504 = vmatprep.subr.mxu0 0.0
      %9505 = vmatpush2.msra.mxu0 %v9437
      %9506 = vmatprep.subr.mxu0 0.0
      %9507 = vmatpush2.msra.mxu0 %v9436
      %9508 = vmatprep.subr.mxu0 0.0
      %9509 = vmatpush2.msra.mxu0 %v9435
      %9510 = vmatprep.subr.mxu0 0.0
      %9511 = vmatpush2.msra.mxu0 %v9434
      %9512 = vmatprep.subr.mxu0 0.0
      %9513 = vmatpush2.msra.mxu0 %v9433
      %9514 = vmatprep.mubr.f32.mxu0 %v9416
      %9515 = vmatmul.mubr.f32.gmra.mxu0 %v9415
      %v9516 = vpop.f32.mrf.mxu0
      %v9517 = vadd.f32 %v9449, %v9516
      %v9518 = vpop.f32.mrf.mxu0
      %9519 = vdwg.mxu0
      %v9520 = vlaneseq
      %v9521 = vand.u32 %v9520, 127
      %vm9522 = vcmp.eq.s32.totalorder %v9521, 0
      %v9523 = vsub.f32 0.0, %v9517
      %v9524 = vmul.f32 %v9523, 1.442695
      %v9525 = vpow.pop %v9524
      %v9526 = vadd.f32 %v9525, 1.0
      %v9527 = vrcp.pop %v9526
      %v9528 = vmul.f32 1.0, %v9527
      %v9529 = vsel %vm9522, %v9528, %v9517
      %vm9530 = vcmask 114688
      %9531 = vst.msk [vmem:[%s222] sm:$0x1] %vm9530, %v9529
      %p9532 = scmp.lt.s32.totalorder %s16, 1
      %s9533 = scalar_select %p9532, %s16, 1
      %s9534 = scalar_lea.vmem %s5, %s9533
      // Predicated region
      $region41: #{_lambda_.1} parent=39 // pred_check
        %p9535 = pneg %p144
      $region42: #{_lambda_.1} parent=39 // pred_check_branch
        %9537 = sbr.rel (%p9535) target = $region44
      $region43: #{_lambda_.1} parent=39 // pred_region
        _
      $region44: #{_lambda_.1} parent=39 // pred_fallthru
        _
    $region40: #{_lambda_.1} parent=5 // pred_fallthru
      _
    %p9538 = scmp.le.s32.totalorder 2, %s11
    // Predicated region
    $region45: #{_lambda_.1} parent=5 // pred_check
      %p9539 = pneg %p9538
    $region46: #{_lambda_.1} parent=5 // pred_check_branch
      %9541 = sbr.rel (%p9539) target = $region48
    $region47: #{_lambda_.1} parent=5 // pred_region
      %s9542 = ssub.s32 %s11, 2
      // Predicated region
      $region49: #{_lambda_.1} parent=47 // pred_check
        %p9543 = pneg %p150
      $region50: #{_lambda_.1} parent=47 // pred_check_branch
        %9545 = sbr.rel (%p9543) target = $region52
      $region51: #{_lambda_.1} parent=47 // pred_region
        %p9546 = scmp.lt.s32.totalorder %s17, 1
        %s9547 = scalar_select %p9546, %s17, 1
        %s9548 = scalar_lea.vmem %s5, %s9547
      $region52: #{_lambda_.1} parent=47 // pred_fallthru
        _
    $region48: #{_lambda_.1} parent=5 // pred_fallthru
      _
  $region6: #{_lambda_.1} parent=0 // loop_footer
    %s15 = sadd.s32 1, %s11
  $region7: #{_lambda_.1} parent=0 // loop_footer_branch
    %10 = sbr.rel target = $region3
  $region8: #{_lambda_.1} parent=0 // loop_exit
    _

</llo_original>
